<compile_context>
chip_gen: v7x
topology: tpu7x:2x2x1
jax: 0.10.0
libtpu: 0.0.40
codegen_flags: <defaults>
</compile_context>

<pallas_src>
import functools
import math

import jax
import jax.numpy as jnp
from jax import lax
from jax.experimental import pallas as pl
from jax.experimental.pallas import tpu as pltpu


def _cdiv(a, b):
    return -(-a // b)


def _round_up(x, m):
    return _cdiv(x, m) * m


def _compiler_params():
    # 32 MiB scoped VMEM is safe on every generation (v7x has only 64 MiB
    # physical); tiles below are sized to stay well under it.
    return pltpu.CompilerParams(
        dimension_semantics=("parallel",),
        vmem_limit_bytes=32 * 1024 * 1024,
    )


def _pick_lane_tile(m, unit, target=2048):
    """Lane tile: multiple of `unit`, <= ~target, >= 2 grid steps if possible."""
    t = max(unit, (target // unit) * unit)
    t = min(t, _round_up(m, unit))               # never pad by more than a step
    if m > unit:                                 # let ("parallel",) split work
        t = min(t, _round_up(_cdiv(m, 2), unit))
    return t


# --------------------------------------------------------------------------
# Pallas kernels
# --------------------------------------------------------------------------
def _conv_pool_kernel(x_ref, w_ref, b_ref, o_ref, *, Ho, Wo):
    """Fused 3x3 conv (pad=1) + bias + tanh + 2x2 maxpool, candidate-planar.

    x_ref: (4, Cin, TM)   space-to-depth-by-2 input: plane c = 2*ph + pw holds
                          input pixel (2*ho+ph, 2*wo+pw); lane m = (b*Ho+ho)*Wo+wo
    w_ref: (3, 3, Cout, Cin)   conv weights, tap-major
    b_ref: (Cout, 1)
    o_ref: (Cout, TM)     pooled tanh activations in the same flat-m layout
    """
    cout, tm = o_ref.shape
    log2_wo = Wo.bit_length() - 1

    # Global flat index of every lane -> (ho, wo) for image-boundary masks.
    g = pl.program_id(0) * tm + lax.broadcasted_iota(jnp.int32, (1, tm), 1)
    wo = g & (Wo - 1)
    ho = (g >> log2_wo) & (Ho - 1)
    mask_h = {-1: ho > 0, 0: None, 1: ho < Ho - 1}
    mask_w = {-1: wo > 0, 0: None, 1: wo < Wo - 1}

    pooled = None
    for oh in range(2):            # output position inside the 2x2 pool window
        for ow in range(2):
            acc = jnp.zeros((cout, tm), jnp.float32)
            for dh in range(3):    # 3x3 conv taps
                for dw in range(3):
                    th, tw = oh + dh - 1, ow + dw - 1
                    c_in = 2 * (th & 1) + (tw & 1)    # source candidate plane
                    sh, sw = th >> 1, tw >> 1         # half-res shift in {-1,0,1}
                    x = x_ref[c_in]                   # (Cin, TM)
                    shift = sh * Wo + sw
                    if shift != 0:
                        # want x[:, m + shift]; pltpu.roll follows np.roll.
                        x = pltpu.roll(x, (-shift) % tm, axis=1)
                    msk = mask_h[sh]
                    if mask_w[sw] is not None:
                        msk = (mask_w[sw] if msk is None
                               else jnp.logical_and(msk, mask_w[sw]))
                    if msk is not None:
                        x = jnp.where(msk, x, 0.0)
                    acc = acc + jnp.dot(w_ref[dh, dw], x,
                                        preferred_element_type=jnp.float32)
            pooled = acc if pooled is None else jnp.maximum(pooled, acc)

    # Bias + tanh hoisted out of the candidate loop (tanh is monotone).
    o_ref[...] = jnp.tanh(pooled + b_ref[...]).astype(o_ref.dtype)


def _fc_head_kernel(x_ref, w1_ref, b1_ref, w2_ref, b2_ref, o_ref):
    """out = W2 @ tanh(W1 @ x + b1) + b2, transposed so the batch sits on lanes."""
    h = jnp.tanh(jnp.dot(w1_ref[...], x_ref[...],
                         preferred_element_type=jnp.float32) + b1_ref[...])
    o_ref[...] = (jnp.dot(w2_ref[...], h, preferred_element_type=jnp.float32)
                  + b2_ref[...]).astype(o_ref.dtype)


# --------------------------------------------------------------------------
# Layer wrappers
# --------------------------------------------------------------------------
def conv3x3_tanh_pool(x4, w, b, *, Ho, Wo):
    """tanh(conv3x3(x) + b) followed by 2x2 maxpool, one fused pallas_call.

    x4: (4, Cin, M) candidate-planar input, M = B*Ho*Wo (pooled grid)
    w : (3, 3, Cout, Cin);  b: (Cout, 1)
    returns (Cout, M) pooled activations in the same flat layout.
    """
    assert Ho & (Ho - 1) == 0 and Wo & (Wo - 1) == 0, "pooled grid must be pow2"
    _, cin, M = x4.shape
    cout = w.shape[2]
    img = Ho * Wo
    unit = (img * 128) // math.gcd(img, 128)   # tile boundaries = image bounds
    tm = _pick_lane_tile(M, unit)
    mp = _round_up(M, tm)
    if mp != M:
        x4 = jnp.pad(x4, ((0, 0), (0, 0), (0, mp - M)))

    out = pl.pallas_call(
        functools.partial(_conv_pool_kernel, Ho=Ho, Wo=Wo),
        out_shape=jax.ShapeDtypeStruct((cout, mp), jnp.float32),
        grid=(mp // tm,),
        in_specs=[
            pl.BlockSpec((4, cin, tm), lambda i: (0, 0, i)),
            pl.BlockSpec((3, 3, cout, cin), lambda i: (0, 0, 0, 0)),
            pl.BlockSpec((cout, 1), lambda i: (0, 0)),
        ],
        out_specs=pl.BlockSpec((cout, tm), lambda i: (0, i)),
        compiler_params=_compiler_params(),
    )(x4, w, b)
    return out[:, :M]


def fc_head(x_t, w1, b1, w2, b2):
    """(W2 @ tanh(W1 @ x_t + b1) + b2)^T for feature-major x_t (F, B) -> (B, 2)."""
    feat, batch = x_t.shape
    h1 = w1.shape[0]
    n = w2.shape[0]
    tb = min(_round_up(batch, 128), 512)
    bp = _round_up(batch, tb)
    if bp != batch:
        x_t = jnp.pad(x_t, ((0, 0), (0, bp - batch)))

    out = pl.pallas_call(
        _fc_head_kernel,
        out_shape=jax.ShapeDtypeStruct((n, bp), jnp.float32),
        grid=(bp // tb,),
        in_specs=[
            pl.BlockSpec((feat, tb), lambda i: (0, i)),
            pl.BlockSpec((h1, feat), lambda i: (0, 0)),
            pl.BlockSpec((h1, 1), lambda i: (0, 0)),
            pl.BlockSpec((n, h1), lambda i: (0, 0)),
            pl.BlockSpec((n, 1), lambda i: (0, 0)),
        ],
        out_specs=pl.BlockSpec((n, tb), lambda i: (0, i)),
        compiler_params=_compiler_params(),
    )(x_t, w1, b1, w2, b2)
    return out[:, :batch].T


# --------------------------------------------------------------------------
# Plain-JAX layout glue (small, pooled-resolution tensors only)
# --------------------------------------------------------------------------
def space_to_depth_cand(x_cbhw, cin_pad=None):
    """(C, B, H, W) -> (4, C', B*(H/2)*(W/2)): one plane per 2x2 sub-pixel."""
    C, B, H, W = x_cbhw.shape
    if cin_pad is not None and cin_pad > C:
        x_cbhw = jnp.pad(x_cbhw, ((0, cin_pad - C), (0, 0), (0, 0), (0, 0)))
        C = cin_pad
    x = x_cbhw.reshape(C, B, H // 2, 2, W // 2, 2)
    x = jnp.transpose(x, (3, 5, 0, 1, 2, 4))       # (ph, pw, C, B, Ho, Wo)
    return x.reshape(4, C, B * (H // 2) * (W // 2))


# --------------------------------------------------------------------------
# NetWidth forward (consumes pre-packed params)
# --------------------------------------------------------------------------
def net_width_forward(x_nchw, pp):
    B = x_nchw.shape[0]
    x = jnp.transpose(x_nchw, (1, 0, 2, 3))                       # (3, B, 32, 32)

    cin1 = pp["conv1_w"].shape[-1]
    x4 = space_to_depth_cand(x, cin1)                             # (4, 8, B*256)
    y1 = conv3x3_tanh_pool(x4, pp["conv1_w"], pp["conv1_b"],
                           Ho=16, Wo=16)                          # (32, B*256)

    x4 = space_to_depth_cand(y1.reshape(32, B, 16, 16))           # (4, 32, B*64)
    y2 = conv3x3_tanh_pool(x4, pp["conv2_w"], pp["conv2_b"],
                           Ho=8, Wo=8)                            # (16, B*64)

    # torch flatten order (c, h, w), feature-major for the lane-dense FC head
    x_t = jnp.transpose(y2.reshape(16, B, 64), (0, 2, 1)).reshape(16 * 64, B)
    return fc_head(x_t, pp["fc1_w"], pp["fc1_b"], pp["fc2_w"], pp["fc2_b"])


# --------------------------------------------------------------------------
# One-time weight packing (outside jit -> no per-call transposes)
# --------------------------------------------------------------------------
def prepare_params(p):
    def conv_pack(w_oihw, cin_pad):
        w = jnp.transpose(w_oihw, (2, 3, 0, 1)).astype(jnp.float32)  # (kh,kw,O,I)
        i = w.shape[-1]
        if cin_pad > i:
            w = jnp.pad(w, ((0, 0), (0, 0), (0, 0), (0, cin_pad - i)))
        return w

    return {
        "conv1_w": conv_pack(p["conv1_w"], 8),                  # (3, 3, 32, 8)
        "conv1_b": p["conv1_b"].reshape(-1, 1).astype(jnp.float32),
        "conv2_w": conv_pack(p["conv2_w"], 32),                 # (3, 3, 16, 32)
        "conv2_b": p["conv2_b"].reshape(-1, 1).astype(jnp.float32),
        "fc1_w": p["fc1_w"].astype(jnp.float32),                # (32, 1024), torch order
        "fc1_b": p["fc1_b"].reshape(-1, 1).astype(jnp.float32),
        "fc2_w": p["fc2_w"].astype(jnp.float32),                # (2, 32)
        "fc2_b": p["fc2_b"].reshape(-1, 1).astype(jnp.float32),
    }


# --------------------------------------------------------------------------
# Deterministic parameter init (torch-style uniform bounds, synthetic weights)
# --------------------------------------------------------------------------
def init_params(key):
    ks = jax.random.split(key, 8)

    def u(k, shape, fan_in):
        bound = 1.0 / (fan_in ** 0.5)
        return jax.random.uniform(k, shape, jnp.float32, -bound, bound)

    return {
        "conv1_w": u(ks[0], (32, 3, 3, 3), 3 * 3 * 3),
        "conv1_b": u(ks[1], (32,), 3 * 3 * 3),
        "conv2_w": u(ks[2], (16, 32, 3, 3), 32 * 3 * 3),
        "conv2_b": u(ks[3], (16,), 32 * 3 * 3),
        "fc1_w": u(ks[4], (32, 16 * 8 * 8), 16 * 8 * 8),
        "fc1_b": u(ks[5], (32,), 16 * 8 * 8),
        "fc2_w": u(ks[6], (2, 32), 32),
        "fc2_b": u(ks[7], (2,), 32),
    }


# --------------------------------------------------------------------------
# Pure-JAX reference for correctness check
# --------------------------------------------------------------------------
def ref_forward(x_nchw, p):
    dn = ("NCHW", "OIHW", "NCHW")
    y = lax.conv_general_dilated(x_nchw, p["conv1_w"], (1, 1),
                                 [(1, 1), (1, 1)], dimension_numbers=dn)
    y = jnp.tanh(y + p["conv1_b"][None, :, None, None])
    y = lax.reduce_window(y, -jnp.inf, lax.max, (1, 1, 2, 2), (1, 1, 2, 2), "VALID")
    y = lax.conv_general_dilated(y, p["conv2_w"], (1, 1),
                                 [(1, 1), (1, 1)], dimension_numbers=dn)
    y = jnp.tanh(y + p["conv2_b"][None, :, None, None])
    y = lax.reduce_window(y, -jnp.inf, lax.max, (1, 1, 2, 2), (1, 1, 2, 2), "VALID")
    y = y.reshape(y.shape[0], -1)
    y = jnp.tanh(y @ p["fc1_w"].T + p["fc1_b"])
    return y @ p["fc2_w"].T + p["fc2_b"]


if __name__ == "__main__":
    key = jax.random.PRNGKey(0)
    k_x, k_p = jax.random.split(key)

    # Spatial size must be 32 / 3 channels so the flatten matches fc1 (16*8*8).
    x = jax.random.normal(k_x, (2, 3, 32, 32), jnp.float32)
    raw_params = init_params(k_p)
    packed = prepare_params(raw_params)          # one-time packing, outside jit

    fwd = jax.jit(net_width_forward)
    out = jax.block_until_ready(fwd(x, packed))

    ref = jax.block_until_ready(ref_forward(x, raw_params))
    assert out.shape == (2, 2), out.shape
    assert jnp.allclose(out, ref, atol=2e-4, rtol=2e-4), (out, ref)

    print("KERNEL_OK")
</pallas_src>

<mosaic_0001>
module attributes {stable_mosaic.version = 11 : i64} {
  func.func @_conv_pool_kernel(%arg0: i32, %arg1: memref<4x8x256xf32, #tpu.memory_space<vmem>>, %arg2: memref<3x3x32x8xf32, #tpu.memory_space<vmem>>, %arg3: memref<32x1xf32, #tpu.memory_space<vmem>>, %arg4: memref<32x256xf32, #tpu.memory_space<vmem>>) attributes {dimension_semantics = [#tpu.dimension_semantics<parallel>], iteration_bounds = array<i64: 2>, scalar_prefetch = 0 : i64, scratch_operands = 0 : i64, tpu.core_type = #tpu.core_type<tc>, window_params = [{transform_indices = @transform_0, window_bounds = array<i64: 4, 8, 256>}, {pipeline_mode = #tpu.pipeline_mode<synchronous>, transform_indices = @transform_1, window_bounds = array<i64: 3, 3, 32, 8>}, {pipeline_mode = #tpu.pipeline_mode<synchronous>, transform_indices = @transform_2, window_bounds = array<i64: 32, 1>}, {transform_indices = @transform_3, window_bounds = array<i64: 32, 256>}]} {
    %c256_i32 = arith.constant 256 : i32
    %0 = arith.muli %arg0, %c256_i32 : i32
    %1 = tpu.iota {dimensions = array<i32: 1>} : vector<1x256xi32>
    %2 = vector.broadcast %0 : i32 to vector<1x256xi32>
    %3 = arith.addi %2, %1 : vector<1x256xi32>
    %c15_i32 = arith.constant 15 : i32
    %4 = vector.broadcast %c15_i32 : i32 to vector<1x256xi32>
    %5 = arith.andi %3, %4 : vector<1x256xi32>
    %c4_i32 = arith.constant 4 : i32
    %6 = vector.broadcast %c4_i32 : i32 to vector<1x256xi32>
    %7 = arith.shrsi %3, %6 : vector<1x256xi32>
    %c15_i32_0 = arith.constant 15 : i32
    %8 = vector.broadcast %c15_i32_0 : i32 to vector<1x256xi32>
    %9 = arith.andi %7, %8 : vector<1x256xi32>
    %c0_i32 = arith.constant 0 : i32
    %10 = vector.broadcast %c0_i32 : i32 to vector<1x256xi32>
    %11 = arith.cmpi sgt, %9, %10 : vector<1x256xi32>
    %c15_i32_1 = arith.constant 15 : i32
    %12 = vector.broadcast %c15_i32_1 : i32 to vector<1x256xi32>
    %13 = arith.cmpi slt, %9, %12 : vector<1x256xi32>
    %c0_i32_2 = arith.constant 0 : i32
    %14 = vector.broadcast %c0_i32_2 : i32 to vector<1x256xi32>
    %15 = arith.cmpi sgt, %5, %14 : vector<1x256xi32>
    %c15_i32_3 = arith.constant 15 : i32
    %16 = vector.broadcast %c15_i32_3 : i32 to vector<1x256xi32>
    %17 = arith.cmpi slt, %5, %16 : vector<1x256xi32>
    %cst = arith.constant 0.000000e+00 : f32
    %18 = vector.broadcast %cst : f32 to vector<32x256xf32>
    %c3 = arith.constant 3 : index
    %c0 = arith.constant 0 : index
    %c0_4 = arith.constant 0 : index
    %19 = vector.load %arg1[%c3, %c0, %c0_4] : memref<4x8x256xf32, #tpu.memory_space<vmem>>, vector<1x8x256xf32>
    %20 = vector.shape_cast %19 : vector<1x8x256xf32> to vector<8x256xf32>
    %c17_i32 = arith.constant 17 : i32
    %21 = tpu.dynamic_rotate %20 by %c17_i32 dim 1 : vector<8x256xf32>, i32 -> vector<8x256xf32>
    %22 = arith.andi %11, %15 : vector<1x256xi1>
    %cst_5 = arith.constant 0.000000e+00 : f32
    %23 = vector.shape_cast %22 : vector<1x256xi1> to vector<1x256xi1>
    %24 = vector.broadcast %23 : vector<1x256xi1> to vector<8x256xi1>
    %25 = vector.broadcast %cst_5 : f32 to vector<8x256xf32>
    %26 = arith.select %24, %21, %25 : vector<8x256xi1>, vector<8x256xf32>
    %c0_6 = arith.constant 0 : index
    %c0_7 = arith.constant 0 : index
    %c0_8 = arith.constant 0 : index
    %c0_9 = arith.constant 0 : index
    %27 = vector.load %arg2[%c0_6, %c0_7, %c0_8, %c0_9] : memref<3x3x32x8xf32, #tpu.memory_space<vmem>>, vector<1x1x32x8xf32>
    %28 = vector.shape_cast %27 : vector<1x1x32x8xf32> to vector<32x8xf32>
    %cst_10 = arith.constant dense<0.000000e+00> : vector<32x256xf32>
    %29 = tpu.matmul %28, %26, %cst_10 {dimension_numbers = #tpu.dot_dimension_numbers<[1], [0], [0], [1], [0, 0, 1, 1], [], []>} : vector<32x8xf32>, vector<8x256xf32>, vector<32x256xf32> -> vector<32x256xf32>
    %30 = arith.addf %18, %29 : vector<32x256xf32>
    %c2 = arith.constant 2 : index
    %c0_11 = arith.constant 0 : index
    %c0_12 = arith.constant 0 : index
    %31 = vector.load %arg1[%c2, %c0_11, %c0_12] : memref<4x8x256xf32, #tpu.memory_space<vmem>>, vector<1x8x256xf32>
    %32 = vector.shape_cast %31 : vector<1x8x256xf32> to vector<8x256xf32>
    %c16_i32 = arith.constant 16 : i32
    %33 = tpu.dynamic_rotate %32 by %c16_i32 dim 1 : vector<8x256xf32>, i32 -> vector<8x256xf32>
    %cst_13 = arith.constant 0.000000e+00 : f32
    %34 = vector.shape_cast %11 : vector<1x256xi1> to vector<1x256xi1>
    %35 = vector.broadcast %34 : vector<1x256xi1> to vector<8x256xi1>
    %36 = vector.broadcast %cst_13 : f32 to vector<8x256xf32>
    %37 = arith.select %35, %33, %36 : vector<8x256xi1>, vector<8x256xf32>
    %c0_14 = arith.constant 0 : index
    %c1 = arith.constant 1 : index
    %c0_15 = arith.constant 0 : index
    %c0_16 = arith.constant 0 : index
    %38 = vector.load %arg2[%c0_14, %c1, %c0_15, %c0_16] : memref<3x3x32x8xf32, #tpu.memory_space<vmem>>, vector<1x1x32x8xf32>
    %39 = vector.shape_cast %38 : vector<1x1x32x8xf32> to vector<32x8xf32>
    %cst_17 = arith.constant dense<0.000000e+00> : vector<32x256xf32>
    %40 = tpu.matmul %39, %37, %cst_17 {dimension_numbers = #tpu.dot_dimension_numbers<[1], [0], [0], [1], [0, 0, 1, 1], [], []>} : vector<32x8xf32>, vector<8x256xf32>, vector<32x256xf32> -> vector<32x256xf32>
    %41 = arith.addf %30, %40 : vector<32x256xf32>
    %c3_18 = arith.constant 3 : index
    %c0_19 = arith.constant 0 : index
    %c0_20 = arith.constant 0 : index
    %42 = vector.load %arg1[%c3_18, %c0_19, %c0_20] : memref<4x8x256xf32, #tpu.memory_space<vmem>>, vector<1x8x256xf32>
    %43 = vector.shape_cast %42 : vector<1x8x256xf32> to vector<8x256xf32>
    %c16_i32_21 = arith.constant 16 : i32
    %44 = tpu.dynamic_rotate %43 by %c16_i32_21 dim 1 : vector<8x256xf32>, i32 -> vector<8x256xf32>
    %cst_22 = arith.constant 0.000000e+00 : f32
    %45 = vector.shape_cast %11 : vector<1x256xi1> to vector<1x256xi1>
    %46 = vector.broadcast %45 : vector<1x256xi1> to vector<8x256xi1>
    %47 = vector.broadcast %cst_22 : f32 to vector<8x256xf32>
    %48 = arith.select %46, %44, %47 : vector<8x256xi1>, vector<8x256xf32>
    %c0_23 = arith.constant 0 : index
    %c2_24 = arith.constant 2 : index
    %c0_25 = arith.constant 0 : index
    %c0_26 = arith.constant 0 : index
    %49 = vector.load %arg2[%c0_23, %c2_24, %c0_25, %c0_26] : memref<3x3x32x8xf32, #tpu.memory_space<vmem>>, vector<1x1x32x8xf32>
    %50 = vector.shape_cast %49 : vector<1x1x32x8xf32> to vector<32x8xf32>
    %cst_27 = arith.constant dense<0.000000e+00> : vector<32x256xf32>
    %51 = tpu.matmul %50, %48, %cst_27 {dimension_numbers = #tpu.dot_dimension_numbers<[1], [0], [0], [1], [0, 0, 1, 1], [], []>} : vector<32x8xf32>, vector<8x256xf32>, vector<32x256xf32> -> vector<32x256xf32>
    %52 = arith.addf %41, %51 : vector<32x256xf32>
    %c1_28 = arith.constant 1 : index
    %c0_29 = arith.constant 0 : index
    %c0_30 = arith.constant 0 : index
    %53 = vector.load %arg1[%c1_28, %c0_29, %c0_30] : memref<4x8x256xf32, #tpu.memory_space<vmem>>, vector<1x8x256xf32>
    %54 = vector.shape_cast %53 : vector<1x8x256xf32> to vector<8x256xf32>
    %c1_i32 = arith.constant 1 : i32
    %55 = tpu.dynamic_rotate %54 by %c1_i32 dim 1 : vector<8x256xf32>, i32 -> vector<8x256xf32>
    %cst_31 = arith.constant 0.000000e+00 : f32
    %56 = vector.shape_cast %15 : vector<1x256xi1> to vector<1x256xi1>
    %57 = vector.broadcast %56 : vector<1x256xi1> to vector<8x256xi1>
    %58 = vector.broadcast %cst_31 : f32 to vector<8x256xf32>
    %59 = arith.select %57, %55, %58 : vector<8x256xi1>, vector<8x256xf32>
    %c1_32 = arith.constant 1 : index
    %c0_33 = arith.constant 0 : index
    %c0_34 = arith.constant 0 : index
    %c0_35 = arith.constant 0 : index
    %60 = vector.load %arg2[%c1_32, %c0_33, %c0_34, %c0_35] : memref<3x3x32x8xf32, #tpu.memory_space<vmem>>, vector<1x1x32x8xf32>
    %61 = vector.shape_cast %60 : vector<1x1x32x8xf32> to vector<32x8xf32>
    %cst_36 = arith.constant dense<0.000000e+00> : vector<32x256xf32>
    %62 = tpu.matmul %61, %59, %cst_36 {dimension_numbers = #tpu.dot_dimension_numbers<[1], [0], [0], [1], [0, 0, 1, 1], [], []>} : vector<32x8xf32>, vector<8x256xf32>, vector<32x256xf32> -> vector<32x256xf32>
    %63 = arith.addf %52, %62 : vector<32x256xf32>
    %c0_37 = arith.constant 0 : index
    %c0_38 = arith.constant 0 : index
    %c0_39 = arith.constant 0 : index
    %64 = vector.load %arg1[%c0_37, %c0_38, %c0_39] : memref<4x8x256xf32, #tpu.memory_space<vmem>>, vector<1x8x256xf32>
    %65 = vector.shape_cast %64 : vector<1x8x256xf32> to vector<8x256xf32>
    %c1_40 = arith.constant 1 : index
    %c1_41 = arith.constant 1 : index
    %c0_42 = arith.constant 0 : index
    %c0_43 = arith.constant 0 : index
    %66 = vector.load %arg2[%c1_40, %c1_41, %c0_42, %c0_43] : memref<3x3x32x8xf32, #tpu.memory_space<vmem>>, vector<1x1x32x8xf32>
    %67 = vector.shape_cast %66 : vector<1x1x32x8xf32> to vector<32x8xf32>
    %cst_44 = arith.constant dense<0.000000e+00> : vector<32x256xf32>
    %68 = tpu.matmul %67, %65, %cst_44 {dimension_numbers = #tpu.dot_dimension_numbers<[1], [0], [0], [1], [0, 0, 1, 1], [], []>} : vector<32x8xf32>, vector<8x256xf32>, vector<32x256xf32> -> vector<32x256xf32>
    %69 = arith.addf %63, %68 : vector<32x256xf32>
    %c1_45 = arith.constant 1 : index
    %c0_46 = arith.constant 0 : index
    %c0_47 = arith.constant 0 : index
    %70 = vector.load %arg1[%c1_45, %c0_46, %c0_47] : memref<4x8x256xf32, #tpu.memory_space<vmem>>, vector<1x8x256xf32>
    %71 = vector.shape_cast %70 : vector<1x8x256xf32> to vector<8x256xf32>
    %c1_48 = arith.constant 1 : index
    %c2_49 = arith.constant 2 : index
    %c0_50 = arith.constant 0 : index
    %c0_51 = arith.constant 0 : index
    %72 = vector.load %arg2[%c1_48, %c2_49, %c0_50, %c0_51] : memref<3x3x32x8xf32, #tpu.memory_space<vmem>>, vector<1x1x32x8xf32>
    %73 = vector.shape_cast %72 : vector<1x1x32x8xf32> to vector<32x8xf32>
    %cst_52 = arith.constant dense<0.000000e+00> : vector<32x256xf32>
    %74 = tpu.matmul %73, %71, %cst_52 {dimension_numbers = #tpu.dot_dimension_numbers<[1], [0], [0], [1], [0, 0, 1, 1], [], []>} : vector<32x8xf32>, vector<8x256xf32>, vector<32x256xf32> -> vector<32x256xf32>
    %75 = arith.addf %69, %74 : vector<32x256xf32>
    %c3_53 = arith.constant 3 : index
    %c0_54 = arith.constant 0 : index
    %c0_55 = arith.constant 0 : index
    %76 = vector.load %arg1[%c3_53, %c0_54, %c0_55] : memref<4x8x256xf32, #tpu.memory_space<vmem>>, vector<1x8x256xf32>
    %77 = vector.shape_cast %76 : vector<1x8x256xf32> to vector<8x256xf32>
    %c1_i32_56 = arith.constant 1 : i32
    %78 = tpu.dynamic_rotate %77 by %c1_i32_56 dim 1 : vector<8x256xf32>, i32 -> vector<8x256xf32>
    %cst_57 = arith.constant 0.000000e+00 : f32
    %79 = vector.shape_cast %15 : vector<1x256xi1> to vector<1x256xi1>
    %80 = vector.broadcast %79 : vector<1x256xi1> to vector<8x256xi1>
    %81 = vector.broadcast %cst_57 : f32 to vector<8x256xf32>
    %82 = arith.select %80, %78, %81 : vector<8x256xi1>, vector<8x256xf32>
    %c2_58 = arith.constant 2 : index
    %c0_59 = arith.constant 0 : index
    %c0_60 = arith.constant 0 : index
    %c0_61 = arith.constant 0 : index
    %83 = vector.load %arg2[%c2_58, %c0_59, %c0_60, %c0_61] : memref<3x3x32x8xf32, #tpu.memory_space<vmem>>, vector<1x1x32x8xf32>
    %84 = vector.shape_cast %83 : vector<1x1x32x8xf32> to vector<32x8xf32>
    %cst_62 = arith.constant dense<0.000000e+00> : vector<32x256xf32>
    %85 = tpu.matmul %84, %82, %cst_62 {dimension_numbers = #tpu.dot_dimension_numbers<[1], [0], [0], [1], [0, 0, 1, 1], [], []>} : vector<32x8xf32>, vector<8x256xf32>, vector<32x256xf32> -> vector<32x256xf32>
    %86 = arith.addf %75, %85 : vector<32x256xf32>
    %c2_63 = arith.constant 2 : index
    %c0_64 = arith.constant 0 : index
    %c0_65 = arith.constant 0 : index
    %87 = vector.load %arg1[%c2_63, %c0_64, %c0_65] : memref<4x8x256xf32, #tpu.memory_space<vmem>>, vector<1x8x256xf32>
    %88 = vector.shape_cast %87 : vector<1x8x256xf32> to vector<8x256xf32>
    %c2_66 = arith.constant 2 : index
    %c1_67 = arith.constant 1 : index
    %c0_68 = arith.constant 0 : index
    %c0_69 = arith.constant 0 : index
    %89 = vector.load %arg2[%c2_66, %c1_67, %c0_68, %c0_69] : memref<3x3x32x8xf32, #tpu.memory_space<vmem>>, vector<1x1x32x8xf32>
    %90 = vector.shape_cast %89 : vector<1x1x32x8xf32> to vector<32x8xf32>
    %cst_70 = arith.constant dense<0.000000e+00> : vector<32x256xf32>
    %91 = tpu.matmul %90, %88, %cst_70 {dimension_numbers = #tpu.dot_dimension_numbers<[1], [0], [0], [1], [0, 0, 1, 1], [], []>} : vector<32x8xf32>, vector<8x256xf32>, vector<32x256xf32> -> vector<32x256xf32>
    %92 = arith.addf %86, %91 : vector<32x256xf32>
    %c3_71 = arith.constant 3 : index
    %c0_72 = arith.constant 0 : index
    %c0_73 = arith.constant 0 : index
    %93 = vector.load %arg1[%c3_71, %c0_72, %c0_73] : memref<4x8x256xf32, #tpu.memory_space<vmem>>, vector<1x8x256xf32>
    %94 = vector.shape_cast %93 : vector<1x8x256xf32> to vector<8x256xf32>
    %c2_74 = arith.constant 2 : index
    %c2_75 = arith.constant 2 : index
    %c0_76 = arith.constant 0 : index
    %c0_77 = arith.constant 0 : index
    %95 = vector.load %arg2[%c2_74, %c2_75, %c0_76, %c0_77] : memref<3x3x32x8xf32, #tpu.memory_space<vmem>>, vector<1x1x32x8xf32>
    %96 = vector.shape_cast %95 : vector<1x1x32x8xf32> to vector<32x8xf32>
    %cst_78 = arith.constant dense<0.000000e+00> : vector<32x256xf32>
    %97 = tpu.matmul %96, %94, %cst_78 {dimension_numbers = #tpu.dot_dimension_numbers<[1], [0], [0], [1], [0, 0, 1, 1], [], []>} : vector<32x8xf32>, vector<8x256xf32>, vector<32x256xf32> -> vector<32x256xf32>
    %98 = arith.addf %92, %97 : vector<32x256xf32>
    %cst_79 = arith.constant 0.000000e+00 : f32
    %99 = vector.broadcast %cst_79 : f32 to vector<32x256xf32>
    %c2_80 = arith.constant 2 : index
    %c0_81 = arith.constant 0 : index
    %c0_82 = arith.constant 0 : index
    %100 = vector.load %arg1[%c2_80, %c0_81, %c0_82] : memref<4x8x256xf32, #tpu.memory_space<vmem>>, vector<1x8x256xf32>
    %101 = vector.shape_cast %100 : vector<1x8x256xf32> to vector<8x256xf32>
    %c16_i32_83 = arith.constant 16 : i32
    %102 = tpu.dynamic_rotate %101 by %c16_i32_83 dim 1 : vector<8x256xf32>, i32 -> vector<8x256xf32>
    %cst_84 = arith.constant 0.000000e+00 : f32
    %103 = vector.shape_cast %11 : vector<1x256xi1> to vector<1x256xi1>
    %104 = vector.broadcast %103 : vector<1x256xi1> to vector<8x256xi1>
    %105 = vector.broadcast %cst_84 : f32 to vector<8x256xf32>
    %106 = arith.select %104, %102, %105 : vector<8x256xi1>, vector<8x256xf32>
    %c0_85 = arith.constant 0 : index
    %c0_86 = arith.constant 0 : index
    %c0_87 = arith.constant 0 : index
    %c0_88 = arith.constant 0 : index
    %107 = vector.load %arg2[%c0_85, %c0_86, %c0_87, %c0_88] : memref<3x3x32x8xf32, #tpu.memory_space<vmem>>, vector<1x1x32x8xf32>
    %108 = vector.shape_cast %107 : vector<1x1x32x8xf32> to vector<32x8xf32>
    %cst_89 = arith.constant dense<0.000000e+00> : vector<32x256xf32>
    %109 = tpu.matmul %108, %106, %cst_89 {dimension_numbers = #tpu.dot_dimension_numbers<[1], [0], [0], [1], [0, 0, 1, 1], [], []>} : vector<32x8xf32>, vector<8x256xf32>, vector<32x256xf32> -> vector<32x256xf32>
    %110 = arith.addf %99, %109 : vector<32x256xf32>
    %c3_90 = arith.constant 3 : index
    %c0_91 = arith.constant 0 : index
    %c0_92 = arith.constant 0 : index
    %111 = vector.load %arg1[%c3_90, %c0_91, %c0_92] : memref<4x8x256xf32, #tpu.memory_space<vmem>>, vector<1x8x256xf32>
    %112 = vector.shape_cast %111 : vector<1x8x256xf32> to vector<8x256xf32>
    %c16_i32_93 = arith.constant 16 : i32
    %113 = tpu.dynamic_rotate %112 by %c16_i32_93 dim 1 : vector<8x256xf32>, i32 -> vector<8x256xf32>
    %cst_94 = arith.constant 0.000000e+00 : f32
    %114 = vector.shape_cast %11 : vector<1x256xi1> to vector<1x256xi1>
    %115 = vector.broadcast %114 : vector<1x256xi1> to vector<8x256xi1>
    %116 = vector.broadcast %cst_94 : f32 to vector<8x256xf32>
    %117 = arith.select %115, %113, %116 : vector<8x256xi1>, vector<8x256xf32>
    %c0_95 = arith.constant 0 : index
    %c1_96 = arith.constant 1 : index
    %c0_97 = arith.constant 0 : index
    %c0_98 = arith.constant 0 : index
    %118 = vector.load %arg2[%c0_95, %c1_96, %c0_97, %c0_98] : memref<3x3x32x8xf32, #tpu.memory_space<vmem>>, vector<1x1x32x8xf32>
    %119 = vector.shape_cast %118 : vector<1x1x32x8xf32> to vector<32x8xf32>
    %cst_99 = arith.constant dense<0.000000e+00> : vector<32x256xf32>
    %120 = tpu.matmul %119, %117, %cst_99 {dimension_numbers = #tpu.dot_dimension_numbers<[1], [0], [0], [1], [0, 0, 1, 1], [], []>} : vector<32x8xf32>, vector<8x256xf32>, vector<32x256xf32> -> vector<32x256xf32>
    %121 = arith.addf %110, %120 : vector<32x256xf32>
    %c2_100 = arith.constant 2 : index
    %c0_101 = arith.constant 0 : index
    %c0_102 = arith.constant 0 : index
    %122 = vector.load %arg1[%c2_100, %c0_101, %c0_102] : memref<4x8x256xf32, #tpu.memory_space<vmem>>, vector<1x8x256xf32>
    %123 = vector.shape_cast %122 : vector<1x8x256xf32> to vector<8x256xf32>
    %c15_i32_103 = arith.constant 15 : i32
    %124 = tpu.dynamic_rotate %123 by %c15_i32_103 dim 1 : vector<8x256xf32>, i32 -> vector<8x256xf32>
    %125 = arith.andi %11, %17 : vector<1x256xi1>
    %cst_104 = arith.constant 0.000000e+00 : f32
    %126 = vector.shape_cast %125 : vector<1x256xi1> to vector<1x256xi1>
    %127 = vector.broadcast %126 : vector<1x256xi1> to vector<8x256xi1>
    %128 = vector.broadcast %cst_104 : f32 to vector<8x256xf32>
    %129 = arith.select %127, %124, %128 : vector<8x256xi1>, vector<8x256xf32>
    %c0_105 = arith.constant 0 : index
    %c2_106 = arith.constant 2 : index
    %c0_107 = arith.constant 0 : index
    %c0_108 = arith.constant 0 : index
    %130 = vector.load %arg2[%c0_105, %c2_106, %c0_107, %c0_108] : memref<3x3x32x8xf32, #tpu.memory_space<vmem>>, vector<1x1x32x8xf32>
    %131 = vector.shape_cast %130 : vector<1x1x32x8xf32> to vector<32x8xf32>
    %cst_109 = arith.constant dense<0.000000e+00> : vector<32x256xf32>
    %132 = tpu.matmul %131, %129, %cst_109 {dimension_numbers = #tpu.dot_dimension_numbers<[1], [0], [0], [1], [0, 0, 1, 1], [], []>} : vector<32x8xf32>, vector<8x256xf32>, vector<32x256xf32> -> vector<32x256xf32>
    %133 = arith.addf %121, %132 : vector<32x256xf32>
    %c0_110 = arith.constant 0 : index
    %c0_111 = arith.constant 0 : index
    %c0_112 = arith.constant 0 : index
    %134 = vector.load %arg1[%c0_110, %c0_111, %c0_112] : memref<4x8x256xf32, #tpu.memory_space<vmem>>, vector<1x8x256xf32>
    %135 = vector.shape_cast %134 : vector<1x8x256xf32> to vector<8x256xf32>
    %c1_113 = arith.constant 1 : index
    %c0_114 = arith.constant 0 : index
    %c0_115 = arith.constant 0 : index
    %c0_116 = arith.constant 0 : index
    %136 = vector.load %arg2[%c1_113, %c0_114, %c0_115, %c0_116] : memref<3x3x32x8xf32, #tpu.memory_space<vmem>>, vector<1x1x32x8xf32>
    %137 = vector.shape_cast %136 : vector<1x1x32x8xf32> to vector<32x8xf32>
    %cst_117 = arith.constant dense<0.000000e+00> : vector<32x256xf32>
    %138 = tpu.matmul %137, %135, %cst_117 {dimension_numbers = #tpu.dot_dimension_numbers<[1], [0], [0], [1], [0, 0, 1, 1], [], []>} : vector<32x8xf32>, vector<8x256xf32>, vector<32x256xf32> -> vector<32x256xf32>
    %139 = arith.addf %133, %138 : vector<32x256xf32>
    %c1_118 = arith.constant 1 : index
    %c0_119 = arith.constant 0 : index
    %c0_120 = arith.constant 0 : index
    %140 = vector.load %arg1[%c1_118, %c0_119, %c0_120] : memref<4x8x256xf32, #tpu.memory_space<vmem>>, vector<1x8x256xf32>
    %141 = vector.shape_cast %140 : vector<1x8x256xf32> to vector<8x256xf32>
    %c1_121 = arith.constant 1 : index
    %c1_122 = arith.constant 1 : index
    %c0_123 = arith.constant 0 : index
    %c0_124 = arith.constant 0 : index
    %142 = vector.load %arg2[%c1_121, %c1_122, %c0_123, %c0_124] : memref<3x3x32x8xf32, #tpu.memory_space<vmem>>, vector<1x1x32x8xf32>
    %143 = vector.shape_cast %142 : vector<1x1x32x8xf32> to vector<32x8xf32>
    %cst_125 = arith.constant dense<0.000000e+00> : vector<32x256xf32>
    %144 = tpu.matmul %143, %141, %cst_125 {dimension_numbers = #tpu.dot_dimension_numbers<[1], [0], [0], [1], [0, 0, 1, 1], [], []>} : vector<32x8xf32>, vector<8x256xf32>, vector<32x256xf32> -> vector<32x256xf32>
    %145 = arith.addf %139, %144 : vector<32x256xf32>
    %c0_126 = arith.constant 0 : index
    %c0_127 = arith.constant 0 : index
    %c0_128 = arith.constant 0 : index
    %146 = vector.load %arg1[%c0_126, %c0_127, %c0_128] : memref<4x8x256xf32, #tpu.memory_space<vmem>>, vector<1x8x256xf32>
    %147 = vector.shape_cast %146 : vector<1x8x256xf32> to vector<8x256xf32>
    %c255_i32 = arith.constant 255 : i32
    %148 = tpu.dynamic_rotate %147 by %c255_i32 dim 1 : vector<8x256xf32>, i32 -> vector<8x256xf32>
    %cst_129 = arith.constant 0.000000e+00 : f32
    %149 = vector.shape_cast %17 : vector<1x256xi1> to vector<1x256xi1>
    %150 = vector.broadcast %149 : vector<1x256xi1> to vector<8x256xi1>
    %151 = vector.broadcast %cst_129 : f32 to vector<8x256xf32>
    %152 = arith.select %150, %148, %151 : vector<8x256xi1>, vector<8x256xf32>
    %c1_130 = arith.constant 1 : index
    %c2_131 = arith.constant 2 : index
    %c0_132 = arith.constant 0 : index
    %c0_133 = arith.constant 0 : index
    %153 = vector.load %arg2[%c1_130, %c2_131, %c0_132, %c0_133] : memref<3x3x32x8xf32, #tpu.memory_space<vmem>>, vector<1x1x32x8xf32>
    %154 = vector.shape_cast %153 : vector<1x1x32x8xf32> to vector<32x8xf32>
    %cst_134 = arith.constant dense<0.000000e+00> : vector<32x256xf32>
    %155 = tpu.matmul %154, %152, %cst_134 {dimension_numbers = #tpu.dot_dimension_numbers<[1], [0], [0], [1], [0, 0, 1, 1], [], []>} : vector<32x8xf32>, vector<8x256xf32>, vector<32x256xf32> -> vector<32x256xf32>
    %156 = arith.addf %145, %155 : vector<32x256xf32>
    %c2_135 = arith.constant 2 : index
    %c0_136 = arith.constant 0 : index
    %c0_137 = arith.constant 0 : index
    %157 = vector.load %arg1[%c2_135, %c0_136, %c0_137] : memref<4x8x256xf32, #tpu.memory_space<vmem>>, vector<1x8x256xf32>
    %158 = vector.shape_cast %157 : vector<1x8x256xf32> to vector<8x256xf32>
    %c2_138 = arith.constant 2 : index
    %c0_139 = arith.constant 0 : index
    %c0_140 = arith.constant 0 : index
    %c0_141 = arith.constant 0 : index
    %159 = vector.load %arg2[%c2_138, %c0_139, %c0_140, %c0_141] : memref<3x3x32x8xf32, #tpu.memory_space<vmem>>, vector<1x1x32x8xf32>
    %160 = vector.shape_cast %159 : vector<1x1x32x8xf32> to vector<32x8xf32>
    %cst_142 = arith.constant dense<0.000000e+00> : vector<32x256xf32>
    %161 = tpu.matmul %160, %158, %cst_142 {dimension_numbers = #tpu.dot_dimension_numbers<[1], [0], [0], [1], [0, 0, 1, 1], [], []>} : vector<32x8xf32>, vector<8x256xf32>, vector<32x256xf32> -> vector<32x256xf32>
    %162 = arith.addf %156, %161 : vector<32x256xf32>
    %c3_143 = arith.constant 3 : index
    %c0_144 = arith.constant 0 : index
    %c0_145 = arith.constant 0 : index
    %163 = vector.load %arg1[%c3_143, %c0_144, %c0_145] : memref<4x8x256xf32, #tpu.memory_space<vmem>>, vector<1x8x256xf32>
    %164 = vector.shape_cast %163 : vector<1x8x256xf32> to vector<8x256xf32>
    %c2_146 = arith.constant 2 : index
    %c1_147 = arith.constant 1 : index
    %c0_148 = arith.constant 0 : index
    %c0_149 = arith.constant 0 : index
    %165 = vector.load %arg2[%c2_146, %c1_147, %c0_148, %c0_149] : memref<3x3x32x8xf32, #tpu.memory_space<vmem>>, vector<1x1x32x8xf32>
    %166 = vector.shape_cast %165 : vector<1x1x32x8xf32> to vector<32x8xf32>
    %cst_150 = arith.constant dense<0.000000e+00> : vector<32x256xf32>
    %167 = tpu.matmul %166, %164, %cst_150 {dimension_numbers = #tpu.dot_dimension_numbers<[1], [0], [0], [1], [0, 0, 1, 1], [], []>} : vector<32x8xf32>, vector<8x256xf32>, vector<32x256xf32> -> vector<32x256xf32>
    %168 = arith.addf %162, %167 : vector<32x256xf32>
    %c2_151 = arith.constant 2 : index
    %c0_152 = arith.constant 0 : index
    %c0_153 = arith.constant 0 : index
    %169 = vector.load %arg1[%c2_151, %c0_152, %c0_153] : memref<4x8x256xf32, #tpu.memory_space<vmem>>, vector<1x8x256xf32>
    %170 = vector.shape_cast %169 : vector<1x8x256xf32> to vector<8x256xf32>
    %c255_i32_154 = arith.constant 255 : i32
    %171 = tpu.dynamic_rotate %170 by %c255_i32_154 dim 1 : vector<8x256xf32>, i32 -> vector<8x256xf32>
    %cst_155 = arith.constant 0.000000e+00 : f32
    %172 = vector.shape_cast %17 : vector<1x256xi1> to vector<1x256xi1>
    %173 = vector.broadcast %172 : vector<1x256xi1> to vector<8x256xi1>
    %174 = vector.broadcast %cst_155 : f32 to vector<8x256xf32>
    %175 = arith.select %173, %171, %174 : vector<8x256xi1>, vector<8x256xf32>
    %c2_156 = arith.constant 2 : index
    %c2_157 = arith.constant 2 : index
    %c0_158 = arith.constant 0 : index
    %c0_159 = arith.constant 0 : index
    %176 = vector.load %arg2[%c2_156, %c2_157, %c0_158, %c0_159] : memref<3x3x32x8xf32, #tpu.memory_space<vmem>>, vector<1x1x32x8xf32>
    %177 = vector.shape_cast %176 : vector<1x1x32x8xf32> to vector<32x8xf32>
    %cst_160 = arith.constant dense<0.000000e+00> : vector<32x256xf32>
    %178 = tpu.matmul %177, %175, %cst_160 {dimension_numbers = #tpu.dot_dimension_numbers<[1], [0], [0], [1], [0, 0, 1, 1], [], []>} : vector<32x8xf32>, vector<8x256xf32>, vector<32x256xf32> -> vector<32x256xf32>
    %179 = arith.addf %168, %178 : vector<32x256xf32>
    %180 = arith.maximumf %98, %179 : vector<32x256xf32>
    %cst_161 = arith.constant 0.000000e+00 : f32
    %181 = vector.broadcast %cst_161 : f32 to vector<32x256xf32>
    %c1_162 = arith.constant 1 : index
    %c0_163 = arith.constant 0 : index
    %c0_164 = arith.constant 0 : index
    %182 = vector.load %arg1[%c1_162, %c0_163, %c0_164] : memref<4x8x256xf32, #tpu.memory_space<vmem>>, vector<1x8x256xf32>
    %183 = vector.shape_cast %182 : vector<1x8x256xf32> to vector<8x256xf32>
    %c1_i32_165 = arith.constant 1 : i32
    %184 = tpu.dynamic_rotate %183 by %c1_i32_165 dim 1 : vector<8x256xf32>, i32 -> vector<8x256xf32>
    %cst_166 = arith.constant 0.000000e+00 : f32
    %185 = vector.shape_cast %15 : vector<1x256xi1> to vector<1x256xi1>
    %186 = vector.broadcast %185 : vector<1x256xi1> to vector<8x256xi1>
    %187 = vector.broadcast %cst_166 : f32 to vector<8x256xf32>
    %188 = arith.select %186, %184, %187 : vector<8x256xi1>, vector<8x256xf32>
    %c0_167 = arith.constant 0 : index
    %c0_168 = arith.constant 0 : index
    %c0_169 = arith.constant 0 : index
    %c0_170 = arith.constant 0 : index
    %189 = vector.load %arg2[%c0_167, %c0_168, %c0_169, %c0_170] : memref<3x3x32x8xf32, #tpu.memory_space<vmem>>, vector<1x1x32x8xf32>
    %190 = vector.shape_cast %189 : vector<1x1x32x8xf32> to vector<32x8xf32>
    %cst_171 = arith.constant dense<0.000000e+00> : vector<32x256xf32>
    %191 = tpu.matmul %190, %188, %cst_171 {dimension_numbers = #tpu.dot_dimension_numbers<[1], [0], [0], [1], [0, 0, 1, 1], [], []>} : vector<32x8xf32>, vector<8x256xf32>, vector<32x256xf32> -> vector<32x256xf32>
    %192 = arith.addf %181, %191 : vector<32x256xf32>
    %c0_172 = arith.constant 0 : index
    %c0_173 = arith.constant 0 : index
    %c0_174 = arith.constant 0 : index
    %193 = vector.load %arg1[%c0_172, %c0_173, %c0_174] : memref<4x8x256xf32, #tpu.memory_space<vmem>>, vector<1x8x256xf32>
    %194 = vector.shape_cast %193 : vector<1x8x256xf32> to vector<8x256xf32>
    %c0_175 = arith.constant 0 : index
    %c1_176 = arith.constant 1 : index
    %c0_177 = arith.constant 0 : index
    %c0_178 = arith.constant 0 : index
    %195 = vector.load %arg2[%c0_175, %c1_176, %c0_177, %c0_178] : memref<3x3x32x8xf32, #tpu.memory_space<vmem>>, vector<1x1x32x8xf32>
    %196 = vector.shape_cast %195 : vector<1x1x32x8xf32> to vector<32x8xf32>
    %cst_179 = arith.constant dense<0.000000e+00> : vector<32x256xf32>
    %197 = tpu.matmul %196, %194, %cst_179 {dimension_numbers = #tpu.dot_dimension_numbers<[1], [0], [0], [1], [0, 0, 1, 1], [], []>} : vector<32x8xf32>, vector<8x256xf32>, vector<32x256xf32> -> vector<32x256xf32>
    %198 = arith.addf %192, %197 : vector<32x256xf32>
    %c1_180 = arith.constant 1 : index
    %c0_181 = arith.constant 0 : index
    %c0_182 = arith.constant 0 : index
    %199 = vector.load %arg1[%c1_180, %c0_181, %c0_182] : memref<4x8x256xf32, #tpu.memory_space<vmem>>, vector<1x8x256xf32>
    %200 = vector.shape_cast %199 : vector<1x8x256xf32> to vector<8x256xf32>
    %c0_183 = arith.constant 0 : index
    %c2_184 = arith.constant 2 : index
    %c0_185 = arith.constant 0 : index
    %c0_186 = arith.constant 0 : index
    %201 = vector.load %arg2[%c0_183, %c2_184, %c0_185, %c0_186] : memref<3x3x32x8xf32, #tpu.memory_space<vmem>>, vector<1x1x32x8xf32>
    %202 = vector.shape_cast %201 : vector<1x1x32x8xf32> to vector<32x8xf32>
    %cst_187 = arith.constant dense<0.000000e+00> : vector<32x256xf32>
    %203 = tpu.matmul %202, %200, %cst_187 {dimension_numbers = #tpu.dot_dimension_numbers<[1], [0], [0], [1], [0, 0, 1, 1], [], []>} : vector<32x8xf32>, vector<8x256xf32>, vector<32x256xf32> -> vector<32x256xf32>
    %204 = arith.addf %198, %203 : vector<32x256xf32>
    %c3_188 = arith.constant 3 : index
    %c0_189 = arith.constant 0 : index
    %c0_190 = arith.constant 0 : index
    %205 = vector.load %arg1[%c3_188, %c0_189, %c0_190] : memref<4x8x256xf32, #tpu.memory_space<vmem>>, vector<1x8x256xf32>
    %206 = vector.shape_cast %205 : vector<1x8x256xf32> to vector<8x256xf32>
    %c1_i32_191 = arith.constant 1 : i32
    %207 = tpu.dynamic_rotate %206 by %c1_i32_191 dim 1 : vector<8x256xf32>, i32 -> vector<8x256xf32>
    %cst_192 = arith.constant 0.000000e+00 : f32
    %208 = vector.shape_cast %15 : vector<1x256xi1> to vector<1x256xi1>
    %209 = vector.broadcast %208 : vector<1x256xi1> to vector<8x256xi1>
    %210 = vector.broadcast %cst_192 : f32 to vector<8x256xf32>
    %211 = arith.select %209, %207, %210 : vector<8x256xi1>, vector<8x256xf32>
    %c1_193 = arith.constant 1 : index
    %c0_194 = arith.constant 0 : index
    %c0_195 = arith.constant 0 : index
    %c0_196 = arith.constant 0 : index
    %212 = vector.load %arg2[%c1_193, %c0_194, %c0_195, %c0_196] : memref<3x3x32x8xf32, #tpu.memory_space<vmem>>, vector<1x1x32x8xf32>
    %213 = vector.shape_cast %212 : vector<1x1x32x8xf32> to vector<32x8xf32>
    %cst_197 = arith.constant dense<0.000000e+00> : vector<32x256xf32>
    %214 = tpu.matmul %213, %211, %cst_197 {dimension_numbers = #tpu.dot_dimension_numbers<[1], [0], [0], [1], [0, 0, 1, 1], [], []>} : vector<32x8xf32>, vector<8x256xf32>, vector<32x256xf32> -> vector<32x256xf32>
    %215 = arith.addf %204, %214 : vector<32x256xf32>
    %c2_198 = arith.constant 2 : index
    %c0_199 = arith.constant 0 : index
    %c0_200 = arith.constant 0 : index
    %216 = vector.load %arg1[%c2_198, %c0_199, %c0_200] : memref<4x8x256xf32, #tpu.memory_space<vmem>>, vector<1x8x256xf32>
    %217 = vector.shape_cast %216 : vector<1x8x256xf32> to vector<8x256xf32>
    %c1_201 = arith.constant 1 : index
    %c1_202 = arith.constant 1 : index
    %c0_203 = arith.constant 0 : index
    %c0_204 = arith.constant 0 : index
    %218 = vector.load %arg2[%c1_201, %c1_202, %c0_203, %c0_204] : memref<3x3x32x8xf32, #tpu.memory_space<vmem>>, vector<1x1x32x8xf32>
    %219 = vector.shape_cast %218 : vector<1x1x32x8xf32> to vector<32x8xf32>
    %cst_205 = arith.constant dense<0.000000e+00> : vector<32x256xf32>
    %220 = tpu.matmul %219, %217, %cst_205 {dimension_numbers = #tpu.dot_dimension_numbers<[1], [0], [0], [1], [0, 0, 1, 1], [], []>} : vector<32x8xf32>, vector<8x256xf32>, vector<32x256xf32> -> vector<32x256xf32>
    %221 = arith.addf %215, %220 : vector<32x256xf32>
    %c3_206 = arith.constant 3 : index
    %c0_207 = arith.constant 0 : index
    %c0_208 = arith.constant 0 : index
    %222 = vector.load %arg1[%c3_206, %c0_207, %c0_208] : memref<4x8x256xf32, #tpu.memory_space<vmem>>, vector<1x8x256xf32>
    %223 = vector.shape_cast %222 : vector<1x8x256xf32> to vector<8x256xf32>
    %c1_209 = arith.constant 1 : index
    %c2_210 = arith.constant 2 : index
    %c0_211 = arith.constant 0 : index
    %c0_212 = arith.constant 0 : index
    %224 = vector.load %arg2[%c1_209, %c2_210, %c0_211, %c0_212] : memref<3x3x32x8xf32, #tpu.memory_space<vmem>>, vector<1x1x32x8xf32>
    %225 = vector.shape_cast %224 : vector<1x1x32x8xf32> to vector<32x8xf32>
    %cst_213 = arith.constant dense<0.000000e+00> : vector<32x256xf32>
    %226 = tpu.matmul %225, %223, %cst_213 {dimension_numbers = #tpu.dot_dimension_numbers<[1], [0], [0], [1], [0, 0, 1, 1], [], []>} : vector<32x8xf32>, vector<8x256xf32>, vector<32x256xf32> -> vector<32x256xf32>
    %227 = arith.addf %221, %226 : vector<32x256xf32>
    %c1_214 = arith.constant 1 : index
    %c0_215 = arith.constant 0 : index
    %c0_216 = arith.constant 0 : index
    %228 = vector.load %arg1[%c1_214, %c0_215, %c0_216] : memref<4x8x256xf32, #tpu.memory_space<vmem>>, vector<1x8x256xf32>
    %229 = vector.shape_cast %228 : vector<1x8x256xf32> to vector<8x256xf32>
    %c241_i32 = arith.constant 241 : i32
    %230 = tpu.dynamic_rotate %229 by %c241_i32 dim 1 : vector<8x256xf32>, i32 -> vector<8x256xf32>
    %231 = arith.andi %13, %15 : vector<1x256xi1>
    %cst_217 = arith.constant 0.000000e+00 : f32
    %232 = vector.shape_cast %231 : vector<1x256xi1> to vector<1x256xi1>
    %233 = vector.broadcast %232 : vector<1x256xi1> to vector<8x256xi1>
    %234 = vector.broadcast %cst_217 : f32 to vector<8x256xf32>
    %235 = arith.select %233, %230, %234 : vector<8x256xi1>, vector<8x256xf32>
    %c2_218 = arith.constant 2 : index
    %c0_219 = arith.constant 0 : index
    %c0_220 = arith.constant 0 : index
    %c0_221 = arith.constant 0 : index
    %236 = vector.load %arg2[%c2_218, %c0_219, %c0_220, %c0_221] : memref<3x3x32x8xf32, #tpu.memory_space<vmem>>, vector<1x1x32x8xf32>
    %237 = vector.shape_cast %236 : vector<1x1x32x8xf32> to vector<32x8xf32>
    %cst_222 = arith.constant dense<0.000000e+00> : vector<32x256xf32>
    %238 = tpu.matmul %237, %235, %cst_222 {dimension_numbers = #tpu.dot_dimension_numbers<[1], [0], [0], [1], [0, 0, 1, 1], [], []>} : vector<32x8xf32>, vector<8x256xf32>, vector<32x256xf32> -> vector<32x256xf32>
    %239 = arith.addf %227, %238 : vector<32x256xf32>
    %c0_223 = arith.constant 0 : index
    %c0_224 = arith.constant 0 : index
    %c0_225 = arith.constant 0 : index
    %240 = vector.load %arg1[%c0_223, %c0_224, %c0_225] : memref<4x8x256xf32, #tpu.memory_space<vmem>>, vector<1x8x256xf32>
    %241 = vector.shape_cast %240 : vector<1x8x256xf32> to vector<8x256xf32>
    %c240_i32 = arith.constant 240 : i32
    %242 = tpu.dynamic_rotate %241 by %c240_i32 dim 1 : vector<8x256xf32>, i32 -> vector<8x256xf32>
    %cst_226 = arith.constant 0.000000e+00 : f32
    %243 = vector.shape_cast %13 : vector<1x256xi1> to vector<1x256xi1>
    %244 = vector.broadcast %243 : vector<1x256xi1> to vector<8x256xi1>
    %245 = vector.broadcast %cst_226 : f32 to vector<8x256xf32>
    %246 = arith.select %244, %242, %245 : vector<8x256xi1>, vector<8x256xf32>
    %c2_227 = arith.constant 2 : index
    %c1_228 = arith.constant 1 : index
    %c0_229 = arith.constant 0 : index
    %c0_230 = arith.constant 0 : index
    %247 = vector.load %arg2[%c2_227, %c1_228, %c0_229, %c0_230] : memref<3x3x32x8xf32, #tpu.memory_space<vmem>>, vector<1x1x32x8xf32>
    %248 = vector.shape_cast %247 : vector<1x1x32x8xf32> to vector<32x8xf32>
    %cst_231 = arith.constant dense<0.000000e+00> : vector<32x256xf32>
    %249 = tpu.matmul %248, %246, %cst_231 {dimension_numbers = #tpu.dot_dimension_numbers<[1], [0], [0], [1], [0, 0, 1, 1], [], []>} : vector<32x8xf32>, vector<8x256xf32>, vector<32x256xf32> -> vector<32x256xf32>
    %250 = arith.addf %239, %249 : vector<32x256xf32>
    %c1_232 = arith.constant 1 : index
    %c0_233 = arith.constant 0 : index
    %c0_234 = arith.constant 0 : index
    %251 = vector.load %arg1[%c1_232, %c0_233, %c0_234] : memref<4x8x256xf32, #tpu.memory_space<vmem>>, vector<1x8x256xf32>
    %252 = vector.shape_cast %251 : vector<1x8x256xf32> to vector<8x256xf32>
    %c240_i32_235 = arith.constant 240 : i32
    %253 = tpu.dynamic_rotate %252 by %c240_i32_235 dim 1 : vector<8x256xf32>, i32 -> vector<8x256xf32>
    %cst_236 = arith.constant 0.000000e+00 : f32
    %254 = vector.shape_cast %13 : vector<1x256xi1> to vector<1x256xi1>
    %255 = vector.broadcast %254 : vector<1x256xi1> to vector<8x256xi1>
    %256 = vector.broadcast %cst_236 : f32 to vector<8x256xf32>
    %257 = arith.select %255, %253, %256 : vector<8x256xi1>, vector<8x256xf32>
    %c2_237 = arith.constant 2 : index
    %c2_238 = arith.constant 2 : index
    %c0_239 = arith.constant 0 : index
    %c0_240 = arith.constant 0 : index
    %258 = vector.load %arg2[%c2_237, %c2_238, %c0_239, %c0_240] : memref<3x3x32x8xf32, #tpu.memory_space<vmem>>, vector<1x1x32x8xf32>
    %259 = vector.shape_cast %258 : vector<1x1x32x8xf32> to vector<32x8xf32>
    %cst_241 = arith.constant dense<0.000000e+00> : vector<32x256xf32>
    %260 = tpu.matmul %259, %257, %cst_241 {dimension_numbers = #tpu.dot_dimension_numbers<[1], [0], [0], [1], [0, 0, 1, 1], [], []>} : vector<32x8xf32>, vector<8x256xf32>, vector<32x256xf32> -> vector<32x256xf32>
    %261 = arith.addf %250, %260 : vector<32x256xf32>
    %262 = arith.maximumf %180, %261 : vector<32x256xf32>
    %cst_242 = arith.constant 0.000000e+00 : f32
    %263 = vector.broadcast %cst_242 : f32 to vector<32x256xf32>
    %c0_243 = arith.constant 0 : index
    %c0_244 = arith.constant 0 : index
    %c0_245 = arith.constant 0 : index
    %264 = vector.load %arg1[%c0_243, %c0_244, %c0_245] : memref<4x8x256xf32, #tpu.memory_space<vmem>>, vector<1x8x256xf32>
    %265 = vector.shape_cast %264 : vector<1x8x256xf32> to vector<8x256xf32>
    %c0_246 = arith.constant 0 : index
    %c0_247 = arith.constant 0 : index
    %c0_248 = arith.constant 0 : index
    %c0_249 = arith.constant 0 : index
    %266 = vector.load %arg2[%c0_246, %c0_247, %c0_248, %c0_249] : memref<3x3x32x8xf32, #tpu.memory_space<vmem>>, vector<1x1x32x8xf32>
    %267 = vector.shape_cast %266 : vector<1x1x32x8xf32> to vector<32x8xf32>
    %cst_250 = arith.constant dense<0.000000e+00> : vector<32x256xf32>
    %268 = tpu.matmul %267, %265, %cst_250 {dimension_numbers = #tpu.dot_dimension_numbers<[1], [0], [0], [1], [0, 0, 1, 1], [], []>} : vector<32x8xf32>, vector<8x256xf32>, vector<32x256xf32> -> vector<32x256xf32>
    %269 = arith.addf %263, %268 : vector<32x256xf32>
    %c1_251 = arith.constant 1 : index
    %c0_252 = arith.constant 0 : index
    %c0_253 = arith.constant 0 : index
    %270 = vector.load %arg1[%c1_251, %c0_252, %c0_253] : memref<4x8x256xf32, #tpu.memory_space<vmem>>, vector<1x8x256xf32>
    %271 = vector.shape_cast %270 : vector<1x8x256xf32> to vector<8x256xf32>
    %c0_254 = arith.constant 0 : index
    %c1_255 = arith.constant 1 : index
    %c0_256 = arith.constant 0 : index
    %c0_257 = arith.constant 0 : index
    %272 = vector.load %arg2[%c0_254, %c1_255, %c0_256, %c0_257] : memref<3x3x32x8xf32, #tpu.memory_space<vmem>>, vector<1x1x32x8xf32>
    %273 = vector.shape_cast %272 : vector<1x1x32x8xf32> to vector<32x8xf32>
    %cst_258 = arith.constant dense<0.000000e+00> : vector<32x256xf32>
    %274 = tpu.matmul %273, %271, %cst_258 {dimension_numbers = #tpu.dot_dimension_numbers<[1], [0], [0], [1], [0, 0, 1, 1], [], []>} : vector<32x8xf32>, vector<8x256xf32>, vector<32x256xf32> -> vector<32x256xf32>
    %275 = arith.addf %269, %274 : vector<32x256xf32>
    %c0_259 = arith.constant 0 : index
    %c0_260 = arith.constant 0 : index
    %c0_261 = arith.constant 0 : index
    %276 = vector.load %arg1[%c0_259, %c0_260, %c0_261] : memref<4x8x256xf32, #tpu.memory_space<vmem>>, vector<1x8x256xf32>
    %277 = vector.shape_cast %276 : vector<1x8x256xf32> to vector<8x256xf32>
    %c255_i32_262 = arith.constant 255 : i32
    %278 = tpu.dynamic_rotate %277 by %c255_i32_262 dim 1 : vector<8x256xf32>, i32 -> vector<8x256xf32>
    %cst_263 = arith.constant 0.000000e+00 : f32
    %279 = vector.shape_cast %17 : vector<1x256xi1> to vector<1x256xi1>
    %280 = vector.broadcast %279 : vector<1x256xi1> to vector<8x256xi1>
    %281 = vector.broadcast %cst_263 : f32 to vector<8x256xf32>
    %282 = arith.select %280, %278, %281 : vector<8x256xi1>, vector<8x256xf32>
    %c0_264 = arith.constant 0 : index
    %c2_265 = arith.constant 2 : index
    %c0_266 = arith.constant 0 : index
    %c0_267 = arith.constant 0 : index
    %283 = vector.load %arg2[%c0_264, %c2_265, %c0_266, %c0_267] : memref<3x3x32x8xf32, #tpu.memory_space<vmem>>, vector<1x1x32x8xf32>
    %284 = vector.shape_cast %283 : vector<1x1x32x8xf32> to vector<32x8xf32>
    %cst_268 = arith.constant dense<0.000000e+00> : vector<32x256xf32>
    %285 = tpu.matmul %284, %282, %cst_268 {dimension_numbers = #tpu.dot_dimension_numbers<[1], [0], [0], [1], [0, 0, 1, 1], [], []>} : vector<32x8xf32>, vector<8x256xf32>, vector<32x256xf32> -> vector<32x256xf32>
    %286 = arith.addf %275, %285 : vector<32x256xf32>
    %c2_269 = arith.constant 2 : index
    %c0_270 = arith.constant 0 : index
    %c0_271 = arith.constant 0 : index
    %287 = vector.load %arg1[%c2_269, %c0_270, %c0_271] : memref<4x8x256xf32, #tpu.memory_space<vmem>>, vector<1x8x256xf32>
    %288 = vector.shape_cast %287 : vector<1x8x256xf32> to vector<8x256xf32>
    %c1_272 = arith.constant 1 : index
    %c0_273 = arith.constant 0 : index
    %c0_274 = arith.constant 0 : index
    %c0_275 = arith.constant 0 : index
    %289 = vector.load %arg2[%c1_272, %c0_273, %c0_274, %c0_275] : memref<3x3x32x8xf32, #tpu.memory_space<vmem>>, vector<1x1x32x8xf32>
    %290 = vector.shape_cast %289 : vector<1x1x32x8xf32> to vector<32x8xf32>
    %cst_276 = arith.constant dense<0.000000e+00> : vector<32x256xf32>
    %291 = tpu.matmul %290, %288, %cst_276 {dimension_numbers = #tpu.dot_dimension_numbers<[1], [0], [0], [1], [0, 0, 1, 1], [], []>} : vector<32x8xf32>, vector<8x256xf32>, vector<32x256xf32> -> vector<32x256xf32>
    %292 = arith.addf %286, %291 : vector<32x256xf32>
    %c3_277 = arith.constant 3 : index
    %c0_278 = arith.constant 0 : index
    %c0_279 = arith.constant 0 : index
    %293 = vector.load %arg1[%c3_277, %c0_278, %c0_279] : memref<4x8x256xf32, #tpu.memory_space<vmem>>, vector<1x8x256xf32>
    %294 = vector.shape_cast %293 : vector<1x8x256xf32> to vector<8x256xf32>
    %c1_280 = arith.constant 1 : index
    %c1_281 = arith.constant 1 : index
    %c0_282 = arith.constant 0 : index
    %c0_283 = arith.constant 0 : index
    %295 = vector.load %arg2[%c1_280, %c1_281, %c0_282, %c0_283] : memref<3x3x32x8xf32, #tpu.memory_space<vmem>>, vector<1x1x32x8xf32>
    %296 = vector.shape_cast %295 : vector<1x1x32x8xf32> to vector<32x8xf32>
    %cst_284 = arith.constant dense<0.000000e+00> : vector<32x256xf32>
    %297 = tpu.matmul %296, %294, %cst_284 {dimension_numbers = #tpu.dot_dimension_numbers<[1], [0], [0], [1], [0, 0, 1, 1], [], []>} : vector<32x8xf32>, vector<8x256xf32>, vector<32x256xf32> -> vector<32x256xf32>
    %298 = arith.addf %292, %297 : vector<32x256xf32>
    %c2_285 = arith.constant 2 : index
    %c0_286 = arith.constant 0 : index
    %c0_287 = arith.constant 0 : index
    %299 = vector.load %arg1[%c2_285, %c0_286, %c0_287] : memref<4x8x256xf32, #tpu.memory_space<vmem>>, vector<1x8x256xf32>
    %300 = vector.shape_cast %299 : vector<1x8x256xf32> to vector<8x256xf32>
    %c255_i32_288 = arith.constant 255 : i32
    %301 = tpu.dynamic_rotate %300 by %c255_i32_288 dim 1 : vector<8x256xf32>, i32 -> vector<8x256xf32>
    %cst_289 = arith.constant 0.000000e+00 : f32
    %302 = vector.shape_cast %17 : vector<1x256xi1> to vector<1x256xi1>
    %303 = vector.broadcast %302 : vector<1x256xi1> to vector<8x256xi1>
    %304 = vector.broadcast %cst_289 : f32 to vector<8x256xf32>
    %305 = arith.select %303, %301, %304 : vector<8x256xi1>, vector<8x256xf32>
    %c1_290 = arith.constant 1 : index
    %c2_291 = arith.constant 2 : index
    %c0_292 = arith.constant 0 : index
    %c0_293 = arith.constant 0 : index
    %306 = vector.load %arg2[%c1_290, %c2_291, %c0_292, %c0_293] : memref<3x3x32x8xf32, #tpu.memory_space<vmem>>, vector<1x1x32x8xf32>
    %307 = vector.shape_cast %306 : vector<1x1x32x8xf32> to vector<32x8xf32>
    %cst_294 = arith.constant dense<0.000000e+00> : vector<32x256xf32>
    %308 = tpu.matmul %307, %305, %cst_294 {dimension_numbers = #tpu.dot_dimension_numbers<[1], [0], [0], [1], [0, 0, 1, 1], [], []>} : vector<32x8xf32>, vector<8x256xf32>, vector<32x256xf32> -> vector<32x256xf32>
    %309 = arith.addf %298, %308 : vector<32x256xf32>
    %c0_295 = arith.constant 0 : index
    %c0_296 = arith.constant 0 : index
    %c0_297 = arith.constant 0 : index
    %310 = vector.load %arg1[%c0_295, %c0_296, %c0_297] : memref<4x8x256xf32, #tpu.memory_space<vmem>>, vector<1x8x256xf32>
    %311 = vector.shape_cast %310 : vector<1x8x256xf32> to vector<8x256xf32>
    %c240_i32_298 = arith.constant 240 : i32
    %312 = tpu.dynamic_rotate %311 by %c240_i32_298 dim 1 : vector<8x256xf32>, i32 -> vector<8x256xf32>
    %cst_299 = arith.constant 0.000000e+00 : f32
    %313 = vector.shape_cast %13 : vector<1x256xi1> to vector<1x256xi1>
    %314 = vector.broadcast %313 : vector<1x256xi1> to vector<8x256xi1>
    %315 = vector.broadcast %cst_299 : f32 to vector<8x256xf32>
    %316 = arith.select %314, %312, %315 : vector<8x256xi1>, vector<8x256xf32>
    %c2_300 = arith.constant 2 : index
    %c0_301 = arith.constant 0 : index
    %c0_302 = arith.constant 0 : index
    %c0_303 = arith.constant 0 : index
    %317 = vector.load %arg2[%c2_300, %c0_301, %c0_302, %c0_303] : memref<3x3x32x8xf32, #tpu.memory_space<vmem>>, vector<1x1x32x8xf32>
    %318 = vector.shape_cast %317 : vector<1x1x32x8xf32> to vector<32x8xf32>
    %cst_304 = arith.constant dense<0.000000e+00> : vector<32x256xf32>
    %319 = tpu.matmul %318, %316, %cst_304 {dimension_numbers = #tpu.dot_dimension_numbers<[1], [0], [0], [1], [0, 0, 1, 1], [], []>} : vector<32x8xf32>, vector<8x256xf32>, vector<32x256xf32> -> vector<32x256xf32>
    %320 = arith.addf %309, %319 : vector<32x256xf32>
    %c1_305 = arith.constant 1 : index
    %c0_306 = arith.constant 0 : index
    %c0_307 = arith.constant 0 : index
    %321 = vector.load %arg1[%c1_305, %c0_306, %c0_307] : memref<4x8x256xf32, #tpu.memory_space<vmem>>, vector<1x8x256xf32>
    %322 = vector.shape_cast %321 : vector<1x8x256xf32> to vector<8x256xf32>
    %c240_i32_308 = arith.constant 240 : i32
    %323 = tpu.dynamic_rotate %322 by %c240_i32_308 dim 1 : vector<8x256xf32>, i32 -> vector<8x256xf32>
    %cst_309 = arith.constant 0.000000e+00 : f32
    %324 = vector.shape_cast %13 : vector<1x256xi1> to vector<1x256xi1>
    %325 = vector.broadcast %324 : vector<1x256xi1> to vector<8x256xi1>
    %326 = vector.broadcast %cst_309 : f32 to vector<8x256xf32>
    %327 = arith.select %325, %323, %326 : vector<8x256xi1>, vector<8x256xf32>
    %c2_310 = arith.constant 2 : index
    %c1_311 = arith.constant 1 : index
    %c0_312 = arith.constant 0 : index
    %c0_313 = arith.constant 0 : index
    %328 = vector.load %arg2[%c2_310, %c1_311, %c0_312, %c0_313] : memref<3x3x32x8xf32, #tpu.memory_space<vmem>>, vector<1x1x32x8xf32>
    %329 = vector.shape_cast %328 : vector<1x1x32x8xf32> to vector<32x8xf32>
    %cst_314 = arith.constant dense<0.000000e+00> : vector<32x256xf32>
    %330 = tpu.matmul %329, %327, %cst_314 {dimension_numbers = #tpu.dot_dimension_numbers<[1], [0], [0], [1], [0, 0, 1, 1], [], []>} : vector<32x8xf32>, vector<8x256xf32>, vector<32x256xf32> -> vector<32x256xf32>
    %331 = arith.addf %320, %330 : vector<32x256xf32>
    %c0_315 = arith.constant 0 : index
    %c0_316 = arith.constant 0 : index
    %c0_317 = arith.constant 0 : index
    %332 = vector.load %arg1[%c0_315, %c0_316, %c0_317] : memref<4x8x256xf32, #tpu.memory_space<vmem>>, vector<1x8x256xf32>
    %333 = vector.shape_cast %332 : vector<1x8x256xf32> to vector<8x256xf32>
    %c239_i32 = arith.constant 239 : i32
    %334 = tpu.dynamic_rotate %333 by %c239_i32 dim 1 : vector<8x256xf32>, i32 -> vector<8x256xf32>
    %335 = arith.andi %13, %17 : vector<1x256xi1>
    %cst_318 = arith.constant 0.000000e+00 : f32
    %336 = vector.shape_cast %335 : vector<1x256xi1> to vector<1x256xi1>
    %337 = vector.broadcast %336 : vector<1x256xi1> to vector<8x256xi1>
    %338 = vector.broadcast %cst_318 : f32 to vector<8x256xf32>
    %339 = arith.select %337, %334, %338 : vector<8x256xi1>, vector<8x256xf32>
    %c2_319 = arith.constant 2 : index
    %c2_320 = arith.constant 2 : index
    %c0_321 = arith.constant 0 : index
    %c0_322 = arith.constant 0 : index
    %340 = vector.load %arg2[%c2_319, %c2_320, %c0_321, %c0_322] : memref<3x3x32x8xf32, #tpu.memory_space<vmem>>, vector<1x1x32x8xf32>
    %341 = vector.shape_cast %340 : vector<1x1x32x8xf32> to vector<32x8xf32>
    %cst_323 = arith.constant dense<0.000000e+00> : vector<32x256xf32>
    %342 = tpu.matmul %341, %339, %cst_323 {dimension_numbers = #tpu.dot_dimension_numbers<[1], [0], [0], [1], [0, 0, 1, 1], [], []>} : vector<32x8xf32>, vector<8x256xf32>, vector<32x256xf32> -> vector<32x256xf32>
    %343 = arith.addf %331, %342 : vector<32x256xf32>
    %344 = arith.maximumf %262, %343 : vector<32x256xf32>
    %c0_324 = arith.constant 0 : index
    %c0_325 = arith.constant 0 : index
    %345 = vector.load %arg3[%c0_324, %c0_325] : memref<32x1xf32, #tpu.memory_space<vmem>>, vector<32x1xf32>
    %346 = vector.broadcast %345 : vector<32x1xf32> to vector<32x256xf32>
    %347 = arith.addf %344, %346 : vector<32x256xf32>
    %348 = math.tanh %347 : vector<32x256xf32>
    %c0_326 = arith.constant 0 : index
    %c0_327 = arith.constant 0 : index
    %349 = vector.load %arg4[%c0_326, %c0_327] : memref<32x256xf32, #tpu.memory_space<vmem>>, vector<32x256xf32>
    tpu.vector_store %arg4[%c0_326, %c0_327], %348 {strides = array<i32>} : memref<32x256xf32, #tpu.memory_space<vmem>>, vector<32x256xf32>,
    return
  }
  func.func @transform_0(%arg0: i32) -> (i32, i32, i32) {
    %c0_i32 = arith.constant 0 : i32
    %c0_i32_0 = arith.constant 0 : i32
    %c0_i32_1 = arith.constant 0 : i32
    return %c0_i32, %c0_i32_0, %arg0 : i32, i32, i32
  }
  func.func @transform_1(%arg0: i32) -> (i32, i32, i32, i32) {
    %c0_i32 = arith.constant 0 : i32
    %c0_i32_0 = arith.constant 0 : i32
    %c0_i32_1 = arith.constant 0 : i32
    %c0_i32_2 = arith.constant 0 : i32
    %c0_i32_3 = arith.constant 0 : i32
    return %c0_i32, %c0_i32_0, %c0_i32_1, %c0_i32_2 : i32, i32, i32, i32
  }
  func.func @transform_2(%arg0: i32) -> (i32, i32) {
    %c0_i32 = arith.constant 0 : i32
    %c0_i32_0 = arith.constant 0 : i32
    %c0_i32_1 = arith.constant 0 : i32
    return %c0_i32, %c0_i32_0 : i32, i32
  }
  func.func @transform_3(%arg0: i32) -> (i32, i32) {
    %c0_i32 = arith.constant 0 : i32
    %c0_i32_0 = arith.constant 0 : i32
    return %c0_i32, %arg0 : i32, i32
  }
}

module attributes {stable_mosaic.version = 11 : i64} {
  func.func @_conv_pool_kernel(%arg0: i32, %arg1: memref<4x32x128xf32, #tpu.memory_space<vmem>>, %arg2: memref<3x3x16x32xf32, #tpu.memory_space<vmem>>, %arg3: memref<16x1xf32, #tpu.memory_space<vmem>>, %arg4: memref<16x128xf32, #tpu.memory_space<vmem>>) attributes {dimension_semantics = [#tpu.dimension_semantics<parallel>], iteration_bounds = array<i64: 1>, scalar_prefetch = 0 : i64, scratch_operands = 0 : i64, tpu.core_type = #tpu.core_type<tc>, window_params = [{transform_indices = @transform_0, window_bounds = array<i64: 4, 32, 128>}, {pipeline_mode = #tpu.pipeline_mode<synchronous>, transform_indices = @transform_1, window_bounds = array<i64: 3, 3, 16, 32>}, {pipeline_mode = #tpu.pipeline_mode<synchronous>, transform_indices = @transform_2, window_bounds = array<i64: 16, 1>}, {transform_indices = @transform_3, window_bounds = array<i64: 16, 128>}]} {
    %c128_i32 = arith.constant 128 : i32
    %0 = arith.muli %arg0, %c128_i32 : i32
    %1 = tpu.iota {dimensions = array<i32: 1>} : vector<1x128xi32>
    %2 = vector.broadcast %0 : i32 to vector<1x128xi32>
    %3 = arith.addi %2, %1 : vector<1x128xi32>
    %c7_i32 = arith.constant 7 : i32
    %4 = vector.broadcast %c7_i32 : i32 to vector<1x128xi32>
    %5 = arith.andi %3, %4 : vector<1x128xi32>
    %c3_i32 = arith.constant 3 : i32
    %6 = vector.broadcast %c3_i32 : i32 to vector<1x128xi32>
    %7 = arith.shrsi %3, %6 : vector<1x128xi32>
    %c7_i32_0 = arith.constant 7 : i32
    %8 = vector.broadcast %c7_i32_0 : i32 to vector<1x128xi32>
    %9 = arith.andi %7, %8 : vector<1x128xi32>
    %c0_i32 = arith.constant 0 : i32
    %10 = vector.broadcast %c0_i32 : i32 to vector<1x128xi32>
    %11 = arith.cmpi sgt, %9, %10 : vector<1x128xi32>
    %c7_i32_1 = arith.constant 7 : i32
    %12 = vector.broadcast %c7_i32_1 : i32 to vector<1x128xi32>
    %13 = arith.cmpi slt, %9, %12 : vector<1x128xi32>
    %c0_i32_2 = arith.constant 0 : i32
    %14 = vector.broadcast %c0_i32_2 : i32 to vector<1x128xi32>
    %15 = arith.cmpi sgt, %5, %14 : vector<1x128xi32>
    %c7_i32_3 = arith.constant 7 : i32
    %16 = vector.broadcast %c7_i32_3 : i32 to vector<1x128xi32>
    %17 = arith.cmpi slt, %5, %16 : vector<1x128xi32>
    %cst = arith.constant 0.000000e+00 : f32
    %18 = vector.broadcast %cst : f32 to vector<16x128xf32>
    %c3 = arith.constant 3 : index
    %c0 = arith.constant 0 : index
    %c0_4 = arith.constant 0 : index
    %19 = vector.load %arg1[%c3, %c0, %c0_4] : memref<4x32x128xf32, #tpu.memory_space<vmem>>, vector<1x32x128xf32>
    %20 = vector.shape_cast %19 : vector<1x32x128xf32> to vector<32x128xf32>
    %c9_i32 = arith.constant 9 : i32
    %21 = tpu.dynamic_rotate %20 by %c9_i32 dim 1 : vector<32x128xf32>, i32 -> vector<32x128xf32>
    %22 = arith.andi %11, %15 : vector<1x128xi1>
    %cst_5 = arith.constant 0.000000e+00 : f32
    %23 = vector.shape_cast %22 : vector<1x128xi1> to vector<1x128xi1>
    %24 = vector.broadcast %23 : vector<1x128xi1> to vector<32x128xi1>
    %25 = vector.broadcast %cst_5 : f32 to vector<32x128xf32>
    %26 = arith.select %24, %21, %25 : vector<32x128xi1>, vector<32x128xf32>
    %c0_6 = arith.constant 0 : index
    %c0_7 = arith.constant 0 : index
    %c0_8 = arith.constant 0 : index
    %c0_9 = arith.constant 0 : index
    %27 = vector.load %arg2[%c0_6, %c0_7, %c0_8, %c0_9] : memref<3x3x16x32xf32, #tpu.memory_space<vmem>>, vector<1x1x16x32xf32>
    %28 = vector.shape_cast %27 : vector<1x1x16x32xf32> to vector<16x32xf32>
    %cst_10 = arith.constant dense<0.000000e+00> : vector<16x128xf32>
    %29 = tpu.matmul %28, %26, %cst_10 {dimension_numbers = #tpu.dot_dimension_numbers<[1], [0], [0], [1], [0, 0, 1, 1], [], []>} : vector<16x32xf32>, vector<32x128xf32>, vector<16x128xf32> -> vector<16x128xf32>
    %30 = arith.addf %18, %29 : vector<16x128xf32>
    %c2 = arith.constant 2 : index
    %c0_11 = arith.constant 0 : index
    %c0_12 = arith.constant 0 : index
    %31 = vector.load %arg1[%c2, %c0_11, %c0_12] : memref<4x32x128xf32, #tpu.memory_space<vmem>>, vector<1x32x128xf32>
    %32 = vector.shape_cast %31 : vector<1x32x128xf32> to vector<32x128xf32>
    %c8_i32 = arith.constant 8 : i32
    %33 = tpu.dynamic_rotate %32 by %c8_i32 dim 1 : vector<32x128xf32>, i32 -> vector<32x128xf32>
    %cst_13 = arith.constant 0.000000e+00 : f32
    %34 = vector.shape_cast %11 : vector<1x128xi1> to vector<1x128xi1>
    %35 = vector.broadcast %34 : vector<1x128xi1> to vector<32x128xi1>
    %36 = vector.broadcast %cst_13 : f32 to vector<32x128xf32>
    %37 = arith.select %35, %33, %36 : vector<32x128xi1>, vector<32x128xf32>
    %c0_14 = arith.constant 0 : index
    %c1 = arith.constant 1 : index
    %c0_15 = arith.constant 0 : index
    %c0_16 = arith.constant 0 : index
    %38 = vector.load %arg2[%c0_14, %c1, %c0_15, %c0_16] : memref<3x3x16x32xf32, #tpu.memory_space<vmem>>, vector<1x1x16x32xf32>
    %39 = vector.shape_cast %38 : vector<1x1x16x32xf32> to vector<16x32xf32>
    %cst_17 = arith.constant dense<0.000000e+00> : vector<16x128xf32>
    %40 = tpu.matmul %39, %37, %cst_17 {dimension_numbers = #tpu.dot_dimension_numbers<[1], [0], [0], [1], [0, 0, 1, 1], [], []>} : vector<16x32xf32>, vector<32x128xf32>, vector<16x128xf32> -> vector<16x128xf32>
    %41 = arith.addf %30, %40 : vector<16x128xf32>
    %c3_18 = arith.constant 3 : index
    %c0_19 = arith.constant 0 : index
    %c0_20 = arith.constant 0 : index
    %42 = vector.load %arg1[%c3_18, %c0_19, %c0_20] : memref<4x32x128xf32, #tpu.memory_space<vmem>>, vector<1x32x128xf32>
    %43 = vector.shape_cast %42 : vector<1x32x128xf32> to vector<32x128xf32>
    %c8_i32_21 = arith.constant 8 : i32
    %44 = tpu.dynamic_rotate %43 by %c8_i32_21 dim 1 : vector<32x128xf32>, i32 -> vector<32x128xf32>
    %cst_22 = arith.constant 0.000000e+00 : f32
    %45 = vector.shape_cast %11 : vector<1x128xi1> to vector<1x128xi1>
    %46 = vector.broadcast %45 : vector<1x128xi1> to vector<32x128xi1>
    %47 = vector.broadcast %cst_22 : f32 to vector<32x128xf32>
    %48 = arith.select %46, %44, %47 : vector<32x128xi1>, vector<32x128xf32>
    %c0_23 = arith.constant 0 : index
    %c2_24 = arith.constant 2 : index
    %c0_25 = arith.constant 0 : index
    %c0_26 = arith.constant 0 : index
    %49 = vector.load %arg2[%c0_23, %c2_24, %c0_25, %c0_26] : memref<3x3x16x32xf32, #tpu.memory_space<vmem>>, vector<1x1x16x32xf32>
    %50 = vector.shape_cast %49 : vector<1x1x16x32xf32> to vector<16x32xf32>
    %cst_27 = arith.constant dense<0.000000e+00> : vector<16x128xf32>
    %51 = tpu.matmul %50, %48, %cst_27 {dimension_numbers = #tpu.dot_dimension_numbers<[1], [0], [0], [1], [0, 0, 1, 1], [], []>} : vector<16x32xf32>, vector<32x128xf32>, vector<16x128xf32> -> vector<16x128xf32>
    %52 = arith.addf %41, %51 : vector<16x128xf32>
    %c1_28 = arith.constant 1 : index
    %c0_29 = arith.constant 0 : index
    %c0_30 = arith.constant 0 : index
    %53 = vector.load %arg1[%c1_28, %c0_29, %c0_30] : memref<4x32x128xf32, #tpu.memory_space<vmem>>, vector<1x32x128xf32>
    %54 = vector.shape_cast %53 : vector<1x32x128xf32> to vector<32x128xf32>
    %c1_i32 = arith.constant 1 : i32
    %55 = tpu.dynamic_rotate %54 by %c1_i32 dim 1 : vector<32x128xf32>, i32 -> vector<32x128xf32>
    %cst_31 = arith.constant 0.000000e+00 : f32
    %56 = vector.shape_cast %15 : vector<1x128xi1> to vector<1x128xi1>
    %57 = vector.broadcast %56 : vector<1x128xi1> to vector<32x128xi1>
    %58 = vector.broadcast %cst_31 : f32 to vector<32x128xf32>
    %59 = arith.select %57, %55, %58 : vector<32x128xi1>, vector<32x128xf32>
    %c1_32 = arith.constant 1 : index
    %c0_33 = arith.constant 0 : index
    %c0_34 = arith.constant 0 : index
    %c0_35 = arith.constant 0 : index
    %60 = vector.load %arg2[%c1_32, %c0_33, %c0_34, %c0_35] : memref<3x3x16x32xf32, #tpu.memory_space<vmem>>, vector<1x1x16x32xf32>
    %61 = vector.shape_cast %60 : vector<1x1x16x32xf32> to vector<16x32xf32>
    %cst_36 = arith.constant dense<0.000000e+00> : vector<16x128xf32>
    %62 = tpu.matmul %61, %59, %cst_36 {dimension_numbers = #tpu.dot_dimension_numbers<[1], [0], [0], [1], [0, 0, 1, 1], [], []>} : vector<16x32xf32>, vector<32x128xf32>, vector<16x128xf32> -> vector<16x128xf32>
    %63 = arith.addf %52, %62 : vector<16x128xf32>
    %c0_37 = arith.constant 0 : index
    %c0_38 = arith.constant 0 : index
    %c0_39 = arith.constant 0 : index
    %64 = vector.load %arg1[%c0_37, %c0_38, %c0_39] : memref<4x32x128xf32, #tpu.memory_space<vmem>>, vector<1x32x128xf32>
    %65 = vector.shape_cast %64 : vector<1x32x128xf32> to vector<32x128xf32>
    %c1_40 = arith.constant 1 : index
    %c1_41 = arith.constant 1 : index
    %c0_42 = arith.constant 0 : index
    %c0_43 = arith.constant 0 : index
    %66 = vector.load %arg2[%c1_40, %c1_41, %c0_42, %c0_43] : memref<3x3x16x32xf32, #tpu.memory_space<vmem>>, vector<1x1x16x32xf32>
    %67 = vector.shape_cast %66 : vector<1x1x16x32xf32> to vector<16x32xf32>
    %cst_44 = arith.constant dense<0.000000e+00> : vector<16x128xf32>
    %68 = tpu.matmul %67, %65, %cst_44 {dimension_numbers = #tpu.dot_dimension_numbers<[1], [0], [0], [1], [0, 0, 1, 1], [], []>} : vector<16x32xf32>, vector<32x128xf32>, vector<16x128xf32> -> vector<16x128xf32>
    %69 = arith.addf %63, %68 : vector<16x128xf32>
    %c1_45 = arith.constant 1 : index
    %c0_46 = arith.constant 0 : index
    %c0_47 = arith.constant 0 : index
    %70 = vector.load %arg1[%c1_45, %c0_46, %c0_47] : memref<4x32x128xf32, #tpu.memory_space<vmem>>, vector<1x32x128xf32>
    %71 = vector.shape_cast %70 : vector<1x32x128xf32> to vector<32x128xf32>
    %c1_48 = arith.constant 1 : index
    %c2_49 = arith.constant 2 : index
    %c0_50 = arith.constant 0 : index
    %c0_51 = arith.constant 0 : index
    %72 = vector.load %arg2[%c1_48, %c2_49, %c0_50, %c0_51] : memref<3x3x16x32xf32, #tpu.memory_space<vmem>>, vector<1x1x16x32xf32>
    %73 = vector.shape_cast %72 : vector<1x1x16x32xf32> to vector<16x32xf32>
    %cst_52 = arith.constant dense<0.000000e+00> : vector<16x128xf32>
    %74 = tpu.matmul %73, %71, %cst_52 {dimension_numbers = #tpu.dot_dimension_numbers<[1], [0], [0], [1], [0, 0, 1, 1], [], []>} : vector<16x32xf32>, vector<32x128xf32>, vector<16x128xf32> -> vector<16x128xf32>
    %75 = arith.addf %69, %74 : vector<16x128xf32>
    %c3_53 = arith.constant 3 : index
    %c0_54 = arith.constant 0 : index
    %c0_55 = arith.constant 0 : index
    %76 = vector.load %arg1[%c3_53, %c0_54, %c0_55] : memref<4x32x128xf32, #tpu.memory_space<vmem>>, vector<1x32x128xf32>
    %77 = vector.shape_cast %76 : vector<1x32x128xf32> to vector<32x128xf32>
    %c1_i32_56 = arith.constant 1 : i32
    %78 = tpu.dynamic_rotate %77 by %c1_i32_56 dim 1 : vector<32x128xf32>, i32 -> vector<32x128xf32>
    %cst_57 = arith.constant 0.000000e+00 : f32
    %79 = vector.shape_cast %15 : vector<1x128xi1> to vector<1x128xi1>
    %80 = vector.broadcast %79 : vector<1x128xi1> to vector<32x128xi1>
    %81 = vector.broadcast %cst_57 : f32 to vector<32x128xf32>
    %82 = arith.select %80, %78, %81 : vector<32x128xi1>, vector<32x128xf32>
    %c2_58 = arith.constant 2 : index
    %c0_59 = arith.constant 0 : index
    %c0_60 = arith.constant 0 : index
    %c0_61 = arith.constant 0 : index
    %83 = vector.load %arg2[%c2_58, %c0_59, %c0_60, %c0_61] : memref<3x3x16x32xf32, #tpu.memory_space<vmem>>, vector<1x1x16x32xf32>
    %84 = vector.shape_cast %83 : vector<1x1x16x32xf32> to vector<16x32xf32>
    %cst_62 = arith.constant dense<0.000000e+00> : vector<16x128xf32>
    %85 = tpu.matmul %84, %82, %cst_62 {dimension_numbers = #tpu.dot_dimension_numbers<[1], [0], [0], [1], [0, 0, 1, 1], [], []>} : vector<16x32xf32>, vector<32x128xf32>, vector<16x128xf32> -> vector<16x128xf32>
    %86 = arith.addf %75, %85 : vector<16x128xf32>
    %c2_63 = arith.constant 2 : index
    %c0_64 = arith.constant 0 : index
    %c0_65 = arith.constant 0 : index
    %87 = vector.load %arg1[%c2_63, %c0_64, %c0_65] : memref<4x32x128xf32, #tpu.memory_space<vmem>>, vector<1x32x128xf32>
    %88 = vector.shape_cast %87 : vector<1x32x128xf32> to vector<32x128xf32>
    %c2_66 = arith.constant 2 : index
    %c1_67 = arith.constant 1 : index
    %c0_68 = arith.constant 0 : index
    %c0_69 = arith.constant 0 : index
    %89 = vector.load %arg2[%c2_66, %c1_67, %c0_68, %c0_69] : memref<3x3x16x32xf32, #tpu.memory_space<vmem>>, vector<1x1x16x32xf32>
    %90 = vector.shape_cast %89 : vector<1x1x16x32xf32> to vector<16x32xf32>
    %cst_70 = arith.constant dense<0.000000e+00> : vector<16x128xf32>
    %91 = tpu.matmul %90, %88, %cst_70 {dimension_numbers = #tpu.dot_dimension_numbers<[1], [0], [0], [1], [0, 0, 1, 1], [], []>} : vector<16x32xf32>, vector<32x128xf32>, vector<16x128xf32> -> vector<16x128xf32>
    %92 = arith.addf %86, %91 : vector<16x128xf32>
    %c3_71 = arith.constant 3 : index
    %c0_72 = arith.constant 0 : index
    %c0_73 = arith.constant 0 : index
    %93 = vector.load %arg1[%c3_71, %c0_72, %c0_73] : memref<4x32x128xf32, #tpu.memory_space<vmem>>, vector<1x32x128xf32>
    %94 = vector.shape_cast %93 : vector<1x32x128xf32> to vector<32x128xf32>
    %c2_74 = arith.constant 2 : index
    %c2_75 = arith.constant 2 : index
    %c0_76 = arith.constant 0 : index
    %c0_77 = arith.constant 0 : index
    %95 = vector.load %arg2[%c2_74, %c2_75, %c0_76, %c0_77] : memref<3x3x16x32xf32, #tpu.memory_space<vmem>>, vector<1x1x16x32xf32>
    %96 = vector.shape_cast %95 : vector<1x1x16x32xf32> to vector<16x32xf32>
    %cst_78 = arith.constant dense<0.000000e+00> : vector<16x128xf32>
    %97 = tpu.matmul %96, %94, %cst_78 {dimension_numbers = #tpu.dot_dimension_numbers<[1], [0], [0], [1], [0, 0, 1, 1], [], []>} : vector<16x32xf32>, vector<32x128xf32>, vector<16x128xf32> -> vector<16x128xf32>
    %98 = arith.addf %92, %97 : vector<16x128xf32>
    %cst_79 = arith.constant 0.000000e+00 : f32
    %99 = vector.broadcast %cst_79 : f32 to vector<16x128xf32>
    %c2_80 = arith.constant 2 : index
    %c0_81 = arith.constant 0 : index
    %c0_82 = arith.constant 0 : index
    %100 = vector.load %arg1[%c2_80, %c0_81, %c0_82] : memref<4x32x128xf32, #tpu.memory_space<vmem>>, vector<1x32x128xf32>
    %101 = vector.shape_cast %100 : vector<1x32x128xf32> to vector<32x128xf32>
    %c8_i32_83 = arith.constant 8 : i32
    %102 = tpu.dynamic_rotate %101 by %c8_i32_83 dim 1 : vector<32x128xf32>, i32 -> vector<32x128xf32>
    %cst_84 = arith.constant 0.000000e+00 : f32
    %103 = vector.shape_cast %11 : vector<1x128xi1> to vector<1x128xi1>
    %104 = vector.broadcast %103 : vector<1x128xi1> to vector<32x128xi1>
    %105 = vector.broadcast %cst_84 : f32 to vector<32x128xf32>
    %106 = arith.select %104, %102, %105 : vector<32x128xi1>, vector<32x128xf32>
    %c0_85 = arith.constant 0 : index
    %c0_86 = arith.constant 0 : index
    %c0_87 = arith.constant 0 : index
    %c0_88 = arith.constant 0 : index
    %107 = vector.load %arg2[%c0_85, %c0_86, %c0_87, %c0_88] : memref<3x3x16x32xf32, #tpu.memory_space<vmem>>, vector<1x1x16x32xf32>
    %108 = vector.shape_cast %107 : vector<1x1x16x32xf32> to vector<16x32xf32>
    %cst_89 = arith.constant dense<0.000000e+00> : vector<16x128xf32>
    %109 = tpu.matmul %108, %106, %cst_89 {dimension_numbers = #tpu.dot_dimension_numbers<[1], [0], [0], [1], [0, 0, 1, 1], [], []>} : vector<16x32xf32>, vector<32x128xf32>, vector<16x128xf32> -> vector<16x128xf32>
    %110 = arith.addf %99, %109 : vector<16x128xf32>
    %c3_90 = arith.constant 3 : index
    %c0_91 = arith.constant 0 : index
    %c0_92 = arith.constant 0 : index
    %111 = vector.load %arg1[%c3_90, %c0_91, %c0_92] : memref<4x32x128xf32, #tpu.memory_space<vmem>>, vector<1x32x128xf32>
    %112 = vector.shape_cast %111 : vector<1x32x128xf32> to vector<32x128xf32>
    %c8_i32_93 = arith.constant 8 : i32
    %113 = tpu.dynamic_rotate %112 by %c8_i32_93 dim 1 : vector<32x128xf32>, i32 -> vector<32x128xf32>
    %cst_94 = arith.constant 0.000000e+00 : f32
    %114 = vector.shape_cast %11 : vector<1x128xi1> to vector<1x128xi1>
    %115 = vector.broadcast %114 : vector<1x128xi1> to vector<32x128xi1>
    %116 = vector.broadcast %cst_94 : f32 to vector<32x128xf32>
    %117 = arith.select %115, %113, %116 : vector<32x128xi1>, vector<32x128xf32>
    %c0_95 = arith.constant 0 : index
    %c1_96 = arith.constant 1 : index
    %c0_97 = arith.constant 0 : index
    %c0_98 = arith.constant 0 : index
    %118 = vector.load %arg2[%c0_95, %c1_96, %c0_97, %c0_98] : memref<3x3x16x32xf32, #tpu.memory_space<vmem>>, vector<1x1x16x32xf32>
    %119 = vector.shape_cast %118 : vector<1x1x16x32xf32> to vector<16x32xf32>
    %cst_99 = arith.constant dense<0.000000e+00> : vector<16x128xf32>
    %120 = tpu.matmul %119, %117, %cst_99 {dimension_numbers = #tpu.dot_dimension_numbers<[1], [0], [0], [1], [0, 0, 1, 1], [], []>} : vector<16x32xf32>, vector<32x128xf32>, vector<16x128xf32> -> vector<16x128xf32>
    %121 = arith.addf %110, %120 : vector<16x128xf32>
    %c2_100 = arith.constant 2 : index
    %c0_101 = arith.constant 0 : index
    %c0_102 = arith.constant 0 : index
    %122 = vector.load %arg1[%c2_100, %c0_101, %c0_102] : memref<4x32x128xf32, #tpu.memory_space<vmem>>, vector<1x32x128xf32>
    %123 = vector.shape_cast %122 : vector<1x32x128xf32> to vector<32x128xf32>
    %c7_i32_103 = arith.constant 7 : i32
    %124 = tpu.dynamic_rotate %123 by %c7_i32_103 dim 1 : vector<32x128xf32>, i32 -> vector<32x128xf32>
    %125 = arith.andi %11, %17 : vector<1x128xi1>
    %cst_104 = arith.constant 0.000000e+00 : f32
    %126 = vector.shape_cast %125 : vector<1x128xi1> to vector<1x128xi1>
    %127 = vector.broadcast %126 : vector<1x128xi1> to vector<32x128xi1>
    %128 = vector.broadcast %cst_104 : f32 to vector<32x128xf32>
    %129 = arith.select %127, %124, %128 : vector<32x128xi1>, vector<32x128xf32>
    %c0_105 = arith.constant 0 : index
    %c2_106 = arith.constant 2 : index
    %c0_107 = arith.constant 0 : index
    %c0_108 = arith.constant 0 : index
    %130 = vector.load %arg2[%c0_105, %c2_106, %c0_107, %c0_108] : memref<3x3x16x32xf32, #tpu.memory_space<vmem>>, vector<1x1x16x32xf32>
    %131 = vector.shape_cast %130 : vector<1x1x16x32xf32> to vector<16x32xf32>
    %cst_109 = arith.constant dense<0.000000e+00> : vector<16x128xf32>
    %132 = tpu.matmul %131, %129, %cst_109 {dimension_numbers = #tpu.dot_dimension_numbers<[1], [0], [0], [1], [0, 0, 1, 1], [], []>} : vector<16x32xf32>, vector<32x128xf32>, vector<16x128xf32> -> vector<16x128xf32>
    %133 = arith.addf %121, %132 : vector<16x128xf32>
    %c0_110 = arith.constant 0 : index
    %c0_111 = arith.constant 0 : index
    %c0_112 = arith.constant 0 : index
    %134 = vector.load %arg1[%c0_110, %c0_111, %c0_112] : memref<4x32x128xf32, #tpu.memory_space<vmem>>, vector<1x32x128xf32>
    %135 = vector.shape_cast %134 : vector<1x32x128xf32> to vector<32x128xf32>
    %c1_113 = arith.constant 1 : index
    %c0_114 = arith.constant 0 : index
    %c0_115 = arith.constant 0 : index
    %c0_116 = arith.constant 0 : index
    %136 = vector.load %arg2[%c1_113, %c0_114, %c0_115, %c0_116] : memref<3x3x16x32xf32, #tpu.memory_space<vmem>>, vector<1x1x16x32xf32>
    %137 = vector.shape_cast %136 : vector<1x1x16x32xf32> to vector<16x32xf32>
    %cst_117 = arith.constant dense<0.000000e+00> : vector<16x128xf32>
    %138 = tpu.matmul %137, %135, %cst_117 {dimension_numbers = #tpu.dot_dimension_numbers<[1], [0], [0], [1], [0, 0, 1, 1], [], []>} : vector<16x32xf32>, vector<32x128xf32>, vector<16x128xf32> -> vector<16x128xf32>
    %139 = arith.addf %133, %138 : vector<16x128xf32>
    %c1_118 = arith.constant 1 : index
    %c0_119 = arith.constant 0 : index
    %c0_120 = arith.constant 0 : index
    %140 = vector.load %arg1[%c1_118, %c0_119, %c0_120] : memref<4x32x128xf32, #tpu.memory_space<vmem>>, vector<1x32x128xf32>
    %141 = vector.shape_cast %140 : vector<1x32x128xf32> to vector<32x128xf32>
    %c1_121 = arith.constant 1 : index
    %c1_122 = arith.constant 1 : index
    %c0_123 = arith.constant 0 : index
    %c0_124 = arith.constant 0 : index
    %142 = vector.load %arg2[%c1_121, %c1_122, %c0_123, %c0_124] : memref<3x3x16x32xf32, #tpu.memory_space<vmem>>, vector<1x1x16x32xf32>
    %143 = vector.shape_cast %142 : vector<1x1x16x32xf32> to vector<16x32xf32>
    %cst_125 = arith.constant dense<0.000000e+00> : vector<16x128xf32>
    %144 = tpu.matmul %143, %141, %cst_125 {dimension_numbers = #tpu.dot_dimension_numbers<[1], [0], [0], [1], [0, 0, 1, 1], [], []>} : vector<16x32xf32>, vector<32x128xf32>, vector<16x128xf32> -> vector<16x128xf32>
    %145 = arith.addf %139, %144 : vector<16x128xf32>
    %c0_126 = arith.constant 0 : index
    %c0_127 = arith.constant 0 : index
    %c0_128 = arith.constant 0 : index
    %146 = vector.load %arg1[%c0_126, %c0_127, %c0_128] : memref<4x32x128xf32, #tpu.memory_space<vmem>>, vector<1x32x128xf32>
    %147 = vector.shape_cast %146 : vector<1x32x128xf32> to vector<32x128xf32>
    %c127_i32 = arith.constant 127 : i32
    %148 = tpu.dynamic_rotate %147 by %c127_i32 dim 1 : vector<32x128xf32>, i32 -> vector<32x128xf32>
    %cst_129 = arith.constant 0.000000e+00 : f32
    %149 = vector.shape_cast %17 : vector<1x128xi1> to vector<1x128xi1>
    %150 = vector.broadcast %149 : vector<1x128xi1> to vector<32x128xi1>
    %151 = vector.broadcast %cst_129 : f32 to vector<32x128xf32>
    %152 = arith.select %150, %148, %151 : vector<32x128xi1>, vector<32x128xf32>
    %c1_130 = arith.constant 1 : index
    %c2_131 = arith.constant 2 : index
    %c0_132 = arith.constant 0 : index
    %c0_133 = arith.constant 0 : index
    %153 = vector.load %arg2[%c1_130, %c2_131, %c0_132, %c0_133] : memref<3x3x16x32xf32, #tpu.memory_space<vmem>>, vector<1x1x16x32xf32>
    %154 = vector.shape_cast %153 : vector<1x1x16x32xf32> to vector<16x32xf32>
    %cst_134 = arith.constant dense<0.000000e+00> : vector<16x128xf32>
    %155 = tpu.matmul %154, %152, %cst_134 {dimension_numbers = #tpu.dot_dimension_numbers<[1], [0], [0], [1], [0, 0, 1, 1], [], []>} : vector<16x32xf32>, vector<32x128xf32>, vector<16x128xf32> -> vector<16x128xf32>
    %156 = arith.addf %145, %155 : vector<16x128xf32>
    %c2_135 = arith.constant 2 : index
    %c0_136 = arith.constant 0 : index
    %c0_137 = arith.constant 0 : index
    %157 = vector.load %arg1[%c2_135, %c0_136, %c0_137] : memref<4x32x128xf32, #tpu.memory_space<vmem>>, vector<1x32x128xf32>
    %158 = vector.shape_cast %157 : vector<1x32x128xf32> to vector<32x128xf32>
    %c2_138 = arith.constant 2 : index
    %c0_139 = arith.constant 0 : index
    %c0_140 = arith.constant 0 : index
    %c0_141 = arith.constant 0 : index
    %159 = vector.load %arg2[%c2_138, %c0_139, %c0_140, %c0_141] : memref<3x3x16x32xf32, #tpu.memory_space<vmem>>, vector<1x1x16x32xf32>
    %160 = vector.shape_cast %159 : vector<1x1x16x32xf32> to vector<16x32xf32>
    %cst_142 = arith.constant dense<0.000000e+00> : vector<16x128xf32>
    %161 = tpu.matmul %160, %158, %cst_142 {dimension_numbers = #tpu.dot_dimension_numbers<[1], [0], [0], [1], [0, 0, 1, 1], [], []>} : vector<16x32xf32>, vector<32x128xf32>, vector<16x128xf32> -> vector<16x128xf32>
    %162 = arith.addf %156, %161 : vector<16x128xf32>
    %c3_143 = arith.constant 3 : index
    %c0_144 = arith.constant 0 : index
    %c0_145 = arith.constant 0 : index
    %163 = vector.load %arg1[%c3_143, %c0_144, %c0_145] : memref<4x32x128xf32, #tpu.memory_space<vmem>>, vector<1x32x128xf32>
    %164 = vector.shape_cast %163 : vector<1x32x128xf32> to vector<32x128xf32>
    %c2_146 = arith.constant 2 : index
    %c1_147 = arith.constant 1 : index
    %c0_148 = arith.constant 0 : index
    %c0_149 = arith.constant 0 : index
    %165 = vector.load %arg2[%c2_146, %c1_147, %c0_148, %c0_149] : memref<3x3x16x32xf32, #tpu.memory_space<vmem>>, vector<1x1x16x32xf32>
    %166 = vector.shape_cast %165 : vector<1x1x16x32xf32> to vector<16x32xf32>
    %cst_150 = arith.constant dense<0.000000e+00> : vector<16x128xf32>
    %167 = tpu.matmul %166, %164, %cst_150 {dimension_numbers = #tpu.dot_dimension_numbers<[1], [0], [0], [1], [0, 0, 1, 1], [], []>} : vector<16x32xf32>, vector<32x128xf32>, vector<16x128xf32> -> vector<16x128xf32>
    %168 = arith.addf %162, %167 : vector<16x128xf32>
    %c2_151 = arith.constant 2 : index
    %c0_152 = arith.constant 0 : index
    %c0_153 = arith.constant 0 : index
    %169 = vector.load %arg1[%c2_151, %c0_152, %c0_153] : memref<4x32x128xf32, #tpu.memory_space<vmem>>, vector<1x32x128xf32>
    %170 = vector.shape_cast %169 : vector<1x32x128xf32> to vector<32x128xf32>
    %c127_i32_154 = arith.constant 127 : i32
    %171 = tpu.dynamic_rotate %170 by %c127_i32_154 dim 1 : vector<32x128xf32>, i32 -> vector<32x128xf32>
    %cst_155 = arith.constant 0.000000e+00 : f32
    %172 = vector.shape_cast %17 : vector<1x128xi1> to vector<1x128xi1>
    %173 = vector.broadcast %172 : vector<1x128xi1> to vector<32x128xi1>
    %174 = vector.broadcast %cst_155 : f32 to vector<32x128xf32>
    %175 = arith.select %173, %171, %174 : vector<32x128xi1>, vector<32x128xf32>
    %c2_156 = arith.constant 2 : index
    %c2_157 = arith.constant 2 : index
    %c0_158 = arith.constant 0 : index
    %c0_159 = arith.constant 0 : index
    %176 = vector.load %arg2[%c2_156, %c2_157, %c0_158, %c0_159] : memref<3x3x16x32xf32, #tpu.memory_space<vmem>>, vector<1x1x16x32xf32>
    %177 = vector.shape_cast %176 : vector<1x1x16x32xf32> to vector<16x32xf32>
    %cst_160 = arith.constant dense<0.000000e+00> : vector<16x128xf32>
    %178 = tpu.matmul %177, %175, %cst_160 {dimension_numbers = #tpu.dot_dimension_numbers<[1], [0], [0], [1], [0, 0, 1, 1], [], []>} : vector<16x32xf32>, vector<32x128xf32>, vector<16x128xf32> -> vector<16x128xf32>
    %179 = arith.addf %168, %178 : vector<16x128xf32>
    %180 = arith.maximumf %98, %179 : vector<16x128xf32>
    %cst_161 = arith.constant 0.000000e+00 : f32
    %181 = vector.broadcast %cst_161 : f32 to vector<16x128xf32>
    %c1_162 = arith.constant 1 : index
    %c0_163 = arith.constant 0 : index
    %c0_164 = arith.constant 0 : index
    %182 = vector.load %arg1[%c1_162, %c0_163, %c0_164] : memref<4x32x128xf32, #tpu.memory_space<vmem>>, vector<1x32x128xf32>
    %183 = vector.shape_cast %182 : vector<1x32x128xf32> to vector<32x128xf32>
    %c1_i32_165 = arith.constant 1 : i32
    %184 = tpu.dynamic_rotate %183 by %c1_i32_165 dim 1 : vector<32x128xf32>, i32 -> vector<32x128xf32>
    %cst_166 = arith.constant 0.000000e+00 : f32
    %185 = vector.shape_cast %15 : vector<1x128xi1> to vector<1x128xi1>
    %186 = vector.broadcast %185 : vector<1x128xi1> to vector<32x128xi1>
    %187 = vector.broadcast %cst_166 : f32 to vector<32x128xf32>
    %188 = arith.select %186, %184, %187 : vector<32x128xi1>, vector<32x128xf32>
    %c0_167 = arith.constant 0 : index
    %c0_168 = arith.constant 0 : index
    %c0_169 = arith.constant 0 : index
    %c0_170 = arith.constant 0 : index
    %189 = vector.load %arg2[%c0_167, %c0_168, %c0_169, %c0_170] : memref<3x3x16x32xf32, #tpu.memory_space<vmem>>, vector<1x1x16x32xf32>
    %190 = vector.shape_cast %189 : vector<1x1x16x32xf32> to vector<16x32xf32>
    %cst_171 = arith.constant dense<0.000000e+00> : vector<16x128xf32>
    %191 = tpu.matmul %190, %188, %cst_171 {dimension_numbers = #tpu.dot_dimension_numbers<[1], [0], [0], [1], [0, 0, 1, 1], [], []>} : vector<16x32xf32>, vector<32x128xf32>, vector<16x128xf32> -> vector<16x128xf32>
    %192 = arith.addf %181, %191 : vector<16x128xf32>
    %c0_172 = arith.constant 0 : index
    %c0_173 = arith.constant 0 : index
    %c0_174 = arith.constant 0 : index
    %193 = vector.load %arg1[%c0_172, %c0_173, %c0_174] : memref<4x32x128xf32, #tpu.memory_space<vmem>>, vector<1x32x128xf32>
    %194 = vector.shape_cast %193 : vector<1x32x128xf32> to vector<32x128xf32>
    %c0_175 = arith.constant 0 : index
    %c1_176 = arith.constant 1 : index
    %c0_177 = arith.constant 0 : index
    %c0_178 = arith.constant 0 : index
    %195 = vector.load %arg2[%c0_175, %c1_176, %c0_177, %c0_178] : memref<3x3x16x32xf32, #tpu.memory_space<vmem>>, vector<1x1x16x32xf32>
    %196 = vector.shape_cast %195 : vector<1x1x16x32xf32> to vector<16x32xf32>
    %cst_179 = arith.constant dense<0.000000e+00> : vector<16x128xf32>
    %197 = tpu.matmul %196, %194, %cst_179 {dimension_numbers = #tpu.dot_dimension_numbers<[1], [0], [0], [1], [0, 0, 1, 1], [], []>} : vector<16x32xf32>, vector<32x128xf32>, vector<16x128xf32> -> vector<16x128xf32>
    %198 = arith.addf %192, %197 : vector<16x128xf32>
    %c1_180 = arith.constant 1 : index
    %c0_181 = arith.constant 0 : index
    %c0_182 = arith.constant 0 : index
    %199 = vector.load %arg1[%c1_180, %c0_181, %c0_182] : memref<4x32x128xf32, #tpu.memory_space<vmem>>, vector<1x32x128xf32>
    %200 = vector.shape_cast %199 : vector<1x32x128xf32> to vector<32x128xf32>
    %c0_183 = arith.constant 0 : index
    %c2_184 = arith.constant 2 : index
    %c0_185 = arith.constant 0 : index
    %c0_186 = arith.constant 0 : index
    %201 = vector.load %arg2[%c0_183, %c2_184, %c0_185, %c0_186] : memref<3x3x16x32xf32, #tpu.memory_space<vmem>>, vector<1x1x16x32xf32>
    %202 = vector.shape_cast %201 : vector<1x1x16x32xf32> to vector<16x32xf32>
    %cst_187 = arith.constant dense<0.000000e+00> : vector<16x128xf32>
    %203 = tpu.matmul %202, %200, %cst_187 {dimension_numbers = #tpu.dot_dimension_numbers<[1], [0], [0], [1], [0, 0, 1, 1], [], []>} : vector<16x32xf32>, vector<32x128xf32>, vector<16x128xf32> -> vector<16x128xf32>
    %204 = arith.addf %198, %203 : vector<16x128xf32>
    %c3_188 = arith.constant 3 : index
    %c0_189 = arith.constant 0 : index
    %c0_190 = arith.constant 0 : index
    %205 = vector.load %arg1[%c3_188, %c0_189, %c0_190] : memref<4x32x128xf32, #tpu.memory_space<vmem>>, vector<1x32x128xf32>
    %206 = vector.shape_cast %205 : vector<1x32x128xf32> to vector<32x128xf32>
    %c1_i32_191 = arith.constant 1 : i32
    %207 = tpu.dynamic_rotate %206 by %c1_i32_191 dim 1 : vector<32x128xf32>, i32 -> vector<32x128xf32>
    %cst_192 = arith.constant 0.000000e+00 : f32
    %208 = vector.shape_cast %15 : vector<1x128xi1> to vector<1x128xi1>
    %209 = vector.broadcast %208 : vector<1x128xi1> to vector<32x128xi1>
    %210 = vector.broadcast %cst_192 : f32 to vector<32x128xf32>
    %211 = arith.select %209, %207, %210 : vector<32x128xi1>, vector<32x128xf32>
    %c1_193 = arith.constant 1 : index
    %c0_194 = arith.constant 0 : index
    %c0_195 = arith.constant 0 : index
    %c0_196 = arith.constant 0 : index
    %212 = vector.load %arg2[%c1_193, %c0_194, %c0_195, %c0_196] : memref<3x3x16x32xf32, #tpu.memory_space<vmem>>, vector<1x1x16x32xf32>
    %213 = vector.shape_cast %212 : vector<1x1x16x32xf32> to vector<16x32xf32>
    %cst_197 = arith.constant dense<0.000000e+00> : vector<16x128xf32>
    %214 = tpu.matmul %213, %211, %cst_197 {dimension_numbers = #tpu.dot_dimension_numbers<[1], [0], [0], [1], [0, 0, 1, 1], [], []>} : vector<16x32xf32>, vector<32x128xf32>, vector<16x128xf32> -> vector<16x128xf32>
    %215 = arith.addf %204, %214 : vector<16x128xf32>
    %c2_198 = arith.constant 2 : index
    %c0_199 = arith.constant 0 : index
    %c0_200 = arith.constant 0 : index
    %216 = vector.load %arg1[%c2_198, %c0_199, %c0_200] : memref<4x32x128xf32, #tpu.memory_space<vmem>>, vector<1x32x128xf32>
    %217 = vector.shape_cast %216 : vector<1x32x128xf32> to vector<32x128xf32>
    %c1_201 = arith.constant 1 : index
    %c1_202 = arith.constant 1 : index
    %c0_203 = arith.constant 0 : index
    %c0_204 = arith.constant 0 : index
    %218 = vector.load %arg2[%c1_201, %c1_202, %c0_203, %c0_204] : memref<3x3x16x32xf32, #tpu.memory_space<vmem>>, vector<1x1x16x32xf32>
    %219 = vector.shape_cast %218 : vector<1x1x16x32xf32> to vector<16x32xf32>
    %cst_205 = arith.constant dense<0.000000e+00> : vector<16x128xf32>
    %220 = tpu.matmul %219, %217, %cst_205 {dimension_numbers = #tpu.dot_dimension_numbers<[1], [0], [0], [1], [0, 0, 1, 1], [], []>} : vector<16x32xf32>, vector<32x128xf32>, vector<16x128xf32> -> vector<16x128xf32>
    %221 = arith.addf %215, %220 : vector<16x128xf32>
    %c3_206 = arith.constant 3 : index
    %c0_207 = arith.constant 0 : index
    %c0_208 = arith.constant 0 : index
    %222 = vector.load %arg1[%c3_206, %c0_207, %c0_208] : memref<4x32x128xf32, #tpu.memory_space<vmem>>, vector<1x32x128xf32>
    %223 = vector.shape_cast %222 : vector<1x32x128xf32> to vector<32x128xf32>
    %c1_209 = arith.constant 1 : index
    %c2_210 = arith.constant 2 : index
    %c0_211 = arith.constant 0 : index
    %c0_212 = arith.constant 0 : index
    %224 = vector.load %arg2[%c1_209, %c2_210, %c0_211, %c0_212] : memref<3x3x16x32xf32, #tpu.memory_space<vmem>>, vector<1x1x16x32xf32>
    %225 = vector.shape_cast %224 : vector<1x1x16x32xf32> to vector<16x32xf32>
    %cst_213 = arith.constant dense<0.000000e+00> : vector<16x128xf32>
    %226 = tpu.matmul %225, %223, %cst_213 {dimension_numbers = #tpu.dot_dimension_numbers<[1], [0], [0], [1], [0, 0, 1, 1], [], []>} : vector<16x32xf32>, vector<32x128xf32>, vector<16x128xf32> -> vector<16x128xf32>
    %227 = arith.addf %221, %226 : vector<16x128xf32>
    %c1_214 = arith.constant 1 : index
    %c0_215 = arith.constant 0 : index
    %c0_216 = arith.constant 0 : index
    %228 = vector.load %arg1[%c1_214, %c0_215, %c0_216] : memref<4x32x128xf32, #tpu.memory_space<vmem>>, vector<1x32x128xf32>
    %229 = vector.shape_cast %228 : vector<1x32x128xf32> to vector<32x128xf32>
    %c121_i32 = arith.constant 121 : i32
    %230 = tpu.dynamic_rotate %229 by %c121_i32 dim 1 : vector<32x128xf32>, i32 -> vector<32x128xf32>
    %231 = arith.andi %13, %15 : vector<1x128xi1>
    %cst_217 = arith.constant 0.000000e+00 : f32
    %232 = vector.shape_cast %231 : vector<1x128xi1> to vector<1x128xi1>
    %233 = vector.broadcast %232 : vector<1x128xi1> to vector<32x128xi1>
    %234 = vector.broadcast %cst_217 : f32 to vector<32x128xf32>
    %235 = arith.select %233, %230, %234 : vector<32x128xi1>, vector<32x128xf32>
    %c2_218 = arith.constant 2 : index
    %c0_219 = arith.constant 0 : index
    %c0_220 = arith.constant 0 : index
    %c0_221 = arith.constant 0 : index
    %236 = vector.load %arg2[%c2_218, %c0_219, %c0_220, %c0_221] : memref<3x3x16x32xf32, #tpu.memory_space<vmem>>, vector<1x1x16x32xf32>
    %237 = vector.shape_cast %236 : vector<1x1x16x32xf32> to vector<16x32xf32>
    %cst_222 = arith.constant dense<0.000000e+00> : vector<16x128xf32>
    %238 = tpu.matmul %237, %235, %cst_222 {dimension_numbers = #tpu.dot_dimension_numbers<[1], [0], [0], [1], [0, 0, 1, 1], [], []>} : vector<16x32xf32>, vector<32x128xf32>, vector<16x128xf32> -> vector<16x128xf32>
    %239 = arith.addf %227, %238 : vector<16x128xf32>
    %c0_223 = arith.constant 0 : index
    %c0_224 = arith.constant 0 : index
    %c0_225 = arith.constant 0 : index
    %240 = vector.load %arg1[%c0_223, %c0_224, %c0_225] : memref<4x32x128xf32, #tpu.memory_space<vmem>>, vector<1x32x128xf32>
    %241 = vector.shape_cast %240 : vector<1x32x128xf32> to vector<32x128xf32>
    %c120_i32 = arith.constant 120 : i32
    %242 = tpu.dynamic_rotate %241 by %c120_i32 dim 1 : vector<32x128xf32>, i32 -> vector<32x128xf32>
    %cst_226 = arith.constant 0.000000e+00 : f32
    %243 = vector.shape_cast %13 : vector<1x128xi1> to vector<1x128xi1>
    %244 = vector.broadcast %243 : vector<1x128xi1> to vector<32x128xi1>
    %245 = vector.broadcast %cst_226 : f32 to vector<32x128xf32>
    %246 = arith.select %244, %242, %245 : vector<32x128xi1>, vector<32x128xf32>
    %c2_227 = arith.constant 2 : index
    %c1_228 = arith.constant 1 : index
    %c0_229 = arith.constant 0 : index
    %c0_230 = arith.constant 0 : index
    %247 = vector.load %arg2[%c2_227, %c1_228, %c0_229, %c0_230] : memref<3x3x16x32xf32, #tpu.memory_space<vmem>>, vector<1x1x16x32xf32>
    %248 = vector.shape_cast %247 : vector<1x1x16x32xf32> to vector<16x32xf32>
    %cst_231 = arith.constant dense<0.000000e+00> : vector<16x128xf32>
    %249 = tpu.matmul %248, %246, %cst_231 {dimension_numbers = #tpu.dot_dimension_numbers<[1], [0], [0], [1], [0, 0, 1, 1], [], []>} : vector<16x32xf32>, vector<32x128xf32>, vector<16x128xf32> -> vector<16x128xf32>
    %250 = arith.addf %239, %249 : vector<16x128xf32>
    %c1_232 = arith.constant 1 : index
    %c0_233 = arith.constant 0 : index
    %c0_234 = arith.constant 0 : index
    %251 = vector.load %arg1[%c1_232, %c0_233, %c0_234] : memref<4x32x128xf32, #tpu.memory_space<vmem>>, vector<1x32x128xf32>
    %252 = vector.shape_cast %251 : vector<1x32x128xf32> to vector<32x128xf32>
    %c120_i32_235 = arith.constant 120 : i32
    %253 = tpu.dynamic_rotate %252 by %c120_i32_235 dim 1 : vector<32x128xf32>, i32 -> vector<32x128xf32>
    %cst_236 = arith.constant 0.000000e+00 : f32
    %254 = vector.shape_cast %13 : vector<1x128xi1> to vector<1x128xi1>
    %255 = vector.broadcast %254 : vector<1x128xi1> to vector<32x128xi1>
    %256 = vector.broadcast %cst_236 : f32 to vector<32x128xf32>
    %257 = arith.select %255, %253, %256 : vector<32x128xi1>, vector<32x128xf32>
    %c2_237 = arith.constant 2 : index
    %c2_238 = arith.constant 2 : index
    %c0_239 = arith.constant 0 : index
    %c0_240 = arith.constant 0 : index
    %258 = vector.load %arg2[%c2_237, %c2_238, %c0_239, %c0_240] : memref<3x3x16x32xf32, #tpu.memory_space<vmem>>, vector<1x1x16x32xf32>
    %259 = vector.shape_cast %258 : vector<1x1x16x32xf32> to vector<16x32xf32>
    %cst_241 = arith.constant dense<0.000000e+00> : vector<16x128xf32>
    %260 = tpu.matmul %259, %257, %cst_241 {dimension_numbers = #tpu.dot_dimension_numbers<[1], [0], [0], [1], [0, 0, 1, 1], [], []>} : vector<16x32xf32>, vector<32x128xf32>, vector<16x128xf32> -> vector<16x128xf32>
    %261 = arith.addf %250, %260 : vector<16x128xf32>
    %262 = arith.maximumf %180, %261 : vector<16x128xf32>
    %cst_242 = arith.constant 0.000000e+00 : f32
    %263 = vector.broadcast %cst_242 : f32 to vector<16x128xf32>
    %c0_243 = arith.constant 0 : index
    %c0_244 = arith.constant 0 : index
    %c0_245 = arith.constant 0 : index
    %264 = vector.load %arg1[%c0_243, %c0_244, %c0_245] : memref<4x32x128xf32, #tpu.memory_space<vmem>>, vector<1x32x128xf32>
    %265 = vector.shape_cast %264 : vector<1x32x128xf32> to vector<32x128xf32>
    %c0_246 = arith.constant 0 : index
    %c0_247 = arith.constant 0 : index
    %c0_248 = arith.constant 0 : index
    %c0_249 = arith.constant 0 : index
    %266 = vector.load %arg2[%c0_246, %c0_247, %c0_248, %c0_249] : memref<3x3x16x32xf32, #tpu.memory_space<vmem>>, vector<1x1x16x32xf32>
    %267 = vector.shape_cast %266 : vector<1x1x16x32xf32> to vector<16x32xf32>
    %cst_250 = arith.constant dense<0.000000e+00> : vector<16x128xf32>
    %268 = tpu.matmul %267, %265, %cst_250 {dimension_numbers = #tpu.dot_dimension_numbers<[1], [0], [0], [1], [0, 0, 1, 1], [], []>} : vector<16x32xf32>, vector<32x128xf32>, vector<16x128xf32> -> vector<16x128xf32>
    %269 = arith.addf %263, %268 : vector<16x128xf32>
    %c1_251 = arith.constant 1 : index
    %c0_252 = arith.constant 0 : index
    %c0_253 = arith.constant 0 : index
    %270 = vector.load %arg1[%c1_251, %c0_252, %c0_253] : memref<4x32x128xf32, #tpu.memory_space<vmem>>, vector<1x32x128xf32>
    %271 = vector.shape_cast %270 : vector<1x32x128xf32> to vector<32x128xf32>
    %c0_254 = arith.constant 0 : index
    %c1_255 = arith.constant 1 : index
    %c0_256 = arith.constant 0 : index
    %c0_257 = arith.constant 0 : index
    %272 = vector.load %arg2[%c0_254, %c1_255, %c0_256, %c0_257] : memref<3x3x16x32xf32, #tpu.memory_space<vmem>>, vector<1x1x16x32xf32>
    %273 = vector.shape_cast %272 : vector<1x1x16x32xf32> to vector<16x32xf32>
    %cst_258 = arith.constant dense<0.000000e+00> : vector<16x128xf32>
    %274 = tpu.matmul %273, %271, %cst_258 {dimension_numbers = #tpu.dot_dimension_numbers<[1], [0], [0], [1], [0, 0, 1, 1], [], []>} : vector<16x32xf32>, vector<32x128xf32>, vector<16x128xf32> -> vector<16x128xf32>
    %275 = arith.addf %269, %274 : vector<16x128xf32>
    %c0_259 = arith.constant 0 : index
    %c0_260 = arith.constant 0 : index
    %c0_261 = arith.constant 0 : index
    %276 = vector.load %arg1[%c0_259, %c0_260, %c0_261] : memref<4x32x128xf32, #tpu.memory_space<vmem>>, vector<1x32x128xf32>
    %277 = vector.shape_cast %276 : vector<1x32x128xf32> to vector<32x128xf32>
    %c127_i32_262 = arith.constant 127 : i32
    %278 = tpu.dynamic_rotate %277 by %c127_i32_262 dim 1 : vector<32x128xf32>, i32 -> vector<32x128xf32>
    %cst_263 = arith.constant 0.000000e+00 : f32
    %279 = vector.shape_cast %17 : vector<1x128xi1> to vector<1x128xi1>
    %280 = vector.broadcast %279 : vector<1x128xi1> to vector<32x128xi1>
    %281 = vector.broadcast %cst_263 : f32 to vector<32x128xf32>
    %282 = arith.select %280, %278, %281 : vector<32x128xi1>, vector<32x128xf32>
    %c0_264 = arith.constant 0 : index
    %c2_265 = arith.constant 2 : index
    %c0_266 = arith.constant 0 : index
    %c0_267 = arith.constant 0 : index
    %283 = vector.load %arg2[%c0_264, %c2_265, %c0_266, %c0_267] : memref<3x3x16x32xf32, #tpu.memory_space<vmem>>, vector<1x1x16x32xf32>
    %284 = vector.shape_cast %283 : vector<1x1x16x32xf32> to vector<16x32xf32>
    %cst_268 = arith.constant dense<0.000000e+00> : vector<16x128xf32>
    %285 = tpu.matmul %284, %282, %cst_268 {dimension_numbers = #tpu.dot_dimension_numbers<[1], [0], [0], [1], [0, 0, 1, 1], [], []>} : vector<16x32xf32>, vector<32x128xf32>, vector<16x128xf32> -> vector<16x128xf32>
    %286 = arith.addf %275, %285 : vector<16x128xf32>
    %c2_269 = arith.constant 2 : index
    %c0_270 = arith.constant 0 : index
    %c0_271 = arith.constant 0 : index
    %287 = vector.load %arg1[%c2_269, %c0_270, %c0_271] : memref<4x32x128xf32, #tpu.memory_space<vmem>>, vector<1x32x128xf32>
    %288 = vector.shape_cast %287 : vector<1x32x128xf32> to vector<32x128xf32>
    %c1_272 = arith.constant 1 : index
    %c0_273 = arith.constant 0 : index
    %c0_274 = arith.constant 0 : index
    %c0_275 = arith.constant 0 : index
    %289 = vector.load %arg2[%c1_272, %c0_273, %c0_274, %c0_275] : memref<3x3x16x32xf32, #tpu.memory_space<vmem>>, vector<1x1x16x32xf32>
    %290 = vector.shape_cast %289 : vector<1x1x16x32xf32> to vector<16x32xf32>
    %cst_276 = arith.constant dense<0.000000e+00> : vector<16x128xf32>
    %291 = tpu.matmul %290, %288, %cst_276 {dimension_numbers = #tpu.dot_dimension_numbers<[1], [0], [0], [1], [0, 0, 1, 1], [], []>} : vector<16x32xf32>, vector<32x128xf32>, vector<16x128xf32> -> vector<16x128xf32>
    %292 = arith.addf %286, %291 : vector<16x128xf32>
    %c3_277 = arith.constant 3 : index
    %c0_278 = arith.constant 0 : index
    %c0_279 = arith.constant 0 : index
    %293 = vector.load %arg1[%c3_277, %c0_278, %c0_279] : memref<4x32x128xf32, #tpu.memory_space<vmem>>, vector<1x32x128xf32>
    %294 = vector.shape_cast %293 : vector<1x32x128xf32> to vector<32x128xf32>
    %c1_280 = arith.constant 1 : index
    %c1_281 = arith.constant 1 : index
    %c0_282 = arith.constant 0 : index
    %c0_283 = arith.constant 0 : index
    %295 = vector.load %arg2[%c1_280, %c1_281, %c0_282, %c0_283] : memref<3x3x16x32xf32, #tpu.memory_space<vmem>>, vector<1x1x16x32xf32>
    %296 = vector.shape_cast %295 : vector<1x1x16x32xf32> to vector<16x32xf32>
    %cst_284 = arith.constant dense<0.000000e+00> : vector<16x128xf32>
    %297 = tpu.matmul %296, %294, %cst_284 {dimension_numbers = #tpu.dot_dimension_numbers<[1], [0], [0], [1], [0, 0, 1, 1], [], []>} : vector<16x32xf32>, vector<32x128xf32>, vector<16x128xf32> -> vector<16x128xf32>
    %298 = arith.addf %292, %297 : vector<16x128xf32>
    %c2_285 = arith.constant 2 : index
    %c0_286 = arith.constant 0 : index
    %c0_287 = arith.constant 0 : index
    %299 = vector.load %arg1[%c2_285, %c0_286, %c0_287] : memref<4x32x128xf32, #tpu.memory_space<vmem>>, vector<1x32x128xf32>
    %300 = vector.shape_cast %299 : vector<1x32x128xf32> to vector<32x128xf32>
    %c127_i32_288 = arith.constant 127 : i32
    %301 = tpu.dynamic_rotate %300 by %c127_i32_288 dim 1 : vector<32x128xf32>, i32 -> vector<32x128xf32>
    %cst_289 = arith.constant 0.000000e+00 : f32
    %302 = vector.shape_cast %17 : vector<1x128xi1> to vector<1x128xi1>
    %303 = vector.broadcast %302 : vector<1x128xi1> to vector<32x128xi1>
    %304 = vector.broadcast %cst_289 : f32 to vector<32x128xf32>
    %305 = arith.select %303, %301, %304 : vector<32x128xi1>, vector<32x128xf32>
    %c1_290 = arith.constant 1 : index
    %c2_291 = arith.constant 2 : index
    %c0_292 = arith.constant 0 : index
    %c0_293 = arith.constant 0 : index
    %306 = vector.load %arg2[%c1_290, %c2_291, %c0_292, %c0_293] : memref<3x3x16x32xf32, #tpu.memory_space<vmem>>, vector<1x1x16x32xf32>
    %307 = vector.shape_cast %306 : vector<1x1x16x32xf32> to vector<16x32xf32>
    %cst_294 = arith.constant dense<0.000000e+00> : vector<16x128xf32>
    %308 = tpu.matmul %307, %305, %cst_294 {dimension_numbers = #tpu.dot_dimension_numbers<[1], [0], [0], [1], [0, 0, 1, 1], [], []>} : vector<16x32xf32>, vector<32x128xf32>, vector<16x128xf32> -> vector<16x128xf32>
    %309 = arith.addf %298, %308 : vector<16x128xf32>
    %c0_295 = arith.constant 0 : index
    %c0_296 = arith.constant 0 : index
    %c0_297 = arith.constant 0 : index
    %310 = vector.load %arg1[%c0_295, %c0_296, %c0_297] : memref<4x32x128xf32, #tpu.memory_space<vmem>>, vector<1x32x128xf32>
    %311 = vector.shape_cast %310 : vector<1x32x128xf32> to vector<32x128xf32>
    %c120_i32_298 = arith.constant 120 : i32
    %312 = tpu.dynamic_rotate %311 by %c120_i32_298 dim 1 : vector<32x128xf32>, i32 -> vector<32x128xf32>
    %cst_299 = arith.constant 0.000000e+00 : f32
    %313 = vector.shape_cast %13 : vector<1x128xi1> to vector<1x128xi1>
    %314 = vector.broadcast %313 : vector<1x128xi1> to vector<32x128xi1>
    %315 = vector.broadcast %cst_299 : f32 to vector<32x128xf32>
    %316 = arith.select %314, %312, %315 : vector<32x128xi1>, vector<32x128xf32>
    %c2_300 = arith.constant 2 : index
    %c0_301 = arith.constant 0 : index
    %c0_302 = arith.constant 0 : index
    %c0_303 = arith.constant 0 : index
    %317 = vector.load %arg2[%c2_300, %c0_301, %c0_302, %c0_303] : memref<3x3x16x32xf32, #tpu.memory_space<vmem>>, vector<1x1x16x32xf32>
    %318 = vector.shape_cast %317 : vector<1x1x16x32xf32> to vector<16x32xf32>
    %cst_304 = arith.constant dense<0.000000e+00> : vector<16x128xf32>
    %319 = tpu.matmul %318, %316, %cst_304 {dimension_numbers = #tpu.dot_dimension_numbers<[1], [0], [0], [1], [0, 0, 1, 1], [], []>} : vector<16x32xf32>, vector<32x128xf32>, vector<16x128xf32> -> vector<16x128xf32>
    %320 = arith.addf %309, %319 : vector<16x128xf32>
    %c1_305 = arith.constant 1 : index
    %c0_306 = arith.constant 0 : index
    %c0_307 = arith.constant 0 : index
    %321 = vector.load %arg1[%c1_305, %c0_306, %c0_307] : memref<4x32x128xf32, #tpu.memory_space<vmem>>, vector<1x32x128xf32>
    %322 = vector.shape_cast %321 : vector<1x32x128xf32> to vector<32x128xf32>
    %c120_i32_308 = arith.constant 120 : i32
    %323 = tpu.dynamic_rotate %322 by %c120_i32_308 dim 1 : vector<32x128xf32>, i32 -> vector<32x128xf32>
    %cst_309 = arith.constant 0.000000e+00 : f32
    %324 = vector.shape_cast %13 : vector<1x128xi1> to vector<1x128xi1>
    %325 = vector.broadcast %324 : vector<1x128xi1> to vector<32x128xi1>
    %326 = vector.broadcast %cst_309 : f32 to vector<32x128xf32>
    %327 = arith.select %325, %323, %326 : vector<32x128xi1>, vector<32x128xf32>
    %c2_310 = arith.constant 2 : index
    %c1_311 = arith.constant 1 : index
    %c0_312 = arith.constant 0 : index
    %c0_313 = arith.constant 0 : index
    %328 = vector.load %arg2[%c2_310, %c1_311, %c0_312, %c0_313] : memref<3x3x16x32xf32, #tpu.memory_space<vmem>>, vector<1x1x16x32xf32>
    %329 = vector.shape_cast %328 : vector<1x1x16x32xf32> to vector<16x32xf32>
    %cst_314 = arith.constant dense<0.000000e+00> : vector<16x128xf32>
    %330 = tpu.matmul %329, %327, %cst_314 {dimension_numbers = #tpu.dot_dimension_numbers<[1], [0], [0], [1], [0, 0, 1, 1], [], []>} : vector<16x32xf32>, vector<32x128xf32>, vector<16x128xf32> -> vector<16x128xf32>
    %331 = arith.addf %320, %330 : vector<16x128xf32>
    %c0_315 = arith.constant 0 : index
    %c0_316 = arith.constant 0 : index
    %c0_317 = arith.constant 0 : index
    %332 = vector.load %arg1[%c0_315, %c0_316, %c0_317] : memref<4x32x128xf32, #tpu.memory_space<vmem>>, vector<1x32x128xf32>
    %333 = vector.shape_cast %332 : vector<1x32x128xf32> to vector<32x128xf32>
    %c119_i32 = arith.constant 119 : i32
    %334 = tpu.dynamic_rotate %333 by %c119_i32 dim 1 : vector<32x128xf32>, i32 -> vector<32x128xf32>
    %335 = arith.andi %13, %17 : vector<1x128xi1>
    %cst_318 = arith.constant 0.000000e+00 : f32
    %336 = vector.shape_cast %335 : vector<1x128xi1> to vector<1x128xi1>
    %337 = vector.broadcast %336 : vector<1x128xi1> to vector<32x128xi1>
    %338 = vector.broadcast %cst_318 : f32 to vector<32x128xf32>
    %339 = arith.select %337, %334, %338 : vector<32x128xi1>, vector<32x128xf32>
    %c2_319 = arith.constant 2 : index
    %c2_320 = arith.constant 2 : index
    %c0_321 = arith.constant 0 : index
    %c0_322 = arith.constant 0 : index
    %340 = vector.load %arg2[%c2_319, %c2_320, %c0_321, %c0_322] : memref<3x3x16x32xf32, #tpu.memory_space<vmem>>, vector<1x1x16x32xf32>
    %341 = vector.shape_cast %340 : vector<1x1x16x32xf32> to vector<16x32xf32>
    %cst_323 = arith.constant dense<0.000000e+00> : vector<16x128xf32>
    %342 = tpu.matmul %341, %339, %cst_323 {dimension_numbers = #tpu.dot_dimension_numbers<[1], [0], [0], [1], [0, 0, 1, 1], [], []>} : vector<16x32xf32>, vector<32x128xf32>, vector<16x128xf32> -> vector<16x128xf32>
    %343 = arith.addf %331, %342 : vector<16x128xf32>
    %344 = arith.maximumf %262, %343 : vector<16x128xf32>
    %c0_324 = arith.constant 0 : index
    %c0_325 = arith.constant 0 : index
    %345 = vector.load %arg3[%c0_324, %c0_325] : memref<16x1xf32, #tpu.memory_space<vmem>>, vector<16x1xf32>
    %346 = vector.broadcast %345 : vector<16x1xf32> to vector<16x128xf32>
    %347 = arith.addf %344, %346 : vector<16x128xf32>
    %348 = math.tanh %347 : vector<16x128xf32>
    %c0_326 = arith.constant 0 : index
    %c0_327 = arith.constant 0 : index
    %349 = vector.load %arg4[%c0_326, %c0_327] : memref<16x128xf32, #tpu.memory_space<vmem>>, vector<16x128xf32>
    tpu.vector_store %arg4[%c0_326, %c0_327], %348 {strides = array<i32>} : memref<16x128xf32, #tpu.memory_space<vmem>>, vector<16x128xf32>,
    return
  }
  func.func @transform_0(%arg0: i32) -> (i32, i32, i32) {
    %c0_i32 = arith.constant 0 : i32
    %c0_i32_0 = arith.constant 0 : i32
    %c0_i32_1 = arith.constant 0 : i32
    return %c0_i32, %c0_i32_0, %arg0 : i32, i32, i32
  }
  func.func @transform_1(%arg0: i32) -> (i32, i32, i32, i32) {
    %c0_i32 = arith.constant 0 : i32
    %c0_i32_0 = arith.constant 0 : i32
    %c0_i32_1 = arith.constant 0 : i32
    %c0_i32_2 = arith.constant 0 : i32
    %c0_i32_3 = arith.constant 0 : i32
    return %c0_i32, %c0_i32_0, %c0_i32_1, %c0_i32_2 : i32, i32, i32, i32
  }
  func.func @transform_2(%arg0: i32) -> (i32, i32) {
    %c0_i32 = arith.constant 0 : i32
    %c0_i32_0 = arith.constant 0 : i32
    %c0_i32_1 = arith.constant 0 : i32
    return %c0_i32, %c0_i32_0 : i32, i32
  }
  func.func @transform_3(%arg0: i32) -> (i32, i32) {
    %c0_i32 = arith.constant 0 : i32
    %c0_i32_0 = arith.constant 0 : i32
    return %c0_i32, %arg0 : i32, i32
  }
}

module attributes {stable_mosaic.version = 11 : i64} {
  func.func @_fc_head_kernel(%arg0: i32, %arg1: memref<1024x128xf32, #tpu.memory_space<vmem>>, %arg2: memref<32x1024xf32, #tpu.memory_space<vmem>>, %arg3: memref<32x1xf32, #tpu.memory_space<vmem>>, %arg4: memref<2x32xf32, #tpu.memory_space<vmem>>, %arg5: memref<2x1xf32, #tpu.memory_space<vmem>>, %arg6: memref<2x128xf32, #tpu.memory_space<vmem>>) attributes {dimension_semantics = [#tpu.dimension_semantics<parallel>], iteration_bounds = array<i64: 1>, scalar_prefetch = 0 : i64, scratch_operands = 0 : i64, tpu.core_type = #tpu.core_type<tc>, window_params = [{transform_indices = @transform_0, window_bounds = array<i64: 1024, 128>}, {pipeline_mode = #tpu.pipeline_mode<synchronous>, transform_indices = @transform_1, window_bounds = array<i64: 32, 1024>}, {pipeline_mode = #tpu.pipeline_mode<synchronous>, transform_indices = @transform_2, window_bounds = array<i64: 32, 1>}, {pipeline_mode = #tpu.pipeline_mode<synchronous>, transform_indices = @transform_3, window_bounds = array<i64: 2, 32>}, {pipeline_mode = #tpu.pipeline_mode<synchronous>, transform_indices = @transform_4, window_bounds = array<i64: 2, 1>}, {transform_indices = @transform_5, window_bounds = array<i64: 2, 128>}]} {
    %c0 = arith.constant 0 : index
    %c0_0 = arith.constant 0 : index
    %0 = vector.load %arg2[%c0, %c0_0] : memref<32x1024xf32, #tpu.memory_space<vmem>>, vector<32x1024xf32>
    %c0_1 = arith.constant 0 : index
    %c0_2 = arith.constant 0 : index
    %1 = vector.load %arg1[%c0_1, %c0_2] : memref<1024x128xf32, #tpu.memory_space<vmem>>, vector<1024x128xf32>
    %cst = arith.constant dense<0.000000e+00> : vector<32x128xf32>
    %2 = tpu.matmul %0, %1, %cst {dimension_numbers = #tpu.dot_dimension_numbers<[1], [0], [0], [1], [0, 0, 1, 1], [], []>} : vector<32x1024xf32>, vector<1024x128xf32>, vector<32x128xf32> -> vector<32x128xf32>
    %c0_3 = arith.constant 0 : index
    %c0_4 = arith.constant 0 : index
    %3 = vector.load %arg3[%c0_3, %c0_4] : memref<32x1xf32, #tpu.memory_space<vmem>>, vector<32x1xf32>
    %4 = vector.broadcast %3 : vector<32x1xf32> to vector<32x128xf32>
    %5 = arith.addf %2, %4 : vector<32x128xf32>
    %6 = math.tanh %5 : vector<32x128xf32>
    %c0_5 = arith.constant 0 : index
    %c0_6 = arith.constant 0 : index
    %7 = vector.load %arg4[%c0_5, %c0_6] : memref<2x32xf32, #tpu.memory_space<vmem>>, vector<2x32xf32>
    %cst_7 = arith.constant dense<0.000000e+00> : vector<2x128xf32>
    %8 = tpu.matmul %7, %6, %cst_7 {dimension_numbers = #tpu.dot_dimension_numbers<[1], [0], [0], [1], [0, 0, 1, 1], [], []>} : vector<2x32xf32>, vector<32x128xf32>, vector<2x128xf32> -> vector<2x128xf32>
    %c0_8 = arith.constant 0 : index
    %c0_9 = arith.constant 0 : index
    %9 = vector.load %arg5[%c0_8, %c0_9] : memref<2x1xf32, #tpu.memory_space<vmem>>, vector<2x1xf32>
    %10 = vector.broadcast %9 : vector<2x1xf32> to vector<2x128xf32>
    %11 = arith.addf %8, %10 : vector<2x128xf32>
    %c0_10 = arith.constant 0 : index
    %c0_11 = arith.constant 0 : index
    %12 = vector.load %arg6[%c0_10, %c0_11] : memref<2x128xf32, #tpu.memory_space<vmem>>, vector<2x128xf32>
    tpu.vector_store %arg6[%c0_10, %c0_11], %11 {strides = array<i32>} : memref<2x128xf32, #tpu.memory_space<vmem>>, vector<2x128xf32>,
    return
  }
  func.func @transform_0(%arg0: i32) -> (i32, i32) {
    %c0_i32 = arith.constant 0 : i32
    %c0_i32_0 = arith.constant 0 : i32
    return %c0_i32, %arg0 : i32, i32
  }
  func.func @transform_1(%arg0: i32) -> (i32, i32) {
    %c0_i32 = arith.constant 0 : i32
    %c0_i32_0 = arith.constant 0 : i32
    %c0_i32_1 = arith.constant 0 : i32
    return %c0_i32, %c0_i32_0 : i32, i32
  }
  func.func @transform_2(%arg0: i32) -> (i32, i32) {
    %c0_i32 = arith.constant 0 : i32
    %c0_i32_0 = arith.constant 0 : i32
    %c0_i32_1 = arith.constant 0 : i32
    return %c0_i32, %c0_i32_0 : i32, i32
  }
  func.func @transform_3(%arg0: i32) -> (i32, i32) {
    %c0_i32 = arith.constant 0 : i32
    %c0_i32_0 = arith.constant 0 : i32
    %c0_i32_1 = arith.constant 0 : i32
    return %c0_i32, %c0_i32_0 : i32, i32
  }
  func.func @transform_4(%arg0: i32) -> (i32, i32) {
    %c0_i32 = arith.constant 0 : i32
    %c0_i32_0 = arith.constant 0 : i32
    %c0_i32_1 = arith.constant 0 : i32
    return %c0_i32, %c0_i32_0 : i32, i32
  }
  func.func @transform_5(%arg0: i32) -> (i32, i32) {
    %c0_i32 = arith.constant 0 : i32
    %c0_i32_0 = arith.constant 0 : i32
    return %c0_i32, %arg0 : i32, i32
  }
}

</mosaic_0001>

<llo_original>
// kernel: net_width_forward.5
$region0: #{net_width_forward.5}
  #allocation0 [shape = 'u32[]', space=smem, size = 0x4, offset = 0x4, fixed_abs, tag = 'smem constant byte address 0x4 - core index']
  #allocation1 [shape = 'u32[144,128]{1,0:T(1,128)}', space=vmem, size = 0x12000, scoped, tag = 'internal scratch']
  %s0 = inlined_call_operand.vmem [shape: f32[1024,128], index: 0, kind: input, shape index: {}]
  %s1 = inlined_call_operand.vmem [shape: f32[32,1024], index: 1, kind: input, shape index: {}]
  %s2 = inlined_call_operand.vmem [shape: f32[32,1], index: 2, kind: input, shape index: {}]
  %s3 = inlined_call_operand.vmem [shape: f32[2,32], index: 3, kind: input, shape index: {}]
  %s4 = inlined_call_operand.vmem [shape: f32[2,1], index: 4, kind: input, shape index: {}]
  %s5 = inlined_call_operand.vmem [shape: f32[2,128], index: 5, kind: output, shape index: {}]
  %s6 = sld [smem:[#allocation0]]
  $region30: #{net_width_forward.5} parent=0
    _
  %s8 = ssub.s32 1, %s6
  %s9 = scalar_select 0, %s8, %s6
  // Predicated region
  $region2: #{net_width_forward.5} parent=0 // pred_check
    _
  $region3: #{net_width_forward.5} parent=0 // pred_check_branch
    %11 = sbr.rel (0) target = $region5
  $region4: #{net_width_forward.5} parent=0 // pred_region
    _
  $region5: #{net_width_forward.5} parent=0 // pred_fallthru
    _
  // Predicated region
  $region6: #{net_width_forward.5} parent=0 // pred_check
    _
  $region7: #{net_width_forward.5} parent=0 // pred_check_branch
    %13 = sbr.rel (0) target = $region9
  $region8: #{net_width_forward.5} parent=0 // pred_region
    _
  $region9: #{net_width_forward.5} parent=0 // pred_fallthru
    _
  // Predicated region
  $region10: #{net_width_forward.5} parent=0 // pred_check
    _
  $region11: #{net_width_forward.5} parent=0 // pred_check_branch
    %15 = sbr.rel (0) target = $region13
  $region12: #{net_width_forward.5} parent=0 // pred_region
    _
  $region13: #{net_width_forward.5} parent=0 // pred_fallthru
    _
  // Predicated region
  $region14: #{net_width_forward.5} parent=0 // pred_check
    _
  $region15: #{net_width_forward.5} parent=0 // pred_check_branch
    %17 = sbr.rel (0) target = $region17
  $region16: #{net_width_forward.5} parent=0 // pred_region
    _
  $region17: #{net_width_forward.5} parent=0 // pred_fallthru
    _
  // Predicated region
  $region18: #{net_width_forward.5} parent=0 // pred_check
    _
  $region19: #{net_width_forward.5} parent=0 // pred_check_branch
    %19 = sbr.rel (0) target = $region21
  $region20: #{net_width_forward.5} parent=0 // pred_region
    _
  $region21: #{net_width_forward.5} parent=0 // pred_fallthru
    _
  %v20 = vld [vmem:[%s1] sm:$0xff]
  %v21 = vld [vmem:[%s1 + $0x8] sm:$0xff]
  %v22 = vld [vmem:[%s1 + $0x10] sm:$0xff]
  %v23 = vld [vmem:[%s1 + $0x18] sm:$0xff]
  %v24 = vld [vmem:[%s1 + $0x20] sm:$0xff]
  %v25 = vld [vmem:[%s1 + $0x28] sm:$0xff]
  %v26 = vld [vmem:[%s1 + $0x30] sm:$0xff]
  %v27 = vld [vmem:[%s1 + $0x38] sm:$0xff]
  %v28 = vld [vmem:[%s1 + $0x40] sm:$0xff]
  %v29 = vld [vmem:[%s1 + $0x48] sm:$0xff]
  %v30 = vld [vmem:[%s1 + $0x50] sm:$0xff]
  %v31 = vld [vmem:[%s1 + $0x58] sm:$0xff]
  %v32 = vld [vmem:[%s1 + $0x60] sm:$0xff]
  %v33 = vld [vmem:[%s1 + $0x68] sm:$0xff]
  %v34 = vld [vmem:[%s1 + $0x70] sm:$0xff]
  %v35 = vld [vmem:[%s1 + $0x78] sm:$0xff]
  %v36 = vld [vmem:[%s1 + $0x80] sm:$0xff]
  %v37 = vld [vmem:[%s1 + $0x88] sm:$0xff]
  %v38 = vld [vmem:[%s1 + $0x90] sm:$0xff]
  %v39 = vld [vmem:[%s1 + $0x98] sm:$0xff]
  %v40 = vld [vmem:[%s1 + $0xa0] sm:$0xff]
  %v41 = vld [vmem:[%s1 + $0xa8] sm:$0xff]
  %v42 = vld [vmem:[%s1 + $0xb0] sm:$0xff]
  %v43 = vld [vmem:[%s1 + $0xb8] sm:$0xff]
  %v44 = vld [vmem:[%s1 + $0xc0] sm:$0xff]
  %v45 = vld [vmem:[%s1 + $0xc8] sm:$0xff]
  %v46 = vld [vmem:[%s1 + $0xd0] sm:$0xff]
  %v47 = vld [vmem:[%s1 + $0xd8] sm:$0xff]
  %v48 = vld [vmem:[%s1 + $0xe0] sm:$0xff]
  %v49 = vld [vmem:[%s1 + $0xe8] sm:$0xff]
  %v50 = vld [vmem:[%s1 + $0xf0] sm:$0xff]
  %v51 = vld [vmem:[%s1 + $0xf8] sm:$0xff]
  %v52 = vld [vmem:[%s0] sm:$0xff]
  %v53 = vld [vmem:[%s0 + $0x8] sm:$0xff]
  %v54 = vld [vmem:[%s0 + $0x10] sm:$0xff]
  %v55 = vld [vmem:[%s0 + $0x18] sm:$0xff]
  %v56 = vld [vmem:[%s0 + $0x20] sm:$0xff]
  %v57 = vld [vmem:[%s0 + $0x28] sm:$0xff]
  %v58 = vld [vmem:[%s0 + $0x30] sm:$0xff]
  %v59 = vld [vmem:[%s0 + $0x38] sm:$0xff]
  %v60 = vld [vmem:[%s0 + $0x40] sm:$0xff]
  %v61 = vld [vmem:[%s0 + $0x48] sm:$0xff]
  %v62 = vld [vmem:[%s0 + $0x50] sm:$0xff]
  %v63 = vld [vmem:[%s0 + $0x58] sm:$0xff]
  %v64 = vld [vmem:[%s0 + $0x60] sm:$0xff]
  %v65 = vld [vmem:[%s0 + $0x68] sm:$0xff]
  %v66 = vld [vmem:[%s0 + $0x70] sm:$0xff]
  %v67 = vld [vmem:[%s0 + $0x78] sm:$0xff]
  %v68 = vld [vmem:[%s0 + $0x80] sm:$0xff]
  %v69 = vld [vmem:[%s0 + $0x88] sm:$0xff]
  %v70 = vld [vmem:[%s0 + $0x90] sm:$0xff]
  %v71 = vld [vmem:[%s0 + $0x98] sm:$0xff]
  %v72 = vld [vmem:[%s0 + $0xa0] sm:$0xff]
  %v73 = vld [vmem:[%s0 + $0xa8] sm:$0xff]
  %v74 = vld [vmem:[%s0 + $0xb0] sm:$0xff]
  %v75 = vld [vmem:[%s0 + $0xb8] sm:$0xff]
  %v76 = vld [vmem:[%s0 + $0xc0] sm:$0xff]
  %v77 = vld [vmem:[%s0 + $0xc8] sm:$0xff]
  %v78 = vld [vmem:[%s0 + $0xd0] sm:$0xff]
  %v79 = vld [vmem:[%s0 + $0xd8] sm:$0xff]
  %v80 = vld [vmem:[%s0 + $0xe0] sm:$0xff]
  %v81 = vld [vmem:[%s0 + $0xe8] sm:$0xff]
  %v82 = vld [vmem:[%s0 + $0xf0] sm:$0xff]
  %v83 = vld [vmem:[%s0 + $0xf8] sm:$0xff]
  %v84 = vld [vmem:[%s0 + $0x100] sm:$0xff]
  %v85 = vld [vmem:[%s0 + $0x108] sm:$0xff]
  %v86 = vld [vmem:[%s0 + $0x110] sm:$0xff]
  %v87 = vld [vmem:[%s0 + $0x118] sm:$0xff]
  %v88 = vld [vmem:[%s0 + $0x120] sm:$0xff]
  %v89 = vld [vmem:[%s0 + $0x128] sm:$0xff]
  %v90 = vld [vmem:[%s0 + $0x130] sm:$0xff]
  %v91 = vld [vmem:[%s0 + $0x138] sm:$0xff]
  %v92 = vld [vmem:[%s0 + $0x140] sm:$0xff]
  %v93 = vld [vmem:[%s0 + $0x148] sm:$0xff]
  %v94 = vld [vmem:[%s0 + $0x150] sm:$0xff]
  %v95 = vld [vmem:[%s0 + $0x158] sm:$0xff]
  %v96 = vld [vmem:[%s0 + $0x160] sm:$0xff]
  %v97 = vld [vmem:[%s0 + $0x168] sm:$0xff]
  %v98 = vld [vmem:[%s0 + $0x170] sm:$0xff]
  %v99 = vld [vmem:[%s0 + $0x178] sm:$0xff]
  %v100 = vld [vmem:[%s0 + $0x180] sm:$0xff]
  %v101 = vld [vmem:[%s0 + $0x188] sm:$0xff]
  %v102 = vld [vmem:[%s0 + $0x190] sm:$0xff]
  %v103 = vld [vmem:[%s0 + $0x198] sm:$0xff]
  %v104 = vld [vmem:[%s0 + $0x1a0] sm:$0xff]
  %v105 = vld [vmem:[%s0 + $0x1a8] sm:$0xff]
  %v106 = vld [vmem:[%s0 + $0x1b0] sm:$0xff]
  %v107 = vld [vmem:[%s0 + $0x1b8] sm:$0xff]
  %v108 = vld [vmem:[%s0 + $0x1c0] sm:$0xff]
  %v109 = vld [vmem:[%s0 + $0x1c8] sm:$0xff]
  %v110 = vld [vmem:[%s0 + $0x1d0] sm:$0xff]
  %v111 = vld [vmem:[%s0 + $0x1d8] sm:$0xff]
  %v112 = vld [vmem:[%s0 + $0x1e0] sm:$0xff]
  %v113 = vld [vmem:[%s0 + $0x1e8] sm:$0xff]
  %v114 = vld [vmem:[%s0 + $0x1f0] sm:$0xff]
  %v115 = vld [vmem:[%s0 + $0x1f8] sm:$0xff]
  %v116 = vld [vmem:[%s0 + $0x200] sm:$0xff]
  %v117 = vld [vmem:[%s0 + $0x208] sm:$0xff]
  %v118 = vld [vmem:[%s0 + $0x210] sm:$0xff]
  %v119 = vld [vmem:[%s0 + $0x218] sm:$0xff]
  %v120 = vld [vmem:[%s0 + $0x220] sm:$0xff]
  %v121 = vld [vmem:[%s0 + $0x228] sm:$0xff]
  %v122 = vld [vmem:[%s0 + $0x230] sm:$0xff]
  %v123 = vld [vmem:[%s0 + $0x238] sm:$0xff]
  %v124 = vld [vmem:[%s0 + $0x240] sm:$0xff]
  %v125 = vld [vmem:[%s0 + $0x248] sm:$0xff]
  %v126 = vld [vmem:[%s0 + $0x250] sm:$0xff]
  %v127 = vld [vmem:[%s0 + $0x258] sm:$0xff]
  %v128 = vld [vmem:[%s0 + $0x260] sm:$0xff]
  %v129 = vld [vmem:[%s0 + $0x268] sm:$0xff]
  %v130 = vld [vmem:[%s0 + $0x270] sm:$0xff]
  %v131 = vld [vmem:[%s0 + $0x278] sm:$0xff]
  %v132 = vld [vmem:[%s0 + $0x280] sm:$0xff]
  %v133 = vld [vmem:[%s0 + $0x288] sm:$0xff]
  %v134 = vld [vmem:[%s0 + $0x290] sm:$0xff]
  %v135 = vld [vmem:[%s0 + $0x298] sm:$0xff]
  %v136 = vld [vmem:[%s0 + $0x2a0] sm:$0xff]
  %v137 = vld [vmem:[%s0 + $0x2a8] sm:$0xff]
  %v138 = vld [vmem:[%s0 + $0x2b0] sm:$0xff]
  %v139 = vld [vmem:[%s0 + $0x2b8] sm:$0xff]
  %v140 = vld [vmem:[%s0 + $0x2c0] sm:$0xff]
  %v141 = vld [vmem:[%s0 + $0x2c8] sm:$0xff]
  %v142 = vld [vmem:[%s0 + $0x2d0] sm:$0xff]
  %v143 = vld [vmem:[%s0 + $0x2d8] sm:$0xff]
  %v144 = vld [vmem:[%s0 + $0x2e0] sm:$0xff]
  %v145 = vld [vmem:[%s0 + $0x2e8] sm:$0xff]
  %v146 = vld [vmem:[%s0 + $0x2f0] sm:$0xff]
  %v147 = vld [vmem:[%s0 + $0x2f8] sm:$0xff]
  %v148 = vld [vmem:[%s0 + $0x300] sm:$0xff]
  %v149 = vld [vmem:[%s0 + $0x308] sm:$0xff]
  %v150 = vld [vmem:[%s0 + $0x310] sm:$0xff]
  %v151 = vld [vmem:[%s0 + $0x318] sm:$0xff]
  %v152 = vld [vmem:[%s0 + $0x320] sm:$0xff]
  %v153 = vld [vmem:[%s0 + $0x328] sm:$0xff]
  %v154 = vld [vmem:[%s0 + $0x330] sm:$0xff]
  %v155 = vld [vmem:[%s0 + $0x338] sm:$0xff]
  %v156 = vld [vmem:[%s0 + $0x340] sm:$0xff]
  %v157 = vld [vmem:[%s0 + $0x348] sm:$0xff]
  %v158 = vld [vmem:[%s0 + $0x350] sm:$0xff]
  %v159 = vld [vmem:[%s0 + $0x358] sm:$0xff]
  %v160 = vld [vmem:[%s0 + $0x360] sm:$0xff]
  %v161 = vld [vmem:[%s0 + $0x368] sm:$0xff]
  %v162 = vld [vmem:[%s0 + $0x370] sm:$0xff]
  %v163 = vld [vmem:[%s0 + $0x378] sm:$0xff]
  %v164 = vld [vmem:[%s0 + $0x380] sm:$0xff]
  %v165 = vld [vmem:[%s0 + $0x388] sm:$0xff]
  %v166 = vld [vmem:[%s0 + $0x390] sm:$0xff]
  %v167 = vld [vmem:[%s0 + $0x398] sm:$0xff]
  %v168 = vld [vmem:[%s0 + $0x3a0] sm:$0xff]
  %v169 = vld [vmem:[%s0 + $0x3a8] sm:$0xff]
  %v170 = vld [vmem:[%s0 + $0x3b0] sm:$0xff]
  %v171 = vld [vmem:[%s0 + $0x3b8] sm:$0xff]
  %v172 = vld [vmem:[%s0 + $0x3c0] sm:$0xff]
  %v173 = vld [vmem:[%s0 + $0x3c8] sm:$0xff]
  %v174 = vld [vmem:[%s0 + $0x3d0] sm:$0xff]
  %v175 = vld [vmem:[%s0 + $0x3d8] sm:$0xff]
  %v176 = vld [vmem:[%s0 + $0x3e0] sm:$0xff]
  %v177 = vld [vmem:[%s0 + $0x3e8] sm:$0xff]
  %v178 = vld [vmem:[%s0 + $0x3f0] sm:$0xff]
  %v179 = vld [vmem:[%s0 + $0x3f8] sm:$0xff]
  %v180 = vld [vmem:[%s2] sm:$0xff]
  %v181 = vld [vmem:[%s2 + $0x8] sm:$0xff]
  %v182 = vld [vmem:[%s2 + $0x10] sm:$0xff]
  %v183 = vld [vmem:[%s2 + $0x18] sm:$0xff]
  %185 = vset.pattern.permute.xlu0 0
  %186 = vperm.xlu0 %185, %v180
  %v187 = vpop.permute.xlu0 %186
  %190 = vset.pattern.permute.xlu0 0
  %191 = vperm.xlu0 %190, %v181
  %v192 = vpop.permute.xlu0 %191
  %195 = vset.pattern.permute.xlu0 0
  %196 = vperm.xlu0 %195, %v182
  %v197 = vpop.permute.xlu0 %196
  %200 = vset.pattern.permute.xlu0 0
  %201 = vperm.xlu0 %200, %v183
  %v202 = vpop.permute.xlu0 %201
  %204 = vmatprep.subr.mxu0 0.0
  %205 = vmatpush1.msra.mxu0 %v52
  %206 = vmatprep.subr.mxu0 0.0
  %207 = vmatpush1.msra.mxu0 %v53
  %208 = vmatprep.subr.mxu0 0.0
  %209 = vmatpush1.msra.mxu0 %v54
  %210 = vmatprep.subr.mxu0 0.0
  %211 = vmatpush1.msra.mxu0 %v55
  %212 = vmatprep.subr.mxu0 0.0
  %213 = vmatpush1.msra.mxu0 %v56
  %214 = vmatprep.subr.mxu0 0.0
  %215 = vmatpush1.msra.mxu0 %v57
  %216 = vmatprep.subr.mxu0 0.0
  %217 = vmatpush1.msra.mxu0 %v58
  %218 = vmatprep.subr.mxu0 0.0
  %219 = vmatpush1.msra.mxu0 %v59
  %220 = vmatprep.subr.mxu0 0.0
  %221 = vmatpush1.msra.mxu0 %v60
  %222 = vmatprep.subr.mxu0 0.0
  %223 = vmatpush1.msra.mxu0 %v61
  %224 = vmatprep.subr.mxu0 0.0
  %225 = vmatpush1.msra.mxu0 %v62
  %226 = vmatprep.subr.mxu0 0.0
  %227 = vmatpush1.msra.mxu0 %v63
  %228 = vmatprep.subr.mxu0 0.0
  %229 = vmatpush1.msra.mxu0 %v64
  %230 = vmatprep.subr.mxu0 0.0
  %231 = vmatpush1.msra.mxu0 %v65
  %232 = vmatprep.subr.mxu0 0.0
  %233 = vmatpush1.msra.mxu0 %v66
  %234 = vmatprep.subr.mxu0 0.0
  %235 = vmatpush1.msra.mxu0 %v67
  %236 = vmatprep.subr.mxu0 0.0
  %237 = vmatpush1.msra.mxu0 %v68
  %238 = vmatprep.subr.mxu0 0.0
  %239 = vmatpush1.msra.mxu0 %v69
  %240 = vmatprep.subr.mxu0 0.0
  %241 = vmatpush1.msra.mxu0 %v70
  %242 = vmatprep.subr.mxu0 0.0
  %243 = vmatpush1.msra.mxu0 %v71
  %244 = vmatprep.subr.mxu0 0.0
  %245 = vmatpush1.msra.mxu0 %v72
  %246 = vmatprep.subr.mxu0 0.0
  %247 = vmatpush1.msra.mxu0 %v73
  %248 = vmatprep.subr.mxu0 0.0
  %249 = vmatpush1.msra.mxu0 %v74
  %250 = vmatprep.subr.mxu0 0.0
  %251 = vmatpush1.msra.mxu0 %v75
  %252 = vmatprep.subr.mxu0 0.0
  %253 = vmatpush1.msra.mxu0 %v76
  %254 = vmatprep.subr.mxu0 0.0
  %255 = vmatpush1.msra.mxu0 %v77
  %256 = vmatprep.subr.mxu0 0.0
  %257 = vmatpush1.msra.mxu0 %v78
  %258 = vmatprep.subr.mxu0 0.0
  %259 = vmatpush1.msra.mxu0 %v79
  %260 = vmatprep.subr.mxu0 0.0
  %261 = vmatpush1.msra.mxu0 %v80
  %262 = vmatprep.subr.mxu0 0.0
  %263 = vmatpush1.msra.mxu0 %v81
  %264 = vmatprep.subr.mxu0 0.0
  %265 = vmatpush1.msra.mxu0 %v82
  %266 = vmatprep.subr.mxu0 0.0
  %267 = vmatpush1.msra.mxu0 %v83
  %268 = vmatprep.mubr.f32.mxu0 %v21
  %269 = vmatmul.mubr.f32.gmra.mrb[0].mxu0 %v20
  %v270 = vpop.f32.mrb[0].mxu0
  %v271 = vadd.f32 %v187, %v270
  %v272 = vpop.f32.mrb[0].mxu0
  %273 = vmatprep.mubr.f32.mxu0 %v29
  %274 = vmatmul.mubr.f32.gmra.mrb[0].mxu0 %v28
  %v275 = vpop.f32.mrb[0].mxu0
  %v276 = vadd.f32 %v192, %v275
  %v277 = vpop.f32.mrb[0].mxu0
  %278 = vmatprep.mubr.f32.mxu0 %v37
  %279 = vmatmul.mubr.f32.gmra.mrb[0].mxu0 %v36
  %v280 = vpop.f32.mrb[0].mxu0
  %v281 = vadd.f32 %v197, %v280
  %v282 = vpop.f32.mrb[0].mxu0
  %283 = vmatprep.mubr.f32.mxu0 %v45
  %284 = vmatmul.mubr.f32.gmra.mrb[0].mxu0 %v44
  %v285 = vpop.f32.mrb[0].mxu0
  %v286 = vadd.f32 %v202, %v285
  %v287 = vpop.f32.mrb[0].mxu0
  %288 = vdwg.mxu0
  %289 = vmatprep.subr.mxu0 0.0
  %290 = vmatpush1.msra.mxu0 %v84
  %291 = vmatprep.subr.mxu0 0.0
  %292 = vmatpush1.msra.mxu0 %v85
  %293 = vmatprep.subr.mxu0 0.0
  %294 = vmatpush1.msra.mxu0 %v86
  %295 = vmatprep.subr.mxu0 0.0
  %296 = vmatpush1.msra.mxu0 %v87
  %297 = vmatprep.subr.mxu0 0.0
  %298 = vmatpush1.msra.mxu0 %v88
  %299 = vmatprep.subr.mxu0 0.0
  %300 = vmatpush1.msra.mxu0 %v89
  %301 = vmatprep.subr.mxu0 0.0
  %302 = vmatpush1.msra.mxu0 %v90
  %303 = vmatprep.subr.mxu0 0.0
  %304 = vmatpush1.msra.mxu0 %v91
  %305 = vmatprep.subr.mxu0 0.0
  %306 = vmatpush1.msra.mxu0 %v92
  %307 = vmatprep.subr.mxu0 0.0
  %308 = vmatpush1.msra.mxu0 %v93
  %309 = vmatprep.subr.mxu0 0.0
  %310 = vmatpush1.msra.mxu0 %v94
  %311 = vmatprep.subr.mxu0 0.0
  %312 = vmatpush1.msra.mxu0 %v95
  %313 = vmatprep.subr.mxu0 0.0
  %314 = vmatpush1.msra.mxu0 %v96
  %315 = vmatprep.subr.mxu0 0.0
  %316 = vmatpush1.msra.mxu0 %v97
  %317 = vmatprep.subr.mxu0 0.0
  %318 = vmatpush1.msra.mxu0 %v98
  %319 = vmatprep.subr.mxu0 0.0
  %320 = vmatpush1.msra.mxu0 %v99
  %321 = vmatprep.subr.mxu0 0.0
  %322 = vmatpush1.msra.mxu0 %v100
  %323 = vmatprep.subr.mxu0 0.0
  %324 = vmatpush1.msra.mxu0 %v101
  %325 = vmatprep.subr.mxu0 0.0
  %326 = vmatpush1.msra.mxu0 %v102
  %327 = vmatprep.subr.mxu0 0.0
  %328 = vmatpush1.msra.mxu0 %v103
  %329 = vmatprep.subr.mxu0 0.0
  %330 = vmatpush1.msra.mxu0 %v104
  %331 = vmatprep.subr.mxu0 0.0
  %332 = vmatpush1.msra.mxu0 %v105
  %333 = vmatprep.subr.mxu0 0.0
  %334 = vmatpush1.msra.mxu0 %v106
  %335 = vmatprep.subr.mxu0 0.0
  %336 = vmatpush1.msra.mxu0 %v107
  %337 = vmatprep.subr.mxu0 0.0
  %338 = vmatpush1.msra.mxu0 %v108
  %339 = vmatprep.subr.mxu0 0.0
  %340 = vmatpush1.msra.mxu0 %v109
  %341 = vmatprep.subr.mxu0 0.0
  %342 = vmatpush1.msra.mxu0 %v110
  %343 = vmatprep.subr.mxu0 0.0
  %344 = vmatpush1.msra.mxu0 %v111
  %345 = vmatprep.subr.mxu0 0.0
  %346 = vmatpush1.msra.mxu0 %v112
  %347 = vmatprep.subr.mxu0 0.0
  %348 = vmatpush1.msra.mxu0 %v113
  %349 = vmatprep.subr.mxu0 0.0
  %350 = vmatpush1.msra.mxu0 %v114
  %351 = vmatprep.subr.mxu0 0.0
  %352 = vmatpush1.msra.mxu0 %v115
  %353 = vmatprep.mubr.f32.mxu0 %v23
  %354 = vmatmul.mubr.f32.gmra.mrb[0].mxu0 %v22
  %v355 = vpop.f32.mrb[0].mxu0
  %v356 = vadd.f32 %v271, %v355
  %v357 = vpop.f32.mrb[0].mxu0
  %358 = vmatprep.mubr.f32.mxu0 %v31
  %359 = vmatmul.mubr.f32.gmra.mrb[0].mxu0 %v30
  %v360 = vpop.f32.mrb[0].mxu0
  %v361 = vadd.f32 %v276, %v360
  %v362 = vpop.f32.mrb[0].mxu0
  %363 = vmatprep.mubr.f32.mxu0 %v39
  %364 = vmatmul.mubr.f32.gmra.mrb[0].mxu0 %v38
  %v365 = vpop.f32.mrb[0].mxu0
  %v366 = vadd.f32 %v281, %v365
  %v367 = vpop.f32.mrb[0].mxu0
  %368 = vmatprep.mubr.f32.mxu0 %v47
  %369 = vmatmul.mubr.f32.gmra.mrb[0].mxu0 %v46
  %v370 = vpop.f32.mrb[0].mxu0
  %v371 = vadd.f32 %v286, %v370
  %v372 = vpop.f32.mrb[0].mxu0
  %373 = vdwg.mxu0
  %374 = vmatprep.subr.mxu0 0.0
  %375 = vmatpush1.msra.mxu0 %v116
  %376 = vmatprep.subr.mxu0 0.0
  %377 = vmatpush1.msra.mxu0 %v117
  %378 = vmatprep.subr.mxu0 0.0
  %379 = vmatpush1.msra.mxu0 %v118
  %380 = vmatprep.subr.mxu0 0.0
  %381 = vmatpush1.msra.mxu0 %v119
  %382 = vmatprep.subr.mxu0 0.0
  %383 = vmatpush1.msra.mxu0 %v120
  %384 = vmatprep.subr.mxu0 0.0
  %385 = vmatpush1.msra.mxu0 %v121
  %386 = vmatprep.subr.mxu0 0.0
  %387 = vmatpush1.msra.mxu0 %v122
  %388 = vmatprep.subr.mxu0 0.0
  %389 = vmatpush1.msra.mxu0 %v123
  %390 = vmatprep.subr.mxu0 0.0
  %391 = vmatpush1.msra.mxu0 %v124
  %392 = vmatprep.subr.mxu0 0.0
  %393 = vmatpush1.msra.mxu0 %v125
  %394 = vmatprep.subr.mxu0 0.0
  %395 = vmatpush1.msra.mxu0 %v126
  %396 = vmatprep.subr.mxu0 0.0
  %397 = vmatpush1.msra.mxu0 %v127
  %398 = vmatprep.subr.mxu0 0.0
  %399 = vmatpush1.msra.mxu0 %v128
  %400 = vmatprep.subr.mxu0 0.0
  %401 = vmatpush1.msra.mxu0 %v129
  %402 = vmatprep.subr.mxu0 0.0
  %403 = vmatpush1.msra.mxu0 %v130
  %404 = vmatprep.subr.mxu0 0.0
  %405 = vmatpush1.msra.mxu0 %v131
  %406 = vmatprep.subr.mxu0 0.0
  %407 = vmatpush1.msra.mxu0 %v132
  %408 = vmatprep.subr.mxu0 0.0
  %409 = vmatpush1.msra.mxu0 %v133
  %410 = vmatprep.subr.mxu0 0.0
  %411 = vmatpush1.msra.mxu0 %v134
  %412 = vmatprep.subr.mxu0 0.0
  %413 = vmatpush1.msra.mxu0 %v135
  %414 = vmatprep.subr.mxu0 0.0
  %415 = vmatpush1.msra.mxu0 %v136
  %416 = vmatprep.subr.mxu0 0.0
  %417 = vmatpush1.msra.mxu0 %v137
  %418 = vmatprep.subr.mxu0 0.0
  %419 = vmatpush1.msra.mxu0 %v138
  %420 = vmatprep.subr.mxu0 0.0
  %421 = vmatpush1.msra.mxu0 %v139
  %422 = vmatprep.subr.mxu0 0.0
  %423 = vmatpush1.msra.mxu0 %v140
  %424 = vmatprep.subr.mxu0 0.0
  %425 = vmatpush1.msra.mxu0 %v141
  %426 = vmatprep.subr.mxu0 0.0
  %427 = vmatpush1.msra.mxu0 %v142
  %428 = vmatprep.subr.mxu0 0.0
  %429 = vmatpush1.msra.mxu0 %v143
  %430 = vmatprep.subr.mxu0 0.0
  %431 = vmatpush1.msra.mxu0 %v144
  %432 = vmatprep.subr.mxu0 0.0
  %433 = vmatpush1.msra.mxu0 %v145
  %434 = vmatprep.subr.mxu0 0.0
  %435 = vmatpush1.msra.mxu0 %v146
  %436 = vmatprep.subr.mxu0 0.0
  %437 = vmatpush1.msra.mxu0 %v147
  %438 = vmatprep.mubr.f32.mxu0 %v25
  %439 = vmatmul.mubr.f32.gmra.mrb[0].mxu0 %v24
  %v440 = vpop.f32.mrb[0].mxu0
  %v441 = vadd.f32 %v356, %v440
  %v442 = vpop.f32.mrb[0].mxu0
  %443 = vmatprep.mubr.f32.mxu0 %v33
  %444 = vmatmul.mubr.f32.gmra.mrb[0].mxu0 %v32
  %v445 = vpop.f32.mrb[0].mxu0
  %v446 = vadd.f32 %v361, %v445
  %v447 = vpop.f32.mrb[0].mxu0
  %448 = vmatprep.mubr.f32.mxu0 %v41
  %449 = vmatmul.mubr.f32.gmra.mrb[0].mxu0 %v40
  %v450 = vpop.f32.mrb[0].mxu0
  %v451 = vadd.f32 %v366, %v450
  %v452 = vpop.f32.mrb[0].mxu0
  %453 = vmatprep.mubr.f32.mxu0 %v49
  %454 = vmatmul.mubr.f32.gmra.mrb[0].mxu0 %v48
  %v455 = vpop.f32.mrb[0].mxu0
  %v456 = vadd.f32 %v371, %v455
  %v457 = vpop.f32.mrb[0].mxu0
  %458 = vdwg.mxu0
  %459 = vmatprep.subr.mxu0 0.0
  %460 = vmatpush1.msra.mxu0 %v148
  %461 = vmatprep.subr.mxu0 0.0
  %462 = vmatpush1.msra.mxu0 %v149
  %463 = vmatprep.subr.mxu0 0.0
  %464 = vmatpush1.msra.mxu0 %v150
  %465 = vmatprep.subr.mxu0 0.0
  %466 = vmatpush1.msra.mxu0 %v151
  %467 = vmatprep.subr.mxu0 0.0
  %468 = vmatpush1.msra.mxu0 %v152
  %469 = vmatprep.subr.mxu0 0.0
  %470 = vmatpush1.msra.mxu0 %v153
  %471 = vmatprep.subr.mxu0 0.0
  %472 = vmatpush1.msra.mxu0 %v154
  %473 = vmatprep.subr.mxu0 0.0
  %474 = vmatpush1.msra.mxu0 %v155
  %475 = vmatprep.subr.mxu0 0.0
  %476 = vmatpush1.msra.mxu0 %v156
  %477 = vmatprep.subr.mxu0 0.0
  %478 = vmatpush1.msra.mxu0 %v157
  %479 = vmatprep.subr.mxu0 0.0
  %480 = vmatpush1.msra.mxu0 %v158
  %481 = vmatprep.subr.mxu0 0.0
  %482 = vmatpush1.msra.mxu0 %v159
  %483 = vmatprep.subr.mxu0 0.0
  %484 = vmatpush1.msra.mxu0 %v160
  %485 = vmatprep.subr.mxu0 0.0
  %486 = vmatpush1.msra.mxu0 %v161
  %487 = vmatprep.subr.mxu0 0.0
  %488 = vmatpush1.msra.mxu0 %v162
  %489 = vmatprep.subr.mxu0 0.0
  %490 = vmatpush1.msra.mxu0 %v163
  %491 = vmatprep.subr.mxu0 0.0
  %492 = vmatpush1.msra.mxu0 %v164
  %493 = vmatprep.subr.mxu0 0.0
  %494 = vmatpush1.msra.mxu0 %v165
  %495 = vmatprep.subr.mxu0 0.0
  %496 = vmatpush1.msra.mxu0 %v166
  %497 = vmatprep.subr.mxu0 0.0
  %498 = vmatpush1.msra.mxu0 %v167
  %499 = vmatprep.subr.mxu0 0.0
  %500 = vmatpush1.msra.mxu0 %v168
  %501 = vmatprep.subr.mxu0 0.0
  %502 = vmatpush1.msra.mxu0 %v169
  %503 = vmatprep.subr.mxu0 0.0
  %504 = vmatpush1.msra.mxu0 %v170
  %505 = vmatprep.subr.mxu0 0.0
  %506 = vmatpush1.msra.mxu0 %v171
  %507 = vmatprep.subr.mxu0 0.0
  %508 = vmatpush1.msra.mxu0 %v172
  %509 = vmatprep.subr.mxu0 0.0
  %510 = vmatpush1.msra.mxu0 %v173
  %511 = vmatprep.subr.mxu0 0.0
  %512 = vmatpush1.msra.mxu0 %v174
  %513 = vmatprep.subr.mxu0 0.0
  %514 = vmatpush1.msra.mxu0 %v175
  %515 = vmatprep.subr.mxu0 0.0
  %516 = vmatpush1.msra.mxu0 %v176
  %517 = vmatprep.subr.mxu0 0.0
  %518 = vmatpush1.msra.mxu0 %v177
  %519 = vmatprep.subr.mxu0 0.0
  %520 = vmatpush1.msra.mxu0 %v178
  %521 = vmatprep.subr.mxu0 0.0
  %522 = vmatpush1.msra.mxu0 %v179
  %523 = vmatprep.mubr.f32.mxu0 %v27
  %524 = vmatmul.mubr.f32.gmra.mrb[0].mxu0 %v26
  %v525 = vpop.f32.mrb[0].mxu0
  %v526 = vadd.f32 %v441, %v525
  %v527 = vpop.f32.mrb[0].mxu0
  %528 = vmatprep.mubr.f32.mxu0 %v35
  %529 = vmatmul.mubr.f32.gmra.mrb[0].mxu0 %v34
  %v530 = vpop.f32.mrb[0].mxu0
  %v531 = vadd.f32 %v446, %v530
  %v532 = vpop.f32.mrb[0].mxu0
  %533 = vmatprep.mubr.f32.mxu0 %v43
  %534 = vmatmul.mubr.f32.gmra.mrb[0].mxu0 %v42
  %v535 = vpop.f32.mrb[0].mxu0
  %v536 = vadd.f32 %v451, %v535
  %v537 = vpop.f32.mrb[0].mxu0
  %538 = vmatprep.mubr.f32.mxu0 %v51
  %539 = vmatmul.mubr.f32.gmra.mrb[0].mxu0 %v50
  %v540 = vpop.f32.mrb[0].mxu0
  %v541 = vadd.f32 %v456, %v540
  %v542 = vpop.f32.mrb[0].mxu0
  %543 = vdwg.mxu0
  %v544 = vtanh.pop %v526
  %v545 = vtanh.pop %v531
  %v546 = vtanh.pop %v536
  %v547 = vtanh.pop %v541
  %v548 = vld [vmem:[%s3] sm:$0x3]
  %v549 = vld [vmem:[%s4] sm:$0x3]
  %551 = vset.pattern.permute.xlu0 0
  %552 = vperm.xlu0 %551, %v549
  %v553 = vpop.permute.xlu0 %552
  %vm555 = vcmask 261120
  %v557 = vsel %vm555, %v548, 0
  %559 = vmatprep.subr.mxu0 0.0
  %560 = vmatpush1.msra.mxu0 %v544
  %561 = vmatprep.subr.mxu0 0.0
  %562 = vmatpush1.msra.mxu0 %v545
  %563 = vmatprep.subr.mxu0 0.0
  %564 = vmatpush1.msra.mxu0 %v546
  %565 = vmatprep.subr.mxu0 0.0
  %566 = vmatpush1.msra.mxu0 %v547
  %567 = vmatprep.subr.mxu0 0.0
  %568 = vmatpush1.msra.mxu0 0.0
  %569 = vmatprep.subr.mxu0 0.0
  %570 = vmatpush1.msra.mxu0 0.0
  %571 = vmatprep.subr.mxu0 0.0
  %572 = vmatpush1.msra.mxu0 0.0
  %573 = vmatprep.subr.mxu0 0.0
  %574 = vmatpush1.msra.mxu0 0.0
  %575 = vmatprep.subr.mxu0 0.0
  %576 = vmatpush1.msra.mxu0 0.0
  %577 = vmatprep.subr.mxu0 0.0
  %578 = vmatpush1.msra.mxu0 0.0
  %579 = vmatprep.subr.mxu0 0.0
  %580 = vmatpush1.msra.mxu0 0.0
  %581 = vmatprep.subr.mxu0 0.0
  %582 = vmatpush1.msra.mxu0 0.0
  %583 = vmatprep.subr.mxu0 0.0
  %584 = vmatpush1.msra.mxu0 0.0
  %585 = vmatprep.subr.mxu0 0.0
  %586 = vmatpush1.msra.mxu0 0.0
  %587 = vmatprep.subr.mxu0 0.0
  %588 = vmatpush1.msra.mxu0 0.0
  %589 = vmatprep.subr.mxu0 0.0
  %590 = vmatpush1.msra.mxu0 0.0
  %591 = vmatprep.subr.mxu0 0.0
  %592 = vmatpush1.msra.mxu0 0.0
  %593 = vmatprep.subr.mxu0 0.0
  %594 = vmatpush1.msra.mxu0 0.0
  %595 = vmatprep.subr.mxu0 0.0
  %596 = vmatpush1.msra.mxu0 0.0
  %597 = vmatprep.subr.mxu0 0.0
  %598 = vmatpush1.msra.mxu0 0.0
  %599 = vmatprep.subr.mxu0 0.0
  %600 = vmatpush1.msra.mxu0 0.0
  %601 = vmatprep.subr.mxu0 0.0
  %602 = vmatpush1.msra.mxu0 0.0
  %603 = vmatprep.subr.mxu0 0.0
  %604 = vmatpush1.msra.mxu0 0.0
  %605 = vmatprep.subr.mxu0 0.0
  %606 = vmatpush1.msra.mxu0 0.0
  %607 = vmatprep.subr.mxu0 0.0
  %608 = vmatpush1.msra.mxu0 0.0
  %609 = vmatprep.subr.mxu0 0.0
  %610 = vmatpush1.msra.mxu0 0.0
  %611 = vmatprep.subr.mxu0 0.0
  %612 = vmatpush1.msra.mxu0 0.0
  %613 = vmatprep.subr.mxu0 0.0
  %614 = vmatpush1.msra.mxu0 0.0
  %615 = vmatprep.subr.mxu0 0.0
  %616 = vmatpush1.msra.mxu0 0.0
  %617 = vmatprep.subr.mxu0 0.0
  %618 = vmatpush1.msra.mxu0 0.0
  %619 = vmatprep.subr.mxu0 0.0
  %620 = vmatpush1.msra.mxu0 0.0
  %621 = vmatprep.subr.mxu0 0.0
  %622 = vmatpush1.msra.mxu0 0.0
  %623 = vmatprep.mubr.f32.mxu0 0.0
  %624 = vmatmul.mubr.f32.gmra.mrb[0].mxu0 %v557
  %v625 = vpop.f32.mrb[0].mxu0
  %v626 = vadd.f32 %v553, %v625
  %v627 = vpop.f32.mrb[0].mxu0
  %628 = vdwg.mxu0
  %629 = vst [vmem:[%s5] sm:$0x3] %v626
  // Predicated region
  $region22: #{net_width_forward.5} parent=0 // pred_check
    _
  $region23: #{net_width_forward.5} parent=0 // pred_check_branch
    %631 = sbr.rel (0) target = $region25
  $region24: #{net_width_forward.5} parent=0 // pred_region
    _
  $region25: #{net_width_forward.5} parent=0 // pred_fallthru
    _
  // Predicated region
  $region26: #{net_width_forward.5} parent=0 // pred_check
    _
  $region27: #{net_width_forward.5} parent=0 // pred_check_branch
    %633 = sbr.rel (0) target = $region29
  $region28: #{net_width_forward.5} parent=0 // pred_region
    _
  $region29: #{net_width_forward.5} parent=0 // pred_fallthru
    _

// kernel: net_width_forward.4
$region0: #{net_width_forward.4}
  #allocation0 [shape = 'u32[]', space=smem, size = 0x4, offset = 0x4, fixed_abs, tag = 'smem constant byte address 0x4 - core index']
  #allocation1 [shape = 'u32[144,128]{1,0:T(1,128)}', space=vmem, size = 0x12000, scoped, tag = 'internal scratch']
  %s0 = inlined_call_operand.vmem [shape: f32[4,32,128], index: 0, kind: input, shape index: {}]
  %s1 = inlined_call_operand.vmem [shape: f32[3,3,16,32], index: 1, kind: input, shape index: {}]
  %s2 = inlined_call_operand.vmem [shape: f32[16,1], index: 2, kind: input, shape index: {}]
  %s3 = inlined_call_operand.vmem [shape: f32[16,128], index: 3, kind: output, shape index: {}]
  %s4 = sld [smem:[#allocation0]]
  $region22: #{net_width_forward.4} parent=0
    _
  %s6 = ssub.s32 1, %s4
  %s7 = scalar_select 0, %s6, %s4
  // Predicated region
  $region2: #{net_width_forward.4} parent=0 // pred_check
    _
  $region3: #{net_width_forward.4} parent=0 // pred_check_branch
    %9 = sbr.rel (0) target = $region5
  $region4: #{net_width_forward.4} parent=0 // pred_region
    _
  $region5: #{net_width_forward.4} parent=0 // pred_fallthru
    _
  // Predicated region
  $region6: #{net_width_forward.4} parent=0 // pred_check
    _
  $region7: #{net_width_forward.4} parent=0 // pred_check_branch
    %11 = sbr.rel (0) target = $region9
  $region8: #{net_width_forward.4} parent=0 // pred_region
    _
  $region9: #{net_width_forward.4} parent=0 // pred_fallthru
    _
  // Predicated region
  $region10: #{net_width_forward.4} parent=0 // pred_check
    _
  $region11: #{net_width_forward.4} parent=0 // pred_check_branch
    %13 = sbr.rel (0) target = $region13
  $region12: #{net_width_forward.4} parent=0 // pred_region
    _
  $region13: #{net_width_forward.4} parent=0 // pred_fallthru
    _
  %s14 = smul.u32 0, 128
  %v15 = vlaneseq
  %v16 = vand.u32 %v15, 127
  %v17 = vstv %s14
  %v18 = vadd.s32 %v17, %v16
  %v19 = vand.u32 %v18, 7
  %v20 = vshra.s32 %v18, 3
  %v21 = vand.u32 %v20, 7
  %vm22 = vcmp.gt.s32.totalorder %v21, 0
  %vm23 = vcmp.lt.s32.totalorder %v21, 7
  %vm24 = vcmp.gt.s32.totalorder %v19, 0
  %vm25 = vcmp.lt.s32.totalorder %v19, 7
  %s26 = scalar_lea.vmem %s0, 96
  %v27 = vld [vmem:[%s26] sm:$0xff]
  %v28 = vld [vmem:[%s26 + $0x8] sm:$0xff]
  %v29 = vld [vmem:[%s26 + $0x10] sm:$0xff]
  %v30 = vld [vmem:[%s26 + $0x18] sm:$0xff]
  %31 = vrot.lane.b32.xlu0 %v27, 9
  %v32 = vpop.permute.xlu0 %31
  %33 = vrot.lane.b32.xlu0 %v28, 9
  %v34 = vpop.permute.xlu0 %33
  %35 = vrot.lane.b32.xlu0 %v29, 9
  %v36 = vpop.permute.xlu0 %35
  %37 = vrot.lane.b32.xlu0 %v30, 9
  %v38 = vpop.permute.xlu0 %37
  %vm39 = vmand %vm22, %vm24
  %v40 = vsel %vm39, 1, 0
  %vm41 = vcmp.eq.s32.totalorder %v40, 1
  %v42 = vsel %vm41, %v32, 0.0
  %v43 = vsel %vm41, %v34, 0.0
  %v44 = vsel %vm41, %v36, 0.0
  %v45 = vsel %vm41, %v38, 0.0
  %v46 = vld [vmem:[%s1] sm:$0xff]
  %v47 = vld [vmem:[%s1 + $0x8] sm:$0xff]
  %s48 = scalar_lea.vmem %s0, 64
  %v49 = vld [vmem:[%s48] sm:$0xff]
  %v50 = vld [vmem:[%s48 + $0x8] sm:$0xff]
  %v51 = vld [vmem:[%s48 + $0x10] sm:$0xff]
  %v52 = vld [vmem:[%s48 + $0x18] sm:$0xff]
  %53 = vrot.lane.b32.xlu0 %v49, 8
  %v54 = vpop.permute.xlu0 %53
  %55 = vrot.lane.b32.xlu0 %v50, 8
  %v56 = vpop.permute.xlu0 %55
  %57 = vrot.lane.b32.xlu0 %v51, 8
  %v58 = vpop.permute.xlu0 %57
  %59 = vrot.lane.b32.xlu0 %v52, 8
  %v60 = vpop.permute.xlu0 %59
  %v61 = vsel %vm22, 1, 0
  %vm62 = vcmp.eq.s32.totalorder %v61, 1
  %v63 = vsel %vm62, %v54, 0.0
  %v64 = vsel %vm62, %v56, 0.0
  %v65 = vsel %vm62, %v58, 0.0
  %v66 = vsel %vm62, %v60, 0.0
  %s67 = scalar_lea.vmem %s1, 16
  %v68 = vld [vmem:[%s67] sm:$0xff]
  %v69 = vld [vmem:[%s67 + $0x8] sm:$0xff]
  %vm70 = vcmask 261120
  %v72 = vsel %vm70, %v68, 0
  %v75 = vsel %vm70, %v69, 0
  %77 = vmatprep.subr.mxu0 0.0
  %78 = vmatpush1.msra.mxu0 %v63
  %79 = vmatprep.subr.mxu0 0.0
  %80 = vmatpush1.msra.mxu0 %v64
  %81 = vmatprep.subr.mxu0 0.0
  %82 = vmatpush1.msra.mxu0 %v65
  %83 = vmatprep.subr.mxu0 0.0
  %84 = vmatpush1.msra.mxu0 %v66
  %85 = vmatprep.subr.mxu0 0.0
  %86 = vmatpush1.msra.mxu0 0.0
  %87 = vmatprep.subr.mxu0 0.0
  %88 = vmatpush1.msra.mxu0 0.0
  %89 = vmatprep.subr.mxu0 0.0
  %90 = vmatpush1.msra.mxu0 0.0
  %91 = vmatprep.subr.mxu0 0.0
  %92 = vmatpush1.msra.mxu0 0.0
  %93 = vmatprep.subr.mxu0 0.0
  %94 = vmatpush1.msra.mxu0 0.0
  %95 = vmatprep.subr.mxu0 0.0
  %96 = vmatpush1.msra.mxu0 0.0
  %97 = vmatprep.subr.mxu0 0.0
  %98 = vmatpush1.msra.mxu0 0.0
  %99 = vmatprep.subr.mxu0 0.0
  %100 = vmatpush1.msra.mxu0 0.0
  %101 = vmatprep.subr.mxu0 0.0
  %102 = vmatpush1.msra.mxu0 0.0
  %103 = vmatprep.subr.mxu0 0.0
  %104 = vmatpush1.msra.mxu0 0.0
  %105 = vmatprep.subr.mxu0 0.0
  %106 = vmatpush1.msra.mxu0 0.0
  %107 = vmatprep.subr.mxu0 0.0
  %108 = vmatpush1.msra.mxu0 0.0
  %109 = vmatprep.subr.mxu0 0.0
  %110 = vmatpush1.msra.mxu0 0.0
  %111 = vmatprep.subr.mxu0 0.0
  %112 = vmatpush1.msra.mxu0 0.0
  %113 = vmatprep.subr.mxu0 0.0
  %114 = vmatpush1.msra.mxu0 0.0
  %115 = vmatprep.subr.mxu0 0.0
  %116 = vmatpush1.msra.mxu0 0.0
  %117 = vmatprep.subr.mxu0 0.0
  %118 = vmatpush1.msra.mxu0 0.0
  %119 = vmatprep.subr.mxu0 0.0
  %120 = vmatpush1.msra.mxu0 0.0
  %121 = vmatprep.subr.mxu0 0.0
  %122 = vmatpush1.msra.mxu0 0.0
  %123 = vmatprep.subr.mxu0 0.0
  %124 = vmatpush1.msra.mxu0 0.0
  %125 = vmatprep.subr.mxu0 0.0
  %126 = vmatpush1.msra.mxu0 0.0
  %127 = vmatprep.subr.mxu0 0.0
  %128 = vmatpush1.msra.mxu0 0.0
  %129 = vmatprep.subr.mxu0 0.0
  %130 = vmatpush1.msra.mxu0 0.0
  %131 = vmatprep.subr.mxu0 0.0
  %132 = vmatpush1.msra.mxu0 0.0
  %133 = vmatprep.subr.mxu0 0.0
  %134 = vmatpush1.msra.mxu0 0.0
  %135 = vmatprep.subr.mxu0 0.0
  %136 = vmatpush1.msra.mxu0 0.0
  %137 = vmatprep.subr.mxu0 0.0
  %138 = vmatpush1.msra.mxu0 0.0
  %139 = vmatprep.subr.mxu0 0.0
  %140 = vmatpush1.msra.mxu0 0.0
  %141 = vmatprep.mubr.f32.mxu0 0.0
  %142 = vmatmul.mubr.f32.gmra.mrb[0].mxu0 %v72
  %v143 = vpop.f32.mrb[0].mxu0
  %v144 = vadd.f32 0.0, %v143
  %v145 = vpop.f32.mrb[0].mxu0
  %146 = vmatprep.mubr.f32.mxu0 0.0
  %147 = vmatmul.mubr.f32.gmra.mrb[0].mxu0 %v75
  %v148 = vpop.f32.mrb[0].mxu0
  %v149 = vadd.f32 0.0, %v148
  %v150 = vpop.f32.mrb[0].mxu0
  %151 = vdwg.mxu0
  %v153 = vsel %vm70, %v46, 0
  %v156 = vsel %vm70, %v47, 0
  %158 = vmatprep.subr.mxu0 0.0
  %159 = vmatpush1.msra.mxu0 %v42
  %160 = vmatprep.subr.mxu0 0.0
  %161 = vmatpush1.msra.mxu0 %v43
  %162 = vmatprep.subr.mxu0 0.0
  %163 = vmatpush1.msra.mxu0 %v44
  %164 = vmatprep.subr.mxu0 0.0
  %165 = vmatpush1.msra.mxu0 %v45
  %166 = vmatprep.subr.mxu0 0.0
  %167 = vmatpush1.msra.mxu0 0.0
  %168 = vmatprep.subr.mxu0 0.0
  %169 = vmatpush1.msra.mxu0 0.0
  %170 = vmatprep.subr.mxu0 0.0
  %171 = vmatpush1.msra.mxu0 0.0
  %172 = vmatprep.subr.mxu0 0.0
  %173 = vmatpush1.msra.mxu0 0.0
  %174 = vmatprep.subr.mxu0 0.0
  %175 = vmatpush1.msra.mxu0 0.0
  %176 = vmatprep.subr.mxu0 0.0
  %177 = vmatpush1.msra.mxu0 0.0
  %178 = vmatprep.subr.mxu0 0.0
  %179 = vmatpush1.msra.mxu0 0.0
  %180 = vmatprep.subr.mxu0 0.0
  %181 = vmatpush1.msra.mxu0 0.0
  %182 = vmatprep.subr.mxu0 0.0
  %183 = vmatpush1.msra.mxu0 0.0
  %184 = vmatprep.subr.mxu0 0.0
  %185 = vmatpush1.msra.mxu0 0.0
  %186 = vmatprep.subr.mxu0 0.0
  %187 = vmatpush1.msra.mxu0 0.0
  %188 = vmatprep.subr.mxu0 0.0
  %189 = vmatpush1.msra.mxu0 0.0
  %190 = vmatprep.subr.mxu0 0.0
  %191 = vmatpush1.msra.mxu0 0.0
  %192 = vmatprep.subr.mxu0 0.0
  %193 = vmatpush1.msra.mxu0 0.0
  %194 = vmatprep.subr.mxu0 0.0
  %195 = vmatpush1.msra.mxu0 0.0
  %196 = vmatprep.subr.mxu0 0.0
  %197 = vmatpush1.msra.mxu0 0.0
  %198 = vmatprep.subr.mxu0 0.0
  %199 = vmatpush1.msra.mxu0 0.0
  %200 = vmatprep.subr.mxu0 0.0
  %201 = vmatpush1.msra.mxu0 0.0
  %202 = vmatprep.subr.mxu0 0.0
  %203 = vmatpush1.msra.mxu0 0.0
  %204 = vmatprep.subr.mxu0 0.0
  %205 = vmatpush1.msra.mxu0 0.0
  %206 = vmatprep.subr.mxu0 0.0
  %207 = vmatpush1.msra.mxu0 0.0
  %208 = vmatprep.subr.mxu0 0.0
  %209 = vmatpush1.msra.mxu0 0.0
  %210 = vmatprep.subr.mxu0 0.0
  %211 = vmatpush1.msra.mxu0 0.0
  %212 = vmatprep.subr.mxu0 0.0
  %213 = vmatpush1.msra.mxu0 0.0
  %214 = vmatprep.subr.mxu0 0.0
  %215 = vmatpush1.msra.mxu0 0.0
  %216 = vmatprep.subr.mxu0 0.0
  %217 = vmatpush1.msra.mxu0 0.0
  %218 = vmatprep.subr.mxu0 0.0
  %219 = vmatpush1.msra.mxu0 0.0
  %220 = vmatprep.subr.mxu0 0.0
  %221 = vmatpush1.msra.mxu0 0.0
  %222 = vmatprep.mubr.f32.mxu0 0.0
  %223 = vmatmul.mubr.f32.gmra.mrb[0].mxu0 %v153
  %v224 = vpop.f32.mrb[0].mxu0
  %v225 = vadd.f32 %v144, %v224
  %v226 = vpop.f32.mrb[0].mxu0
  %227 = vmatprep.mubr.f32.mxu0 0.0
  %228 = vmatmul.mubr.f32.gmra.mrb[0].mxu0 %v156
  %v229 = vpop.f32.mrb[0].mxu0
  %v230 = vadd.f32 %v149, %v229
  %v231 = vpop.f32.mrb[0].mxu0
  %232 = vdwg.mxu0
  %233 = vrot.lane.b32.xlu0 %v27, 8
  %v234 = vpop.permute.xlu0 %233
  %235 = vrot.lane.b32.xlu0 %v28, 8
  %v236 = vpop.permute.xlu0 %235
  %237 = vrot.lane.b32.xlu0 %v29, 8
  %v238 = vpop.permute.xlu0 %237
  %239 = vrot.lane.b32.xlu0 %v30, 8
  %v240 = vpop.permute.xlu0 %239
  %v241 = vsel %vm62, %v234, 0.0
  %v242 = vsel %vm62, %v236, 0.0
  %v243 = vsel %vm62, %v238, 0.0
  %v244 = vsel %vm62, %v240, 0.0
  %s245 = scalar_lea.vmem %s1, 32
  %v246 = vld [vmem:[%s245] sm:$0xff]
  %v247 = vld [vmem:[%s245 + $0x8] sm:$0xff]
  %v249 = vsel %vm70, %v246, 0
  %v252 = vsel %vm70, %v247, 0
  %254 = vmatprep.subr.mxu0 0.0
  %255 = vmatpush1.msra.mxu0 %v241
  %256 = vmatprep.subr.mxu0 0.0
  %257 = vmatpush1.msra.mxu0 %v242
  %258 = vmatprep.subr.mxu0 0.0
  %259 = vmatpush1.msra.mxu0 %v243
  %260 = vmatprep.subr.mxu0 0.0
  %261 = vmatpush1.msra.mxu0 %v244
  %262 = vmatprep.subr.mxu0 0.0
  %263 = vmatpush1.msra.mxu0 0.0
  %264 = vmatprep.subr.mxu0 0.0
  %265 = vmatpush1.msra.mxu0 0.0
  %266 = vmatprep.subr.mxu0 0.0
  %267 = vmatpush1.msra.mxu0 0.0
  %268 = vmatprep.subr.mxu0 0.0
  %269 = vmatpush1.msra.mxu0 0.0
  %270 = vmatprep.subr.mxu0 0.0
  %271 = vmatpush1.msra.mxu0 0.0
  %272 = vmatprep.subr.mxu0 0.0
  %273 = vmatpush1.msra.mxu0 0.0
  %274 = vmatprep.subr.mxu0 0.0
  %275 = vmatpush1.msra.mxu0 0.0
  %276 = vmatprep.subr.mxu0 0.0
  %277 = vmatpush1.msra.mxu0 0.0
  %278 = vmatprep.subr.mxu0 0.0
  %279 = vmatpush1.msra.mxu0 0.0
  %280 = vmatprep.subr.mxu0 0.0
  %281 = vmatpush1.msra.mxu0 0.0
  %282 = vmatprep.subr.mxu0 0.0
  %283 = vmatpush1.msra.mxu0 0.0
  %284 = vmatprep.subr.mxu0 0.0
  %285 = vmatpush1.msra.mxu0 0.0
  %286 = vmatprep.subr.mxu0 0.0
  %287 = vmatpush1.msra.mxu0 0.0
  %288 = vmatprep.subr.mxu0 0.0
  %289 = vmatpush1.msra.mxu0 0.0
  %290 = vmatprep.subr.mxu0 0.0
  %291 = vmatpush1.msra.mxu0 0.0
  %292 = vmatprep.subr.mxu0 0.0
  %293 = vmatpush1.msra.mxu0 0.0
  %294 = vmatprep.subr.mxu0 0.0
  %295 = vmatpush1.msra.mxu0 0.0
  %296 = vmatprep.subr.mxu0 0.0
  %297 = vmatpush1.msra.mxu0 0.0
  %298 = vmatprep.subr.mxu0 0.0
  %299 = vmatpush1.msra.mxu0 0.0
  %300 = vmatprep.subr.mxu0 0.0
  %301 = vmatpush1.msra.mxu0 0.0
  %302 = vmatprep.subr.mxu0 0.0
  %303 = vmatpush1.msra.mxu0 0.0
  %304 = vmatprep.subr.mxu0 0.0
  %305 = vmatpush1.msra.mxu0 0.0
  %306 = vmatprep.subr.mxu0 0.0
  %307 = vmatpush1.msra.mxu0 0.0
  %308 = vmatprep.subr.mxu0 0.0
  %309 = vmatpush1.msra.mxu0 0.0
  %310 = vmatprep.subr.mxu0 0.0
  %311 = vmatpush1.msra.mxu0 0.0
  %312 = vmatprep.subr.mxu0 0.0
  %313 = vmatpush1.msra.mxu0 0.0
  %314 = vmatprep.subr.mxu0 0.0
  %315 = vmatpush1.msra.mxu0 0.0
  %316 = vmatprep.subr.mxu0 0.0
  %317 = vmatpush1.msra.mxu0 0.0
  %318 = vmatprep.mubr.f32.mxu0 0.0
  %319 = vmatmul.mubr.f32.gmra.mrb[0].mxu0 %v249
  %v320 = vpop.f32.mrb[0].mxu0
  %v321 = vadd.f32 0.0, %v320
  %v322 = vpop.f32.mrb[0].mxu0
  %323 = vmatprep.mubr.f32.mxu0 0.0
  %324 = vmatmul.mubr.f32.gmra.mrb[0].mxu0 %v252
  %v325 = vpop.f32.mrb[0].mxu0
  %v326 = vadd.f32 0.0, %v325
  %v327 = vpop.f32.mrb[0].mxu0
  %328 = vdwg.mxu0
  %v329 = vadd.f32 %v225, %v321
  %v330 = vadd.f32 %v230, %v326
  %s331 = scalar_lea.vmem %s0, 32
  %v332 = vld [vmem:[%s331] sm:$0xff]
  %v333 = vld [vmem:[%s331 + $0x8] sm:$0xff]
  %v334 = vld [vmem:[%s331 + $0x10] sm:$0xff]
  %v335 = vld [vmem:[%s331 + $0x18] sm:$0xff]
  %336 = vrot.lane.b32.xlu0 %v332, 1
  %v337 = vpop.permute.xlu0 %336
  %338 = vrot.lane.b32.xlu0 %v333, 1
  %v339 = vpop.permute.xlu0 %338
  %340 = vrot.lane.b32.xlu0 %v334, 1
  %v341 = vpop.permute.xlu0 %340
  %342 = vrot.lane.b32.xlu0 %v335, 1
  %v343 = vpop.permute.xlu0 %342
  %v344 = vsel %vm24, 1, 0
  %vm345 = vcmp.eq.s32.totalorder %v344, 1
  %v346 = vsel %vm345, %v337, 0.0
  %v347 = vsel %vm345, %v339, 0.0
  %v348 = vsel %vm345, %v341, 0.0
  %v349 = vsel %vm345, %v343, 0.0
  %s350 = scalar_lea.vmem %s1, 48
  %v351 = vld [vmem:[%s350] sm:$0xff]
  %v352 = vld [vmem:[%s350 + $0x8] sm:$0xff]
  %v354 = vsel %vm70, %v351, 0
  %v357 = vsel %vm70, %v352, 0
  %359 = vmatprep.subr.mxu0 0.0
  %360 = vmatpush1.msra.mxu0 %v346
  %361 = vmatprep.subr.mxu0 0.0
  %362 = vmatpush1.msra.mxu0 %v347
  %363 = vmatprep.subr.mxu0 0.0
  %364 = vmatpush1.msra.mxu0 %v348
  %365 = vmatprep.subr.mxu0 0.0
  %366 = vmatpush1.msra.mxu0 %v349
  %367 = vmatprep.subr.mxu0 0.0
  %368 = vmatpush1.msra.mxu0 0.0
  %369 = vmatprep.subr.mxu0 0.0
  %370 = vmatpush1.msra.mxu0 0.0
  %371 = vmatprep.subr.mxu0 0.0
  %372 = vmatpush1.msra.mxu0 0.0
  %373 = vmatprep.subr.mxu0 0.0
  %374 = vmatpush1.msra.mxu0 0.0
  %375 = vmatprep.subr.mxu0 0.0
  %376 = vmatpush1.msra.mxu0 0.0
  %377 = vmatprep.subr.mxu0 0.0
  %378 = vmatpush1.msra.mxu0 0.0
  %379 = vmatprep.subr.mxu0 0.0
  %380 = vmatpush1.msra.mxu0 0.0
  %381 = vmatprep.subr.mxu0 0.0
  %382 = vmatpush1.msra.mxu0 0.0
  %383 = vmatprep.subr.mxu0 0.0
  %384 = vmatpush1.msra.mxu0 0.0
  %385 = vmatprep.subr.mxu0 0.0
  %386 = vmatpush1.msra.mxu0 0.0
  %387 = vmatprep.subr.mxu0 0.0
  %388 = vmatpush1.msra.mxu0 0.0
  %389 = vmatprep.subr.mxu0 0.0
  %390 = vmatpush1.msra.mxu0 0.0
  %391 = vmatprep.subr.mxu0 0.0
  %392 = vmatpush1.msra.mxu0 0.0
  %393 = vmatprep.subr.mxu0 0.0
  %394 = vmatpush1.msra.mxu0 0.0
  %395 = vmatprep.subr.mxu0 0.0
  %396 = vmatpush1.msra.mxu0 0.0
  %397 = vmatprep.subr.mxu0 0.0
  %398 = vmatpush1.msra.mxu0 0.0
  %399 = vmatprep.subr.mxu0 0.0
  %400 = vmatpush1.msra.mxu0 0.0
  %401 = vmatprep.subr.mxu0 0.0
  %402 = vmatpush1.msra.mxu0 0.0
  %403 = vmatprep.subr.mxu0 0.0
  %404 = vmatpush1.msra.mxu0 0.0
  %405 = vmatprep.subr.mxu0 0.0
  %406 = vmatpush1.msra.mxu0 0.0
  %407 = vmatprep.subr.mxu0 0.0
  %408 = vmatpush1.msra.mxu0 0.0
  %409 = vmatprep.subr.mxu0 0.0
  %410 = vmatpush1.msra.mxu0 0.0
  %411 = vmatprep.subr.mxu0 0.0
  %412 = vmatpush1.msra.mxu0 0.0
  %413 = vmatprep.subr.mxu0 0.0
  %414 = vmatpush1.msra.mxu0 0.0
  %415 = vmatprep.subr.mxu0 0.0
  %416 = vmatpush1.msra.mxu0 0.0
  %417 = vmatprep.subr.mxu0 0.0
  %418 = vmatpush1.msra.mxu0 0.0
  %419 = vmatprep.subr.mxu0 0.0
  %420 = vmatpush1.msra.mxu0 0.0
  %421 = vmatprep.subr.mxu0 0.0
  %422 = vmatpush1.msra.mxu0 0.0
  %423 = vmatprep.mubr.f32.mxu0 0.0
  %424 = vmatmul.mubr.f32.gmra.mrb[0].mxu0 %v354
  %v425 = vpop.f32.mrb[0].mxu0
  %v426 = vadd.f32 0.0, %v425
  %v427 = vpop.f32.mrb[0].mxu0
  %428 = vmatprep.mubr.f32.mxu0 0.0
  %429 = vmatmul.mubr.f32.gmra.mrb[0].mxu0 %v357
  %v430 = vpop.f32.mrb[0].mxu0
  %v431 = vadd.f32 0.0, %v430
  %v432 = vpop.f32.mrb[0].mxu0
  %433 = vdwg.mxu0
  %v434 = vadd.f32 %v329, %v426
  %v435 = vadd.f32 %v330, %v431
  %v436 = vld [vmem:[%s0] sm:$0xff]
  %v437 = vld [vmem:[%s0 + $0x8] sm:$0xff]
  %v438 = vld [vmem:[%s0 + $0x10] sm:$0xff]
  %v439 = vld [vmem:[%s0 + $0x18] sm:$0xff]
  %s440 = scalar_lea.vmem %s1, 64
  %v441 = vld [vmem:[%s440] sm:$0xff]
  %v442 = vld [vmem:[%s440 + $0x8] sm:$0xff]
  %v444 = vsel %vm70, %v441, 0
  %v447 = vsel %vm70, %v442, 0
  %449 = vmatprep.subr.mxu0 0.0
  %450 = vmatpush1.msra.mxu0 %v436
  %451 = vmatprep.subr.mxu0 0.0
  %452 = vmatpush1.msra.mxu0 %v437
  %453 = vmatprep.subr.mxu0 0.0
  %454 = vmatpush1.msra.mxu0 %v438
  %455 = vmatprep.subr.mxu0 0.0
  %456 = vmatpush1.msra.mxu0 %v439
  %457 = vmatprep.subr.mxu0 0.0
  %458 = vmatpush1.msra.mxu0 0.0
  %459 = vmatprep.subr.mxu0 0.0
  %460 = vmatpush1.msra.mxu0 0.0
  %461 = vmatprep.subr.mxu0 0.0
  %462 = vmatpush1.msra.mxu0 0.0
  %463 = vmatprep.subr.mxu0 0.0
  %464 = vmatpush1.msra.mxu0 0.0
  %465 = vmatprep.subr.mxu0 0.0
  %466 = vmatpush1.msra.mxu0 0.0
  %467 = vmatprep.subr.mxu0 0.0
  %468 = vmatpush1.msra.mxu0 0.0
  %469 = vmatprep.subr.mxu0 0.0
  %470 = vmatpush1.msra.mxu0 0.0
  %471 = vmatprep.subr.mxu0 0.0
  %472 = vmatpush1.msra.mxu0 0.0
  %473 = vmatprep.subr.mxu0 0.0
  %474 = vmatpush1.msra.mxu0 0.0
  %475 = vmatprep.subr.mxu0 0.0
  %476 = vmatpush1.msra.mxu0 0.0
  %477 = vmatprep.subr.mxu0 0.0
  %478 = vmatpush1.msra.mxu0 0.0
  %479 = vmatprep.subr.mxu0 0.0
  %480 = vmatpush1.msra.mxu0 0.0
  %481 = vmatprep.subr.mxu0 0.0
  %482 = vmatpush1.msra.mxu0 0.0
  %483 = vmatprep.subr.mxu0 0.0
  %484 = vmatpush1.msra.mxu0 0.0
  %485 = vmatprep.subr.mxu0 0.0
  %486 = vmatpush1.msra.mxu0 0.0
  %487 = vmatprep.subr.mxu0 0.0
  %488 = vmatpush1.msra.mxu0 0.0
  %489 = vmatprep.subr.mxu0 0.0
  %490 = vmatpush1.msra.mxu0 0.0
  %491 = vmatprep.subr.mxu0 0.0
  %492 = vmatpush1.msra.mxu0 0.0
  %493 = vmatprep.subr.mxu0 0.0
  %494 = vmatpush1.msra.mxu0 0.0
  %495 = vmatprep.subr.mxu0 0.0
  %496 = vmatpush1.msra.mxu0 0.0
  %497 = vmatprep.subr.mxu0 0.0
  %498 = vmatpush1.msra.mxu0 0.0
  %499 = vmatprep.subr.mxu0 0.0
  %500 = vmatpush1.msra.mxu0 0.0
  %501 = vmatprep.subr.mxu0 0.0
  %502 = vmatpush1.msra.mxu0 0.0
  %503 = vmatprep.subr.mxu0 0.0
  %504 = vmatpush1.msra.mxu0 0.0
  %505 = vmatprep.subr.mxu0 0.0
  %506 = vmatpush1.msra.mxu0 0.0
  %507 = vmatprep.subr.mxu0 0.0
  %508 = vmatpush1.msra.mxu0 0.0
  %509 = vmatprep.subr.mxu0 0.0
  %510 = vmatpush1.msra.mxu0 0.0
  %511 = vmatprep.subr.mxu0 0.0
  %512 = vmatpush1.msra.mxu0 0.0
  %513 = vmatprep.mubr.f32.mxu0 0.0
  %514 = vmatmul.mubr.f32.gmra.mrb[0].mxu0 %v444
  %v515 = vpop.f32.mrb[0].mxu0
  %v516 = vadd.f32 0.0, %v515
  %v517 = vpop.f32.mrb[0].mxu0
  %518 = vmatprep.mubr.f32.mxu0 0.0
  %519 = vmatmul.mubr.f32.gmra.mrb[0].mxu0 %v447
  %v520 = vpop.f32.mrb[0].mxu0
  %v521 = vadd.f32 0.0, %v520
  %v522 = vpop.f32.mrb[0].mxu0
  %523 = vdwg.mxu0
  %v524 = vadd.f32 %v434, %v516
  %v525 = vadd.f32 %v435, %v521
  %s526 = scalar_lea.vmem %s1, 80
  %v527 = vld [vmem:[%s526] sm:$0xff]
  %v528 = vld [vmem:[%s526 + $0x8] sm:$0xff]
  %v530 = vsel %vm70, %v527, 0
  %v533 = vsel %vm70, %v528, 0
  %535 = vmatprep.subr.mxu0 0.0
  %536 = vmatpush1.msra.mxu0 %v332
  %537 = vmatprep.subr.mxu0 0.0
  %538 = vmatpush1.msra.mxu0 %v333
  %539 = vmatprep.subr.mxu0 0.0
  %540 = vmatpush1.msra.mxu0 %v334
  %541 = vmatprep.subr.mxu0 0.0
  %542 = vmatpush1.msra.mxu0 %v335
  %543 = vmatprep.subr.mxu0 0.0
  %544 = vmatpush1.msra.mxu0 0.0
  %545 = vmatprep.subr.mxu0 0.0
  %546 = vmatpush1.msra.mxu0 0.0
  %547 = vmatprep.subr.mxu0 0.0
  %548 = vmatpush1.msra.mxu0 0.0
  %549 = vmatprep.subr.mxu0 0.0
  %550 = vmatpush1.msra.mxu0 0.0
  %551 = vmatprep.subr.mxu0 0.0
  %552 = vmatpush1.msra.mxu0 0.0
  %553 = vmatprep.subr.mxu0 0.0
  %554 = vmatpush1.msra.mxu0 0.0
  %555 = vmatprep.subr.mxu0 0.0
  %556 = vmatpush1.msra.mxu0 0.0
  %557 = vmatprep.subr.mxu0 0.0
  %558 = vmatpush1.msra.mxu0 0.0
  %559 = vmatprep.subr.mxu0 0.0
  %560 = vmatpush1.msra.mxu0 0.0
  %561 = vmatprep.subr.mxu0 0.0
  %562 = vmatpush1.msra.mxu0 0.0
  %563 = vmatprep.subr.mxu0 0.0
  %564 = vmatpush1.msra.mxu0 0.0
  %565 = vmatprep.subr.mxu0 0.0
  %566 = vmatpush1.msra.mxu0 0.0
  %567 = vmatprep.subr.mxu0 0.0
  %568 = vmatpush1.msra.mxu0 0.0
  %569 = vmatprep.subr.mxu0 0.0
  %570 = vmatpush1.msra.mxu0 0.0
  %571 = vmatprep.subr.mxu0 0.0
  %572 = vmatpush1.msra.mxu0 0.0
  %573 = vmatprep.subr.mxu0 0.0
  %574 = vmatpush1.msra.mxu0 0.0
  %575 = vmatprep.subr.mxu0 0.0
  %576 = vmatpush1.msra.mxu0 0.0
  %577 = vmatprep.subr.mxu0 0.0
  %578 = vmatpush1.msra.mxu0 0.0
  %579 = vmatprep.subr.mxu0 0.0
  %580 = vmatpush1.msra.mxu0 0.0
  %581 = vmatprep.subr.mxu0 0.0
  %582 = vmatpush1.msra.mxu0 0.0
  %583 = vmatprep.subr.mxu0 0.0
  %584 = vmatpush1.msra.mxu0 0.0
  %585 = vmatprep.subr.mxu0 0.0
  %586 = vmatpush1.msra.mxu0 0.0
  %587 = vmatprep.subr.mxu0 0.0
  %588 = vmatpush1.msra.mxu0 0.0
  %589 = vmatprep.subr.mxu0 0.0
  %590 = vmatpush1.msra.mxu0 0.0
  %591 = vmatprep.subr.mxu0 0.0
  %592 = vmatpush1.msra.mxu0 0.0
  %593 = vmatprep.subr.mxu0 0.0
  %594 = vmatpush1.msra.mxu0 0.0
  %595 = vmatprep.subr.mxu0 0.0
  %596 = vmatpush1.msra.mxu0 0.0
  %597 = vmatprep.subr.mxu0 0.0
  %598 = vmatpush1.msra.mxu0 0.0
  %599 = vmatprep.mubr.f32.mxu0 0.0
  %600 = vmatmul.mubr.f32.gmra.mrb[0].mxu0 %v530
  %v601 = vpop.f32.mrb[0].mxu0
  %v602 = vadd.f32 0.0, %v601
  %v603 = vpop.f32.mrb[0].mxu0
  %604 = vmatprep.mubr.f32.mxu0 0.0
  %605 = vmatmul.mubr.f32.gmra.mrb[0].mxu0 %v533
  %v606 = vpop.f32.mrb[0].mxu0
  %v607 = vadd.f32 0.0, %v606
  %v608 = vpop.f32.mrb[0].mxu0
  %609 = vdwg.mxu0
  %v610 = vadd.f32 %v524, %v602
  %v611 = vadd.f32 %v525, %v607
  %612 = vrot.lane.b32.xlu0 %v27, 1
  %v613 = vpop.permute.xlu0 %612
  %614 = vrot.lane.b32.xlu0 %v28, 1
  %v615 = vpop.permute.xlu0 %614
  %616 = vrot.lane.b32.xlu0 %v29, 1
  %v617 = vpop.permute.xlu0 %616
  %618 = vrot.lane.b32.xlu0 %v30, 1
  %v619 = vpop.permute.xlu0 %618
  %v620 = vsel %vm345, %v613, 0.0
  %v621 = vsel %vm345, %v615, 0.0
  %v622 = vsel %vm345, %v617, 0.0
  %v623 = vsel %vm345, %v619, 0.0
  %s624 = scalar_lea.vmem %s1, 96
  %v625 = vld [vmem:[%s624] sm:$0xff]
  %v626 = vld [vmem:[%s624 + $0x8] sm:$0xff]
  %v628 = vsel %vm70, %v625, 0
  %v631 = vsel %vm70, %v626, 0
  %633 = vmatprep.subr.mxu0 0.0
  %634 = vmatpush1.msra.mxu0 %v620
  %635 = vmatprep.subr.mxu0 0.0
  %636 = vmatpush1.msra.mxu0 %v621
  %637 = vmatprep.subr.mxu0 0.0
  %638 = vmatpush1.msra.mxu0 %v622
  %639 = vmatprep.subr.mxu0 0.0
  %640 = vmatpush1.msra.mxu0 %v623
  %641 = vmatprep.subr.mxu0 0.0
  %642 = vmatpush1.msra.mxu0 0.0
  %643 = vmatprep.subr.mxu0 0.0
  %644 = vmatpush1.msra.mxu0 0.0
  %645 = vmatprep.subr.mxu0 0.0
  %646 = vmatpush1.msra.mxu0 0.0
  %647 = vmatprep.subr.mxu0 0.0
  %648 = vmatpush1.msra.mxu0 0.0
  %649 = vmatprep.subr.mxu0 0.0
  %650 = vmatpush1.msra.mxu0 0.0
  %651 = vmatprep.subr.mxu0 0.0
  %652 = vmatpush1.msra.mxu0 0.0
  %653 = vmatprep.subr.mxu0 0.0
  %654 = vmatpush1.msra.mxu0 0.0
  %655 = vmatprep.subr.mxu0 0.0
  %656 = vmatpush1.msra.mxu0 0.0
  %657 = vmatprep.subr.mxu0 0.0
  %658 = vmatpush1.msra.mxu0 0.0
  %659 = vmatprep.subr.mxu0 0.0
  %660 = vmatpush1.msra.mxu0 0.0
  %661 = vmatprep.subr.mxu0 0.0
  %662 = vmatpush1.msra.mxu0 0.0
  %663 = vmatprep.subr.mxu0 0.0
  %664 = vmatpush1.msra.mxu0 0.0
  %665 = vmatprep.subr.mxu0 0.0
  %666 = vmatpush1.msra.mxu0 0.0
  %667 = vmatprep.subr.mxu0 0.0
  %668 = vmatpush1.msra.mxu0 0.0
  %669 = vmatprep.subr.mxu0 0.0
  %670 = vmatpush1.msra.mxu0 0.0
  %671 = vmatprep.subr.mxu0 0.0
  %672 = vmatpush1.msra.mxu0 0.0
  %673 = vmatprep.subr.mxu0 0.0
  %674 = vmatpush1.msra.mxu0 0.0
  %675 = vmatprep.subr.mxu0 0.0
  %676 = vmatpush1.msra.mxu0 0.0
  %677 = vmatprep.subr.mxu0 0.0
  %678 = vmatpush1.msra.mxu0 0.0
  %679 = vmatprep.subr.mxu0 0.0
  %680 = vmatpush1.msra.mxu0 0.0
  %681 = vmatprep.subr.mxu0 0.0
  %682 = vmatpush1.msra.mxu0 0.0
  %683 = vmatprep.subr.mxu0 0.0
  %684 = vmatpush1.msra.mxu0 0.0
  %685 = vmatprep.subr.mxu0 0.0
  %686 = vmatpush1.msra.mxu0 0.0
  %687 = vmatprep.subr.mxu0 0.0
  %688 = vmatpush1.msra.mxu0 0.0
  %689 = vmatprep.subr.mxu0 0.0
  %690 = vmatpush1.msra.mxu0 0.0
  %691 = vmatprep.subr.mxu0 0.0
  %692 = vmatpush1.msra.mxu0 0.0
  %693 = vmatprep.subr.mxu0 0.0
  %694 = vmatpush1.msra.mxu0 0.0
  %695 = vmatprep.subr.mxu0 0.0
  %696 = vmatpush1.msra.mxu0 0.0
  %697 = vmatprep.mubr.f32.mxu0 0.0
  %698 = vmatmul.mubr.f32.gmra.mrb[0].mxu0 %v628
  %v699 = vpop.f32.mrb[0].mxu0
  %v700 = vadd.f32 0.0, %v699
  %v701 = vpop.f32.mrb[0].mxu0
  %702 = vmatprep.mubr.f32.mxu0 0.0
  %703 = vmatmul.mubr.f32.gmra.mrb[0].mxu0 %v631
  %v704 = vpop.f32.mrb[0].mxu0
  %v705 = vadd.f32 0.0, %v704
  %v706 = vpop.f32.mrb[0].mxu0
  %707 = vdwg.mxu0
  %v708 = vadd.f32 %v610, %v700
  %v709 = vadd.f32 %v611, %v705
  %s710 = scalar_lea.vmem %s1, 112
  %v711 = vld [vmem:[%s710] sm:$0xff]
  %v712 = vld [vmem:[%s710 + $0x8] sm:$0xff]
  %v714 = vsel %vm70, %v711, 0
  %v717 = vsel %vm70, %v712, 0
  %719 = vmatprep.subr.mxu0 0.0
  %720 = vmatpush1.msra.mxu0 %v49
  %721 = vmatprep.subr.mxu0 0.0
  %722 = vmatpush1.msra.mxu0 %v50
  %723 = vmatprep.subr.mxu0 0.0
  %724 = vmatpush1.msra.mxu0 %v51
  %725 = vmatprep.subr.mxu0 0.0
  %726 = vmatpush1.msra.mxu0 %v52
  %727 = vmatprep.subr.mxu0 0.0
  %728 = vmatpush1.msra.mxu0 0.0
  %729 = vmatprep.subr.mxu0 0.0
  %730 = vmatpush1.msra.mxu0 0.0
  %731 = vmatprep.subr.mxu0 0.0
  %732 = vmatpush1.msra.mxu0 0.0
  %733 = vmatprep.subr.mxu0 0.0
  %734 = vmatpush1.msra.mxu0 0.0
  %735 = vmatprep.subr.mxu0 0.0
  %736 = vmatpush1.msra.mxu0 0.0
  %737 = vmatprep.subr.mxu0 0.0
  %738 = vmatpush1.msra.mxu0 0.0
  %739 = vmatprep.subr.mxu0 0.0
  %740 = vmatpush1.msra.mxu0 0.0
  %741 = vmatprep.subr.mxu0 0.0
  %742 = vmatpush1.msra.mxu0 0.0
  %743 = vmatprep.subr.mxu0 0.0
  %744 = vmatpush1.msra.mxu0 0.0
  %745 = vmatprep.subr.mxu0 0.0
  %746 = vmatpush1.msra.mxu0 0.0
  %747 = vmatprep.subr.mxu0 0.0
  %748 = vmatpush1.msra.mxu0 0.0
  %749 = vmatprep.subr.mxu0 0.0
  %750 = vmatpush1.msra.mxu0 0.0
  %751 = vmatprep.subr.mxu0 0.0
  %752 = vmatpush1.msra.mxu0 0.0
  %753 = vmatprep.subr.mxu0 0.0
  %754 = vmatpush1.msra.mxu0 0.0
  %755 = vmatprep.subr.mxu0 0.0
  %756 = vmatpush1.msra.mxu0 0.0
  %757 = vmatprep.subr.mxu0 0.0
  %758 = vmatpush1.msra.mxu0 0.0
  %759 = vmatprep.subr.mxu0 0.0
  %760 = vmatpush1.msra.mxu0 0.0
  %761 = vmatprep.subr.mxu0 0.0
  %762 = vmatpush1.msra.mxu0 0.0
  %763 = vmatprep.subr.mxu0 0.0
  %764 = vmatpush1.msra.mxu0 0.0
  %765 = vmatprep.subr.mxu0 0.0
  %766 = vmatpush1.msra.mxu0 0.0
  %767 = vmatprep.subr.mxu0 0.0
  %768 = vmatpush1.msra.mxu0 0.0
  %769 = vmatprep.subr.mxu0 0.0
  %770 = vmatpush1.msra.mxu0 0.0
  %771 = vmatprep.subr.mxu0 0.0
  %772 = vmatpush1.msra.mxu0 0.0
  %773 = vmatprep.subr.mxu0 0.0
  %774 = vmatpush1.msra.mxu0 0.0
  %775 = vmatprep.subr.mxu0 0.0
  %776 = vmatpush1.msra.mxu0 0.0
  %777 = vmatprep.subr.mxu0 0.0
  %778 = vmatpush1.msra.mxu0 0.0
  %779 = vmatprep.subr.mxu0 0.0
  %780 = vmatpush1.msra.mxu0 0.0
  %781 = vmatprep.subr.mxu0 0.0
  %782 = vmatpush1.msra.mxu0 0.0
  %783 = vmatprep.mubr.f32.mxu0 0.0
  %784 = vmatmul.mubr.f32.gmra.mrb[0].mxu0 %v714
  %v785 = vpop.f32.mrb[0].mxu0
  %v786 = vadd.f32 0.0, %v785
  %v787 = vpop.f32.mrb[0].mxu0
  %788 = vmatprep.mubr.f32.mxu0 0.0
  %789 = vmatmul.mubr.f32.gmra.mrb[0].mxu0 %v717
  %v790 = vpop.f32.mrb[0].mxu0
  %v791 = vadd.f32 0.0, %v790
  %v792 = vpop.f32.mrb[0].mxu0
  %793 = vdwg.mxu0
  %v794 = vadd.f32 %v708, %v786
  %v795 = vadd.f32 %v709, %v791
  %s796 = scalar_lea.vmem %s1, 128
  %v797 = vld [vmem:[%s796] sm:$0xff]
  %v798 = vld [vmem:[%s796 + $0x8] sm:$0xff]
  %v800 = vsel %vm70, %v797, 0
  %v803 = vsel %vm70, %v798, 0
  %805 = vmatprep.subr.mxu0 0.0
  %806 = vmatpush1.msra.mxu0 %v27
  %807 = vmatprep.subr.mxu0 0.0
  %808 = vmatpush1.msra.mxu0 %v28
  %809 = vmatprep.subr.mxu0 0.0
  %810 = vmatpush1.msra.mxu0 %v29
  %811 = vmatprep.subr.mxu0 0.0
  %812 = vmatpush1.msra.mxu0 %v30
  %813 = vmatprep.subr.mxu0 0.0
  %814 = vmatpush1.msra.mxu0 0.0
  %815 = vmatprep.subr.mxu0 0.0
  %816 = vmatpush1.msra.mxu0 0.0
  %817 = vmatprep.subr.mxu0 0.0
  %818 = vmatpush1.msra.mxu0 0.0
  %819 = vmatprep.subr.mxu0 0.0
  %820 = vmatpush1.msra.mxu0 0.0
  %821 = vmatprep.subr.mxu0 0.0
  %822 = vmatpush1.msra.mxu0 0.0
  %823 = vmatprep.subr.mxu0 0.0
  %824 = vmatpush1.msra.mxu0 0.0
  %825 = vmatprep.subr.mxu0 0.0
  %826 = vmatpush1.msra.mxu0 0.0
  %827 = vmatprep.subr.mxu0 0.0
  %828 = vmatpush1.msra.mxu0 0.0
  %829 = vmatprep.subr.mxu0 0.0
  %830 = vmatpush1.msra.mxu0 0.0
  %831 = vmatprep.subr.mxu0 0.0
  %832 = vmatpush1.msra.mxu0 0.0
  %833 = vmatprep.subr.mxu0 0.0
  %834 = vmatpush1.msra.mxu0 0.0
  %835 = vmatprep.subr.mxu0 0.0
  %836 = vmatpush1.msra.mxu0 0.0
  %837 = vmatprep.subr.mxu0 0.0
  %838 = vmatpush1.msra.mxu0 0.0
  %839 = vmatprep.subr.mxu0 0.0
  %840 = vmatpush1.msra.mxu0 0.0
  %841 = vmatprep.subr.mxu0 0.0
  %842 = vmatpush1.msra.mxu0 0.0
  %843 = vmatprep.subr.mxu0 0.0
  %844 = vmatpush1.msra.mxu0 0.0
  %845 = vmatprep.subr.mxu0 0.0
  %846 = vmatpush1.msra.mxu0 0.0
  %847 = vmatprep.subr.mxu0 0.0
  %848 = vmatpush1.msra.mxu0 0.0
  %849 = vmatprep.subr.mxu0 0.0
  %850 = vmatpush1.msra.mxu0 0.0
  %851 = vmatprep.subr.mxu0 0.0
  %852 = vmatpush1.msra.mxu0 0.0
  %853 = vmatprep.subr.mxu0 0.0
  %854 = vmatpush1.msra.mxu0 0.0
  %855 = vmatprep.subr.mxu0 0.0
  %856 = vmatpush1.msra.mxu0 0.0
  %857 = vmatprep.subr.mxu0 0.0
  %858 = vmatpush1.msra.mxu0 0.0
  %859 = vmatprep.subr.mxu0 0.0
  %860 = vmatpush1.msra.mxu0 0.0
  %861 = vmatprep.subr.mxu0 0.0
  %862 = vmatpush1.msra.mxu0 0.0
  %863 = vmatprep.subr.mxu0 0.0
  %864 = vmatpush1.msra.mxu0 0.0
  %865 = vmatprep.subr.mxu0 0.0
  %866 = vmatpush1.msra.mxu0 0.0
  %867 = vmatprep.subr.mxu0 0.0
  %868 = vmatpush1.msra.mxu0 0.0
  %869 = vmatprep.mubr.f32.mxu0 0.0
  %870 = vmatmul.mubr.f32.gmra.mrb[0].mxu0 %v800
  %v871 = vpop.f32.mrb[0].mxu0
  %v872 = vadd.f32 0.0, %v871
  %v873 = vpop.f32.mrb[0].mxu0
  %874 = vmatprep.mubr.f32.mxu0 0.0
  %875 = vmatmul.mubr.f32.gmra.mrb[0].mxu0 %v803
  %v876 = vpop.f32.mrb[0].mxu0
  %v877 = vadd.f32 0.0, %v876
  %v878 = vpop.f32.mrb[0].mxu0
  %879 = vdwg.mxu0
  %v880 = vadd.f32 %v794, %v872
  %v881 = vadd.f32 %v795, %v877
  %882 = vmatprep.subr.mxu0 0.0
  %883 = vmatpush1.msra.mxu0 %v241
  %884 = vmatprep.subr.mxu0 0.0
  %885 = vmatpush1.msra.mxu0 %v242
  %886 = vmatprep.subr.mxu0 0.0
  %887 = vmatpush1.msra.mxu0 %v243
  %888 = vmatprep.subr.mxu0 0.0
  %889 = vmatpush1.msra.mxu0 %v244
  %890 = vmatprep.subr.mxu0 0.0
  %891 = vmatpush1.msra.mxu0 0.0
  %892 = vmatprep.subr.mxu0 0.0
  %893 = vmatpush1.msra.mxu0 0.0
  %894 = vmatprep.subr.mxu0 0.0
  %895 = vmatpush1.msra.mxu0 0.0
  %896 = vmatprep.subr.mxu0 0.0
  %897 = vmatpush1.msra.mxu0 0.0
  %898 = vmatprep.subr.mxu0 0.0
  %899 = vmatpush1.msra.mxu0 0.0
  %900 = vmatprep.subr.mxu0 0.0
  %901 = vmatpush1.msra.mxu0 0.0
  %902 = vmatprep.subr.mxu0 0.0
  %903 = vmatpush1.msra.mxu0 0.0
  %904 = vmatprep.subr.mxu0 0.0
  %905 = vmatpush1.msra.mxu0 0.0
  %906 = vmatprep.subr.mxu0 0.0
  %907 = vmatpush1.msra.mxu0 0.0
  %908 = vmatprep.subr.mxu0 0.0
  %909 = vmatpush1.msra.mxu0 0.0
  %910 = vmatprep.subr.mxu0 0.0
  %911 = vmatpush1.msra.mxu0 0.0
  %912 = vmatprep.subr.mxu0 0.0
  %913 = vmatpush1.msra.mxu0 0.0
  %914 = vmatprep.subr.mxu0 0.0
  %915 = vmatpush1.msra.mxu0 0.0
  %916 = vmatprep.subr.mxu0 0.0
  %917 = vmatpush1.msra.mxu0 0.0
  %918 = vmatprep.subr.mxu0 0.0
  %919 = vmatpush1.msra.mxu0 0.0
  %920 = vmatprep.subr.mxu0 0.0
  %921 = vmatpush1.msra.mxu0 0.0
  %922 = vmatprep.subr.mxu0 0.0
  %923 = vmatpush1.msra.mxu0 0.0
  %924 = vmatprep.subr.mxu0 0.0
  %925 = vmatpush1.msra.mxu0 0.0
  %926 = vmatprep.subr.mxu0 0.0
  %927 = vmatpush1.msra.mxu0 0.0
  %928 = vmatprep.subr.mxu0 0.0
  %929 = vmatpush1.msra.mxu0 0.0
  %930 = vmatprep.subr.mxu0 0.0
  %931 = vmatpush1.msra.mxu0 0.0
  %932 = vmatprep.subr.mxu0 0.0
  %933 = vmatpush1.msra.mxu0 0.0
  %934 = vmatprep.subr.mxu0 0.0
  %935 = vmatpush1.msra.mxu0 0.0
  %936 = vmatprep.subr.mxu0 0.0
  %937 = vmatpush1.msra.mxu0 0.0
  %938 = vmatprep.subr.mxu0 0.0
  %939 = vmatpush1.msra.mxu0 0.0
  %940 = vmatprep.subr.mxu0 0.0
  %941 = vmatpush1.msra.mxu0 0.0
  %942 = vmatprep.subr.mxu0 0.0
  %943 = vmatpush1.msra.mxu0 0.0
  %944 = vmatprep.subr.mxu0 0.0
  %945 = vmatpush1.msra.mxu0 0.0
  %946 = vmatprep.mubr.f32.mxu0 0.0
  %947 = vmatmul.mubr.f32.gmra.mrb[0].mxu0 %v72
  %v948 = vpop.f32.mrb[0].mxu0
  %v949 = vadd.f32 0.0, %v948
  %v950 = vpop.f32.mrb[0].mxu0
  %951 = vmatprep.mubr.f32.mxu0 0.0
  %952 = vmatmul.mubr.f32.gmra.mrb[0].mxu0 %v75
  %v953 = vpop.f32.mrb[0].mxu0
  %v954 = vadd.f32 0.0, %v953
  %v955 = vpop.f32.mrb[0].mxu0
  %956 = vdwg.mxu0
  %957 = vmatprep.subr.mxu0 0.0
  %958 = vmatpush1.msra.mxu0 %v63
  %959 = vmatprep.subr.mxu0 0.0
  %960 = vmatpush1.msra.mxu0 %v64
  %961 = vmatprep.subr.mxu0 0.0
  %962 = vmatpush1.msra.mxu0 %v65
  %963 = vmatprep.subr.mxu0 0.0
  %964 = vmatpush1.msra.mxu0 %v66
  %965 = vmatprep.subr.mxu0 0.0
  %966 = vmatpush1.msra.mxu0 0.0
  %967 = vmatprep.subr.mxu0 0.0
  %968 = vmatpush1.msra.mxu0 0.0
  %969 = vmatprep.subr.mxu0 0.0
  %970 = vmatpush1.msra.mxu0 0.0
  %971 = vmatprep.subr.mxu0 0.0
  %972 = vmatpush1.msra.mxu0 0.0
  %973 = vmatprep.subr.mxu0 0.0
  %974 = vmatpush1.msra.mxu0 0.0
  %975 = vmatprep.subr.mxu0 0.0
  %976 = vmatpush1.msra.mxu0 0.0
  %977 = vmatprep.subr.mxu0 0.0
  %978 = vmatpush1.msra.mxu0 0.0
  %979 = vmatprep.subr.mxu0 0.0
  %980 = vmatpush1.msra.mxu0 0.0
  %981 = vmatprep.subr.mxu0 0.0
  %982 = vmatpush1.msra.mxu0 0.0
  %983 = vmatprep.subr.mxu0 0.0
  %984 = vmatpush1.msra.mxu0 0.0
  %985 = vmatprep.subr.mxu0 0.0
  %986 = vmatpush1.msra.mxu0 0.0
  %987 = vmatprep.subr.mxu0 0.0
  %988 = vmatpush1.msra.mxu0 0.0
  %989 = vmatprep.subr.mxu0 0.0
  %990 = vmatpush1.msra.mxu0 0.0
  %991 = vmatprep.subr.mxu0 0.0
  %992 = vmatpush1.msra.mxu0 0.0
  %993 = vmatprep.subr.mxu0 0.0
  %994 = vmatpush1.msra.mxu0 0.0
  %995 = vmatprep.subr.mxu0 0.0
  %996 = vmatpush1.msra.mxu0 0.0
  %997 = vmatprep.subr.mxu0 0.0
  %998 = vmatpush1.msra.mxu0 0.0
  %999 = vmatprep.subr.mxu0 0.0
  %1000 = vmatpush1.msra.mxu0 0.0
  %1001 = vmatprep.subr.mxu0 0.0
  %1002 = vmatpush1.msra.mxu0 0.0
  %1003 = vmatprep.subr.mxu0 0.0
  %1004 = vmatpush1.msra.mxu0 0.0
  %1005 = vmatprep.subr.mxu0 0.0
  %1006 = vmatpush1.msra.mxu0 0.0
  %1007 = vmatprep.subr.mxu0 0.0
  %1008 = vmatpush1.msra.mxu0 0.0
  %1009 = vmatprep.subr.mxu0 0.0
  %1010 = vmatpush1.msra.mxu0 0.0
  %1011 = vmatprep.subr.mxu0 0.0
  %1012 = vmatpush1.msra.mxu0 0.0
  %1013 = vmatprep.subr.mxu0 0.0
  %1014 = vmatpush1.msra.mxu0 0.0
  %1015 = vmatprep.subr.mxu0 0.0
  %1016 = vmatpush1.msra.mxu0 0.0
  %1017 = vmatprep.subr.mxu0 0.0
  %1018 = vmatpush1.msra.mxu0 0.0
  %1019 = vmatprep.subr.mxu0 0.0
  %1020 = vmatpush1.msra.mxu0 0.0
  %1021 = vmatprep.mubr.f32.mxu0 0.0
  %1022 = vmatmul.mubr.f32.gmra.mrb[0].mxu0 %v153
  %v1023 = vpop.f32.mrb[0].mxu0
  %v1024 = vadd.f32 %v949, %v1023
  %v1025 = vpop.f32.mrb[0].mxu0
  %1026 = vmatprep.mubr.f32.mxu0 0.0
  %1027 = vmatmul.mubr.f32.gmra.mrb[0].mxu0 %v156
  %v1028 = vpop.f32.mrb[0].mxu0
  %v1029 = vadd.f32 %v954, %v1028
  %v1030 = vpop.f32.mrb[0].mxu0
  %1031 = vdwg.mxu0
  %1032 = vrot.lane.b32.xlu0 %v49, 7
  %v1033 = vpop.permute.xlu0 %1032
  %1034 = vrot.lane.b32.xlu0 %v50, 7
  %v1035 = vpop.permute.xlu0 %1034
  %1036 = vrot.lane.b32.xlu0 %v51, 7
  %v1037 = vpop.permute.xlu0 %1036
  %1038 = vrot.lane.b32.xlu0 %v52, 7
  %v1039 = vpop.permute.xlu0 %1038
  %vm1040 = vmand %vm22, %vm25
  %v1041 = vsel %vm1040, 1, 0
  %vm1042 = vcmp.eq.s32.totalorder %v1041, 1
  %v1043 = vsel %vm1042, %v1033, 0.0
  %v1044 = vsel %vm1042, %v1035, 0.0
  %v1045 = vsel %vm1042, %v1037, 0.0
  %v1046 = vsel %vm1042, %v1039, 0.0
  %1047 = vmatprep.subr.mxu0 0.0
  %1048 = vmatpush1.msra.mxu0 %v1043
  %1049 = vmatprep.subr.mxu0 0.0
  %1050 = vmatpush1.msra.mxu0 %v1044
  %1051 = vmatprep.subr.mxu0 0.0
  %1052 = vmatpush1.msra.mxu0 %v1045
  %1053 = vmatprep.subr.mxu0 0.0
  %1054 = vmatpush1.msra.mxu0 %v1046
  %1055 = vmatprep.subr.mxu0 0.0
  %1056 = vmatpush1.msra.mxu0 0.0
  %1057 = vmatprep.subr.mxu0 0.0
  %1058 = vmatpush1.msra.mxu0 0.0
  %1059 = vmatprep.subr.mxu0 0.0
  %1060 = vmatpush1.msra.mxu0 0.0
  %1061 = vmatprep.subr.mxu0 0.0
  %1062 = vmatpush1.msra.mxu0 0.0
  %1063 = vmatprep.subr.mxu0 0.0
  %1064 = vmatpush1.msra.mxu0 0.0
  %1065 = vmatprep.subr.mxu0 0.0
  %1066 = vmatpush1.msra.mxu0 0.0
  %1067 = vmatprep.subr.mxu0 0.0
  %1068 = vmatpush1.msra.mxu0 0.0
  %1069 = vmatprep.subr.mxu0 0.0
  %1070 = vmatpush1.msra.mxu0 0.0
  %1071 = vmatprep.subr.mxu0 0.0
  %1072 = vmatpush1.msra.mxu0 0.0
  %1073 = vmatprep.subr.mxu0 0.0
  %1074 = vmatpush1.msra.mxu0 0.0
  %1075 = vmatprep.subr.mxu0 0.0
  %1076 = vmatpush1.msra.mxu0 0.0
  %1077 = vmatprep.subr.mxu0 0.0
  %1078 = vmatpush1.msra.mxu0 0.0
  %1079 = vmatprep.subr.mxu0 0.0
  %1080 = vmatpush1.msra.mxu0 0.0
  %1081 = vmatprep.subr.mxu0 0.0
  %1082 = vmatpush1.msra.mxu0 0.0
  %1083 = vmatprep.subr.mxu0 0.0
  %1084 = vmatpush1.msra.mxu0 0.0
  %1085 = vmatprep.subr.mxu0 0.0
  %1086 = vmatpush1.msra.mxu0 0.0
  %1087 = vmatprep.subr.mxu0 0.0
  %1088 = vmatpush1.msra.mxu0 0.0
  %1089 = vmatprep.subr.mxu0 0.0
  %1090 = vmatpush1.msra.mxu0 0.0
  %1091 = vmatprep.subr.mxu0 0.0
  %1092 = vmatpush1.msra.mxu0 0.0
  %1093 = vmatprep.subr.mxu0 0.0
  %1094 = vmatpush1.msra.mxu0 0.0
  %1095 = vmatprep.subr.mxu0 0.0
  %1096 = vmatpush1.msra.mxu0 0.0
  %1097 = vmatprep.subr.mxu0 0.0
  %1098 = vmatpush1.msra.mxu0 0.0
  %1099 = vmatprep.subr.mxu0 0.0
  %1100 = vmatpush1.msra.mxu0 0.0
  %1101 = vmatprep.subr.mxu0 0.0
  %1102 = vmatpush1.msra.mxu0 0.0
  %1103 = vmatprep.subr.mxu0 0.0
  %1104 = vmatpush1.msra.mxu0 0.0
  %1105 = vmatprep.subr.mxu0 0.0
  %1106 = vmatpush1.msra.mxu0 0.0
  %1107 = vmatprep.subr.mxu0 0.0
  %1108 = vmatpush1.msra.mxu0 0.0
  %1109 = vmatprep.subr.mxu0 0.0
  %1110 = vmatpush1.msra.mxu0 0.0
  %1111 = vmatprep.mubr.f32.mxu0 0.0
  %1112 = vmatmul.mubr.f32.gmra.mrb[0].mxu0 %v249
  %v1113 = vpop.f32.mrb[0].mxu0
  %v1114 = vadd.f32 0.0, %v1113
  %v1115 = vpop.f32.mrb[0].mxu0
  %1116 = vmatprep.mubr.f32.mxu0 0.0
  %1117 = vmatmul.mubr.f32.gmra.mrb[0].mxu0 %v252
  %v1118 = vpop.f32.mrb[0].mxu0
  %v1119 = vadd.f32 0.0, %v1118
  %v1120 = vpop.f32.mrb[0].mxu0
  %1121 = vdwg.mxu0
  %v1122 = vadd.f32 %v1024, %v1114
  %v1123 = vadd.f32 %v1029, %v1119
  %1124 = vmatprep.subr.mxu0 0.0
  %1125 = vmatpush1.msra.mxu0 %v436
  %1126 = vmatprep.subr.mxu0 0.0
  %1127 = vmatpush1.msra.mxu0 %v437
  %1128 = vmatprep.subr.mxu0 0.0
  %1129 = vmatpush1.msra.mxu0 %v438
  %1130 = vmatprep.subr.mxu0 0.0
  %1131 = vmatpush1.msra.mxu0 %v439
  %1132 = vmatprep.subr.mxu0 0.0
  %1133 = vmatpush1.msra.mxu0 0.0
  %1134 = vmatprep.subr.mxu0 0.0
  %1135 = vmatpush1.msra.mxu0 0.0
  %1136 = vmatprep.subr.mxu0 0.0
  %1137 = vmatpush1.msra.mxu0 0.0
  %1138 = vmatprep.subr.mxu0 0.0
  %1139 = vmatpush1.msra.mxu0 0.0
  %1140 = vmatprep.subr.mxu0 0.0
  %1141 = vmatpush1.msra.mxu0 0.0
  %1142 = vmatprep.subr.mxu0 0.0
  %1143 = vmatpush1.msra.mxu0 0.0
  %1144 = vmatprep.subr.mxu0 0.0
  %1145 = vmatpush1.msra.mxu0 0.0
  %1146 = vmatprep.subr.mxu0 0.0
  %1147 = vmatpush1.msra.mxu0 0.0
  %1148 = vmatprep.subr.mxu0 0.0
  %1149 = vmatpush1.msra.mxu0 0.0
  %1150 = vmatprep.subr.mxu0 0.0
  %1151 = vmatpush1.msra.mxu0 0.0
  %1152 = vmatprep.subr.mxu0 0.0
  %1153 = vmatpush1.msra.mxu0 0.0
  %1154 = vmatprep.subr.mxu0 0.0
  %1155 = vmatpush1.msra.mxu0 0.0
  %1156 = vmatprep.subr.mxu0 0.0
  %1157 = vmatpush1.msra.mxu0 0.0
  %1158 = vmatprep.subr.mxu0 0.0
  %1159 = vmatpush1.msra.mxu0 0.0
  %1160 = vmatprep.subr.mxu0 0.0
  %1161 = vmatpush1.msra.mxu0 0.0
  %1162 = vmatprep.subr.mxu0 0.0
  %1163 = vmatpush1.msra.mxu0 0.0
  %1164 = vmatprep.subr.mxu0 0.0
  %1165 = vmatpush1.msra.mxu0 0.0
  %1166 = vmatprep.subr.mxu0 0.0
  %1167 = vmatpush1.msra.mxu0 0.0
  %1168 = vmatprep.subr.mxu0 0.0
  %1169 = vmatpush1.msra.mxu0 0.0
  %1170 = vmatprep.subr.mxu0 0.0
  %1171 = vmatpush1.msra.mxu0 0.0
  %1172 = vmatprep.subr.mxu0 0.0
  %1173 = vmatpush1.msra.mxu0 0.0
  %1174 = vmatprep.subr.mxu0 0.0
  %1175 = vmatpush1.msra.mxu0 0.0
  %1176 = vmatprep.subr.mxu0 0.0
  %1177 = vmatpush1.msra.mxu0 0.0
  %1178 = vmatprep.subr.mxu0 0.0
  %1179 = vmatpush1.msra.mxu0 0.0
  %1180 = vmatprep.subr.mxu0 0.0
  %1181 = vmatpush1.msra.mxu0 0.0
  %1182 = vmatprep.subr.mxu0 0.0
  %1183 = vmatpush1.msra.mxu0 0.0
  %1184 = vmatprep.subr.mxu0 0.0
  %1185 = vmatpush1.msra.mxu0 0.0
  %1186 = vmatprep.subr.mxu0 0.0
  %1187 = vmatpush1.msra.mxu0 0.0
  %1188 = vmatprep.mubr.f32.mxu0 0.0
  %1189 = vmatmul.mubr.f32.gmra.mrb[0].mxu0 %v354
  %v1190 = vpop.f32.mrb[0].mxu0
  %v1191 = vadd.f32 0.0, %v1190
  %v1192 = vpop.f32.mrb[0].mxu0
  %1193 = vmatprep.mubr.f32.mxu0 0.0
  %1194 = vmatmul.mubr.f32.gmra.mrb[0].mxu0 %v357
  %v1195 = vpop.f32.mrb[0].mxu0
  %v1196 = vadd.f32 0.0, %v1195
  %v1197 = vpop.f32.mrb[0].mxu0
  %1198 = vdwg.mxu0
  %v1199 = vadd.f32 %v1122, %v1191
  %v1200 = vadd.f32 %v1123, %v1196
  %1201 = vmatprep.subr.mxu0 0.0
  %1202 = vmatpush1.msra.mxu0 %v332
  %1203 = vmatprep.subr.mxu0 0.0
  %1204 = vmatpush1.msra.mxu0 %v333
  %1205 = vmatprep.subr.mxu0 0.0
  %1206 = vmatpush1.msra.mxu0 %v334
  %1207 = vmatprep.subr.mxu0 0.0
  %1208 = vmatpush1.msra.mxu0 %v335
  %1209 = vmatprep.subr.mxu0 0.0
  %1210 = vmatpush1.msra.mxu0 0.0
  %1211 = vmatprep.subr.mxu0 0.0
  %1212 = vmatpush1.msra.mxu0 0.0
  %1213 = vmatprep.subr.mxu0 0.0
  %1214 = vmatpush1.msra.mxu0 0.0
  %1215 = vmatprep.subr.mxu0 0.0
  %1216 = vmatpush1.msra.mxu0 0.0
  %1217 = vmatprep.subr.mxu0 0.0
  %1218 = vmatpush1.msra.mxu0 0.0
  %1219 = vmatprep.subr.mxu0 0.0
  %1220 = vmatpush1.msra.mxu0 0.0
  %1221 = vmatprep.subr.mxu0 0.0
  %1222 = vmatpush1.msra.mxu0 0.0
  %1223 = vmatprep.subr.mxu0 0.0
  %1224 = vmatpush1.msra.mxu0 0.0
  %1225 = vmatprep.subr.mxu0 0.0
  %1226 = vmatpush1.msra.mxu0 0.0
  %1227 = vmatprep.subr.mxu0 0.0
  %1228 = vmatpush1.msra.mxu0 0.0
  %1229 = vmatprep.subr.mxu0 0.0
  %1230 = vmatpush1.msra.mxu0 0.0
  %1231 = vmatprep.subr.mxu0 0.0
  %1232 = vmatpush1.msra.mxu0 0.0
  %1233 = vmatprep.subr.mxu0 0.0
  %1234 = vmatpush1.msra.mxu0 0.0
  %1235 = vmatprep.subr.mxu0 0.0
  %1236 = vmatpush1.msra.mxu0 0.0
  %1237 = vmatprep.subr.mxu0 0.0
  %1238 = vmatpush1.msra.mxu0 0.0
  %1239 = vmatprep.subr.mxu0 0.0
  %1240 = vmatpush1.msra.mxu0 0.0
  %1241 = vmatprep.subr.mxu0 0.0
  %1242 = vmatpush1.msra.mxu0 0.0
  %1243 = vmatprep.subr.mxu0 0.0
  %1244 = vmatpush1.msra.mxu0 0.0
  %1245 = vmatprep.subr.mxu0 0.0
  %1246 = vmatpush1.msra.mxu0 0.0
  %1247 = vmatprep.subr.mxu0 0.0
  %1248 = vmatpush1.msra.mxu0 0.0
  %1249 = vmatprep.subr.mxu0 0.0
  %1250 = vmatpush1.msra.mxu0 0.0
  %1251 = vmatprep.subr.mxu0 0.0
  %1252 = vmatpush1.msra.mxu0 0.0
  %1253 = vmatprep.subr.mxu0 0.0
  %1254 = vmatpush1.msra.mxu0 0.0
  %1255 = vmatprep.subr.mxu0 0.0
  %1256 = vmatpush1.msra.mxu0 0.0
  %1257 = vmatprep.subr.mxu0 0.0
  %1258 = vmatpush1.msra.mxu0 0.0
  %1259 = vmatprep.subr.mxu0 0.0
  %1260 = vmatpush1.msra.mxu0 0.0
  %1261 = vmatprep.subr.mxu0 0.0
  %1262 = vmatpush1.msra.mxu0 0.0
  %1263 = vmatprep.subr.mxu0 0.0
  %1264 = vmatpush1.msra.mxu0 0.0
  %1265 = vmatprep.mubr.f32.mxu0 0.0
  %1266 = vmatmul.mubr.f32.gmra.mrb[0].mxu0 %v444
  %v1267 = vpop.f32.mrb[0].mxu0
  %v1268 = vadd.f32 0.0, %v1267
  %v1269 = vpop.f32.mrb[0].mxu0
  %1270 = vmatprep.mubr.f32.mxu0 0.0
  %1271 = vmatmul.mubr.f32.gmra.mrb[0].mxu0 %v447
  %v1272 = vpop.f32.mrb[0].mxu0
  %v1273 = vadd.f32 0.0, %v1272
  %v1274 = vpop.f32.mrb[0].mxu0
  %1275 = vdwg.mxu0
  %v1276 = vadd.f32 %v1199, %v1268
  %v1277 = vadd.f32 %v1200, %v1273
  %1278 = vrot.lane.b32.xlu0 %v436, 127
  %v1279 = vpop.permute.xlu0 %1278
  %1280 = vrot.lane.b32.xlu0 %v437, 127
  %v1281 = vpop.permute.xlu0 %1280
  %1282 = vrot.lane.b32.xlu0 %v438, 127
  %v1283 = vpop.permute.xlu0 %1282
  %1284 = vrot.lane.b32.xlu0 %v439, 127
  %v1285 = vpop.permute.xlu0 %1284
  %v1286 = vsel %vm25, 1, 0
  %vm1287 = vcmp.eq.s32.totalorder %v1286, 1
  %v1288 = vsel %vm1287, %v1279, 0.0
  %v1289 = vsel %vm1287, %v1281, 0.0
  %v1290 = vsel %vm1287, %v1283, 0.0
  %v1291 = vsel %vm1287, %v1285, 0.0
  %1292 = vmatprep.subr.mxu0 0.0
  %1293 = vmatpush1.msra.mxu0 %v1288
  %1294 = vmatprep.subr.mxu0 0.0
  %1295 = vmatpush1.msra.mxu0 %v1289
  %1296 = vmatprep.subr.mxu0 0.0
  %1297 = vmatpush1.msra.mxu0 %v1290
  %1298 = vmatprep.subr.mxu0 0.0
  %1299 = vmatpush1.msra.mxu0 %v1291
  %1300 = vmatprep.subr.mxu0 0.0
  %1301 = vmatpush1.msra.mxu0 0.0
  %1302 = vmatprep.subr.mxu0 0.0
  %1303 = vmatpush1.msra.mxu0 0.0
  %1304 = vmatprep.subr.mxu0 0.0
  %1305 = vmatpush1.msra.mxu0 0.0
  %1306 = vmatprep.subr.mxu0 0.0
  %1307 = vmatpush1.msra.mxu0 0.0
  %1308 = vmatprep.subr.mxu0 0.0
  %1309 = vmatpush1.msra.mxu0 0.0
  %1310 = vmatprep.subr.mxu0 0.0
  %1311 = vmatpush1.msra.mxu0 0.0
  %1312 = vmatprep.subr.mxu0 0.0
  %1313 = vmatpush1.msra.mxu0 0.0
  %1314 = vmatprep.subr.mxu0 0.0
  %1315 = vmatpush1.msra.mxu0 0.0
  %1316 = vmatprep.subr.mxu0 0.0
  %1317 = vmatpush1.msra.mxu0 0.0
  %1318 = vmatprep.subr.mxu0 0.0
  %1319 = vmatpush1.msra.mxu0 0.0
  %1320 = vmatprep.subr.mxu0 0.0
  %1321 = vmatpush1.msra.mxu0 0.0
  %1322 = vmatprep.subr.mxu0 0.0
  %1323 = vmatpush1.msra.mxu0 0.0
  %1324 = vmatprep.subr.mxu0 0.0
  %1325 = vmatpush1.msra.mxu0 0.0
  %1326 = vmatprep.subr.mxu0 0.0
  %1327 = vmatpush1.msra.mxu0 0.0
  %1328 = vmatprep.subr.mxu0 0.0
  %1329 = vmatpush1.msra.mxu0 0.0
  %1330 = vmatprep.subr.mxu0 0.0
  %1331 = vmatpush1.msra.mxu0 0.0
  %1332 = vmatprep.subr.mxu0 0.0
  %1333 = vmatpush1.msra.mxu0 0.0
  %1334 = vmatprep.subr.mxu0 0.0
  %1335 = vmatpush1.msra.mxu0 0.0
  %1336 = vmatprep.subr.mxu0 0.0
  %1337 = vmatpush1.msra.mxu0 0.0
  %1338 = vmatprep.subr.mxu0 0.0
  %1339 = vmatpush1.msra.mxu0 0.0
  %1340 = vmatprep.subr.mxu0 0.0
  %1341 = vmatpush1.msra.mxu0 0.0
  %1342 = vmatprep.subr.mxu0 0.0
  %1343 = vmatpush1.msra.mxu0 0.0
  %1344 = vmatprep.subr.mxu0 0.0
  %1345 = vmatpush1.msra.mxu0 0.0
  %1346 = vmatprep.subr.mxu0 0.0
  %1347 = vmatpush1.msra.mxu0 0.0
  %1348 = vmatprep.subr.mxu0 0.0
  %1349 = vmatpush1.msra.mxu0 0.0
  %1350 = vmatprep.subr.mxu0 0.0
  %1351 = vmatpush1.msra.mxu0 0.0
  %1352 = vmatprep.subr.mxu0 0.0
  %1353 = vmatpush1.msra.mxu0 0.0
  %1354 = vmatprep.subr.mxu0 0.0
  %1355 = vmatpush1.msra.mxu0 0.0
  %1356 = vmatprep.mubr.f32.mxu0 0.0
  %1357 = vmatmul.mubr.f32.gmra.mrb[0].mxu0 %v530
  %v1358 = vpop.f32.mrb[0].mxu0
  %v1359 = vadd.f32 0.0, %v1358
  %v1360 = vpop.f32.mrb[0].mxu0
  %1361 = vmatprep.mubr.f32.mxu0 0.0
  %1362 = vmatmul.mubr.f32.gmra.mrb[0].mxu0 %v533
  %v1363 = vpop.f32.mrb[0].mxu0
  %v1364 = vadd.f32 0.0, %v1363
  %v1365 = vpop.f32.mrb[0].mxu0
  %1366 = vdwg.mxu0
  %v1367 = vadd.f32 %v1276, %v1359
  %v1368 = vadd.f32 %v1277, %v1364
  %1369 = vmatprep.subr.mxu0 0.0
  %1370 = vmatpush1.msra.mxu0 %v49
  %1371 = vmatprep.subr.mxu0 0.0
  %1372 = vmatpush1.msra.mxu0 %v50
  %1373 = vmatprep.subr.mxu0 0.0
  %1374 = vmatpush1.msra.mxu0 %v51
  %1375 = vmatprep.subr.mxu0 0.0
  %1376 = vmatpush1.msra.mxu0 %v52
  %1377 = vmatprep.subr.mxu0 0.0
  %1378 = vmatpush1.msra.mxu0 0.0
  %1379 = vmatprep.subr.mxu0 0.0
  %1380 = vmatpush1.msra.mxu0 0.0
  %1381 = vmatprep.subr.mxu0 0.0
  %1382 = vmatpush1.msra.mxu0 0.0
  %1383 = vmatprep.subr.mxu0 0.0
  %1384 = vmatpush1.msra.mxu0 0.0
  %1385 = vmatprep.subr.mxu0 0.0
  %1386 = vmatpush1.msra.mxu0 0.0
  %1387 = vmatprep.subr.mxu0 0.0
  %1388 = vmatpush1.msra.mxu0 0.0
  %1389 = vmatprep.subr.mxu0 0.0
  %1390 = vmatpush1.msra.mxu0 0.0
  %1391 = vmatprep.subr.mxu0 0.0
  %1392 = vmatpush1.msra.mxu0 0.0
  %1393 = vmatprep.subr.mxu0 0.0
  %1394 = vmatpush1.msra.mxu0 0.0
  %1395 = vmatprep.subr.mxu0 0.0
  %1396 = vmatpush1.msra.mxu0 0.0
  %1397 = vmatprep.subr.mxu0 0.0
  %1398 = vmatpush1.msra.mxu0 0.0
  %1399 = vmatprep.subr.mxu0 0.0
  %1400 = vmatpush1.msra.mxu0 0.0
  %1401 = vmatprep.subr.mxu0 0.0
  %1402 = vmatpush1.msra.mxu0 0.0
  %1403 = vmatprep.subr.mxu0 0.0
  %1404 = vmatpush1.msra.mxu0 0.0
  %1405 = vmatprep.subr.mxu0 0.0
  %1406 = vmatpush1.msra.mxu0 0.0
  %1407 = vmatprep.subr.mxu0 0.0
  %1408 = vmatpush1.msra.mxu0 0.0
  %1409 = vmatprep.subr.mxu0 0.0
  %1410 = vmatpush1.msra.mxu0 0.0
  %1411 = vmatprep.subr.mxu0 0.0
  %1412 = vmatpush1.msra.mxu0 0.0
  %1413 = vmatprep.subr.mxu0 0.0
  %1414 = vmatpush1.msra.mxu0 0.0
  %1415 = vmatprep.subr.mxu0 0.0
  %1416 = vmatpush1.msra.mxu0 0.0
  %1417 = vmatprep.subr.mxu0 0.0
  %1418 = vmatpush1.msra.mxu0 0.0
  %1419 = vmatprep.subr.mxu0 0.0
  %1420 = vmatpush1.msra.mxu0 0.0
  %1421 = vmatprep.subr.mxu0 0.0
  %1422 = vmatpush1.msra.mxu0 0.0
  %1423 = vmatprep.subr.mxu0 0.0
  %1424 = vmatpush1.msra.mxu0 0.0
  %1425 = vmatprep.subr.mxu0 0.0
  %1426 = vmatpush1.msra.mxu0 0.0
  %1427 = vmatprep.subr.mxu0 0.0
  %1428 = vmatpush1.msra.mxu0 0.0
  %1429 = vmatprep.subr.mxu0 0.0
  %1430 = vmatpush1.msra.mxu0 0.0
  %1431 = vmatprep.subr.mxu0 0.0
  %1432 = vmatpush1.msra.mxu0 0.0
  %1433 = vmatprep.mubr.f32.mxu0 0.0
  %1434 = vmatmul.mubr.f32.gmra.mrb[0].mxu0 %v628
  %v1435 = vpop.f32.mrb[0].mxu0
  %v1436 = vadd.f32 0.0, %v1435
  %v1437 = vpop.f32.mrb[0].mxu0
  %1438 = vmatprep.mubr.f32.mxu0 0.0
  %1439 = vmatmul.mubr.f32.gmra.mrb[0].mxu0 %v631
  %v1440 = vpop.f32.mrb[0].mxu0
  %v1441 = vadd.f32 0.0, %v1440
  %v1442 = vpop.f32.mrb[0].mxu0
  %1443 = vdwg.mxu0
  %v1444 = vadd.f32 %v1367, %v1436
  %v1445 = vadd.f32 %v1368, %v1441
  %1446 = vmatprep.subr.mxu0 0.0
  %1447 = vmatpush1.msra.mxu0 %v27
  %1448 = vmatprep.subr.mxu0 0.0
  %1449 = vmatpush1.msra.mxu0 %v28
  %1450 = vmatprep.subr.mxu0 0.0
  %1451 = vmatpush1.msra.mxu0 %v29
  %1452 = vmatprep.subr.mxu0 0.0
  %1453 = vmatpush1.msra.mxu0 %v30
  %1454 = vmatprep.subr.mxu0 0.0
  %1455 = vmatpush1.msra.mxu0 0.0
  %1456 = vmatprep.subr.mxu0 0.0
  %1457 = vmatpush1.msra.mxu0 0.0
  %1458 = vmatprep.subr.mxu0 0.0
  %1459 = vmatpush1.msra.mxu0 0.0
  %1460 = vmatprep.subr.mxu0 0.0
  %1461 = vmatpush1.msra.mxu0 0.0
  %1462 = vmatprep.subr.mxu0 0.0
  %1463 = vmatpush1.msra.mxu0 0.0
  %1464 = vmatprep.subr.mxu0 0.0
  %1465 = vmatpush1.msra.mxu0 0.0
  %1466 = vmatprep.subr.mxu0 0.0
  %1467 = vmatpush1.msra.mxu0 0.0
  %1468 = vmatprep.subr.mxu0 0.0
  %1469 = vmatpush1.msra.mxu0 0.0
  %1470 = vmatprep.subr.mxu0 0.0
  %1471 = vmatpush1.msra.mxu0 0.0
  %1472 = vmatprep.subr.mxu0 0.0
  %1473 = vmatpush1.msra.mxu0 0.0
  %1474 = vmatprep.subr.mxu0 0.0
  %1475 = vmatpush1.msra.mxu0 0.0
  %1476 = vmatprep.subr.mxu0 0.0
  %1477 = vmatpush1.msra.mxu0 0.0
  %1478 = vmatprep.subr.mxu0 0.0
  %1479 = vmatpush1.msra.mxu0 0.0
  %1480 = vmatprep.subr.mxu0 0.0
  %1481 = vmatpush1.msra.mxu0 0.0
  %1482 = vmatprep.subr.mxu0 0.0
  %1483 = vmatpush1.msra.mxu0 0.0
  %1484 = vmatprep.subr.mxu0 0.0
  %1485 = vmatpush1.msra.mxu0 0.0
  %1486 = vmatprep.subr.mxu0 0.0
  %1487 = vmatpush1.msra.mxu0 0.0
  %1488 = vmatprep.subr.mxu0 0.0
  %1489 = vmatpush1.msra.mxu0 0.0
  %1490 = vmatprep.subr.mxu0 0.0
  %1491 = vmatpush1.msra.mxu0 0.0
  %1492 = vmatprep.subr.mxu0 0.0
  %1493 = vmatpush1.msra.mxu0 0.0
  %1494 = vmatprep.subr.mxu0 0.0
  %1495 = vmatpush1.msra.mxu0 0.0
  %1496 = vmatprep.subr.mxu0 0.0
  %1497 = vmatpush1.msra.mxu0 0.0
  %1498 = vmatprep.subr.mxu0 0.0
  %1499 = vmatpush1.msra.mxu0 0.0
  %1500 = vmatprep.subr.mxu0 0.0
  %1501 = vmatpush1.msra.mxu0 0.0
  %1502 = vmatprep.subr.mxu0 0.0
  %1503 = vmatpush1.msra.mxu0 0.0
  %1504 = vmatprep.subr.mxu0 0.0
  %1505 = vmatpush1.msra.mxu0 0.0
  %1506 = vmatprep.subr.mxu0 0.0
  %1507 = vmatpush1.msra.mxu0 0.0
  %1508 = vmatprep.subr.mxu0 0.0
  %1509 = vmatpush1.msra.mxu0 0.0
  %1510 = vmatprep.mubr.f32.mxu0 0.0
  %1511 = vmatmul.mubr.f32.gmra.mrb[0].mxu0 %v714
  %v1512 = vpop.f32.mrb[0].mxu0
  %v1513 = vadd.f32 0.0, %v1512
  %v1514 = vpop.f32.mrb[0].mxu0
  %1515 = vmatprep.mubr.f32.mxu0 0.0
  %1516 = vmatmul.mubr.f32.gmra.mrb[0].mxu0 %v717
  %v1517 = vpop.f32.mrb[0].mxu0
  %v1518 = vadd.f32 0.0, %v1517
  %v1519 = vpop.f32.mrb[0].mxu0
  %1520 = vdwg.mxu0
  %v1521 = vadd.f32 %v1444, %v1513
  %v1522 = vadd.f32 %v1445, %v1518
  %1523 = vrot.lane.b32.xlu0 %v49, 127
  %v1524 = vpop.permute.xlu0 %1523
  %1525 = vrot.lane.b32.xlu0 %v50, 127
  %v1526 = vpop.permute.xlu0 %1525
  %1527 = vrot.lane.b32.xlu0 %v51, 127
  %v1528 = vpop.permute.xlu0 %1527
  %1529 = vrot.lane.b32.xlu0 %v52, 127
  %v1530 = vpop.permute.xlu0 %1529
  %v1531 = vsel %vm1287, %v1524, 0.0
  %v1532 = vsel %vm1287, %v1526, 0.0
  %v1533 = vsel %vm1287, %v1528, 0.0
  %v1534 = vsel %vm1287, %v1530, 0.0
  %1535 = vmatprep.subr.mxu0 0.0
  %1536 = vmatpush1.msra.mxu0 %v1531
  %1537 = vmatprep.subr.mxu0 0.0
  %1538 = vmatpush1.msra.mxu0 %v1532
  %1539 = vmatprep.subr.mxu0 0.0
  %1540 = vmatpush1.msra.mxu0 %v1533
  %1541 = vmatprep.subr.mxu0 0.0
  %1542 = vmatpush1.msra.mxu0 %v1534
  %1543 = vmatprep.subr.mxu0 0.0
  %1544 = vmatpush1.msra.mxu0 0.0
  %1545 = vmatprep.subr.mxu0 0.0
  %1546 = vmatpush1.msra.mxu0 0.0
  %1547 = vmatprep.subr.mxu0 0.0
  %1548 = vmatpush1.msra.mxu0 0.0
  %1549 = vmatprep.subr.mxu0 0.0
  %1550 = vmatpush1.msra.mxu0 0.0
  %1551 = vmatprep.subr.mxu0 0.0
  %1552 = vmatpush1.msra.mxu0 0.0
  %1553 = vmatprep.subr.mxu0 0.0
  %1554 = vmatpush1.msra.mxu0 0.0
  %1555 = vmatprep.subr.mxu0 0.0
  %1556 = vmatpush1.msra.mxu0 0.0
  %1557 = vmatprep.subr.mxu0 0.0
  %1558 = vmatpush1.msra.mxu0 0.0
  %1559 = vmatprep.subr.mxu0 0.0
  %1560 = vmatpush1.msra.mxu0 0.0
  %1561 = vmatprep.subr.mxu0 0.0
  %1562 = vmatpush1.msra.mxu0 0.0
  %1563 = vmatprep.subr.mxu0 0.0
  %1564 = vmatpush1.msra.mxu0 0.0
  %1565 = vmatprep.subr.mxu0 0.0
  %1566 = vmatpush1.msra.mxu0 0.0
  %1567 = vmatprep.subr.mxu0 0.0
  %1568 = vmatpush1.msra.mxu0 0.0
  %1569 = vmatprep.subr.mxu0 0.0
  %1570 = vmatpush1.msra.mxu0 0.0
  %1571 = vmatprep.subr.mxu0 0.0
  %1572 = vmatpush1.msra.mxu0 0.0
  %1573 = vmatprep.subr.mxu0 0.0
  %1574 = vmatpush1.msra.mxu0 0.0
  %1575 = vmatprep.subr.mxu0 0.0
  %1576 = vmatpush1.msra.mxu0 0.0
  %1577 = vmatprep.subr.mxu0 0.0
  %1578 = vmatpush1.msra.mxu0 0.0
  %1579 = vmatprep.subr.mxu0 0.0
  %1580 = vmatpush1.msra.mxu0 0.0
  %1581 = vmatprep.subr.mxu0 0.0
  %1582 = vmatpush1.msra.mxu0 0.0
  %1583 = vmatprep.subr.mxu0 0.0
  %1584 = vmatpush1.msra.mxu0 0.0
  %1585 = vmatprep.subr.mxu0 0.0
  %1586 = vmatpush1.msra.mxu0 0.0
  %1587 = vmatprep.subr.mxu0 0.0
  %1588 = vmatpush1.msra.mxu0 0.0
  %1589 = vmatprep.subr.mxu0 0.0
  %1590 = vmatpush1.msra.mxu0 0.0
  %1591 = vmatprep.subr.mxu0 0.0
  %1592 = vmatpush1.msra.mxu0 0.0
  %1593 = vmatprep.subr.mxu0 0.0
  %1594 = vmatpush1.msra.mxu0 0.0
  %1595 = vmatprep.subr.mxu0 0.0
  %1596 = vmatpush1.msra.mxu0 0.0
  %1597 = vmatprep.subr.mxu0 0.0
  %1598 = vmatpush1.msra.mxu0 0.0
  %1599 = vmatprep.mubr.f32.mxu0 0.0
  %1600 = vmatmul.mubr.f32.gmra.mrb[0].mxu0 %v800
  %v1601 = vpop.f32.mrb[0].mxu0
  %v1602 = vadd.f32 0.0, %v1601
  %v1603 = vpop.f32.mrb[0].mxu0
  %1604 = vmatprep.mubr.f32.mxu0 0.0
  %1605 = vmatmul.mubr.f32.gmra.mrb[0].mxu0 %v803
  %v1606 = vpop.f32.mrb[0].mxu0
  %v1607 = vadd.f32 0.0, %v1606
  %v1608 = vpop.f32.mrb[0].mxu0
  %1609 = vdwg.mxu0
  %v1610 = vadd.f32 %v1521, %v1602
  %v1611 = vadd.f32 %v1522, %v1607
  %v1612 = vmax.f32 %v880, %v1610
  %v1613 = vmax.f32 %v881, %v1611
  %1614 = vmatprep.subr.mxu0 0.0
  %1615 = vmatpush1.msra.mxu0 %v436
  %1616 = vmatprep.subr.mxu0 0.0
  %1617 = vmatpush1.msra.mxu0 %v437
  %1618 = vmatprep.subr.mxu0 0.0
  %1619 = vmatpush1.msra.mxu0 %v438
  %1620 = vmatprep.subr.mxu0 0.0
  %1621 = vmatpush1.msra.mxu0 %v439
  %1622 = vmatprep.subr.mxu0 0.0
  %1623 = vmatpush1.msra.mxu0 0.0
  %1624 = vmatprep.subr.mxu0 0.0
  %1625 = vmatpush1.msra.mxu0 0.0
  %1626 = vmatprep.subr.mxu0 0.0
  %1627 = vmatpush1.msra.mxu0 0.0
  %1628 = vmatprep.subr.mxu0 0.0
  %1629 = vmatpush1.msra.mxu0 0.0
  %1630 = vmatprep.subr.mxu0 0.0
  %1631 = vmatpush1.msra.mxu0 0.0
  %1632 = vmatprep.subr.mxu0 0.0
  %1633 = vmatpush1.msra.mxu0 0.0
  %1634 = vmatprep.subr.mxu0 0.0
  %1635 = vmatpush1.msra.mxu0 0.0
  %1636 = vmatprep.subr.mxu0 0.0
  %1637 = vmatpush1.msra.mxu0 0.0
  %1638 = vmatprep.subr.mxu0 0.0
  %1639 = vmatpush1.msra.mxu0 0.0
  %1640 = vmatprep.subr.mxu0 0.0
  %1641 = vmatpush1.msra.mxu0 0.0
  %1642 = vmatprep.subr.mxu0 0.0
  %1643 = vmatpush1.msra.mxu0 0.0
  %1644 = vmatprep.subr.mxu0 0.0
  %1645 = vmatpush1.msra.mxu0 0.0
  %1646 = vmatprep.subr.mxu0 0.0
  %1647 = vmatpush1.msra.mxu0 0.0
  %1648 = vmatprep.subr.mxu0 0.0
  %1649 = vmatpush1.msra.mxu0 0.0
  %1650 = vmatprep.subr.mxu0 0.0
  %1651 = vmatpush1.msra.mxu0 0.0
  %1652 = vmatprep.subr.mxu0 0.0
  %1653 = vmatpush1.msra.mxu0 0.0
  %1654 = vmatprep.subr.mxu0 0.0
  %1655 = vmatpush1.msra.mxu0 0.0
  %1656 = vmatprep.subr.mxu0 0.0
  %1657 = vmatpush1.msra.mxu0 0.0
  %1658 = vmatprep.subr.mxu0 0.0
  %1659 = vmatpush1.msra.mxu0 0.0
  %1660 = vmatprep.subr.mxu0 0.0
  %1661 = vmatpush1.msra.mxu0 0.0
  %1662 = vmatprep.subr.mxu0 0.0
  %1663 = vmatpush1.msra.mxu0 0.0
  %1664 = vmatprep.subr.mxu0 0.0
  %1665 = vmatpush1.msra.mxu0 0.0
  %1666 = vmatprep.subr.mxu0 0.0
  %1667 = vmatpush1.msra.mxu0 0.0
  %1668 = vmatprep.subr.mxu0 0.0
  %1669 = vmatpush1.msra.mxu0 0.0
  %1670 = vmatprep.subr.mxu0 0.0
  %1671 = vmatpush1.msra.mxu0 0.0
  %1672 = vmatprep.subr.mxu0 0.0
  %1673 = vmatpush1.msra.mxu0 0.0
  %1674 = vmatprep.subr.mxu0 0.0
  %1675 = vmatpush1.msra.mxu0 0.0
  %1676 = vmatprep.subr.mxu0 0.0
  %1677 = vmatpush1.msra.mxu0 0.0
  %1678 = vmatprep.mubr.f32.mxu0 0.0
  %1679 = vmatmul.mubr.f32.gmra.mrb[0].mxu0 %v72
  %v1680 = vpop.f32.mrb[0].mxu0
  %v1681 = vadd.f32 0.0, %v1680
  %v1682 = vpop.f32.mrb[0].mxu0
  %1683 = vmatprep.mubr.f32.mxu0 0.0
  %1684 = vmatmul.mubr.f32.gmra.mrb[0].mxu0 %v75
  %v1685 = vpop.f32.mrb[0].mxu0
  %v1686 = vadd.f32 0.0, %v1685
  %v1687 = vpop.f32.mrb[0].mxu0
  %1688 = vdwg.mxu0
  %1689 = vmatprep.subr.mxu0 0.0
  %1690 = vmatpush1.msra.mxu0 %v346
  %1691 = vmatprep.subr.mxu0 0.0
  %1692 = vmatpush1.msra.mxu0 %v347
  %1693 = vmatprep.subr.mxu0 0.0
  %1694 = vmatpush1.msra.mxu0 %v348
  %1695 = vmatprep.subr.mxu0 0.0
  %1696 = vmatpush1.msra.mxu0 %v349
  %1697 = vmatprep.subr.mxu0 0.0
  %1698 = vmatpush1.msra.mxu0 0.0
  %1699 = vmatprep.subr.mxu0 0.0
  %1700 = vmatpush1.msra.mxu0 0.0
  %1701 = vmatprep.subr.mxu0 0.0
  %1702 = vmatpush1.msra.mxu0 0.0
  %1703 = vmatprep.subr.mxu0 0.0
  %1704 = vmatpush1.msra.mxu0 0.0
  %1705 = vmatprep.subr.mxu0 0.0
  %1706 = vmatpush1.msra.mxu0 0.0
  %1707 = vmatprep.subr.mxu0 0.0
  %1708 = vmatpush1.msra.mxu0 0.0
  %1709 = vmatprep.subr.mxu0 0.0
  %1710 = vmatpush1.msra.mxu0 0.0
  %1711 = vmatprep.subr.mxu0 0.0
  %1712 = vmatpush1.msra.mxu0 0.0
  %1713 = vmatprep.subr.mxu0 0.0
  %1714 = vmatpush1.msra.mxu0 0.0
  %1715 = vmatprep.subr.mxu0 0.0
  %1716 = vmatpush1.msra.mxu0 0.0
  %1717 = vmatprep.subr.mxu0 0.0
  %1718 = vmatpush1.msra.mxu0 0.0
  %1719 = vmatprep.subr.mxu0 0.0
  %1720 = vmatpush1.msra.mxu0 0.0
  %1721 = vmatprep.subr.mxu0 0.0
  %1722 = vmatpush1.msra.mxu0 0.0
  %1723 = vmatprep.subr.mxu0 0.0
  %1724 = vmatpush1.msra.mxu0 0.0
  %1725 = vmatprep.subr.mxu0 0.0
  %1726 = vmatpush1.msra.mxu0 0.0
  %1727 = vmatprep.subr.mxu0 0.0
  %1728 = vmatpush1.msra.mxu0 0.0
  %1729 = vmatprep.subr.mxu0 0.0
  %1730 = vmatpush1.msra.mxu0 0.0
  %1731 = vmatprep.subr.mxu0 0.0
  %1732 = vmatpush1.msra.mxu0 0.0
  %1733 = vmatprep.subr.mxu0 0.0
  %1734 = vmatpush1.msra.mxu0 0.0
  %1735 = vmatprep.subr.mxu0 0.0
  %1736 = vmatpush1.msra.mxu0 0.0
  %1737 = vmatprep.subr.mxu0 0.0
  %1738 = vmatpush1.msra.mxu0 0.0
  %1739 = vmatprep.subr.mxu0 0.0
  %1740 = vmatpush1.msra.mxu0 0.0
  %1741 = vmatprep.subr.mxu0 0.0
  %1742 = vmatpush1.msra.mxu0 0.0
  %1743 = vmatprep.subr.mxu0 0.0
  %1744 = vmatpush1.msra.mxu0 0.0
  %1745 = vmatprep.subr.mxu0 0.0
  %1746 = vmatpush1.msra.mxu0 0.0
  %1747 = vmatprep.subr.mxu0 0.0
  %1748 = vmatpush1.msra.mxu0 0.0
  %1749 = vmatprep.subr.mxu0 0.0
  %1750 = vmatpush1.msra.mxu0 0.0
  %1751 = vmatprep.subr.mxu0 0.0
  %1752 = vmatpush1.msra.mxu0 0.0
  %1753 = vmatprep.mubr.f32.mxu0 0.0
  %1754 = vmatmul.mubr.f32.gmra.mrb[0].mxu0 %v153
  %v1755 = vpop.f32.mrb[0].mxu0
  %v1756 = vadd.f32 %v1681, %v1755
  %v1757 = vpop.f32.mrb[0].mxu0
  %1758 = vmatprep.mubr.f32.mxu0 0.0
  %1759 = vmatmul.mubr.f32.gmra.mrb[0].mxu0 %v156
  %v1760 = vpop.f32.mrb[0].mxu0
  %v1761 = vadd.f32 %v1686, %v1760
  %v1762 = vpop.f32.mrb[0].mxu0
  %1763 = vdwg.mxu0
  %1764 = vmatprep.subr.mxu0 0.0
  %1765 = vmatpush1.msra.mxu0 %v332
  %1766 = vmatprep.subr.mxu0 0.0
  %1767 = vmatpush1.msra.mxu0 %v333
  %1768 = vmatprep.subr.mxu0 0.0
  %1769 = vmatpush1.msra.mxu0 %v334
  %1770 = vmatprep.subr.mxu0 0.0
  %1771 = vmatpush1.msra.mxu0 %v335
  %1772 = vmatprep.subr.mxu0 0.0
  %1773 = vmatpush1.msra.mxu0 0.0
  %1774 = vmatprep.subr.mxu0 0.0
  %1775 = vmatpush1.msra.mxu0 0.0
  %1776 = vmatprep.subr.mxu0 0.0
  %1777 = vmatpush1.msra.mxu0 0.0
  %1778 = vmatprep.subr.mxu0 0.0
  %1779 = vmatpush1.msra.mxu0 0.0
  %1780 = vmatprep.subr.mxu0 0.0
  %1781 = vmatpush1.msra.mxu0 0.0
  %1782 = vmatprep.subr.mxu0 0.0
  %1783 = vmatpush1.msra.mxu0 0.0
  %1784 = vmatprep.subr.mxu0 0.0
  %1785 = vmatpush1.msra.mxu0 0.0
  %1786 = vmatprep.subr.mxu0 0.0
  %1787 = vmatpush1.msra.mxu0 0.0
  %1788 = vmatprep.subr.mxu0 0.0
  %1789 = vmatpush1.msra.mxu0 0.0
  %1790 = vmatprep.subr.mxu0 0.0
  %1791 = vmatpush1.msra.mxu0 0.0
  %1792 = vmatprep.subr.mxu0 0.0
  %1793 = vmatpush1.msra.mxu0 0.0
  %1794 = vmatprep.subr.mxu0 0.0
  %1795 = vmatpush1.msra.mxu0 0.0
  %1796 = vmatprep.subr.mxu0 0.0
  %1797 = vmatpush1.msra.mxu0 0.0
  %1798 = vmatprep.subr.mxu0 0.0
  %1799 = vmatpush1.msra.mxu0 0.0
  %1800 = vmatprep.subr.mxu0 0.0
  %1801 = vmatpush1.msra.mxu0 0.0
  %1802 = vmatprep.subr.mxu0 0.0
  %1803 = vmatpush1.msra.mxu0 0.0
  %1804 = vmatprep.subr.mxu0 0.0
  %1805 = vmatpush1.msra.mxu0 0.0
  %1806 = vmatprep.subr.mxu0 0.0
  %1807 = vmatpush1.msra.mxu0 0.0
  %1808 = vmatprep.subr.mxu0 0.0
  %1809 = vmatpush1.msra.mxu0 0.0
  %1810 = vmatprep.subr.mxu0 0.0
  %1811 = vmatpush1.msra.mxu0 0.0
  %1812 = vmatprep.subr.mxu0 0.0
  %1813 = vmatpush1.msra.mxu0 0.0
  %1814 = vmatprep.subr.mxu0 0.0
  %1815 = vmatpush1.msra.mxu0 0.0
  %1816 = vmatprep.subr.mxu0 0.0
  %1817 = vmatpush1.msra.mxu0 0.0
  %1818 = vmatprep.subr.mxu0 0.0
  %1819 = vmatpush1.msra.mxu0 0.0
  %1820 = vmatprep.subr.mxu0 0.0
  %1821 = vmatpush1.msra.mxu0 0.0
  %1822 = vmatprep.subr.mxu0 0.0
  %1823 = vmatpush1.msra.mxu0 0.0
  %1824 = vmatprep.subr.mxu0 0.0
  %1825 = vmatpush1.msra.mxu0 0.0
  %1826 = vmatprep.subr.mxu0 0.0
  %1827 = vmatpush1.msra.mxu0 0.0
  %1828 = vmatprep.mubr.f32.mxu0 0.0
  %1829 = vmatmul.mubr.f32.gmra.mrb[0].mxu0 %v249
  %v1830 = vpop.f32.mrb[0].mxu0
  %v1831 = vadd.f32 0.0, %v1830
  %v1832 = vpop.f32.mrb[0].mxu0
  %1833 = vmatprep.mubr.f32.mxu0 0.0
  %1834 = vmatmul.mubr.f32.gmra.mrb[0].mxu0 %v252
  %v1835 = vpop.f32.mrb[0].mxu0
  %v1836 = vadd.f32 0.0, %v1835
  %v1837 = vpop.f32.mrb[0].mxu0
  %1838 = vdwg.mxu0
  %v1839 = vadd.f32 %v1756, %v1831
  %v1840 = vadd.f32 %v1761, %v1836
  %1841 = vmatprep.subr.mxu0 0.0
  %1842 = vmatpush1.msra.mxu0 %v620
  %1843 = vmatprep.subr.mxu0 0.0
  %1844 = vmatpush1.msra.mxu0 %v621
  %1845 = vmatprep.subr.mxu0 0.0
  %1846 = vmatpush1.msra.mxu0 %v622
  %1847 = vmatprep.subr.mxu0 0.0
  %1848 = vmatpush1.msra.mxu0 %v623
  %1849 = vmatprep.subr.mxu0 0.0
  %1850 = vmatpush1.msra.mxu0 0.0
  %1851 = vmatprep.subr.mxu0 0.0
  %1852 = vmatpush1.msra.mxu0 0.0
  %1853 = vmatprep.subr.mxu0 0.0
  %1854 = vmatpush1.msra.mxu0 0.0
  %1855 = vmatprep.subr.mxu0 0.0
  %1856 = vmatpush1.msra.mxu0 0.0
  %1857 = vmatprep.subr.mxu0 0.0
  %1858 = vmatpush1.msra.mxu0 0.0
  %1859 = vmatprep.subr.mxu0 0.0
  %1860 = vmatpush1.msra.mxu0 0.0
  %1861 = vmatprep.subr.mxu0 0.0
  %1862 = vmatpush1.msra.mxu0 0.0
  %1863 = vmatprep.subr.mxu0 0.0
  %1864 = vmatpush1.msra.mxu0 0.0
  %1865 = vmatprep.subr.mxu0 0.0
  %1866 = vmatpush1.msra.mxu0 0.0
  %1867 = vmatprep.subr.mxu0 0.0
  %1868 = vmatpush1.msra.mxu0 0.0
  %1869 = vmatprep.subr.mxu0 0.0
  %1870 = vmatpush1.msra.mxu0 0.0
  %1871 = vmatprep.subr.mxu0 0.0
  %1872 = vmatpush1.msra.mxu0 0.0
  %1873 = vmatprep.subr.mxu0 0.0
  %1874 = vmatpush1.msra.mxu0 0.0
  %1875 = vmatprep.subr.mxu0 0.0
  %1876 = vmatpush1.msra.mxu0 0.0
  %1877 = vmatprep.subr.mxu0 0.0
  %1878 = vmatpush1.msra.mxu0 0.0
  %1879 = vmatprep.subr.mxu0 0.0
  %1880 = vmatpush1.msra.mxu0 0.0
  %1881 = vmatprep.subr.mxu0 0.0
  %1882 = vmatpush1.msra.mxu0 0.0
  %1883 = vmatprep.subr.mxu0 0.0
  %1884 = vmatpush1.msra.mxu0 0.0
  %1885 = vmatprep.subr.mxu0 0.0
  %1886 = vmatpush1.msra.mxu0 0.0
  %1887 = vmatprep.subr.mxu0 0.0
  %1888 = vmatpush1.msra.mxu0 0.0
  %1889 = vmatprep.subr.mxu0 0.0
  %1890 = vmatpush1.msra.mxu0 0.0
  %1891 = vmatprep.subr.mxu0 0.0
  %1892 = vmatpush1.msra.mxu0 0.0
  %1893 = vmatprep.subr.mxu0 0.0
  %1894 = vmatpush1.msra.mxu0 0.0
  %1895 = vmatprep.subr.mxu0 0.0
  %1896 = vmatpush1.msra.mxu0 0.0
  %1897 = vmatprep.subr.mxu0 0.0
  %1898 = vmatpush1.msra.mxu0 0.0
  %1899 = vmatprep.subr.mxu0 0.0
  %1900 = vmatpush1.msra.mxu0 0.0
  %1901 = vmatprep.subr.mxu0 0.0
  %1902 = vmatpush1.msra.mxu0 0.0
  %1903 = vmatprep.subr.mxu0 0.0
  %1904 = vmatpush1.msra.mxu0 0.0
  %1905 = vmatprep.mubr.f32.mxu0 0.0
  %1906 = vmatmul.mubr.f32.gmra.mrb[0].mxu0 %v354
  %v1907 = vpop.f32.mrb[0].mxu0
  %v1908 = vadd.f32 0.0, %v1907
  %v1909 = vpop.f32.mrb[0].mxu0
  %1910 = vmatprep.mubr.f32.mxu0 0.0
  %1911 = vmatmul.mubr.f32.gmra.mrb[0].mxu0 %v357
  %v1912 = vpop.f32.mrb[0].mxu0
  %v1913 = vadd.f32 0.0, %v1912
  %v1914 = vpop.f32.mrb[0].mxu0
  %1915 = vdwg.mxu0
  %v1916 = vadd.f32 %v1839, %v1908
  %v1917 = vadd.f32 %v1840, %v1913
  %1918 = vmatprep.subr.mxu0 0.0
  %1919 = vmatpush1.msra.mxu0 %v49
  %1920 = vmatprep.subr.mxu0 0.0
  %1921 = vmatpush1.msra.mxu0 %v50
  %1922 = vmatprep.subr.mxu0 0.0
  %1923 = vmatpush1.msra.mxu0 %v51
  %1924 = vmatprep.subr.mxu0 0.0
  %1925 = vmatpush1.msra.mxu0 %v52
  %1926 = vmatprep.subr.mxu0 0.0
  %1927 = vmatpush1.msra.mxu0 0.0
  %1928 = vmatprep.subr.mxu0 0.0
  %1929 = vmatpush1.msra.mxu0 0.0
  %1930 = vmatprep.subr.mxu0 0.0
  %1931 = vmatpush1.msra.mxu0 0.0
  %1932 = vmatprep.subr.mxu0 0.0
  %1933 = vmatpush1.msra.mxu0 0.0
  %1934 = vmatprep.subr.mxu0 0.0
  %1935 = vmatpush1.msra.mxu0 0.0
  %1936 = vmatprep.subr.mxu0 0.0
  %1937 = vmatpush1.msra.mxu0 0.0
  %1938 = vmatprep.subr.mxu0 0.0
  %1939 = vmatpush1.msra.mxu0 0.0
  %1940 = vmatprep.subr.mxu0 0.0
  %1941 = vmatpush1.msra.mxu0 0.0
  %1942 = vmatprep.subr.mxu0 0.0
  %1943 = vmatpush1.msra.mxu0 0.0
  %1944 = vmatprep.subr.mxu0 0.0
  %1945 = vmatpush1.msra.mxu0 0.0
  %1946 = vmatprep.subr.mxu0 0.0
  %1947 = vmatpush1.msra.mxu0 0.0
  %1948 = vmatprep.subr.mxu0 0.0
  %1949 = vmatpush1.msra.mxu0 0.0
  %1950 = vmatprep.subr.mxu0 0.0
  %1951 = vmatpush1.msra.mxu0 0.0
  %1952 = vmatprep.subr.mxu0 0.0
  %1953 = vmatpush1.msra.mxu0 0.0
  %1954 = vmatprep.subr.mxu0 0.0
  %1955 = vmatpush1.msra.mxu0 0.0
  %1956 = vmatprep.subr.mxu0 0.0
  %1957 = vmatpush1.msra.mxu0 0.0
  %1958 = vmatprep.subr.mxu0 0.0
  %1959 = vmatpush1.msra.mxu0 0.0
  %1960 = vmatprep.subr.mxu0 0.0
  %1961 = vmatpush1.msra.mxu0 0.0
  %1962 = vmatprep.subr.mxu0 0.0
  %1963 = vmatpush1.msra.mxu0 0.0
  %1964 = vmatprep.subr.mxu0 0.0
  %1965 = vmatpush1.msra.mxu0 0.0
  %1966 = vmatprep.subr.mxu0 0.0
  %1967 = vmatpush1.msra.mxu0 0.0
  %1968 = vmatprep.subr.mxu0 0.0
  %1969 = vmatpush1.msra.mxu0 0.0
  %1970 = vmatprep.subr.mxu0 0.0
  %1971 = vmatpush1.msra.mxu0 0.0
  %1972 = vmatprep.subr.mxu0 0.0
  %1973 = vmatpush1.msra.mxu0 0.0
  %1974 = vmatprep.subr.mxu0 0.0
  %1975 = vmatpush1.msra.mxu0 0.0
  %1976 = vmatprep.subr.mxu0 0.0
  %1977 = vmatpush1.msra.mxu0 0.0
  %1978 = vmatprep.subr.mxu0 0.0
  %1979 = vmatpush1.msra.mxu0 0.0
  %1980 = vmatprep.subr.mxu0 0.0
  %1981 = vmatpush1.msra.mxu0 0.0
  %1982 = vmatprep.mubr.f32.mxu0 0.0
  %1983 = vmatmul.mubr.f32.gmra.mrb[0].mxu0 %v444
  %v1984 = vpop.f32.mrb[0].mxu0
  %v1985 = vadd.f32 0.0, %v1984
  %v1986 = vpop.f32.mrb[0].mxu0
  %1987 = vmatprep.mubr.f32.mxu0 0.0
  %1988 = vmatmul.mubr.f32.gmra.mrb[0].mxu0 %v447
  %v1989 = vpop.f32.mrb[0].mxu0
  %v1990 = vadd.f32 0.0, %v1989
  %v1991 = vpop.f32.mrb[0].mxu0
  %1992 = vdwg.mxu0
  %v1993 = vadd.f32 %v1916, %v1985
  %v1994 = vadd.f32 %v1917, %v1990
  %1995 = vmatprep.subr.mxu0 0.0
  %1996 = vmatpush1.msra.mxu0 %v27
  %1997 = vmatprep.subr.mxu0 0.0
  %1998 = vmatpush1.msra.mxu0 %v28
  %1999 = vmatprep.subr.mxu0 0.0
  %2000 = vmatpush1.msra.mxu0 %v29
  %2001 = vmatprep.subr.mxu0 0.0
  %2002 = vmatpush1.msra.mxu0 %v30
  %2003 = vmatprep.subr.mxu0 0.0
  %2004 = vmatpush1.msra.mxu0 0.0
  %2005 = vmatprep.subr.mxu0 0.0
  %2006 = vmatpush1.msra.mxu0 0.0
  %2007 = vmatprep.subr.mxu0 0.0
  %2008 = vmatpush1.msra.mxu0 0.0
  %2009 = vmatprep.subr.mxu0 0.0
  %2010 = vmatpush1.msra.mxu0 0.0
  %2011 = vmatprep.subr.mxu0 0.0
  %2012 = vmatpush1.msra.mxu0 0.0
  %2013 = vmatprep.subr.mxu0 0.0
  %2014 = vmatpush1.msra.mxu0 0.0
  %2015 = vmatprep.subr.mxu0 0.0
  %2016 = vmatpush1.msra.mxu0 0.0
  %2017 = vmatprep.subr.mxu0 0.0
  %2018 = vmatpush1.msra.mxu0 0.0
  %2019 = vmatprep.subr.mxu0 0.0
  %2020 = vmatpush1.msra.mxu0 0.0
  %2021 = vmatprep.subr.mxu0 0.0
  %2022 = vmatpush1.msra.mxu0 0.0
  %2023 = vmatprep.subr.mxu0 0.0
  %2024 = vmatpush1.msra.mxu0 0.0
  %2025 = vmatprep.subr.mxu0 0.0
  %2026 = vmatpush1.msra.mxu0 0.0
  %2027 = vmatprep.subr.mxu0 0.0
  %2028 = vmatpush1.msra.mxu0 0.0
  %2029 = vmatprep.subr.mxu0 0.0
  %2030 = vmatpush1.msra.mxu0 0.0
  %2031 = vmatprep.subr.mxu0 0.0
  %2032 = vmatpush1.msra.mxu0 0.0
  %2033 = vmatprep.subr.mxu0 0.0
  %2034 = vmatpush1.msra.mxu0 0.0
  %2035 = vmatprep.subr.mxu0 0.0
  %2036 = vmatpush1.msra.mxu0 0.0
  %2037 = vmatprep.subr.mxu0 0.0
  %2038 = vmatpush1.msra.mxu0 0.0
  %2039 = vmatprep.subr.mxu0 0.0
  %2040 = vmatpush1.msra.mxu0 0.0
  %2041 = vmatprep.subr.mxu0 0.0
  %2042 = vmatpush1.msra.mxu0 0.0
  %2043 = vmatprep.subr.mxu0 0.0
  %2044 = vmatpush1.msra.mxu0 0.0
  %2045 = vmatprep.subr.mxu0 0.0
  %2046 = vmatpush1.msra.mxu0 0.0
  %2047 = vmatprep.subr.mxu0 0.0
  %2048 = vmatpush1.msra.mxu0 0.0
  %2049 = vmatprep.subr.mxu0 0.0
  %2050 = vmatpush1.msra.mxu0 0.0
  %2051 = vmatprep.subr.mxu0 0.0
  %2052 = vmatpush1.msra.mxu0 0.0
  %2053 = vmatprep.subr.mxu0 0.0
  %2054 = vmatpush1.msra.mxu0 0.0
  %2055 = vmatprep.subr.mxu0 0.0
  %2056 = vmatpush1.msra.mxu0 0.0
  %2057 = vmatprep.subr.mxu0 0.0
  %2058 = vmatpush1.msra.mxu0 0.0
  %2059 = vmatprep.mubr.f32.mxu0 0.0
  %2060 = vmatmul.mubr.f32.gmra.mrb[0].mxu0 %v530
  %v2061 = vpop.f32.mrb[0].mxu0
  %v2062 = vadd.f32 0.0, %v2061
  %v2063 = vpop.f32.mrb[0].mxu0
  %2064 = vmatprep.mubr.f32.mxu0 0.0
  %2065 = vmatmul.mubr.f32.gmra.mrb[0].mxu0 %v533
  %v2066 = vpop.f32.mrb[0].mxu0
  %v2067 = vadd.f32 0.0, %v2066
  %v2068 = vpop.f32.mrb[0].mxu0
  %2069 = vdwg.mxu0
  %v2070 = vadd.f32 %v1993, %v2062
  %v2071 = vadd.f32 %v1994, %v2067
  %2072 = vrot.lane.b32.xlu0 %v332, 121
  %v2073 = vpop.permute.xlu0 %2072
  %2074 = vrot.lane.b32.xlu0 %v333, 121
  %v2075 = vpop.permute.xlu0 %2074
  %2076 = vrot.lane.b32.xlu0 %v334, 121
  %v2077 = vpop.permute.xlu0 %2076
  %2078 = vrot.lane.b32.xlu0 %v335, 121
  %v2079 = vpop.permute.xlu0 %2078
  %vm2080 = vmand %vm23, %vm24
  %v2081 = vsel %vm2080, 1, 0
  %vm2082 = vcmp.eq.s32.totalorder %v2081, 1
  %v2083 = vsel %vm2082, %v2073, 0.0
  %v2084 = vsel %vm2082, %v2075, 0.0
  %v2085 = vsel %vm2082, %v2077, 0.0
  %v2086 = vsel %vm2082, %v2079, 0.0
  %2087 = vmatprep.subr.mxu0 0.0
  %2088 = vmatpush1.msra.mxu0 %v2083
  %2089 = vmatprep.subr.mxu0 0.0
  %2090 = vmatpush1.msra.mxu0 %v2084
  %2091 = vmatprep.subr.mxu0 0.0
  %2092 = vmatpush1.msra.mxu0 %v2085
  %2093 = vmatprep.subr.mxu0 0.0
  %2094 = vmatpush1.msra.mxu0 %v2086
  %2095 = vmatprep.subr.mxu0 0.0
  %2096 = vmatpush1.msra.mxu0 0.0
  %2097 = vmatprep.subr.mxu0 0.0
  %2098 = vmatpush1.msra.mxu0 0.0
  %2099 = vmatprep.subr.mxu0 0.0
  %2100 = vmatpush1.msra.mxu0 0.0
  %2101 = vmatprep.subr.mxu0 0.0
  %2102 = vmatpush1.msra.mxu0 0.0
  %2103 = vmatprep.subr.mxu0 0.0
  %2104 = vmatpush1.msra.mxu0 0.0
  %2105 = vmatprep.subr.mxu0 0.0
  %2106 = vmatpush1.msra.mxu0 0.0
  %2107 = vmatprep.subr.mxu0 0.0
  %2108 = vmatpush1.msra.mxu0 0.0
  %2109 = vmatprep.subr.mxu0 0.0
  %2110 = vmatpush1.msra.mxu0 0.0
  %2111 = vmatprep.subr.mxu0 0.0
  %2112 = vmatpush1.msra.mxu0 0.0
  %2113 = vmatprep.subr.mxu0 0.0
  %2114 = vmatpush1.msra.mxu0 0.0
  %2115 = vmatprep.subr.mxu0 0.0
  %2116 = vmatpush1.msra.mxu0 0.0
  %2117 = vmatprep.subr.mxu0 0.0
  %2118 = vmatpush1.msra.mxu0 0.0
  %2119 = vmatprep.subr.mxu0 0.0
  %2120 = vmatpush1.msra.mxu0 0.0
  %2121 = vmatprep.subr.mxu0 0.0
  %2122 = vmatpush1.msra.mxu0 0.0
  %2123 = vmatprep.subr.mxu0 0.0
  %2124 = vmatpush1.msra.mxu0 0.0
  %2125 = vmatprep.subr.mxu0 0.0
  %2126 = vmatpush1.msra.mxu0 0.0
  %2127 = vmatprep.subr.mxu0 0.0
  %2128 = vmatpush1.msra.mxu0 0.0
  %2129 = vmatprep.subr.mxu0 0.0
  %2130 = vmatpush1.msra.mxu0 0.0
  %2131 = vmatprep.subr.mxu0 0.0
  %2132 = vmatpush1.msra.mxu0 0.0
  %2133 = vmatprep.subr.mxu0 0.0
  %2134 = vmatpush1.msra.mxu0 0.0
  %2135 = vmatprep.subr.mxu0 0.0
  %2136 = vmatpush1.msra.mxu0 0.0
  %2137 = vmatprep.subr.mxu0 0.0
  %2138 = vmatpush1.msra.mxu0 0.0
  %2139 = vmatprep.subr.mxu0 0.0
  %2140 = vmatpush1.msra.mxu0 0.0
  %2141 = vmatprep.subr.mxu0 0.0
  %2142 = vmatpush1.msra.mxu0 0.0
  %2143 = vmatprep.subr.mxu0 0.0
  %2144 = vmatpush1.msra.mxu0 0.0
  %2145 = vmatprep.subr.mxu0 0.0
  %2146 = vmatpush1.msra.mxu0 0.0
  %2147 = vmatprep.subr.mxu0 0.0
  %2148 = vmatpush1.msra.mxu0 0.0
  %2149 = vmatprep.subr.mxu0 0.0
  %2150 = vmatpush1.msra.mxu0 0.0
  %2151 = vmatprep.mubr.f32.mxu0 0.0
  %2152 = vmatmul.mubr.f32.gmra.mrb[0].mxu0 %v628
  %v2153 = vpop.f32.mrb[0].mxu0
  %v2154 = vadd.f32 0.0, %v2153
  %v2155 = vpop.f32.mrb[0].mxu0
  %2156 = vmatprep.mubr.f32.mxu0 0.0
  %2157 = vmatmul.mubr.f32.gmra.mrb[0].mxu0 %v631
  %v2158 = vpop.f32.mrb[0].mxu0
  %v2159 = vadd.f32 0.0, %v2158
  %v2160 = vpop.f32.mrb[0].mxu0
  %2161 = vdwg.mxu0
  %v2162 = vadd.f32 %v2070, %v2154
  %v2163 = vadd.f32 %v2071, %v2159
  %2164 = vrot.lane.b32.xlu0 %v436, 120
  %v2165 = vpop.permute.xlu0 %2164
  %2166 = vrot.lane.b32.xlu0 %v437, 120
  %v2167 = vpop.permute.xlu0 %2166
  %2168 = vrot.lane.b32.xlu0 %v438, 120
  %v2169 = vpop.permute.xlu0 %2168
  %2170 = vrot.lane.b32.xlu0 %v439, 120
  %v2171 = vpop.permute.xlu0 %2170
  %v2172 = vsel %vm23, 1, 0
  %vm2173 = vcmp.eq.s32.totalorder %v2172, 1
  %v2174 = vsel %vm2173, %v2165, 0.0
  %v2175 = vsel %vm2173, %v2167, 0.0
  %v2176 = vsel %vm2173, %v2169, 0.0
  %v2177 = vsel %vm2173, %v2171, 0.0
  %2178 = vmatprep.subr.mxu0 0.0
  %2179 = vmatpush1.msra.mxu0 %v2174
  %2180 = vmatprep.subr.mxu0 0.0
  %2181 = vmatpush1.msra.mxu0 %v2175
  %2182 = vmatprep.subr.mxu0 0.0
  %2183 = vmatpush1.msra.mxu0 %v2176
  %2184 = vmatprep.subr.mxu0 0.0
  %2185 = vmatpush1.msra.mxu0 %v2177
  %2186 = vmatprep.subr.mxu0 0.0
  %2187 = vmatpush1.msra.mxu0 0.0
  %2188 = vmatprep.subr.mxu0 0.0
  %2189 = vmatpush1.msra.mxu0 0.0
  %2190 = vmatprep.subr.mxu0 0.0
  %2191 = vmatpush1.msra.mxu0 0.0
  %2192 = vmatprep.subr.mxu0 0.0
  %2193 = vmatpush1.msra.mxu0 0.0
  %2194 = vmatprep.subr.mxu0 0.0
  %2195 = vmatpush1.msra.mxu0 0.0
  %2196 = vmatprep.subr.mxu0 0.0
  %2197 = vmatpush1.msra.mxu0 0.0
  %2198 = vmatprep.subr.mxu0 0.0
  %2199 = vmatpush1.msra.mxu0 0.0
  %2200 = vmatprep.subr.mxu0 0.0
  %2201 = vmatpush1.msra.mxu0 0.0
  %2202 = vmatprep.subr.mxu0 0.0
  %2203 = vmatpush1.msra.mxu0 0.0
  %2204 = vmatprep.subr.mxu0 0.0
  %2205 = vmatpush1.msra.mxu0 0.0
  %2206 = vmatprep.subr.mxu0 0.0
  %2207 = vmatpush1.msra.mxu0 0.0
  %2208 = vmatprep.subr.mxu0 0.0
  %2209 = vmatpush1.msra.mxu0 0.0
  %2210 = vmatprep.subr.mxu0 0.0
  %2211 = vmatpush1.msra.mxu0 0.0
  %2212 = vmatprep.subr.mxu0 0.0
  %2213 = vmatpush1.msra.mxu0 0.0
  %2214 = vmatprep.subr.mxu0 0.0
  %2215 = vmatpush1.msra.mxu0 0.0
  %2216 = vmatprep.subr.mxu0 0.0
  %2217 = vmatpush1.msra.mxu0 0.0
  %2218 = vmatprep.subr.mxu0 0.0
  %2219 = vmatpush1.msra.mxu0 0.0
  %2220 = vmatprep.subr.mxu0 0.0
  %2221 = vmatpush1.msra.mxu0 0.0
  %2222 = vmatprep.subr.mxu0 0.0
  %2223 = vmatpush1.msra.mxu0 0.0
  %2224 = vmatprep.subr.mxu0 0.0
  %2225 = vmatpush1.msra.mxu0 0.0
  %2226 = vmatprep.subr.mxu0 0.0
  %2227 = vmatpush1.msra.mxu0 0.0
  %2228 = vmatprep.subr.mxu0 0.0
  %2229 = vmatpush1.msra.mxu0 0.0
  %2230 = vmatprep.subr.mxu0 0.0
  %2231 = vmatpush1.msra.mxu0 0.0
  %2232 = vmatprep.subr.mxu0 0.0
  %2233 = vmatpush1.msra.mxu0 0.0
  %2234 = vmatprep.subr.mxu0 0.0
  %2235 = vmatpush1.msra.mxu0 0.0
  %2236 = vmatprep.subr.mxu0 0.0
  %2237 = vmatpush1.msra.mxu0 0.0
  %2238 = vmatprep.subr.mxu0 0.0
  %2239 = vmatpush1.msra.mxu0 0.0
  %2240 = vmatprep.subr.mxu0 0.0
  %2241 = vmatpush1.msra.mxu0 0.0
  %2242 = vmatprep.mubr.f32.mxu0 0.0
  %2243 = vmatmul.mubr.f32.gmra.mrb[0].mxu0 %v714
  %v2244 = vpop.f32.mrb[0].mxu0
  %v2245 = vadd.f32 0.0, %v2244
  %v2246 = vpop.f32.mrb[0].mxu0
  %2247 = vmatprep.mubr.f32.mxu0 0.0
  %2248 = vmatmul.mubr.f32.gmra.mrb[0].mxu0 %v717
  %v2249 = vpop.f32.mrb[0].mxu0
  %v2250 = vadd.f32 0.0, %v2249
  %v2251 = vpop.f32.mrb[0].mxu0
  %2252 = vdwg.mxu0
  %v2253 = vadd.f32 %v2162, %v2245
  %v2254 = vadd.f32 %v2163, %v2250
  %2255 = vrot.lane.b32.xlu0 %v332, 120
  %v2256 = vpop.permute.xlu0 %2255
  %2257 = vrot.lane.b32.xlu0 %v333, 120
  %v2258 = vpop.permute.xlu0 %2257
  %2259 = vrot.lane.b32.xlu0 %v334, 120
  %v2260 = vpop.permute.xlu0 %2259
  %2261 = vrot.lane.b32.xlu0 %v335, 120
  %v2262 = vpop.permute.xlu0 %2261
  %v2263 = vsel %vm2173, %v2256, 0.0
  %v2264 = vsel %vm2173, %v2258, 0.0
  %v2265 = vsel %vm2173, %v2260, 0.0
  %v2266 = vsel %vm2173, %v2262, 0.0
  %2267 = vmatprep.subr.mxu0 0.0
  %2268 = vmatpush1.msra.mxu0 %v2263
  %2269 = vmatprep.subr.mxu0 0.0
  %2270 = vmatpush1.msra.mxu0 %v2264
  %2271 = vmatprep.subr.mxu0 0.0
  %2272 = vmatpush1.msra.mxu0 %v2265
  %2273 = vmatprep.subr.mxu0 0.0
  %2274 = vmatpush1.msra.mxu0 %v2266
  %2275 = vmatprep.subr.mxu0 0.0
  %2276 = vmatpush1.msra.mxu0 0.0
  %2277 = vmatprep.subr.mxu0 0.0
  %2278 = vmatpush1.msra.mxu0 0.0
  %2279 = vmatprep.subr.mxu0 0.0
  %2280 = vmatpush1.msra.mxu0 0.0
  %2281 = vmatprep.subr.mxu0 0.0
  %2282 = vmatpush1.msra.mxu0 0.0
  %2283 = vmatprep.subr.mxu0 0.0
  %2284 = vmatpush1.msra.mxu0 0.0
  %2285 = vmatprep.subr.mxu0 0.0
  %2286 = vmatpush1.msra.mxu0 0.0
  %2287 = vmatprep.subr.mxu0 0.0
  %2288 = vmatpush1.msra.mxu0 0.0
  %2289 = vmatprep.subr.mxu0 0.0
  %2290 = vmatpush1.msra.mxu0 0.0
  %2291 = vmatprep.subr.mxu0 0.0
  %2292 = vmatpush1.msra.mxu0 0.0
  %2293 = vmatprep.subr.mxu0 0.0
  %2294 = vmatpush1.msra.mxu0 0.0
  %2295 = vmatprep.subr.mxu0 0.0
  %2296 = vmatpush1.msra.mxu0 0.0
  %2297 = vmatprep.subr.mxu0 0.0
  %2298 = vmatpush1.msra.mxu0 0.0
  %2299 = vmatprep.subr.mxu0 0.0
  %2300 = vmatpush1.msra.mxu0 0.0
  %2301 = vmatprep.subr.mxu0 0.0
  %2302 = vmatpush1.msra.mxu0 0.0
  %2303 = vmatprep.subr.mxu0 0.0
  %2304 = vmatpush1.msra.mxu0 0.0
  %2305 = vmatprep.subr.mxu0 0.0
  %2306 = vmatpush1.msra.mxu0 0.0
  %2307 = vmatprep.subr.mxu0 0.0
  %2308 = vmatpush1.msra.mxu0 0.0
  %2309 = vmatprep.subr.mxu0 0.0
  %2310 = vmatpush1.msra.mxu0 0.0
  %2311 = vmatprep.subr.mxu0 0.0
  %2312 = vmatpush1.msra.mxu0 0.0
  %2313 = vmatprep.subr.mxu0 0.0
  %2314 = vmatpush1.msra.mxu0 0.0
  %2315 = vmatprep.subr.mxu0 0.0
  %2316 = vmatpush1.msra.mxu0 0.0
  %2317 = vmatprep.subr.mxu0 0.0
  %2318 = vmatpush1.msra.mxu0 0.0
  %2319 = vmatprep.subr.mxu0 0.0
  %2320 = vmatpush1.msra.mxu0 0.0
  %2321 = vmatprep.subr.mxu0 0.0
  %2322 = vmatpush1.msra.mxu0 0.0
  %2323 = vmatprep.subr.mxu0 0.0
  %2324 = vmatpush1.msra.mxu0 0.0
  %2325 = vmatprep.subr.mxu0 0.0
  %2326 = vmatpush1.msra.mxu0 0.0
  %2327 = vmatprep.subr.mxu0 0.0
  %2328 = vmatpush1.msra.mxu0 0.0
  %2329 = vmatprep.subr.mxu0 0.0
  %2330 = vmatpush1.msra.mxu0 0.0
  %2331 = vmatprep.mubr.f32.mxu0 0.0
  %2332 = vmatmul.mubr.f32.gmra.mrb[0].mxu0 %v800
  %v2333 = vpop.f32.mrb[0].mxu0
  %v2334 = vadd.f32 0.0, %v2333
  %v2335 = vpop.f32.mrb[0].mxu0
  %2336 = vmatprep.mubr.f32.mxu0 0.0
  %2337 = vmatmul.mubr.f32.gmra.mrb[0].mxu0 %v803
  %v2338 = vpop.f32.mrb[0].mxu0
  %v2339 = vadd.f32 0.0, %v2338
  %v2340 = vpop.f32.mrb[0].mxu0
  %2341 = vdwg.mxu0
  %v2342 = vadd.f32 %v2253, %v2334
  %v2343 = vadd.f32 %v2254, %v2339
  %v2344 = vmax.f32 %v1612, %v2342
  %v2345 = vmax.f32 %v1613, %v2343
  %2346 = vmatprep.subr.mxu0 0.0
  %2347 = vmatpush1.msra.mxu0 %v332
  %2348 = vmatprep.subr.mxu0 0.0
  %2349 = vmatpush1.msra.mxu0 %v333
  %2350 = vmatprep.subr.mxu0 0.0
  %2351 = vmatpush1.msra.mxu0 %v334
  %2352 = vmatprep.subr.mxu0 0.0
  %2353 = vmatpush1.msra.mxu0 %v335
  %2354 = vmatprep.subr.mxu0 0.0
  %2355 = vmatpush1.msra.mxu0 0.0
  %2356 = vmatprep.subr.mxu0 0.0
  %2357 = vmatpush1.msra.mxu0 0.0
  %2358 = vmatprep.subr.mxu0 0.0
  %2359 = vmatpush1.msra.mxu0 0.0
  %2360 = vmatprep.subr.mxu0 0.0
  %2361 = vmatpush1.msra.mxu0 0.0
  %2362 = vmatprep.subr.mxu0 0.0
  %2363 = vmatpush1.msra.mxu0 0.0
  %2364 = vmatprep.subr.mxu0 0.0
  %2365 = vmatpush1.msra.mxu0 0.0
  %2366 = vmatprep.subr.mxu0 0.0
  %2367 = vmatpush1.msra.mxu0 0.0
  %2368 = vmatprep.subr.mxu0 0.0
  %2369 = vmatpush1.msra.mxu0 0.0
  %2370 = vmatprep.subr.mxu0 0.0
  %2371 = vmatpush1.msra.mxu0 0.0
  %2372 = vmatprep.subr.mxu0 0.0
  %2373 = vmatpush1.msra.mxu0 0.0
  %2374 = vmatprep.subr.mxu0 0.0
  %2375 = vmatpush1.msra.mxu0 0.0
  %2376 = vmatprep.subr.mxu0 0.0
  %2377 = vmatpush1.msra.mxu0 0.0
  %2378 = vmatprep.subr.mxu0 0.0
  %2379 = vmatpush1.msra.mxu0 0.0
  %2380 = vmatprep.subr.mxu0 0.0
  %2381 = vmatpush1.msra.mxu0 0.0
  %2382 = vmatprep.subr.mxu0 0.0
  %2383 = vmatpush1.msra.mxu0 0.0
  %2384 = vmatprep.subr.mxu0 0.0
  %2385 = vmatpush1.msra.mxu0 0.0
  %2386 = vmatprep.subr.mxu0 0.0
  %2387 = vmatpush1.msra.mxu0 0.0
  %2388 = vmatprep.subr.mxu0 0.0
  %2389 = vmatpush1.msra.mxu0 0.0
  %2390 = vmatprep.subr.mxu0 0.0
  %2391 = vmatpush1.msra.mxu0 0.0
  %2392 = vmatprep.subr.mxu0 0.0
  %2393 = vmatpush1.msra.mxu0 0.0
  %2394 = vmatprep.subr.mxu0 0.0
  %2395 = vmatpush1.msra.mxu0 0.0
  %2396 = vmatprep.subr.mxu0 0.0
  %2397 = vmatpush1.msra.mxu0 0.0
  %2398 = vmatprep.subr.mxu0 0.0
  %2399 = vmatpush1.msra.mxu0 0.0
  %2400 = vmatprep.subr.mxu0 0.0
  %2401 = vmatpush1.msra.mxu0 0.0
  %2402 = vmatprep.subr.mxu0 0.0
  %2403 = vmatpush1.msra.mxu0 0.0
  %2404 = vmatprep.subr.mxu0 0.0
  %2405 = vmatpush1.msra.mxu0 0.0
  %2406 = vmatprep.subr.mxu0 0.0
  %2407 = vmatpush1.msra.mxu0 0.0
  %2408 = vmatprep.subr.mxu0 0.0
  %2409 = vmatpush1.msra.mxu0 0.0
  %2410 = vmatprep.mubr.f32.mxu0 0.0
  %2411 = vmatmul.mubr.f32.gmra.mrb[0].mxu0 %v72
  %v2412 = vpop.f32.mrb[0].mxu0
  %v2413 = vadd.f32 0.0, %v2412
  %v2414 = vpop.f32.mrb[0].mxu0
  %2415 = vmatprep.mubr.f32.mxu0 0.0
  %2416 = vmatmul.mubr.f32.gmra.mrb[0].mxu0 %v75
  %v2417 = vpop.f32.mrb[0].mxu0
  %v2418 = vadd.f32 0.0, %v2417
  %v2419 = vpop.f32.mrb[0].mxu0
  %2420 = vdwg.mxu0
  %2421 = vmatprep.subr.mxu0 0.0
  %2422 = vmatpush1.msra.mxu0 %v436
  %2423 = vmatprep.subr.mxu0 0.0
  %2424 = vmatpush1.msra.mxu0 %v437
  %2425 = vmatprep.subr.mxu0 0.0
  %2426 = vmatpush1.msra.mxu0 %v438
  %2427 = vmatprep.subr.mxu0 0.0
  %2428 = vmatpush1.msra.mxu0 %v439
  %2429 = vmatprep.subr.mxu0 0.0
  %2430 = vmatpush1.msra.mxu0 0.0
  %2431 = vmatprep.subr.mxu0 0.0
  %2432 = vmatpush1.msra.mxu0 0.0
  %2433 = vmatprep.subr.mxu0 0.0
  %2434 = vmatpush1.msra.mxu0 0.0
  %2435 = vmatprep.subr.mxu0 0.0
  %2436 = vmatpush1.msra.mxu0 0.0
  %2437 = vmatprep.subr.mxu0 0.0
  %2438 = vmatpush1.msra.mxu0 0.0
  %2439 = vmatprep.subr.mxu0 0.0
  %2440 = vmatpush1.msra.mxu0 0.0
  %2441 = vmatprep.subr.mxu0 0.0
  %2442 = vmatpush1.msra.mxu0 0.0
  %2443 = vmatprep.subr.mxu0 0.0
  %2444 = vmatpush1.msra.mxu0 0.0
  %2445 = vmatprep.subr.mxu0 0.0
  %2446 = vmatpush1.msra.mxu0 0.0
  %2447 = vmatprep.subr.mxu0 0.0
  %2448 = vmatpush1.msra.mxu0 0.0
  %2449 = vmatprep.subr.mxu0 0.0
  %2450 = vmatpush1.msra.mxu0 0.0
  %2451 = vmatprep.subr.mxu0 0.0
  %2452 = vmatpush1.msra.mxu0 0.0
  %2453 = vmatprep.subr.mxu0 0.0
  %2454 = vmatpush1.msra.mxu0 0.0
  %2455 = vmatprep.subr.mxu0 0.0
  %2456 = vmatpush1.msra.mxu0 0.0
  %2457 = vmatprep.subr.mxu0 0.0
  %2458 = vmatpush1.msra.mxu0 0.0
  %2459 = vmatprep.subr.mxu0 0.0
  %2460 = vmatpush1.msra.mxu0 0.0
  %2461 = vmatprep.subr.mxu0 0.0
  %2462 = vmatpush1.msra.mxu0 0.0
  %2463 = vmatprep.subr.mxu0 0.0
  %2464 = vmatpush1.msra.mxu0 0.0
  %2465 = vmatprep.subr.mxu0 0.0
  %2466 = vmatpush1.msra.mxu0 0.0
  %2467 = vmatprep.subr.mxu0 0.0
  %2468 = vmatpush1.msra.mxu0 0.0
  %2469 = vmatprep.subr.mxu0 0.0
  %2470 = vmatpush1.msra.mxu0 0.0
  %2471 = vmatprep.subr.mxu0 0.0
  %2472 = vmatpush1.msra.mxu0 0.0
  %2473 = vmatprep.subr.mxu0 0.0
  %2474 = vmatpush1.msra.mxu0 0.0
  %2475 = vmatprep.subr.mxu0 0.0
  %2476 = vmatpush1.msra.mxu0 0.0
  %2477 = vmatprep.subr.mxu0 0.0
  %2478 = vmatpush1.msra.mxu0 0.0
  %2479 = vmatprep.subr.mxu0 0.0
  %2480 = vmatpush1.msra.mxu0 0.0
  %2481 = vmatprep.subr.mxu0 0.0
  %2482 = vmatpush1.msra.mxu0 0.0
  %2483 = vmatprep.subr.mxu0 0.0
  %2484 = vmatpush1.msra.mxu0 0.0
  %2485 = vmatprep.mubr.f32.mxu0 0.0
  %2486 = vmatmul.mubr.f32.gmra.mrb[0].mxu0 %v153
  %v2487 = vpop.f32.mrb[0].mxu0
  %v2488 = vadd.f32 %v2413, %v2487
  %v2489 = vpop.f32.mrb[0].mxu0
  %2490 = vmatprep.mubr.f32.mxu0 0.0
  %2491 = vmatmul.mubr.f32.gmra.mrb[0].mxu0 %v156
  %v2492 = vpop.f32.mrb[0].mxu0
  %v2493 = vadd.f32 %v2418, %v2492
  %v2494 = vpop.f32.mrb[0].mxu0
  %2495 = vdwg.mxu0
  %2496 = vmatprep.subr.mxu0 0.0
  %2497 = vmatpush1.msra.mxu0 %v1288
  %2498 = vmatprep.subr.mxu0 0.0
  %2499 = vmatpush1.msra.mxu0 %v1289
  %2500 = vmatprep.subr.mxu0 0.0
  %2501 = vmatpush1.msra.mxu0 %v1290
  %2502 = vmatprep.subr.mxu0 0.0
  %2503 = vmatpush1.msra.mxu0 %v1291
  %2504 = vmatprep.subr.mxu0 0.0
  %2505 = vmatpush1.msra.mxu0 0.0
  %2506 = vmatprep.subr.mxu0 0.0
  %2507 = vmatpush1.msra.mxu0 0.0
  %2508 = vmatprep.subr.mxu0 0.0
  %2509 = vmatpush1.msra.mxu0 0.0
  %2510 = vmatprep.subr.mxu0 0.0
  %2511 = vmatpush1.msra.mxu0 0.0
  %2512 = vmatprep.subr.mxu0 0.0
  %2513 = vmatpush1.msra.mxu0 0.0
  %2514 = vmatprep.subr.mxu0 0.0
  %2515 = vmatpush1.msra.mxu0 0.0
  %2516 = vmatprep.subr.mxu0 0.0
  %2517 = vmatpush1.msra.mxu0 0.0
  %2518 = vmatprep.subr.mxu0 0.0
  %2519 = vmatpush1.msra.mxu0 0.0
  %2520 = vmatprep.subr.mxu0 0.0
  %2521 = vmatpush1.msra.mxu0 0.0
  %2522 = vmatprep.subr.mxu0 0.0
  %2523 = vmatpush1.msra.mxu0 0.0
  %2524 = vmatprep.subr.mxu0 0.0
  %2525 = vmatpush1.msra.mxu0 0.0
  %2526 = vmatprep.subr.mxu0 0.0
  %2527 = vmatpush1.msra.mxu0 0.0
  %2528 = vmatprep.subr.mxu0 0.0
  %2529 = vmatpush1.msra.mxu0 0.0
  %2530 = vmatprep.subr.mxu0 0.0
  %2531 = vmatpush1.msra.mxu0 0.0
  %2532 = vmatprep.subr.mxu0 0.0
  %2533 = vmatpush1.msra.mxu0 0.0
  %2534 = vmatprep.subr.mxu0 0.0
  %2535 = vmatpush1.msra.mxu0 0.0
  %2536 = vmatprep.subr.mxu0 0.0
  %2537 = vmatpush1.msra.mxu0 0.0
  %2538 = vmatprep.subr.mxu0 0.0
  %2539 = vmatpush1.msra.mxu0 0.0
  %2540 = vmatprep.subr.mxu0 0.0
  %2541 = vmatpush1.msra.mxu0 0.0
  %2542 = vmatprep.subr.mxu0 0.0
  %2543 = vmatpush1.msra.mxu0 0.0
  %2544 = vmatprep.subr.mxu0 0.0
  %2545 = vmatpush1.msra.mxu0 0.0
  %2546 = vmatprep.subr.mxu0 0.0
  %2547 = vmatpush1.msra.mxu0 0.0
  %2548 = vmatprep.subr.mxu0 0.0
  %2549 = vmatpush1.msra.mxu0 0.0
  %2550 = vmatprep.subr.mxu0 0.0
  %2551 = vmatpush1.msra.mxu0 0.0
  %2552 = vmatprep.subr.mxu0 0.0
  %2553 = vmatpush1.msra.mxu0 0.0
  %2554 = vmatprep.subr.mxu0 0.0
  %2555 = vmatpush1.msra.mxu0 0.0
  %2556 = vmatprep.subr.mxu0 0.0
  %2557 = vmatpush1.msra.mxu0 0.0
  %2558 = vmatprep.subr.mxu0 0.0
  %2559 = vmatpush1.msra.mxu0 0.0
  %2560 = vmatprep.mubr.f32.mxu0 0.0
  %2561 = vmatmul.mubr.f32.gmra.mrb[0].mxu0 %v249
  %v2562 = vpop.f32.mrb[0].mxu0
  %v2563 = vadd.f32 0.0, %v2562
  %v2564 = vpop.f32.mrb[0].mxu0
  %2565 = vmatprep.mubr.f32.mxu0 0.0
  %2566 = vmatmul.mubr.f32.gmra.mrb[0].mxu0 %v252
  %v2567 = vpop.f32.mrb[0].mxu0
  %v2568 = vadd.f32 0.0, %v2567
  %v2569 = vpop.f32.mrb[0].mxu0
  %2570 = vdwg.mxu0
  %v2571 = vadd.f32 %v2488, %v2563
  %v2572 = vadd.f32 %v2493, %v2568
  %2573 = vmatprep.subr.mxu0 0.0
  %2574 = vmatpush1.msra.mxu0 %v49
  %2575 = vmatprep.subr.mxu0 0.0
  %2576 = vmatpush1.msra.mxu0 %v50
  %2577 = vmatprep.subr.mxu0 0.0
  %2578 = vmatpush1.msra.mxu0 %v51
  %2579 = vmatprep.subr.mxu0 0.0
  %2580 = vmatpush1.msra.mxu0 %v52
  %2581 = vmatprep.subr.mxu0 0.0
  %2582 = vmatpush1.msra.mxu0 0.0
  %2583 = vmatprep.subr.mxu0 0.0
  %2584 = vmatpush1.msra.mxu0 0.0
  %2585 = vmatprep.subr.mxu0 0.0
  %2586 = vmatpush1.msra.mxu0 0.0
  %2587 = vmatprep.subr.mxu0 0.0
  %2588 = vmatpush1.msra.mxu0 0.0
  %2589 = vmatprep.subr.mxu0 0.0
  %2590 = vmatpush1.msra.mxu0 0.0
  %2591 = vmatprep.subr.mxu0 0.0
  %2592 = vmatpush1.msra.mxu0 0.0
  %2593 = vmatprep.subr.mxu0 0.0
  %2594 = vmatpush1.msra.mxu0 0.0
  %2595 = vmatprep.subr.mxu0 0.0
  %2596 = vmatpush1.msra.mxu0 0.0
  %2597 = vmatprep.subr.mxu0 0.0
  %2598 = vmatpush1.msra.mxu0 0.0
  %2599 = vmatprep.subr.mxu0 0.0
  %2600 = vmatpush1.msra.mxu0 0.0
  %2601 = vmatprep.subr.mxu0 0.0
  %2602 = vmatpush1.msra.mxu0 0.0
  %2603 = vmatprep.subr.mxu0 0.0
  %2604 = vmatpush1.msra.mxu0 0.0
  %2605 = vmatprep.subr.mxu0 0.0
  %2606 = vmatpush1.msra.mxu0 0.0
  %2607 = vmatprep.subr.mxu0 0.0
  %2608 = vmatpush1.msra.mxu0 0.0
  %2609 = vmatprep.subr.mxu0 0.0
  %2610 = vmatpush1.msra.mxu0 0.0
  %2611 = vmatprep.subr.mxu0 0.0
  %2612 = vmatpush1.msra.mxu0 0.0
  %2613 = vmatprep.subr.mxu0 0.0
  %2614 = vmatpush1.msra.mxu0 0.0
  %2615 = vmatprep.subr.mxu0 0.0
  %2616 = vmatpush1.msra.mxu0 0.0
  %2617 = vmatprep.subr.mxu0 0.0
  %2618 = vmatpush1.msra.mxu0 0.0
  %2619 = vmatprep.subr.mxu0 0.0
  %2620 = vmatpush1.msra.mxu0 0.0
  %2621 = vmatprep.subr.mxu0 0.0
  %2622 = vmatpush1.msra.mxu0 0.0
  %2623 = vmatprep.subr.mxu0 0.0
  %2624 = vmatpush1.msra.mxu0 0.0
  %2625 = vmatprep.subr.mxu0 0.0
  %2626 = vmatpush1.msra.mxu0 0.0
  %2627 = vmatprep.subr.mxu0 0.0
  %2628 = vmatpush1.msra.mxu0 0.0
  %2629 = vmatprep.subr.mxu0 0.0
  %2630 = vmatpush1.msra.mxu0 0.0
  %2631 = vmatprep.subr.mxu0 0.0
  %2632 = vmatpush1.msra.mxu0 0.0
  %2633 = vmatprep.subr.mxu0 0.0
  %2634 = vmatpush1.msra.mxu0 0.0
  %2635 = vmatprep.subr.mxu0 0.0
  %2636 = vmatpush1.msra.mxu0 0.0
  %2637 = vmatprep.mubr.f32.mxu0 0.0
  %2638 = vmatmul.mubr.f32.gmra.mrb[0].mxu0 %v354
  %v2639 = vpop.f32.mrb[0].mxu0
  %v2640 = vadd.f32 0.0, %v2639
  %v2641 = vpop.f32.mrb[0].mxu0
  %2642 = vmatprep.mubr.f32.mxu0 0.0
  %2643 = vmatmul.mubr.f32.gmra.mrb[0].mxu0 %v357
  %v2644 = vpop.f32.mrb[0].mxu0
  %v2645 = vadd.f32 0.0, %v2644
  %v2646 = vpop.f32.mrb[0].mxu0
  %2647 = vdwg.mxu0
  %v2648 = vadd.f32 %v2571, %v2640
  %v2649 = vadd.f32 %v2572, %v2645
  %2650 = vmatprep.subr.mxu0 0.0
  %2651 = vmatpush1.msra.mxu0 %v27
  %2652 = vmatprep.subr.mxu0 0.0
  %2653 = vmatpush1.msra.mxu0 %v28
  %2654 = vmatprep.subr.mxu0 0.0
  %2655 = vmatpush1.msra.mxu0 %v29
  %2656 = vmatprep.subr.mxu0 0.0
  %2657 = vmatpush1.msra.mxu0 %v30
  %2658 = vmatprep.subr.mxu0 0.0
  %2659 = vmatpush1.msra.mxu0 0.0
  %2660 = vmatprep.subr.mxu0 0.0
  %2661 = vmatpush1.msra.mxu0 0.0
  %2662 = vmatprep.subr.mxu0 0.0
  %2663 = vmatpush1.msra.mxu0 0.0
  %2664 = vmatprep.subr.mxu0 0.0
  %2665 = vmatpush1.msra.mxu0 0.0
  %2666 = vmatprep.subr.mxu0 0.0
  %2667 = vmatpush1.msra.mxu0 0.0
  %2668 = vmatprep.subr.mxu0 0.0
  %2669 = vmatpush1.msra.mxu0 0.0
  %2670 = vmatprep.subr.mxu0 0.0
  %2671 = vmatpush1.msra.mxu0 0.0
  %2672 = vmatprep.subr.mxu0 0.0
  %2673 = vmatpush1.msra.mxu0 0.0
  %2674 = vmatprep.subr.mxu0 0.0
  %2675 = vmatpush1.msra.mxu0 0.0
  %2676 = vmatprep.subr.mxu0 0.0
  %2677 = vmatpush1.msra.mxu0 0.0
  %2678 = vmatprep.subr.mxu0 0.0
  %2679 = vmatpush1.msra.mxu0 0.0
  %2680 = vmatprep.subr.mxu0 0.0
  %2681 = vmatpush1.msra.mxu0 0.0
  %2682 = vmatprep.subr.mxu0 0.0
  %2683 = vmatpush1.msra.mxu0 0.0
  %2684 = vmatprep.subr.mxu0 0.0
  %2685 = vmatpush1.msra.mxu0 0.0
  %2686 = vmatprep.subr.mxu0 0.0
  %2687 = vmatpush1.msra.mxu0 0.0
  %2688 = vmatprep.subr.mxu0 0.0
  %2689 = vmatpush1.msra.mxu0 0.0
  %2690 = vmatprep.subr.mxu0 0.0
  %2691 = vmatpush1.msra.mxu0 0.0
  %2692 = vmatprep.subr.mxu0 0.0
  %2693 = vmatpush1.msra.mxu0 0.0
  %2694 = vmatprep.subr.mxu0 0.0
  %2695 = vmatpush1.msra.mxu0 0.0
  %2696 = vmatprep.subr.mxu0 0.0
  %2697 = vmatpush1.msra.mxu0 0.0
  %2698 = vmatprep.subr.mxu0 0.0
  %2699 = vmatpush1.msra.mxu0 0.0
  %2700 = vmatprep.subr.mxu0 0.0
  %2701 = vmatpush1.msra.mxu0 0.0
  %2702 = vmatprep.subr.mxu0 0.0
  %2703 = vmatpush1.msra.mxu0 0.0
  %2704 = vmatprep.subr.mxu0 0.0
  %2705 = vmatpush1.msra.mxu0 0.0
  %2706 = vmatprep.subr.mxu0 0.0
  %2707 = vmatpush1.msra.mxu0 0.0
  %2708 = vmatprep.subr.mxu0 0.0
  %2709 = vmatpush1.msra.mxu0 0.0
  %2710 = vmatprep.subr.mxu0 0.0
  %2711 = vmatpush1.msra.mxu0 0.0
  %2712 = vmatprep.subr.mxu0 0.0
  %2713 = vmatpush1.msra.mxu0 0.0
  %2714 = vmatprep.mubr.f32.mxu0 0.0
  %2715 = vmatmul.mubr.f32.gmra.mrb[0].mxu0 %v444
  %v2716 = vpop.f32.mrb[0].mxu0
  %v2717 = vadd.f32 0.0, %v2716
  %v2718 = vpop.f32.mrb[0].mxu0
  %2719 = vmatprep.mubr.f32.mxu0 0.0
  %2720 = vmatmul.mubr.f32.gmra.mrb[0].mxu0 %v447
  %v2721 = vpop.f32.mrb[0].mxu0
  %v2722 = vadd.f32 0.0, %v2721
  %v2723 = vpop.f32.mrb[0].mxu0
  %2724 = vdwg.mxu0
  %v2725 = vadd.f32 %v2648, %v2717
  %v2726 = vadd.f32 %v2649, %v2722
  %2727 = vmatprep.subr.mxu0 0.0
  %2728 = vmatpush1.msra.mxu0 %v1531
  %2729 = vmatprep.subr.mxu0 0.0
  %2730 = vmatpush1.msra.mxu0 %v1532
  %2731 = vmatprep.subr.mxu0 0.0
  %2732 = vmatpush1.msra.mxu0 %v1533
  %2733 = vmatprep.subr.mxu0 0.0
  %2734 = vmatpush1.msra.mxu0 %v1534
  %2735 = vmatprep.subr.mxu0 0.0
  %2736 = vmatpush1.msra.mxu0 0.0
  %2737 = vmatprep.subr.mxu0 0.0
  %2738 = vmatpush1.msra.mxu0 0.0
  %2739 = vmatprep.subr.mxu0 0.0
  %2740 = vmatpush1.msra.mxu0 0.0
  %2741 = vmatprep.subr.mxu0 0.0
  %2742 = vmatpush1.msra.mxu0 0.0
  %2743 = vmatprep.subr.mxu0 0.0
  %2744 = vmatpush1.msra.mxu0 0.0
  %2745 = vmatprep.subr.mxu0 0.0
  %2746 = vmatpush1.msra.mxu0 0.0
  %2747 = vmatprep.subr.mxu0 0.0
  %2748 = vmatpush1.msra.mxu0 0.0
  %2749 = vmatprep.subr.mxu0 0.0
  %2750 = vmatpush1.msra.mxu0 0.0
  %2751 = vmatprep.subr.mxu0 0.0
  %2752 = vmatpush1.msra.mxu0 0.0
  %2753 = vmatprep.subr.mxu0 0.0
  %2754 = vmatpush1.msra.mxu0 0.0
  %2755 = vmatprep.subr.mxu0 0.0
  %2756 = vmatpush1.msra.mxu0 0.0
  %2757 = vmatprep.subr.mxu0 0.0
  %2758 = vmatpush1.msra.mxu0 0.0
  %2759 = vmatprep.subr.mxu0 0.0
  %2760 = vmatpush1.msra.mxu0 0.0
  %2761 = vmatprep.subr.mxu0 0.0
  %2762 = vmatpush1.msra.mxu0 0.0
  %2763 = vmatprep.subr.mxu0 0.0
  %2764 = vmatpush1.msra.mxu0 0.0
  %2765 = vmatprep.subr.mxu0 0.0
  %2766 = vmatpush1.msra.mxu0 0.0
  %2767 = vmatprep.subr.mxu0 0.0
  %2768 = vmatpush1.msra.mxu0 0.0
  %2769 = vmatprep.subr.mxu0 0.0
  %2770 = vmatpush1.msra.mxu0 0.0
  %2771 = vmatprep.subr.mxu0 0.0
  %2772 = vmatpush1.msra.mxu0 0.0
  %2773 = vmatprep.subr.mxu0 0.0
  %2774 = vmatpush1.msra.mxu0 0.0
  %2775 = vmatprep.subr.mxu0 0.0
  %2776 = vmatpush1.msra.mxu0 0.0
  %2777 = vmatprep.subr.mxu0 0.0
  %2778 = vmatpush1.msra.mxu0 0.0
  %2779 = vmatprep.subr.mxu0 0.0
  %2780 = vmatpush1.msra.mxu0 0.0
  %2781 = vmatprep.subr.mxu0 0.0
  %2782 = vmatpush1.msra.mxu0 0.0
  %2783 = vmatprep.subr.mxu0 0.0
  %2784 = vmatpush1.msra.mxu0 0.0
  %2785 = vmatprep.subr.mxu0 0.0
  %2786 = vmatpush1.msra.mxu0 0.0
  %2787 = vmatprep.subr.mxu0 0.0
  %2788 = vmatpush1.msra.mxu0 0.0
  %2789 = vmatprep.subr.mxu0 0.0
  %2790 = vmatpush1.msra.mxu0 0.0
  %2791 = vmatprep.mubr.f32.mxu0 0.0
  %2792 = vmatmul.mubr.f32.gmra.mrb[0].mxu0 %v530
  %v2793 = vpop.f32.mrb[0].mxu0
  %v2794 = vadd.f32 0.0, %v2793
  %v2795 = vpop.f32.mrb[0].mxu0
  %2796 = vmatprep.mubr.f32.mxu0 0.0
  %2797 = vmatmul.mubr.f32.gmra.mrb[0].mxu0 %v533
  %v2798 = vpop.f32.mrb[0].mxu0
  %v2799 = vadd.f32 0.0, %v2798
  %v2800 = vpop.f32.mrb[0].mxu0
  %2801 = vdwg.mxu0
  %v2802 = vadd.f32 %v2725, %v2794
  %v2803 = vadd.f32 %v2726, %v2799
  %2804 = vmatprep.subr.mxu0 0.0
  %2805 = vmatpush1.msra.mxu0 %v2174
  %2806 = vmatprep.subr.mxu0 0.0
  %2807 = vmatpush1.msra.mxu0 %v2175
  %2808 = vmatprep.subr.mxu0 0.0
  %2809 = vmatpush1.msra.mxu0 %v2176
  %2810 = vmatprep.subr.mxu0 0.0
  %2811 = vmatpush1.msra.mxu0 %v2177
  %2812 = vmatprep.subr.mxu0 0.0
  %2813 = vmatpush1.msra.mxu0 0.0
  %2814 = vmatprep.subr.mxu0 0.0
  %2815 = vmatpush1.msra.mxu0 0.0
  %2816 = vmatprep.subr.mxu0 0.0
  %2817 = vmatpush1.msra.mxu0 0.0
  %2818 = vmatprep.subr.mxu0 0.0
  %2819 = vmatpush1.msra.mxu0 0.0
  %2820 = vmatprep.subr.mxu0 0.0
  %2821 = vmatpush1.msra.mxu0 0.0
  %2822 = vmatprep.subr.mxu0 0.0
  %2823 = vmatpush1.msra.mxu0 0.0
  %2824 = vmatprep.subr.mxu0 0.0
  %2825 = vmatpush1.msra.mxu0 0.0
  %2826 = vmatprep.subr.mxu0 0.0
  %2827 = vmatpush1.msra.mxu0 0.0
  %2828 = vmatprep.subr.mxu0 0.0
  %2829 = vmatpush1.msra.mxu0 0.0
  %2830 = vmatprep.subr.mxu0 0.0
  %2831 = vmatpush1.msra.mxu0 0.0
  %2832 = vmatprep.subr.mxu0 0.0
  %2833 = vmatpush1.msra.mxu0 0.0
  %2834 = vmatprep.subr.mxu0 0.0
  %2835 = vmatpush1.msra.mxu0 0.0
  %2836 = vmatprep.subr.mxu0 0.0
  %2837 = vmatpush1.msra.mxu0 0.0
  %2838 = vmatprep.subr.mxu0 0.0
  %2839 = vmatpush1.msra.mxu0 0.0
  %2840 = vmatprep.subr.mxu0 0.0
  %2841 = vmatpush1.msra.mxu0 0.0
  %2842 = vmatprep.subr.mxu0 0.0
  %2843 = vmatpush1.msra.mxu0 0.0
  %2844 = vmatprep.subr.mxu0 0.0
  %2845 = vmatpush1.msra.mxu0 0.0
  %2846 = vmatprep.subr.mxu0 0.0
  %2847 = vmatpush1.msra.mxu0 0.0
  %2848 = vmatprep.subr.mxu0 0.0
  %2849 = vmatpush1.msra.mxu0 0.0
  %2850 = vmatprep.subr.mxu0 0.0
  %2851 = vmatpush1.msra.mxu0 0.0
  %2852 = vmatprep.subr.mxu0 0.0
  %2853 = vmatpush1.msra.mxu0 0.0
  %2854 = vmatprep.subr.mxu0 0.0
  %2855 = vmatpush1.msra.mxu0 0.0
  %2856 = vmatprep.subr.mxu0 0.0
  %2857 = vmatpush1.msra.mxu0 0.0
  %2858 = vmatprep.subr.mxu0 0.0
  %2859 = vmatpush1.msra.mxu0 0.0
  %2860 = vmatprep.subr.mxu0 0.0
  %2861 = vmatpush1.msra.mxu0 0.0
  %2862 = vmatprep.subr.mxu0 0.0
  %2863 = vmatpush1.msra.mxu0 0.0
  %2864 = vmatprep.subr.mxu0 0.0
  %2865 = vmatpush1.msra.mxu0 0.0
  %2866 = vmatprep.subr.mxu0 0.0
  %2867 = vmatpush1.msra.mxu0 0.0
  %2868 = vmatprep.mubr.f32.mxu0 0.0
  %2869 = vmatmul.mubr.f32.gmra.mrb[0].mxu0 %v628
  %v2870 = vpop.f32.mrb[0].mxu0
  %v2871 = vadd.f32 0.0, %v2870
  %v2872 = vpop.f32.mrb[0].mxu0
  %2873 = vmatprep.mubr.f32.mxu0 0.0
  %2874 = vmatmul.mubr.f32.gmra.mrb[0].mxu0 %v631
  %v2875 = vpop.f32.mrb[0].mxu0
  %v2876 = vadd.f32 0.0, %v2875
  %v2877 = vpop.f32.mrb[0].mxu0
  %2878 = vdwg.mxu0
  %v2879 = vadd.f32 %v2802, %v2871
  %v2880 = vadd.f32 %v2803, %v2876
  %2881 = vmatprep.subr.mxu0 0.0
  %2882 = vmatpush1.msra.mxu0 %v2263
  %2883 = vmatprep.subr.mxu0 0.0
  %2884 = vmatpush1.msra.mxu0 %v2264
  %2885 = vmatprep.subr.mxu0 0.0
  %2886 = vmatpush1.msra.mxu0 %v2265
  %2887 = vmatprep.subr.mxu0 0.0
  %2888 = vmatpush1.msra.mxu0 %v2266
  %2889 = vmatprep.subr.mxu0 0.0
  %2890 = vmatpush1.msra.mxu0 0.0
  %2891 = vmatprep.subr.mxu0 0.0
  %2892 = vmatpush1.msra.mxu0 0.0
  %2893 = vmatprep.subr.mxu0 0.0
  %2894 = vmatpush1.msra.mxu0 0.0
  %2895 = vmatprep.subr.mxu0 0.0
  %2896 = vmatpush1.msra.mxu0 0.0
  %2897 = vmatprep.subr.mxu0 0.0
  %2898 = vmatpush1.msra.mxu0 0.0
  %2899 = vmatprep.subr.mxu0 0.0
  %2900 = vmatpush1.msra.mxu0 0.0
  %2901 = vmatprep.subr.mxu0 0.0
  %2902 = vmatpush1.msra.mxu0 0.0
  %2903 = vmatprep.subr.mxu0 0.0
  %2904 = vmatpush1.msra.mxu0 0.0
  %2905 = vmatprep.subr.mxu0 0.0
  %2906 = vmatpush1.msra.mxu0 0.0
  %2907 = vmatprep.subr.mxu0 0.0
  %2908 = vmatpush1.msra.mxu0 0.0
  %2909 = vmatprep.subr.mxu0 0.0
  %2910 = vmatpush1.msra.mxu0 0.0
  %2911 = vmatprep.subr.mxu0 0.0
  %2912 = vmatpush1.msra.mxu0 0.0
  %2913 = vmatprep.subr.mxu0 0.0
  %2914 = vmatpush1.msra.mxu0 0.0
  %2915 = vmatprep.subr.mxu0 0.0
  %2916 = vmatpush1.msra.mxu0 0.0
  %2917 = vmatprep.subr.mxu0 0.0
  %2918 = vmatpush1.msra.mxu0 0.0
  %2919 = vmatprep.subr.mxu0 0.0
  %2920 = vmatpush1.msra.mxu0 0.0
  %2921 = vmatprep.subr.mxu0 0.0
  %2922 = vmatpush1.msra.mxu0 0.0
  %2923 = vmatprep.subr.mxu0 0.0
  %2924 = vmatpush1.msra.mxu0 0.0
  %2925 = vmatprep.subr.mxu0 0.0
  %2926 = vmatpush1.msra.mxu0 0.0
  %2927 = vmatprep.subr.mxu0 0.0
  %2928 = vmatpush1.msra.mxu0 0.0
  %2929 = vmatprep.subr.mxu0 0.0
  %2930 = vmatpush1.msra.mxu0 0.0
  %2931 = vmatprep.subr.mxu0 0.0
  %2932 = vmatpush1.msra.mxu0 0.0
  %2933 = vmatprep.subr.mxu0 0.0
  %2934 = vmatpush1.msra.mxu0 0.0
  %2935 = vmatprep.subr.mxu0 0.0
  %2936 = vmatpush1.msra.mxu0 0.0
  %2937 = vmatprep.subr.mxu0 0.0
  %2938 = vmatpush1.msra.mxu0 0.0
  %2939 = vmatprep.subr.mxu0 0.0
  %2940 = vmatpush1.msra.mxu0 0.0
  %2941 = vmatprep.subr.mxu0 0.0
  %2942 = vmatpush1.msra.mxu0 0.0
  %2943 = vmatprep.subr.mxu0 0.0
  %2944 = vmatpush1.msra.mxu0 0.0
  %2945 = vmatprep.mubr.f32.mxu0 0.0
  %2946 = vmatmul.mubr.f32.gmra.mrb[0].mxu0 %v714
  %v2947 = vpop.f32.mrb[0].mxu0
  %v2948 = vadd.f32 0.0, %v2947
  %v2949 = vpop.f32.mrb[0].mxu0
  %2950 = vmatprep.mubr.f32.mxu0 0.0
  %2951 = vmatmul.mubr.f32.gmra.mrb[0].mxu0 %v717
  %v2952 = vpop.f32.mrb[0].mxu0
  %v2953 = vadd.f32 0.0, %v2952
  %v2954 = vpop.f32.mrb[0].mxu0
  %2955 = vdwg.mxu0
  %v2956 = vadd.f32 %v2879, %v2948
  %v2957 = vadd.f32 %v2880, %v2953
  %2958 = vrot.lane.b32.xlu0 %v436, 119
  %v2959 = vpop.permute.xlu0 %2958
  %2960 = vrot.lane.b32.xlu0 %v437, 119
  %v2961 = vpop.permute.xlu0 %2960
  %2962 = vrot.lane.b32.xlu0 %v438, 119
  %v2963 = vpop.permute.xlu0 %2962
  %2964 = vrot.lane.b32.xlu0 %v439, 119
  %v2965 = vpop.permute.xlu0 %2964
  %vm2966 = vmand %vm23, %vm25
  %v2967 = vsel %vm2966, 1, 0
  %vm2968 = vcmp.eq.s32.totalorder %v2967, 1
  %v2969 = vsel %vm2968, %v2959, 0.0
  %v2970 = vsel %vm2968, %v2961, 0.0
  %v2971 = vsel %vm2968, %v2963, 0.0
  %v2972 = vsel %vm2968, %v2965, 0.0
  %2973 = vmatprep.subr.mxu0 0.0
  %2974 = vmatpush1.msra.mxu0 %v2969
  %2975 = vmatprep.subr.mxu0 0.0
  %2976 = vmatpush1.msra.mxu0 %v2970
  %2977 = vmatprep.subr.mxu0 0.0
  %2978 = vmatpush1.msra.mxu0 %v2971
  %2979 = vmatprep.subr.mxu0 0.0
  %2980 = vmatpush1.msra.mxu0 %v2972
  %2981 = vmatprep.subr.mxu0 0.0
  %2982 = vmatpush1.msra.mxu0 0.0
  %2983 = vmatprep.subr.mxu0 0.0
  %2984 = vmatpush1.msra.mxu0 0.0
  %2985 = vmatprep.subr.mxu0 0.0
  %2986 = vmatpush1.msra.mxu0 0.0
  %2987 = vmatprep.subr.mxu0 0.0
  %2988 = vmatpush1.msra.mxu0 0.0
  %2989 = vmatprep.subr.mxu0 0.0
  %2990 = vmatpush1.msra.mxu0 0.0
  %2991 = vmatprep.subr.mxu0 0.0
  %2992 = vmatpush1.msra.mxu0 0.0
  %2993 = vmatprep.subr.mxu0 0.0
  %2994 = vmatpush1.msra.mxu0 0.0
  %2995 = vmatprep.subr.mxu0 0.0
  %2996 = vmatpush1.msra.mxu0 0.0
  %2997 = vmatprep.subr.mxu0 0.0
  %2998 = vmatpush1.msra.mxu0 0.0
  %2999 = vmatprep.subr.mxu0 0.0
  %3000 = vmatpush1.msra.mxu0 0.0
  %3001 = vmatprep.subr.mxu0 0.0
  %3002 = vmatpush1.msra.mxu0 0.0
  %3003 = vmatprep.subr.mxu0 0.0
  %3004 = vmatpush1.msra.mxu0 0.0
  %3005 = vmatprep.subr.mxu0 0.0
  %3006 = vmatpush1.msra.mxu0 0.0
  %3007 = vmatprep.subr.mxu0 0.0
  %3008 = vmatpush1.msra.mxu0 0.0
  %3009 = vmatprep.subr.mxu0 0.0
  %3010 = vmatpush1.msra.mxu0 0.0
  %3011 = vmatprep.subr.mxu0 0.0
  %3012 = vmatpush1.msra.mxu0 0.0
  %3013 = vmatprep.subr.mxu0 0.0
  %3014 = vmatpush1.msra.mxu0 0.0
  %3015 = vmatprep.subr.mxu0 0.0
  %3016 = vmatpush1.msra.mxu0 0.0
  %3017 = vmatprep.subr.mxu0 0.0
  %3018 = vmatpush1.msra.mxu0 0.0
  %3019 = vmatprep.subr.mxu0 0.0
  %3020 = vmatpush1.msra.mxu0 0.0
  %3021 = vmatprep.subr.mxu0 0.0
  %3022 = vmatpush1.msra.mxu0 0.0
  %3023 = vmatprep.subr.mxu0 0.0
  %3024 = vmatpush1.msra.mxu0 0.0
  %3025 = vmatprep.subr.mxu0 0.0
  %3026 = vmatpush1.msra.mxu0 0.0
  %3027 = vmatprep.subr.mxu0 0.0
  %3028 = vmatpush1.msra.mxu0 0.0
  %3029 = vmatprep.subr.mxu0 0.0
  %3030 = vmatpush1.msra.mxu0 0.0
  %3031 = vmatprep.subr.mxu0 0.0
  %3032 = vmatpush1.msra.mxu0 0.0
  %3033 = vmatprep.subr.mxu0 0.0
  %3034 = vmatpush1.msra.mxu0 0.0
  %3035 = vmatprep.subr.mxu0 0.0
  %3036 = vmatpush1.msra.mxu0 0.0
  %3037 = vmatprep.mubr.f32.mxu0 0.0
  %3038 = vmatmul.mubr.f32.gmra.mrb[0].mxu0 %v800
  %v3039 = vpop.f32.mrb[0].mxu0
  %v3040 = vadd.f32 0.0, %v3039
  %v3041 = vpop.f32.mrb[0].mxu0
  %3042 = vmatprep.mubr.f32.mxu0 0.0
  %3043 = vmatmul.mubr.f32.gmra.mrb[0].mxu0 %v803
  %v3044 = vpop.f32.mrb[0].mxu0
  %v3045 = vadd.f32 0.0, %v3044
  %v3046 = vpop.f32.mrb[0].mxu0
  %3047 = vdwg.mxu0
  %v3048 = vadd.f32 %v2956, %v3040
  %v3049 = vadd.f32 %v2957, %v3045
  %v3050 = vmax.f32 %v2344, %v3048
  %v3051 = vmax.f32 %v2345, %v3049
  %v3052 = vld [vmem:[%s2] sm:$0xff]
  %v3053 = vld [vmem:[%s2 + $0x8] sm:$0xff]
  %3055 = vset.pattern.permute.xlu0 0
  %3056 = vperm.xlu0 %3055, %v3052
  %v3057 = vpop.permute.xlu0 %3056
  %3060 = vset.pattern.permute.xlu0 0
  %3061 = vperm.xlu0 %3060, %v3053
  %v3062 = vpop.permute.xlu0 %3061
  %v3064 = vadd.f32 %v3050, %v3057
  %v3065 = vadd.f32 %v3051, %v3062
  %v3066 = vtanh.pop %v3064
  %v3067 = vtanh.pop %v3065
  %3068 = vst [vmem:[%s3] sm:$0xff] %v3066
  %3069 = vst [vmem:[%s3 + $0x8] sm:$0xff] %v3067
  // Predicated region
  $region14: #{net_width_forward.4} parent=0 // pred_check
    _
  $region15: #{net_width_forward.4} parent=0 // pred_check_branch
    %3071 = sbr.rel (0) target = $region17
  $region16: #{net_width_forward.4} parent=0 // pred_region
    _
  $region17: #{net_width_forward.4} parent=0 // pred_fallthru
    _
  // Predicated region
  $region18: #{net_width_forward.4} parent=0 // pred_check
    _
  $region19: #{net_width_forward.4} parent=0 // pred_check_branch
    %3073 = sbr.rel (0) target = $region21
  $region20: #{net_width_forward.4} parent=0 // pred_region
    _
  $region21: #{net_width_forward.4} parent=0 // pred_fallthru
    _

// kernel: net_width_forward.3
$region0: #{net_width_forward.3}
  #allocation0 [shape = 'u32[]', space=smem, size = 0x4, offset = 0x4, fixed_abs, tag = 'smem constant byte address 0x4 - core index']
  #allocation1 [shape = 'u32[144,128]{1,0:T(1,128)}', space=vmem, size = 0x12000, scoped, tag = 'internal scratch']
  %s0 = inlined_call_operand.vmem [shape: f32[4,8,512], index: 0, kind: input, shape index: {}]
  %s1 = inlined_call_operand.vmem [shape: f32[3,3,32,8], index: 1, kind: input, shape index: {}]
  %s2 = inlined_call_operand.vmem [shape: f32[32,1], index: 2, kind: input, shape index: {}]
  %s3 = inlined_call_operand.vmem [shape: f32[32,512], index: 3, kind: output, shape index: {}]
  %s4 = sld [smem:[#allocation0]]
  $region87: #{net_width_forward.3} parent=0
    _
  %s6 = ssub.s32 1, %s4
  %s7 = scalar_select 0, %s6, %s4
  $region1: #{net_width_forward.3} parent=0
    #allocation2 [shape = 'u8[65536]{0}', space=vmem, size = 0x10000, scoped, tag = 'input window, operand 0']
    #allocation3 [shape = 'u8[65536]{0}', space=vmem, size = 0x10000, scoped, tag = 'output window, operand 0']
    loop: start=0, step=1, limit=4
    $region2: #{net_width_forward.3} parent=1 // loop_pre_header
      _
    $region3: #{net_width_forward.3} parent=1 // loop_header
      %s9 = sphi 0, %s13
      %p10 = scmp.ge.s32.totalorder %s9, 4
      %s19 = sphi 0, %s21
      %s22 = sphi 0, %s19
      %s23 = sphi 0, %s22
      %s39 = sphi 0, %s23
      %s43 = sphi 0, %s43
      %s45 = sphi 0, %s43
      %s46 = sphi 0, %s45
      %s60 = sphi 0, %s46
      %s64 = sphi 0, %s64
      %s66 = sphi 0, %s64
      %s67 = sphi 0, %s66
      %s81 = sphi 0, %s67
      %s87 = sphi 0, %s89
      %s90 = sphi 0, %s87
      %s91 = sphi 0, %s90
      %s107 = sphi 0, %s91
    $region4: #{net_width_forward.3} parent=1 // loop_header_branch
      %12 = sbr.rel (%p10) target = $region8
    $region5: #{net_width_forward.3} parent=1 // loop_body
      %s14 = ssub.s32 %s9, 1
      %s15 = ssub.s32 %s9, 2
      %s16 = sadd.s32 %s9, 1
      %s17 = ssub.s32 %s9, %s16
      %p18 = scmp.eq.s32.totalorder %s17, 0
      %s20 = sadd.s32 %s19, 1
      %s21 = scalar_select %p18, %s19, %s20
      %p24 = pneg %p18
      %p25 = scmp.eq.s32.totalorder %s9, 1
      %p26 = por %p24, %p25
      %p27 = scmp.ne.s32.totalorder %s19, %s22
      %p28 = scmp.eq.s32.totalorder %s9, 0
      %p29 = por %p27, %p28
      %p30 = scmp.ne.s32.totalorder %s19, %s22
      %p31 = scmp.eq.s32.totalorder %s14, 1
      %p32 = por %p30, %p31
      %p33 = scmp.ne.s32.totalorder %s22, %s23
      %p34 = scmp.eq.s32.totalorder %s14, 0
      %p35 = por %p33, %p34
      %p36 = scmp.ne.s32.totalorder %s22, %s23
      %p37 = scmp.eq.s32.totalorder %s15, 1
      %p38 = por %p36, %p37
      %p40 = scmp.ne.s32.totalorder %s23, %s39
      %p41 = scmp.eq.s32.totalorder %s15, 0
      %p42 = por %p40, %p41
      %s44 = sadd.s32 %s43, 1
      %p47 = scmp.eq.s32.totalorder %s9, 1
      %p48 = scmp.ne.s32.totalorder %s43, %s45
      %p49 = scmp.eq.s32.totalorder %s9, 0
      %p50 = por %p48, %p49
      %p51 = scmp.ne.s32.totalorder %s43, %s45
      %p52 = scmp.eq.s32.totalorder %s14, 1
      %p53 = por %p51, %p52
      %p54 = scmp.ne.s32.totalorder %s45, %s46
      %p55 = scmp.eq.s32.totalorder %s14, 0
      %p56 = por %p54, %p55
      %p57 = scmp.ne.s32.totalorder %s45, %s46
      %p58 = scmp.eq.s32.totalorder %s15, 1
      %p59 = por %p57, %p58
      %p61 = scmp.ne.s32.totalorder %s46, %s60
      %p62 = scmp.eq.s32.totalorder %s15, 0
      %p63 = por %p61, %p62
      %s65 = sadd.s32 %s64, 1
      %p68 = scmp.eq.s32.totalorder %s9, 1
      %p69 = scmp.ne.s32.totalorder %s64, %s66
      %p70 = scmp.eq.s32.totalorder %s9, 0
      %p71 = por %p69, %p70
      %p72 = scmp.ne.s32.totalorder %s64, %s66
      %p73 = scmp.eq.s32.totalorder %s14, 1
      %p74 = por %p72, %p73
      %p75 = scmp.ne.s32.totalorder %s66, %s67
      %p76 = scmp.eq.s32.totalorder %s14, 0
      %p77 = por %p75, %p76
      %p78 = scmp.ne.s32.totalorder %s66, %s67
      %p79 = scmp.eq.s32.totalorder %s15, 1
      %p80 = por %p78, %p79
      %p82 = scmp.ne.s32.totalorder %s67, %s81
      %p83 = scmp.eq.s32.totalorder %s15, 0
      %p84 = por %p82, %p83
      %s85 = ssub.s32 %s9, %s16
      %p86 = scmp.eq.s32.totalorder %s85, 0
      %s88 = sadd.s32 %s87, 1
      %s89 = scalar_select %p86, %s87, %s88
      %p92 = pneg %p86
      %p93 = scmp.eq.s32.totalorder %s9, 1
      %p94 = por %p92, %p93
      %p95 = scmp.ne.s32.totalorder %s87, %s90
      %p96 = scmp.eq.s32.totalorder %s9, 0
      %p97 = por %p95, %p96
      %p98 = scmp.ne.s32.totalorder %s87, %s90
      %p99 = scmp.eq.s32.totalorder %s14, 1
      %p100 = por %p98, %p99
      %p101 = scmp.ne.s32.totalorder %s90, %s91
      %p102 = scmp.eq.s32.totalorder %s14, 0
      %p103 = por %p101, %p102
      %p104 = scmp.ne.s32.totalorder %s90, %s91
      %p105 = scmp.eq.s32.totalorder %s15, 1
      %p106 = por %p104, %p105
      %p108 = scmp.ne.s32.totalorder %s91, %s107
      %p109 = scmp.eq.s32.totalorder %s15, 0
      %p110 = por %p108, %p109
      %p111 = scmp.le.s32.totalorder 1, %s9
      %p112 = scmp.lt.s32.totalorder %s9, 3
      %p113 = pnand %p111, %p112
      %p114 = pneg %p113
      // Predicated region
      $region9: #{net_width_forward.3} parent=5 // pred_check
        _
      $region10: #{net_width_forward.3} parent=5 // pred_check_branch
        %116 = sbr.rel (%p113) target = $region12
      $region11: #{net_width_forward.3} parent=5 // pred_region
        %s117 = ssub.s32 %s9, 1
        // Predicated region
        $region13: #{net_width_forward.3} parent=11 // pred_check
          %p118 = pneg %p56
        $region14: #{net_width_forward.3} parent=11 // pred_check_branch
          %120 = sbr.rel (%p118) target = $region16
        $region15: #{net_width_forward.3} parent=11 // pred_region
          _
        $region16: #{net_width_forward.3} parent=11 // pred_fallthru
          _
        // Predicated region
        $region17: #{net_width_forward.3} parent=11 // pred_check
          %p121 = pneg %p77
        $region18: #{net_width_forward.3} parent=11 // pred_check_branch
          %123 = sbr.rel (%p121) target = $region20
        $region19: #{net_width_forward.3} parent=11 // pred_region
          _
        $region20: #{net_width_forward.3} parent=11 // pred_fallthru
          _
      $region12: #{net_width_forward.3} parent=5 // pred_fallthru
        _
      %p124 = scmp.lt.s32.totalorder %s9, 2
      // Predicated region
      $region21: #{net_width_forward.3} parent=5 // pred_check
        %p125 = pneg %p124
      $region22: #{net_width_forward.3} parent=5 // pred_check_branch
        %127 = sbr.rel (%p125) target = $region24
      $region23: #{net_width_forward.3} parent=5 // pred_region
        // Predicated region
        $region25: #{net_width_forward.3} parent=23 // pred_check
          %p128 = pneg %p29
        $region26: #{net_width_forward.3} parent=23 // pred_check_branch
          %130 = sbr.rel (%p128) target = $region28
        $region27: #{net_width_forward.3} parent=23 // pred_region
          %s131 = sand.u32 %s19, 1
          %s132 = sand.u32 %s19, 1
          %s133 = smul.addr %s132, 64
          %s134 = scalar_lea.vmem [#allocation2], %s133
          %s135 = smul.u32 2, %s9
          %s136 = smul.addr %s135, 8
          %s137 = scalar_lea.vmem %s0, %s136
          // Predicated region
          $region29: #{net_width_forward.3} parent=27 // pred_check
            _
          $region30: #{net_width_forward.3} parent=27 // pred_check_branch
            %139 = sbr.rel (0) target = $region32
          $region31: #{net_width_forward.3} parent=27 // pred_region
            // Predicated region
            $region33: #{net_width_forward.3} parent=31 // pred_check
              _
            $region34: #{net_width_forward.3} parent=31 // pred_check_branch
              %141 = sbr.rel (0) target = $region36
            $region35: #{net_width_forward.3} parent=31 // pred_region
              loop: start=0, step=1, limit=1
              $region37: #{net_width_forward.3} parent=35 // loop_pre_header
                _
              $region38: #{net_width_forward.3} parent=35 // loop_header
                %s143 = sphi 0, %s147
                %p144 = scmp.ge.s32.totalorder %s143, 1
                %s148 = sphi %s137, %s137
                %s149 = sphi %s134, %s134
              $region39: #{net_width_forward.3} parent=35 // loop_header_branch
                %146 = sbr.rel (%p144) target = $region43
              $region40: #{net_width_forward.3} parent=35 // loop_body
                %v150 = vld [vmem:[%s148] sm:$0xff]
                %151 = vst [vmem:[%s149] sm:$0xff] %v150
                %v152 = vld [vmem:[%s148 + $0x8] sm:$0xff]
                %153 = vst [vmem:[%s149 + $0x8] sm:$0xff] %v152
                %v154 = vld [vmem:[%s148 + $0x20] sm:$0xff]
                %155 = vst [vmem:[%s149 + $0x10] sm:$0xff] %v154
                %v156 = vld [vmem:[%s148 + $0x28] sm:$0xff]
                %157 = vst [vmem:[%s149 + $0x18] sm:$0xff] %v156
                %v158 = vld [vmem:[%s148 + $0x40] sm:$0xff]
                %159 = vst [vmem:[%s149 + $0x20] sm:$0xff] %v158
                %v160 = vld [vmem:[%s148 + $0x48] sm:$0xff]
                %161 = vst [vmem:[%s149 + $0x28] sm:$0xff] %v160
                %v162 = vld [vmem:[%s148 + $0x60] sm:$0xff]
                %163 = vst [vmem:[%s149 + $0x30] sm:$0xff] %v162
                %v164 = vld [vmem:[%s148 + $0x68] sm:$0xff]
                %165 = vst [vmem:[%s149 + $0x38] sm:$0xff] %v164
              $region41: #{net_width_forward.3} parent=35 // loop_footer
                %s147 = sadd.s32 1, %s143
              $region42: #{net_width_forward.3} parent=35 // loop_footer_branch
                %142 = sbr.rel target = $region38
              $region43: #{net_width_forward.3} parent=35 // loop_exit
                _
            $region36: #{net_width_forward.3} parent=31 // pred_fallthru
              _
            // Predicated region
            $region44: #{net_width_forward.3} parent=31 // pred_check
              _
            $region45: #{net_width_forward.3} parent=31 // pred_check_branch
              %167 = sbr.rel target = $region47
            $region46: #{net_width_forward.3} parent=31 // pred_region
              _
            $region47: #{net_width_forward.3} parent=31 // pred_fallthru
              _
          $region32: #{net_width_forward.3} parent=27 // pred_fallthru
            _
          %168 = vnop
        $region28: #{net_width_forward.3} parent=23 // pred_fallthru
          _
      $region24: #{net_width_forward.3} parent=5 // pred_fallthru
        _
      %p169 = scmp.le.s32.totalorder 1, %s9
      %p170 = scmp.lt.s32.totalorder %s9, 3
      %p171 = pnand %p169, %p170
      %p172 = pneg %p171
      // Predicated region
      $region48: #{net_width_forward.3} parent=5 // pred_check
        _
      $region49: #{net_width_forward.3} parent=5 // pred_check_branch
        %174 = sbr.rel (%p171) target = $region51
      $region50: #{net_width_forward.3} parent=5 // pred_region
        %s175 = ssub.s32 %s9, 1
        %s176 = sand.u32 %s22, 1
        %s177 = sand.u32 %s22, 1
        %s178 = smul.addr %s177, 64
        %s179 = scalar_lea.vmem [#allocation2], %s178
        // Predicated region
        $region52: #{net_width_forward.3} parent=50 // pred_check
          %p180 = pneg %p35
        $region53: #{net_width_forward.3} parent=50 // pred_check_branch
          %182 = sbr.rel (%p180) target = $region55
        $region54: #{net_width_forward.3} parent=50 // pred_region
          _
        $region55: #{net_width_forward.3} parent=50 // pred_fallthru
          _
        %s183 = sand.u32 %s22, 1
        %s184 = sand.u32 %s22, 1
        %s185 = smul.addr %s184, 64
        %s186 = scalar_lea.vmem [#allocation2], %s185
        %p187 = pneg %p35
        %p188 = pneg %p32
        %p189 = pneg %p56
        %p190 = pneg %p53
        %p191 = pneg %p77
        %p192 = pneg %p74
        %p193 = pneg %p103
        %p194 = pneg %p100
        %s195 = sand.u32 %s90, 1
        %s196 = sand.u32 %s90, 1
        %s197 = smul.addr %s196, 64
        %s198 = scalar_lea.vmem [#allocation3], %s197
        %s199 = smul.u32 2, %s14
        %s200 = smul.u32 2, %s14
        %s201 = smul.u32 %s14, 256
        %v202 = vlaneseq
        %v203 = vand.u32 %v202, 127
        %v204 = vadd.s32 %v203, 128
        %v205 = vstv %s201
        %v206 = vadd.s32 %v205, %v203
        %v207 = vadd.s32 %v205, %v204
        %v208 = vand.u32 %v206, 15
        %v209 = vand.u32 %v207, 15
        %v210 = vshra.s32 %v206, 4
        %v211 = vshra.s32 %v207, 4
        %v212 = vand.u32 %v210, 15
        %v213 = vand.u32 %v211, 15
        %vm214 = vcmp.gt.s32.totalorder %v212, 0
        %vm215 = vcmp.gt.s32.totalorder %v213, 0
        %vm216 = vcmp.lt.s32.totalorder %v212, 15
        %vm217 = vcmp.lt.s32.totalorder %v213, 15
        %vm218 = vcmp.gt.s32.totalorder %v208, 0
        %vm219 = vcmp.gt.s32.totalorder %v209, 0
        %vm220 = vcmp.lt.s32.totalorder %v208, 15
        %vm221 = vcmp.lt.s32.totalorder %v209, 15
        %s222 = scalar_lea.vmem %s179, 48 [#allocation2]
        %v223 = vld [vmem:[%s222] sm:$0xff]
        %v224 = vld [vmem:[%s222 + $0x8] sm:$0xff]
        %225 = vrot.lane.b32.xlu0 %v223, 17
        %v226 = vpop.permute.xlu0 %225
        %227 = vrot.lane.b32.xlu0 %v224, 17
        %v228 = vpop.permute.xlu0 %227
        %vm229 = vcmp.lt.s32.totalorder %v203, 17
        %v230 = vsel %vm229, %v226, %v228
        %v231 = vsel %vm229, %v228, %v226
        %vm232 = vmand %vm214, %vm218
        %vm233 = vmand %vm215, %vm219
        %v234 = vsel %vm232, 1, 0
        %v235 = vsel %vm233, 1, 0
        %vm236 = vcmp.eq.s32.totalorder %v234, 1
        %vm237 = vcmp.eq.s32.totalorder %v235, 1
        %v238 = vsel %vm236, %v231, 0.0
        %v239 = vsel %vm237, %v230, 0.0
        %v240 = vld [vmem:[%s1] sm:$0xff]
        %v241 = vld [vmem:[%s1 + $0x8] sm:$0xff]
        %v242 = vld [vmem:[%s1 + $0x10] sm:$0xff]
        %v243 = vld [vmem:[%s1 + $0x18] sm:$0xff]
        %s244 = scalar_lea.vmem %s179, 32 [#allocation2]
        %v245 = vld [vmem:[%s244] sm:$0xff]
        %v246 = vld [vmem:[%s244 + $0x8] sm:$0xff]
        %247 = vrot.lane.b32.xlu0 %v245, 16
        %v248 = vpop.permute.xlu0 %247
        %249 = vrot.lane.b32.xlu0 %v246, 16
        %v250 = vpop.permute.xlu0 %249
        %vm251 = vcmp.lt.s32.totalorder %v203, 16
        %v252 = vsel %vm251, %v248, %v250
        %v253 = vsel %vm251, %v250, %v248
        %v254 = vsel %vm214, 1, 0
        %v255 = vsel %vm215, 1, 0
        %vm256 = vcmp.eq.s32.totalorder %v254, 1
        %vm257 = vcmp.eq.s32.totalorder %v255, 1
        %v258 = vsel %vm256, %v253, 0.0
        %v259 = vsel %vm257, %v252, 0.0
        %s260 = scalar_lea.vmem %s1, 32
        %v261 = vld [vmem:[%s260] sm:$0xff]
        %v262 = vld [vmem:[%s260 + $0x8] sm:$0xff]
        %v263 = vld [vmem:[%s260 + $0x10] sm:$0xff]
        %v264 = vld [vmem:[%s260 + $0x18] sm:$0xff]
        %vm265 = vcmask 64512
        %v267 = vsel %vm265, %v261, 0
        %v270 = vsel %vm265, %v262, 0
        %v273 = vsel %vm265, %v263, 0
        %v276 = vsel %vm265, %v264, 0
        %278 = vmatprep.subr.mxu0 %v259
        %279 = vmatpush1.msra.mxu0 %v258
        %280 = vmatprep.subr.mxu0 0.0
        %281 = vmatpush1.msra.mxu0 0.0
        %282 = vmatprep.subr.mxu0 0.0
        %283 = vmatpush1.msra.mxu0 0.0
        %284 = vmatprep.subr.mxu0 0.0
        %285 = vmatpush1.msra.mxu0 0.0
        %286 = vmatprep.subr.mxu0 0.0
        %287 = vmatpush1.msra.mxu0 0.0
        %288 = vmatprep.subr.mxu0 0.0
        %289 = vmatpush1.msra.mxu0 0.0
        %290 = vmatprep.subr.mxu0 0.0
        %291 = vmatpush1.msra.mxu0 0.0
        %292 = vmatprep.subr.mxu0 0.0
        %293 = vmatpush1.msra.mxu0 0.0
        %294 = vmatprep.subr.mxu0 0.0
        %295 = vmatpush1.msra.mxu0 0.0
        %296 = vmatprep.subr.mxu0 0.0
        %297 = vmatpush1.msra.mxu0 0.0
        %298 = vmatprep.subr.mxu0 0.0
        %299 = vmatpush1.msra.mxu0 0.0
        %300 = vmatprep.subr.mxu0 0.0
        %301 = vmatpush1.msra.mxu0 0.0
        %302 = vmatprep.subr.mxu0 0.0
        %303 = vmatpush1.msra.mxu0 0.0
        %304 = vmatprep.subr.mxu0 0.0
        %305 = vmatpush1.msra.mxu0 0.0
        %306 = vmatprep.subr.mxu0 0.0
        %307 = vmatpush1.msra.mxu0 0.0
        %308 = vmatprep.subr.mxu0 0.0
        %309 = vmatpush1.msra.mxu0 0.0
        %310 = vmatprep.subr.mxu0 0.0
        %311 = vmatpush1.msra.mxu0 0.0
        %312 = vmatprep.subr.mxu0 0.0
        %313 = vmatpush1.msra.mxu0 0.0
        %314 = vmatprep.subr.mxu0 0.0
        %315 = vmatpush1.msra.mxu0 0.0
        %316 = vmatprep.subr.mxu0 0.0
        %317 = vmatpush1.msra.mxu0 0.0
        %318 = vmatprep.subr.mxu0 0.0
        %319 = vmatpush1.msra.mxu0 0.0
        %320 = vmatprep.subr.mxu0 0.0
        %321 = vmatpush1.msra.mxu0 0.0
        %322 = vmatprep.subr.mxu0 0.0
        %323 = vmatpush1.msra.mxu0 0.0
        %324 = vmatprep.subr.mxu0 0.0
        %325 = vmatpush1.msra.mxu0 0.0
        %326 = vmatprep.subr.mxu0 0.0
        %327 = vmatpush1.msra.mxu0 0.0
        %328 = vmatprep.subr.mxu0 0.0
        %329 = vmatpush1.msra.mxu0 0.0
        %330 = vmatprep.subr.mxu0 0.0
        %331 = vmatpush1.msra.mxu0 0.0
        %332 = vmatprep.subr.mxu0 0.0
        %333 = vmatpush1.msra.mxu0 0.0
        %334 = vmatprep.subr.mxu0 0.0
        %335 = vmatpush1.msra.mxu0 0.0
        %336 = vmatprep.subr.mxu0 0.0
        %337 = vmatpush1.msra.mxu0 0.0
        %338 = vmatprep.subr.mxu0 0.0
        %339 = vmatpush1.msra.mxu0 0.0
        %340 = vmatprep.subr.mxu0 0.0
        %341 = vmatpush1.msra.mxu0 0.0
        %342 = vmatprep.mubr.f32.mxu0 0.0
        %343 = vmatmul.mubr.f32.gmra.mrb[0].mxu0 %v267
        %v344 = vpop.f32.mrb[0].mxu0
        %v345 = vadd.f32 0.0, %v344
        %v346 = vpop.f32.mrb[0].mxu0
        %v347 = vadd.f32 0.0, %v346
        %348 = vmatprep.mubr.f32.mxu0 0.0
        %349 = vmatmul.mubr.f32.gmra.mrb[0].mxu0 %v270
        %v350 = vpop.f32.mrb[0].mxu0
        %v351 = vadd.f32 0.0, %v350
        %v352 = vpop.f32.mrb[0].mxu0
        %v353 = vadd.f32 0.0, %v352
        %354 = vmatprep.mubr.f32.mxu0 0.0
        %355 = vmatmul.mubr.f32.gmra.mrb[0].mxu0 %v273
        %v356 = vpop.f32.mrb[0].mxu0
        %v357 = vadd.f32 0.0, %v356
        %v358 = vpop.f32.mrb[0].mxu0
        %v359 = vadd.f32 0.0, %v358
        %360 = vmatprep.mubr.f32.mxu0 0.0
        %361 = vmatmul.mubr.f32.gmra.mrb[0].mxu0 %v276
        %v362 = vpop.f32.mrb[0].mxu0
        %v363 = vadd.f32 0.0, %v362
        %v364 = vpop.f32.mrb[0].mxu0
        %v365 = vadd.f32 0.0, %v364
        %366 = vdwg.mxu0
        %v368 = vsel %vm265, %v240, 0
        %v371 = vsel %vm265, %v241, 0
        %v374 = vsel %vm265, %v242, 0
        %v377 = vsel %vm265, %v243, 0
        %379 = vmatprep.subr.mxu0 %v239
        %380 = vmatpush1.msra.mxu0 %v238
        %381 = vmatprep.subr.mxu0 0.0
        %382 = vmatpush1.msra.mxu0 0.0
        %383 = vmatprep.subr.mxu0 0.0
        %384 = vmatpush1.msra.mxu0 0.0
        %385 = vmatprep.subr.mxu0 0.0
        %386 = vmatpush1.msra.mxu0 0.0
        %387 = vmatprep.subr.mxu0 0.0
        %388 = vmatpush1.msra.mxu0 0.0
        %389 = vmatprep.subr.mxu0 0.0
        %390 = vmatpush1.msra.mxu0 0.0
        %391 = vmatprep.subr.mxu0 0.0
        %392 = vmatpush1.msra.mxu0 0.0
        %393 = vmatprep.subr.mxu0 0.0
        %394 = vmatpush1.msra.mxu0 0.0
        %395 = vmatprep.subr.mxu0 0.0
        %396 = vmatpush1.msra.mxu0 0.0
        %397 = vmatprep.subr.mxu0 0.0
        %398 = vmatpush1.msra.mxu0 0.0
        %399 = vmatprep.subr.mxu0 0.0
        %400 = vmatpush1.msra.mxu0 0.0
        %401 = vmatprep.subr.mxu0 0.0
        %402 = vmatpush1.msra.mxu0 0.0
        %403 = vmatprep.subr.mxu0 0.0
        %404 = vmatpush1.msra.mxu0 0.0
        %405 = vmatprep.subr.mxu0 0.0
        %406 = vmatpush1.msra.mxu0 0.0
        %407 = vmatprep.subr.mxu0 0.0
        %408 = vmatpush1.msra.mxu0 0.0
        %409 = vmatprep.subr.mxu0 0.0
        %410 = vmatpush1.msra.mxu0 0.0
        %411 = vmatprep.subr.mxu0 0.0
        %412 = vmatpush1.msra.mxu0 0.0
        %413 = vmatprep.subr.mxu0 0.0
        %414 = vmatpush1.msra.mxu0 0.0
        %415 = vmatprep.subr.mxu0 0.0
        %416 = vmatpush1.msra.mxu0 0.0
        %417 = vmatprep.subr.mxu0 0.0
        %418 = vmatpush1.msra.mxu0 0.0
        %419 = vmatprep.subr.mxu0 0.0
        %420 = vmatpush1.msra.mxu0 0.0
        %421 = vmatprep.subr.mxu0 0.0
        %422 = vmatpush1.msra.mxu0 0.0
        %423 = vmatprep.subr.mxu0 0.0
        %424 = vmatpush1.msra.mxu0 0.0
        %425 = vmatprep.subr.mxu0 0.0
        %426 = vmatpush1.msra.mxu0 0.0
        %427 = vmatprep.subr.mxu0 0.0
        %428 = vmatpush1.msra.mxu0 0.0
        %429 = vmatprep.subr.mxu0 0.0
        %430 = vmatpush1.msra.mxu0 0.0
        %431 = vmatprep.subr.mxu0 0.0
        %432 = vmatpush1.msra.mxu0 0.0
        %433 = vmatprep.subr.mxu0 0.0
        %434 = vmatpush1.msra.mxu0 0.0
        %435 = vmatprep.subr.mxu0 0.0
        %436 = vmatpush1.msra.mxu0 0.0
        %437 = vmatprep.subr.mxu0 0.0
        %438 = vmatpush1.msra.mxu0 0.0
        %439 = vmatprep.subr.mxu0 0.0
        %440 = vmatpush1.msra.mxu0 0.0
        %441 = vmatprep.subr.mxu0 0.0
        %442 = vmatpush1.msra.mxu0 0.0
        %443 = vmatprep.mubr.f32.mxu0 0.0
        %444 = vmatmul.mubr.f32.gmra.mrb[0].mxu0 %v368
        %v445 = vpop.f32.mrb[0].mxu0
        %v446 = vadd.f32 %v345, %v445
        %v447 = vpop.f32.mrb[0].mxu0
        %v448 = vadd.f32 %v347, %v447
        %449 = vmatprep.mubr.f32.mxu0 0.0
        %450 = vmatmul.mubr.f32.gmra.mrb[0].mxu0 %v371
        %v451 = vpop.f32.mrb[0].mxu0
        %v452 = vadd.f32 %v351, %v451
        %v453 = vpop.f32.mrb[0].mxu0
        %v454 = vadd.f32 %v353, %v453
        %455 = vmatprep.mubr.f32.mxu0 0.0
        %456 = vmatmul.mubr.f32.gmra.mrb[0].mxu0 %v374
        %v457 = vpop.f32.mrb[0].mxu0
        %v458 = vadd.f32 %v357, %v457
        %v459 = vpop.f32.mrb[0].mxu0
        %v460 = vadd.f32 %v359, %v459
        %461 = vmatprep.mubr.f32.mxu0 0.0
        %462 = vmatmul.mubr.f32.gmra.mrb[0].mxu0 %v377
        %v463 = vpop.f32.mrb[0].mxu0
        %v464 = vadd.f32 %v363, %v463
        %v465 = vpop.f32.mrb[0].mxu0
        %v466 = vadd.f32 %v365, %v465
        %467 = vdwg.mxu0
        %468 = vrot.lane.b32.xlu0 %v223, 16
        %v469 = vpop.permute.xlu0 %468
        %470 = vrot.lane.b32.xlu0 %v224, 16
        %v471 = vpop.permute.xlu0 %470
        %v472 = vsel %vm251, %v469, %v471
        %v473 = vsel %vm251, %v471, %v469
        %v474 = vsel %vm256, %v473, 0.0
        %v475 = vsel %vm257, %v472, 0.0
        %s476 = scalar_lea.vmem %s1, 64
        %v477 = vld [vmem:[%s476] sm:$0xff]
        %v478 = vld [vmem:[%s476 + $0x8] sm:$0xff]
        %v479 = vld [vmem:[%s476 + $0x10] sm:$0xff]
        %v480 = vld [vmem:[%s476 + $0x18] sm:$0xff]
        %v482 = vsel %vm265, %v477, 0
        %v485 = vsel %vm265, %v478, 0
        %v488 = vsel %vm265, %v479, 0
        %v491 = vsel %vm265, %v480, 0
        %493 = vmatprep.subr.mxu0 %v475
        %494 = vmatpush1.msra.mxu0 %v474
        %495 = vmatprep.subr.mxu0 0.0
        %496 = vmatpush1.msra.mxu0 0.0
        %497 = vmatprep.subr.mxu0 0.0
        %498 = vmatpush1.msra.mxu0 0.0
        %499 = vmatprep.subr.mxu0 0.0
        %500 = vmatpush1.msra.mxu0 0.0
        %501 = vmatprep.subr.mxu0 0.0
        %502 = vmatpush1.msra.mxu0 0.0
        %503 = vmatprep.subr.mxu0 0.0
        %504 = vmatpush1.msra.mxu0 0.0
        %505 = vmatprep.subr.mxu0 0.0
        %506 = vmatpush1.msra.mxu0 0.0
        %507 = vmatprep.subr.mxu0 0.0
        %508 = vmatpush1.msra.mxu0 0.0
        %509 = vmatprep.subr.mxu0 0.0
        %510 = vmatpush1.msra.mxu0 0.0
        %511 = vmatprep.subr.mxu0 0.0
        %512 = vmatpush1.msra.mxu0 0.0
        %513 = vmatprep.subr.mxu0 0.0
        %514 = vmatpush1.msra.mxu0 0.0
        %515 = vmatprep.subr.mxu0 0.0
        %516 = vmatpush1.msra.mxu0 0.0
        %517 = vmatprep.subr.mxu0 0.0
        %518 = vmatpush1.msra.mxu0 0.0
        %519 = vmatprep.subr.mxu0 0.0
        %520 = vmatpush1.msra.mxu0 0.0
        %521 = vmatprep.subr.mxu0 0.0
        %522 = vmatpush1.msra.mxu0 0.0
        %523 = vmatprep.subr.mxu0 0.0
        %524 = vmatpush1.msra.mxu0 0.0
        %525 = vmatprep.subr.mxu0 0.0
        %526 = vmatpush1.msra.mxu0 0.0
        %527 = vmatprep.subr.mxu0 0.0
        %528 = vmatpush1.msra.mxu0 0.0
        %529 = vmatprep.subr.mxu0 0.0
        %530 = vmatpush1.msra.mxu0 0.0
        %531 = vmatprep.subr.mxu0 0.0
        %532 = vmatpush1.msra.mxu0 0.0
        %533 = vmatprep.subr.mxu0 0.0
        %534 = vmatpush1.msra.mxu0 0.0
        %535 = vmatprep.subr.mxu0 0.0
        %536 = vmatpush1.msra.mxu0 0.0
        %537 = vmatprep.subr.mxu0 0.0
        %538 = vmatpush1.msra.mxu0 0.0
        %539 = vmatprep.subr.mxu0 0.0
        %540 = vmatpush1.msra.mxu0 0.0
        %541 = vmatprep.subr.mxu0 0.0
        %542 = vmatpush1.msra.mxu0 0.0
        %543 = vmatprep.subr.mxu0 0.0
        %544 = vmatpush1.msra.mxu0 0.0
        %545 = vmatprep.subr.mxu0 0.0
        %546 = vmatpush1.msra.mxu0 0.0
        %547 = vmatprep.subr.mxu0 0.0
        %548 = vmatpush1.msra.mxu0 0.0
        %549 = vmatprep.subr.mxu0 0.0
        %550 = vmatpush1.msra.mxu0 0.0
        %551 = vmatprep.subr.mxu0 0.0
        %552 = vmatpush1.msra.mxu0 0.0
        %553 = vmatprep.subr.mxu0 0.0
        %554 = vmatpush1.msra.mxu0 0.0
        %555 = vmatprep.subr.mxu0 0.0
        %556 = vmatpush1.msra.mxu0 0.0
        %557 = vmatprep.mubr.f32.mxu0 0.0
        %558 = vmatmul.mubr.f32.gmra.mrb[0].mxu0 %v482
        %v559 = vpop.f32.mrb[0].mxu0
        %v560 = vadd.f32 0.0, %v559
        %v561 = vpop.f32.mrb[0].mxu0
        %v562 = vadd.f32 0.0, %v561
        %563 = vmatprep.mubr.f32.mxu0 0.0
        %564 = vmatmul.mubr.f32.gmra.mrb[0].mxu0 %v485
        %v565 = vpop.f32.mrb[0].mxu0
        %v566 = vadd.f32 0.0, %v565
        %v567 = vpop.f32.mrb[0].mxu0
        %v568 = vadd.f32 0.0, %v567
        %569 = vmatprep.mubr.f32.mxu0 0.0
        %570 = vmatmul.mubr.f32.gmra.mrb[0].mxu0 %v488
        %v571 = vpop.f32.mrb[0].mxu0
        %v572 = vadd.f32 0.0, %v571
        %v573 = vpop.f32.mrb[0].mxu0
        %v574 = vadd.f32 0.0, %v573
        %575 = vmatprep.mubr.f32.mxu0 0.0
        %576 = vmatmul.mubr.f32.gmra.mrb[0].mxu0 %v491
        %v577 = vpop.f32.mrb[0].mxu0
        %v578 = vadd.f32 0.0, %v577
        %v579 = vpop.f32.mrb[0].mxu0
        %v580 = vadd.f32 0.0, %v579
        %581 = vdwg.mxu0
        %v582 = vadd.f32 %v446, %v560
        %v583 = vadd.f32 %v448, %v562
        %v584 = vadd.f32 %v452, %v566
        %v585 = vadd.f32 %v454, %v568
        %v586 = vadd.f32 %v458, %v572
        %v587 = vadd.f32 %v460, %v574
        %v588 = vadd.f32 %v464, %v578
        %v589 = vadd.f32 %v466, %v580
        %s590 = scalar_lea.vmem %s179, 16 [#allocation2]
        %v591 = vld [vmem:[%s590] sm:$0xff]
        %v592 = vld [vmem:[%s590 + $0x8] sm:$0xff]
        %593 = vrot.lane.b32.xlu0 %v591, 1
        %v594 = vpop.permute.xlu0 %593
        %595 = vrot.lane.b32.xlu0 %v592, 1
        %v596 = vpop.permute.xlu0 %595
        %vm597 = vcmp.lt.s32.totalorder %v203, 1
        %v598 = vsel %vm597, %v594, %v596
        %v599 = vsel %vm597, %v596, %v594
        %v600 = vsel %vm218, 1, 0
        %v601 = vsel %vm219, 1, 0
        %vm602 = vcmp.eq.s32.totalorder %v600, 1
        %vm603 = vcmp.eq.s32.totalorder %v601, 1
        %v604 = vsel %vm602, %v599, 0.0
        %v605 = vsel %vm603, %v598, 0.0
        %s606 = scalar_lea.vmem %s1, 96
        %v607 = vld [vmem:[%s606] sm:$0xff]
        %v608 = vld [vmem:[%s606 + $0x8] sm:$0xff]
        %v609 = vld [vmem:[%s606 + $0x10] sm:$0xff]
        %v610 = vld [vmem:[%s606 + $0x18] sm:$0xff]
        %v612 = vsel %vm265, %v607, 0
        %v615 = vsel %vm265, %v608, 0
        %v618 = vsel %vm265, %v609, 0
        %v621 = vsel %vm265, %v610, 0
        %623 = vmatprep.subr.mxu0 %v605
        %624 = vmatpush1.msra.mxu0 %v604
        %625 = vmatprep.subr.mxu0 0.0
        %626 = vmatpush1.msra.mxu0 0.0
        %627 = vmatprep.subr.mxu0 0.0
        %628 = vmatpush1.msra.mxu0 0.0
        %629 = vmatprep.subr.mxu0 0.0
        %630 = vmatpush1.msra.mxu0 0.0
        %631 = vmatprep.subr.mxu0 0.0
        %632 = vmatpush1.msra.mxu0 0.0
        %633 = vmatprep.subr.mxu0 0.0
        %634 = vmatpush1.msra.mxu0 0.0
        %635 = vmatprep.subr.mxu0 0.0
        %636 = vmatpush1.msra.mxu0 0.0
        %637 = vmatprep.subr.mxu0 0.0
        %638 = vmatpush1.msra.mxu0 0.0
        %639 = vmatprep.subr.mxu0 0.0
        %640 = vmatpush1.msra.mxu0 0.0
        %641 = vmatprep.subr.mxu0 0.0
        %642 = vmatpush1.msra.mxu0 0.0
        %643 = vmatprep.subr.mxu0 0.0
        %644 = vmatpush1.msra.mxu0 0.0
        %645 = vmatprep.subr.mxu0 0.0
        %646 = vmatpush1.msra.mxu0 0.0
        %647 = vmatprep.subr.mxu0 0.0
        %648 = vmatpush1.msra.mxu0 0.0
        %649 = vmatprep.subr.mxu0 0.0
        %650 = vmatpush1.msra.mxu0 0.0
        %651 = vmatprep.subr.mxu0 0.0
        %652 = vmatpush1.msra.mxu0 0.0
        %653 = vmatprep.subr.mxu0 0.0
        %654 = vmatpush1.msra.mxu0 0.0
        %655 = vmatprep.subr.mxu0 0.0
        %656 = vmatpush1.msra.mxu0 0.0
        %657 = vmatprep.subr.mxu0 0.0
        %658 = vmatpush1.msra.mxu0 0.0
        %659 = vmatprep.subr.mxu0 0.0
        %660 = vmatpush1.msra.mxu0 0.0
        %661 = vmatprep.subr.mxu0 0.0
        %662 = vmatpush1.msra.mxu0 0.0
        %663 = vmatprep.subr.mxu0 0.0
        %664 = vmatpush1.msra.mxu0 0.0
        %665 = vmatprep.subr.mxu0 0.0
        %666 = vmatpush1.msra.mxu0 0.0
        %667 = vmatprep.subr.mxu0 0.0
        %668 = vmatpush1.msra.mxu0 0.0
        %669 = vmatprep.subr.mxu0 0.0
        %670 = vmatpush1.msra.mxu0 0.0
        %671 = vmatprep.subr.mxu0 0.0
        %672 = vmatpush1.msra.mxu0 0.0
        %673 = vmatprep.subr.mxu0 0.0
        %674 = vmatpush1.msra.mxu0 0.0
        %675 = vmatprep.subr.mxu0 0.0
        %676 = vmatpush1.msra.mxu0 0.0
        %677 = vmatprep.subr.mxu0 0.0
        %678 = vmatpush1.msra.mxu0 0.0
        %679 = vmatprep.subr.mxu0 0.0
        %680 = vmatpush1.msra.mxu0 0.0
        %681 = vmatprep.subr.mxu0 0.0
        %682 = vmatpush1.msra.mxu0 0.0
        %683 = vmatprep.subr.mxu0 0.0
        %684 = vmatpush1.msra.mxu0 0.0
        %685 = vmatprep.subr.mxu0 0.0
        %686 = vmatpush1.msra.mxu0 0.0
        %687 = vmatprep.mubr.f32.mxu0 0.0
        %688 = vmatmul.mubr.f32.gmra.mrb[0].mxu0 %v612
        %v689 = vpop.f32.mrb[0].mxu0
        %v690 = vadd.f32 0.0, %v689
        %v691 = vpop.f32.mrb[0].mxu0
        %v692 = vadd.f32 0.0, %v691
        %693 = vmatprep.mubr.f32.mxu0 0.0
        %694 = vmatmul.mubr.f32.gmra.mrb[0].mxu0 %v615
        %v695 = vpop.f32.mrb[0].mxu0
        %v696 = vadd.f32 0.0, %v695
        %v697 = vpop.f32.mrb[0].mxu0
        %v698 = vadd.f32 0.0, %v697
        %699 = vmatprep.mubr.f32.mxu0 0.0
        %700 = vmatmul.mubr.f32.gmra.mrb[0].mxu0 %v618
        %v701 = vpop.f32.mrb[0].mxu0
        %v702 = vadd.f32 0.0, %v701
        %v703 = vpop.f32.mrb[0].mxu0
        %v704 = vadd.f32 0.0, %v703
        %705 = vmatprep.mubr.f32.mxu0 0.0
        %706 = vmatmul.mubr.f32.gmra.mrb[0].mxu0 %v621
        %v707 = vpop.f32.mrb[0].mxu0
        %v708 = vadd.f32 0.0, %v707
        %v709 = vpop.f32.mrb[0].mxu0
        %v710 = vadd.f32 0.0, %v709
        %711 = vdwg.mxu0
        %v712 = vadd.f32 %v582, %v690
        %v713 = vadd.f32 %v583, %v692
        %v714 = vadd.f32 %v584, %v696
        %v715 = vadd.f32 %v585, %v698
        %v716 = vadd.f32 %v586, %v702
        %v717 = vadd.f32 %v587, %v704
        %v718 = vadd.f32 %v588, %v708
        %v719 = vadd.f32 %v589, %v710
        %v720 = vld [vmem:[%s179] sm:$0xff]
        %v721 = vld [vmem:[%s179 + $0x8] sm:$0xff]
        %s722 = scalar_lea.vmem %s1, 128
        %v723 = vld [vmem:[%s722] sm:$0xff]
        %v724 = vld [vmem:[%s722 + $0x8] sm:$0xff]
        %v725 = vld [vmem:[%s722 + $0x10] sm:$0xff]
        %v726 = vld [vmem:[%s722 + $0x18] sm:$0xff]
        %v728 = vsel %vm265, %v723, 0
        %v731 = vsel %vm265, %v724, 0
        %v734 = vsel %vm265, %v725, 0
        %v737 = vsel %vm265, %v726, 0
        %739 = vmatprep.subr.mxu0 %v721
        %740 = vmatpush1.msra.mxu0 %v720
        %741 = vmatprep.subr.mxu0 0.0
        %742 = vmatpush1.msra.mxu0 0.0
        %743 = vmatprep.subr.mxu0 0.0
        %744 = vmatpush1.msra.mxu0 0.0
        %745 = vmatprep.subr.mxu0 0.0
        %746 = vmatpush1.msra.mxu0 0.0
        %747 = vmatprep.subr.mxu0 0.0
        %748 = vmatpush1.msra.mxu0 0.0
        %749 = vmatprep.subr.mxu0 0.0
        %750 = vmatpush1.msra.mxu0 0.0
        %751 = vmatprep.subr.mxu0 0.0
        %752 = vmatpush1.msra.mxu0 0.0
        %753 = vmatprep.subr.mxu0 0.0
        %754 = vmatpush1.msra.mxu0 0.0
        %755 = vmatprep.subr.mxu0 0.0
        %756 = vmatpush1.msra.mxu0 0.0
        %757 = vmatprep.subr.mxu0 0.0
        %758 = vmatpush1.msra.mxu0 0.0
        %759 = vmatprep.subr.mxu0 0.0
        %760 = vmatpush1.msra.mxu0 0.0
        %761 = vmatprep.subr.mxu0 0.0
        %762 = vmatpush1.msra.mxu0 0.0
        %763 = vmatprep.subr.mxu0 0.0
        %764 = vmatpush1.msra.mxu0 0.0
        %765 = vmatprep.subr.mxu0 0.0
        %766 = vmatpush1.msra.mxu0 0.0
        %767 = vmatprep.subr.mxu0 0.0
        %768 = vmatpush1.msra.mxu0 0.0
        %769 = vmatprep.subr.mxu0 0.0
        %770 = vmatpush1.msra.mxu0 0.0
        %771 = vmatprep.subr.mxu0 0.0
        %772 = vmatpush1.msra.mxu0 0.0
        %773 = vmatprep.subr.mxu0 0.0
        %774 = vmatpush1.msra.mxu0 0.0
        %775 = vmatprep.subr.mxu0 0.0
        %776 = vmatpush1.msra.mxu0 0.0
        %777 = vmatprep.subr.mxu0 0.0
        %778 = vmatpush1.msra.mxu0 0.0
        %779 = vmatprep.subr.mxu0 0.0
        %780 = vmatpush1.msra.mxu0 0.0
        %781 = vmatprep.subr.mxu0 0.0
        %782 = vmatpush1.msra.mxu0 0.0
        %783 = vmatprep.subr.mxu0 0.0
        %784 = vmatpush1.msra.mxu0 0.0
        %785 = vmatprep.subr.mxu0 0.0
        %786 = vmatpush1.msra.mxu0 0.0
        %787 = vmatprep.subr.mxu0 0.0
        %788 = vmatpush1.msra.mxu0 0.0
        %789 = vmatprep.subr.mxu0 0.0
        %790 = vmatpush1.msra.mxu0 0.0
        %791 = vmatprep.subr.mxu0 0.0
        %792 = vmatpush1.msra.mxu0 0.0
        %793 = vmatprep.subr.mxu0 0.0
        %794 = vmatpush1.msra.mxu0 0.0
        %795 = vmatprep.subr.mxu0 0.0
        %796 = vmatpush1.msra.mxu0 0.0
        %797 = vmatprep.subr.mxu0 0.0
        %798 = vmatpush1.msra.mxu0 0.0
        %799 = vmatprep.subr.mxu0 0.0
        %800 = vmatpush1.msra.mxu0 0.0
        %801 = vmatprep.subr.mxu0 0.0
        %802 = vmatpush1.msra.mxu0 0.0
        %803 = vmatprep.mubr.f32.mxu0 0.0
        %804 = vmatmul.mubr.f32.gmra.mrb[0].mxu0 %v728
        %v805 = vpop.f32.mrb[0].mxu0
        %v806 = vadd.f32 0.0, %v805
        %v807 = vpop.f32.mrb[0].mxu0
        %v808 = vadd.f32 0.0, %v807
        %809 = vmatprep.mubr.f32.mxu0 0.0
        %810 = vmatmul.mubr.f32.gmra.mrb[0].mxu0 %v731
        %v811 = vpop.f32.mrb[0].mxu0
        %v812 = vadd.f32 0.0, %v811
        %v813 = vpop.f32.mrb[0].mxu0
        %v814 = vadd.f32 0.0, %v813
        %815 = vmatprep.mubr.f32.mxu0 0.0
        %816 = vmatmul.mubr.f32.gmra.mrb[0].mxu0 %v734
        %v817 = vpop.f32.mrb[0].mxu0
        %v818 = vadd.f32 0.0, %v817
        %v819 = vpop.f32.mrb[0].mxu0
        %v820 = vadd.f32 0.0, %v819
        %821 = vmatprep.mubr.f32.mxu0 0.0
        %822 = vmatmul.mubr.f32.gmra.mrb[0].mxu0 %v737
        %v823 = vpop.f32.mrb[0].mxu0
        %v824 = vadd.f32 0.0, %v823
        %v825 = vpop.f32.mrb[0].mxu0
        %v826 = vadd.f32 0.0, %v825
        %827 = vdwg.mxu0
        %v828 = vadd.f32 %v712, %v806
        %v829 = vadd.f32 %v713, %v808
        %v830 = vadd.f32 %v714, %v812
        %v831 = vadd.f32 %v715, %v814
        %v832 = vadd.f32 %v716, %v818
        %v833 = vadd.f32 %v717, %v820
        %v834 = vadd.f32 %v718, %v824
        %v835 = vadd.f32 %v719, %v826
        %s836 = scalar_lea.vmem %s1, 160
        %v837 = vld [vmem:[%s836] sm:$0xff]
        %v838 = vld [vmem:[%s836 + $0x8] sm:$0xff]
        %v839 = vld [vmem:[%s836 + $0x10] sm:$0xff]
        %v840 = vld [vmem:[%s836 + $0x18] sm:$0xff]
        %v842 = vsel %vm265, %v837, 0
        %v845 = vsel %vm265, %v838, 0
        %v848 = vsel %vm265, %v839, 0
        %v851 = vsel %vm265, %v840, 0
        %853 = vmatprep.subr.mxu0 %v592
        %854 = vmatpush1.msra.mxu0 %v591
        %855 = vmatprep.subr.mxu0 0.0
        %856 = vmatpush1.msra.mxu0 0.0
        %857 = vmatprep.subr.mxu0 0.0
        %858 = vmatpush1.msra.mxu0 0.0
        %859 = vmatprep.subr.mxu0 0.0
        %860 = vmatpush1.msra.mxu0 0.0
        %861 = vmatprep.subr.mxu0 0.0
        %862 = vmatpush1.msra.mxu0 0.0
        %863 = vmatprep.subr.mxu0 0.0
        %864 = vmatpush1.msra.mxu0 0.0
        %865 = vmatprep.subr.mxu0 0.0
        %866 = vmatpush1.msra.mxu0 0.0
        %867 = vmatprep.subr.mxu0 0.0
        %868 = vmatpush1.msra.mxu0 0.0
        %869 = vmatprep.subr.mxu0 0.0
        %870 = vmatpush1.msra.mxu0 0.0
        %871 = vmatprep.subr.mxu0 0.0
        %872 = vmatpush1.msra.mxu0 0.0
        %873 = vmatprep.subr.mxu0 0.0
        %874 = vmatpush1.msra.mxu0 0.0
        %875 = vmatprep.subr.mxu0 0.0
        %876 = vmatpush1.msra.mxu0 0.0
        %877 = vmatprep.subr.mxu0 0.0
        %878 = vmatpush1.msra.mxu0 0.0
        %879 = vmatprep.subr.mxu0 0.0
        %880 = vmatpush1.msra.mxu0 0.0
        %881 = vmatprep.subr.mxu0 0.0
        %882 = vmatpush1.msra.mxu0 0.0
        %883 = vmatprep.subr.mxu0 0.0
        %884 = vmatpush1.msra.mxu0 0.0
        %885 = vmatprep.subr.mxu0 0.0
        %886 = vmatpush1.msra.mxu0 0.0
        %887 = vmatprep.subr.mxu0 0.0
        %888 = vmatpush1.msra.mxu0 0.0
        %889 = vmatprep.subr.mxu0 0.0
        %890 = vmatpush1.msra.mxu0 0.0
        %891 = vmatprep.subr.mxu0 0.0
        %892 = vmatpush1.msra.mxu0 0.0
        %893 = vmatprep.subr.mxu0 0.0
        %894 = vmatpush1.msra.mxu0 0.0
        %895 = vmatprep.subr.mxu0 0.0
        %896 = vmatpush1.msra.mxu0 0.0
        %897 = vmatprep.subr.mxu0 0.0
        %898 = vmatpush1.msra.mxu0 0.0
        %899 = vmatprep.subr.mxu0 0.0
        %900 = vmatpush1.msra.mxu0 0.0
        %901 = vmatprep.subr.mxu0 0.0
        %902 = vmatpush1.msra.mxu0 0.0
        %903 = vmatprep.subr.mxu0 0.0
        %904 = vmatpush1.msra.mxu0 0.0
        %905 = vmatprep.subr.mxu0 0.0
        %906 = vmatpush1.msra.mxu0 0.0
        %907 = vmatprep.subr.mxu0 0.0
        %908 = vmatpush1.msra.mxu0 0.0
        %909 = vmatprep.subr.mxu0 0.0
        %910 = vmatpush1.msra.mxu0 0.0
        %911 = vmatprep.subr.mxu0 0.0
        %912 = vmatpush1.msra.mxu0 0.0
        %913 = vmatprep.subr.mxu0 0.0
        %914 = vmatpush1.msra.mxu0 0.0
        %915 = vmatprep.subr.mxu0 0.0
        %916 = vmatpush1.msra.mxu0 0.0
        %917 = vmatprep.mubr.f32.mxu0 0.0
        %918 = vmatmul.mubr.f32.gmra.mrb[0].mxu0 %v842
        %v919 = vpop.f32.mrb[0].mxu0
        %v920 = vadd.f32 0.0, %v919
        %v921 = vpop.f32.mrb[0].mxu0
        %v922 = vadd.f32 0.0, %v921
        %923 = vmatprep.mubr.f32.mxu0 0.0
        %924 = vmatmul.mubr.f32.gmra.mrb[0].mxu0 %v845
        %v925 = vpop.f32.mrb[0].mxu0
        %v926 = vadd.f32 0.0, %v925
        %v927 = vpop.f32.mrb[0].mxu0
        %v928 = vadd.f32 0.0, %v927
        %929 = vmatprep.mubr.f32.mxu0 0.0
        %930 = vmatmul.mubr.f32.gmra.mrb[0].mxu0 %v848
        %v931 = vpop.f32.mrb[0].mxu0
        %v932 = vadd.f32 0.0, %v931
        %v933 = vpop.f32.mrb[0].mxu0
        %v934 = vadd.f32 0.0, %v933
        %935 = vmatprep.mubr.f32.mxu0 0.0
        %936 = vmatmul.mubr.f32.gmra.mrb[0].mxu0 %v851
        %v937 = vpop.f32.mrb[0].mxu0
        %v938 = vadd.f32 0.0, %v937
        %v939 = vpop.f32.mrb[0].mxu0
        %v940 = vadd.f32 0.0, %v939
        %941 = vdwg.mxu0
        %v942 = vadd.f32 %v828, %v920
        %v943 = vadd.f32 %v829, %v922
        %v944 = vadd.f32 %v830, %v926
        %v945 = vadd.f32 %v831, %v928
        %v946 = vadd.f32 %v832, %v932
        %v947 = vadd.f32 %v833, %v934
        %v948 = vadd.f32 %v834, %v938
        %v949 = vadd.f32 %v835, %v940
        %950 = vrot.lane.b32.xlu0 %v223, 1
        %v951 = vpop.permute.xlu0 %950
        %952 = vrot.lane.b32.xlu0 %v224, 1
        %v953 = vpop.permute.xlu0 %952
        %v954 = vsel %vm597, %v951, %v953
        %v955 = vsel %vm597, %v953, %v951
        %v956 = vsel %vm602, %v955, 0.0
        %v957 = vsel %vm603, %v954, 0.0
        %s958 = scalar_lea.vmem %s1, 192
        %v959 = vld [vmem:[%s958] sm:$0xff]
        %v960 = vld [vmem:[%s958 + $0x8] sm:$0xff]
        %v961 = vld [vmem:[%s958 + $0x10] sm:$0xff]
        %v962 = vld [vmem:[%s958 + $0x18] sm:$0xff]
        %v964 = vsel %vm265, %v959, 0
        %v967 = vsel %vm265, %v960, 0
        %v970 = vsel %vm265, %v961, 0
        %v973 = vsel %vm265, %v962, 0
        %975 = vmatprep.subr.mxu0 %v957
        %976 = vmatpush1.msra.mxu0 %v956
        %977 = vmatprep.subr.mxu0 0.0
        %978 = vmatpush1.msra.mxu0 0.0
        %979 = vmatprep.subr.mxu0 0.0
        %980 = vmatpush1.msra.mxu0 0.0
        %981 = vmatprep.subr.mxu0 0.0
        %982 = vmatpush1.msra.mxu0 0.0
        %983 = vmatprep.subr.mxu0 0.0
        %984 = vmatpush1.msra.mxu0 0.0
        %985 = vmatprep.subr.mxu0 0.0
        %986 = vmatpush1.msra.mxu0 0.0
        %987 = vmatprep.subr.mxu0 0.0
        %988 = vmatpush1.msra.mxu0 0.0
        %989 = vmatprep.subr.mxu0 0.0
        %990 = vmatpush1.msra.mxu0 0.0
        %991 = vmatprep.subr.mxu0 0.0
        %992 = vmatpush1.msra.mxu0 0.0
        %993 = vmatprep.subr.mxu0 0.0
        %994 = vmatpush1.msra.mxu0 0.0
        %995 = vmatprep.subr.mxu0 0.0
        %996 = vmatpush1.msra.mxu0 0.0
        %997 = vmatprep.subr.mxu0 0.0
        %998 = vmatpush1.msra.mxu0 0.0
        %999 = vmatprep.subr.mxu0 0.0
        %1000 = vmatpush1.msra.mxu0 0.0
        %1001 = vmatprep.subr.mxu0 0.0
        %1002 = vmatpush1.msra.mxu0 0.0
        %1003 = vmatprep.subr.mxu0 0.0
        %1004 = vmatpush1.msra.mxu0 0.0
        %1005 = vmatprep.subr.mxu0 0.0
        %1006 = vmatpush1.msra.mxu0 0.0
        %1007 = vmatprep.subr.mxu0 0.0
        %1008 = vmatpush1.msra.mxu0 0.0
        %1009 = vmatprep.subr.mxu0 0.0
        %1010 = vmatpush1.msra.mxu0 0.0
        %1011 = vmatprep.subr.mxu0 0.0
        %1012 = vmatpush1.msra.mxu0 0.0
        %1013 = vmatprep.subr.mxu0 0.0
        %1014 = vmatpush1.msra.mxu0 0.0
        %1015 = vmatprep.subr.mxu0 0.0
        %1016 = vmatpush1.msra.mxu0 0.0
        %1017 = vmatprep.subr.mxu0 0.0
        %1018 = vmatpush1.msra.mxu0 0.0
        %1019 = vmatprep.subr.mxu0 0.0
        %1020 = vmatpush1.msra.mxu0 0.0
        %1021 = vmatprep.subr.mxu0 0.0
        %1022 = vmatpush1.msra.mxu0 0.0
        %1023 = vmatprep.subr.mxu0 0.0
        %1024 = vmatpush1.msra.mxu0 0.0
        %1025 = vmatprep.subr.mxu0 0.0
        %1026 = vmatpush1.msra.mxu0 0.0
        %1027 = vmatprep.subr.mxu0 0.0
        %1028 = vmatpush1.msra.mxu0 0.0
        %1029 = vmatprep.subr.mxu0 0.0
        %1030 = vmatpush1.msra.mxu0 0.0
        %1031 = vmatprep.subr.mxu0 0.0
        %1032 = vmatpush1.msra.mxu0 0.0
        %1033 = vmatprep.subr.mxu0 0.0
        %1034 = vmatpush1.msra.mxu0 0.0
        %1035 = vmatprep.subr.mxu0 0.0
        %1036 = vmatpush1.msra.mxu0 0.0
        %1037 = vmatprep.subr.mxu0 0.0
        %1038 = vmatpush1.msra.mxu0 0.0
        %1039 = vmatprep.mubr.f32.mxu0 0.0
        %1040 = vmatmul.mubr.f32.gmra.mrb[0].mxu0 %v964
        %v1041 = vpop.f32.mrb[0].mxu0
        %v1042 = vadd.f32 0.0, %v1041
        %v1043 = vpop.f32.mrb[0].mxu0
        %v1044 = vadd.f32 0.0, %v1043
        %1045 = vmatprep.mubr.f32.mxu0 0.0
        %1046 = vmatmul.mubr.f32.gmra.mrb[0].mxu0 %v967
        %v1047 = vpop.f32.mrb[0].mxu0
        %v1048 = vadd.f32 0.0, %v1047
        %v1049 = vpop.f32.mrb[0].mxu0
        %v1050 = vadd.f32 0.0, %v1049
        %1051 = vmatprep.mubr.f32.mxu0 0.0
        %1052 = vmatmul.mubr.f32.gmra.mrb[0].mxu0 %v970
        %v1053 = vpop.f32.mrb[0].mxu0
        %v1054 = vadd.f32 0.0, %v1053
        %v1055 = vpop.f32.mrb[0].mxu0
        %v1056 = vadd.f32 0.0, %v1055
        %1057 = vmatprep.mubr.f32.mxu0 0.0
        %1058 = vmatmul.mubr.f32.gmra.mrb[0].mxu0 %v973
        %v1059 = vpop.f32.mrb[0].mxu0
        %v1060 = vadd.f32 0.0, %v1059
        %v1061 = vpop.f32.mrb[0].mxu0
        %v1062 = vadd.f32 0.0, %v1061
        %1063 = vdwg.mxu0
        %v1064 = vadd.f32 %v942, %v1042
        %v1065 = vadd.f32 %v943, %v1044
        %v1066 = vadd.f32 %v944, %v1048
        %v1067 = vadd.f32 %v945, %v1050
        %v1068 = vadd.f32 %v946, %v1054
        %v1069 = vadd.f32 %v947, %v1056
        %v1070 = vadd.f32 %v948, %v1060
        %v1071 = vadd.f32 %v949, %v1062
        %s1072 = scalar_lea.vmem %s1, 224
        %v1073 = vld [vmem:[%s1072] sm:$0xff]
        %v1074 = vld [vmem:[%s1072 + $0x8] sm:$0xff]
        %v1075 = vld [vmem:[%s1072 + $0x10] sm:$0xff]
        %v1076 = vld [vmem:[%s1072 + $0x18] sm:$0xff]
        %v1078 = vsel %vm265, %v1073, 0
        %v1081 = vsel %vm265, %v1074, 0
        %v1084 = vsel %vm265, %v1075, 0
        %v1087 = vsel %vm265, %v1076, 0
        %1089 = vmatprep.subr.mxu0 %v246
        %1090 = vmatpush1.msra.mxu0 %v245
        %1091 = vmatprep.subr.mxu0 0.0
        %1092 = vmatpush1.msra.mxu0 0.0
        %1093 = vmatprep.subr.mxu0 0.0
        %1094 = vmatpush1.msra.mxu0 0.0
        %1095 = vmatprep.subr.mxu0 0.0
        %1096 = vmatpush1.msra.mxu0 0.0
        %1097 = vmatprep.subr.mxu0 0.0
        %1098 = vmatpush1.msra.mxu0 0.0
        %1099 = vmatprep.subr.mxu0 0.0
        %1100 = vmatpush1.msra.mxu0 0.0
        %1101 = vmatprep.subr.mxu0 0.0
        %1102 = vmatpush1.msra.mxu0 0.0
        %1103 = vmatprep.subr.mxu0 0.0
        %1104 = vmatpush1.msra.mxu0 0.0
        %1105 = vmatprep.subr.mxu0 0.0
        %1106 = vmatpush1.msra.mxu0 0.0
        %1107 = vmatprep.subr.mxu0 0.0
        %1108 = vmatpush1.msra.mxu0 0.0
        %1109 = vmatprep.subr.mxu0 0.0
        %1110 = vmatpush1.msra.mxu0 0.0
        %1111 = vmatprep.subr.mxu0 0.0
        %1112 = vmatpush1.msra.mxu0 0.0
        %1113 = vmatprep.subr.mxu0 0.0
        %1114 = vmatpush1.msra.mxu0 0.0
        %1115 = vmatprep.subr.mxu0 0.0
        %1116 = vmatpush1.msra.mxu0 0.0
        %1117 = vmatprep.subr.mxu0 0.0
        %1118 = vmatpush1.msra.mxu0 0.0
        %1119 = vmatprep.subr.mxu0 0.0
        %1120 = vmatpush1.msra.mxu0 0.0
        %1121 = vmatprep.subr.mxu0 0.0
        %1122 = vmatpush1.msra.mxu0 0.0
        %1123 = vmatprep.subr.mxu0 0.0
        %1124 = vmatpush1.msra.mxu0 0.0
        %1125 = vmatprep.subr.mxu0 0.0
        %1126 = vmatpush1.msra.mxu0 0.0
        %1127 = vmatprep.subr.mxu0 0.0
        %1128 = vmatpush1.msra.mxu0 0.0
        %1129 = vmatprep.subr.mxu0 0.0
        %1130 = vmatpush1.msra.mxu0 0.0
        %1131 = vmatprep.subr.mxu0 0.0
        %1132 = vmatpush1.msra.mxu0 0.0
        %1133 = vmatprep.subr.mxu0 0.0
        %1134 = vmatpush1.msra.mxu0 0.0
        %1135 = vmatprep.subr.mxu0 0.0
        %1136 = vmatpush1.msra.mxu0 0.0
        %1137 = vmatprep.subr.mxu0 0.0
        %1138 = vmatpush1.msra.mxu0 0.0
        %1139 = vmatprep.subr.mxu0 0.0
        %1140 = vmatpush1.msra.mxu0 0.0
        %1141 = vmatprep.subr.mxu0 0.0
        %1142 = vmatpush1.msra.mxu0 0.0
        %1143 = vmatprep.subr.mxu0 0.0
        %1144 = vmatpush1.msra.mxu0 0.0
        %1145 = vmatprep.subr.mxu0 0.0
        %1146 = vmatpush1.msra.mxu0 0.0
        %1147 = vmatprep.subr.mxu0 0.0
        %1148 = vmatpush1.msra.mxu0 0.0
        %1149 = vmatprep.subr.mxu0 0.0
        %1150 = vmatpush1.msra.mxu0 0.0
        %1151 = vmatprep.subr.mxu0 0.0
        %1152 = vmatpush1.msra.mxu0 0.0
        %1153 = vmatprep.mubr.f32.mxu0 0.0
        %1154 = vmatmul.mubr.f32.gmra.mrb[0].mxu0 %v1078
        %v1155 = vpop.f32.mrb[0].mxu0
        %v1156 = vadd.f32 0.0, %v1155
        %v1157 = vpop.f32.mrb[0].mxu0
        %v1158 = vadd.f32 0.0, %v1157
        %1159 = vmatprep.mubr.f32.mxu0 0.0
        %1160 = vmatmul.mubr.f32.gmra.mrb[0].mxu0 %v1081
        %v1161 = vpop.f32.mrb[0].mxu0
        %v1162 = vadd.f32 0.0, %v1161
        %v1163 = vpop.f32.mrb[0].mxu0
        %v1164 = vadd.f32 0.0, %v1163
        %1165 = vmatprep.mubr.f32.mxu0 0.0
        %1166 = vmatmul.mubr.f32.gmra.mrb[0].mxu0 %v1084
        %v1167 = vpop.f32.mrb[0].mxu0
        %v1168 = vadd.f32 0.0, %v1167
        %v1169 = vpop.f32.mrb[0].mxu0
        %v1170 = vadd.f32 0.0, %v1169
        %1171 = vmatprep.mubr.f32.mxu0 0.0
        %1172 = vmatmul.mubr.f32.gmra.mrb[0].mxu0 %v1087
        %v1173 = vpop.f32.mrb[0].mxu0
        %v1174 = vadd.f32 0.0, %v1173
        %v1175 = vpop.f32.mrb[0].mxu0
        %v1176 = vadd.f32 0.0, %v1175
        %1177 = vdwg.mxu0
        %v1178 = vadd.f32 %v1064, %v1156
        %v1179 = vadd.f32 %v1065, %v1158
        %v1180 = vadd.f32 %v1066, %v1162
        %v1181 = vadd.f32 %v1067, %v1164
        %v1182 = vadd.f32 %v1068, %v1168
        %v1183 = vadd.f32 %v1069, %v1170
        %v1184 = vadd.f32 %v1070, %v1174
        %v1185 = vadd.f32 %v1071, %v1176
        %s1186 = scalar_lea.vmem %s1, 256
        %v1187 = vld [vmem:[%s1186] sm:$0xff]
        %v1188 = vld [vmem:[%s1186 + $0x8] sm:$0xff]
        %v1189 = vld [vmem:[%s1186 + $0x10] sm:$0xff]
        %v1190 = vld [vmem:[%s1186 + $0x18] sm:$0xff]
        %v1192 = vsel %vm265, %v1187, 0
        %v1195 = vsel %vm265, %v1188, 0
        %v1198 = vsel %vm265, %v1189, 0
        %v1201 = vsel %vm265, %v1190, 0
        %1203 = vmatprep.subr.mxu0 %v224
        %1204 = vmatpush1.msra.mxu0 %v223
        %1205 = vmatprep.subr.mxu0 0.0
        %1206 = vmatpush1.msra.mxu0 0.0
        %1207 = vmatprep.subr.mxu0 0.0
        %1208 = vmatpush1.msra.mxu0 0.0
        %1209 = vmatprep.subr.mxu0 0.0
        %1210 = vmatpush1.msra.mxu0 0.0
        %1211 = vmatprep.subr.mxu0 0.0
        %1212 = vmatpush1.msra.mxu0 0.0
        %1213 = vmatprep.subr.mxu0 0.0
        %1214 = vmatpush1.msra.mxu0 0.0
        %1215 = vmatprep.subr.mxu0 0.0
        %1216 = vmatpush1.msra.mxu0 0.0
        %1217 = vmatprep.subr.mxu0 0.0
        %1218 = vmatpush1.msra.mxu0 0.0
        %1219 = vmatprep.subr.mxu0 0.0
        %1220 = vmatpush1.msra.mxu0 0.0
        %1221 = vmatprep.subr.mxu0 0.0
        %1222 = vmatpush1.msra.mxu0 0.0
        %1223 = vmatprep.subr.mxu0 0.0
        %1224 = vmatpush1.msra.mxu0 0.0
        %1225 = vmatprep.subr.mxu0 0.0
        %1226 = vmatpush1.msra.mxu0 0.0
        %1227 = vmatprep.subr.mxu0 0.0
        %1228 = vmatpush1.msra.mxu0 0.0
        %1229 = vmatprep.subr.mxu0 0.0
        %1230 = vmatpush1.msra.mxu0 0.0
        %1231 = vmatprep.subr.mxu0 0.0
        %1232 = vmatpush1.msra.mxu0 0.0
        %1233 = vmatprep.subr.mxu0 0.0
        %1234 = vmatpush1.msra.mxu0 0.0
        %1235 = vmatprep.subr.mxu0 0.0
        %1236 = vmatpush1.msra.mxu0 0.0
        %1237 = vmatprep.subr.mxu0 0.0
        %1238 = vmatpush1.msra.mxu0 0.0
        %1239 = vmatprep.subr.mxu0 0.0
        %1240 = vmatpush1.msra.mxu0 0.0
        %1241 = vmatprep.subr.mxu0 0.0
        %1242 = vmatpush1.msra.mxu0 0.0
        %1243 = vmatprep.subr.mxu0 0.0
        %1244 = vmatpush1.msra.mxu0 0.0
        %1245 = vmatprep.subr.mxu0 0.0
        %1246 = vmatpush1.msra.mxu0 0.0
        %1247 = vmatprep.subr.mxu0 0.0
        %1248 = vmatpush1.msra.mxu0 0.0
        %1249 = vmatprep.subr.mxu0 0.0
        %1250 = vmatpush1.msra.mxu0 0.0
        %1251 = vmatprep.subr.mxu0 0.0
        %1252 = vmatpush1.msra.mxu0 0.0
        %1253 = vmatprep.subr.mxu0 0.0
        %1254 = vmatpush1.msra.mxu0 0.0
        %1255 = vmatprep.subr.mxu0 0.0
        %1256 = vmatpush1.msra.mxu0 0.0
        %1257 = vmatprep.subr.mxu0 0.0
        %1258 = vmatpush1.msra.mxu0 0.0
        %1259 = vmatprep.subr.mxu0 0.0
        %1260 = vmatpush1.msra.mxu0 0.0
        %1261 = vmatprep.subr.mxu0 0.0
        %1262 = vmatpush1.msra.mxu0 0.0
        %1263 = vmatprep.subr.mxu0 0.0
        %1264 = vmatpush1.msra.mxu0 0.0
        %1265 = vmatprep.subr.mxu0 0.0
        %1266 = vmatpush1.msra.mxu0 0.0
        %1267 = vmatprep.mubr.f32.mxu0 0.0
        %1268 = vmatmul.mubr.f32.gmra.mrb[0].mxu0 %v1192
        %v1269 = vpop.f32.mrb[0].mxu0
        %v1270 = vadd.f32 0.0, %v1269
        %v1271 = vpop.f32.mrb[0].mxu0
        %v1272 = vadd.f32 0.0, %v1271
        %1273 = vmatprep.mubr.f32.mxu0 0.0
        %1274 = vmatmul.mubr.f32.gmra.mrb[0].mxu0 %v1195
        %v1275 = vpop.f32.mrb[0].mxu0
        %v1276 = vadd.f32 0.0, %v1275
        %v1277 = vpop.f32.mrb[0].mxu0
        %v1278 = vadd.f32 0.0, %v1277
        %1279 = vmatprep.mubr.f32.mxu0 0.0
        %1280 = vmatmul.mubr.f32.gmra.mrb[0].mxu0 %v1198
        %v1281 = vpop.f32.mrb[0].mxu0
        %v1282 = vadd.f32 0.0, %v1281
        %v1283 = vpop.f32.mrb[0].mxu0
        %v1284 = vadd.f32 0.0, %v1283
        %1285 = vmatprep.mubr.f32.mxu0 0.0
        %1286 = vmatmul.mubr.f32.gmra.mrb[0].mxu0 %v1201
        %v1287 = vpop.f32.mrb[0].mxu0
        %v1288 = vadd.f32 0.0, %v1287
        %v1289 = vpop.f32.mrb[0].mxu0
        %v1290 = vadd.f32 0.0, %v1289
        %1291 = vdwg.mxu0
        %v1292 = vadd.f32 %v1178, %v1270
        %v1293 = vadd.f32 %v1179, %v1272
        %v1294 = vadd.f32 %v1180, %v1276
        %v1295 = vadd.f32 %v1181, %v1278
        %v1296 = vadd.f32 %v1182, %v1282
        %v1297 = vadd.f32 %v1183, %v1284
        %v1298 = vadd.f32 %v1184, %v1288
        %v1299 = vadd.f32 %v1185, %v1290
        %1300 = vmatprep.subr.mxu0 %v475
        %1301 = vmatpush1.msra.mxu0 %v474
        %1302 = vmatprep.subr.mxu0 0.0
        %1303 = vmatpush1.msra.mxu0 0.0
        %1304 = vmatprep.subr.mxu0 0.0
        %1305 = vmatpush1.msra.mxu0 0.0
        %1306 = vmatprep.subr.mxu0 0.0
        %1307 = vmatpush1.msra.mxu0 0.0
        %1308 = vmatprep.subr.mxu0 0.0
        %1309 = vmatpush1.msra.mxu0 0.0
        %1310 = vmatprep.subr.mxu0 0.0
        %1311 = vmatpush1.msra.mxu0 0.0
        %1312 = vmatprep.subr.mxu0 0.0
        %1313 = vmatpush1.msra.mxu0 0.0
        %1314 = vmatprep.subr.mxu0 0.0
        %1315 = vmatpush1.msra.mxu0 0.0
        %1316 = vmatprep.subr.mxu0 0.0
        %1317 = vmatpush1.msra.mxu0 0.0
        %1318 = vmatprep.subr.mxu0 0.0
        %1319 = vmatpush1.msra.mxu0 0.0
        %1320 = vmatprep.subr.mxu0 0.0
        %1321 = vmatpush1.msra.mxu0 0.0
        %1322 = vmatprep.subr.mxu0 0.0
        %1323 = vmatpush1.msra.mxu0 0.0
        %1324 = vmatprep.subr.mxu0 0.0
        %1325 = vmatpush1.msra.mxu0 0.0
        %1326 = vmatprep.subr.mxu0 0.0
        %1327 = vmatpush1.msra.mxu0 0.0
        %1328 = vmatprep.subr.mxu0 0.0
        %1329 = vmatpush1.msra.mxu0 0.0
        %1330 = vmatprep.subr.mxu0 0.0
        %1331 = vmatpush1.msra.mxu0 0.0
        %1332 = vmatprep.subr.mxu0 0.0
        %1333 = vmatpush1.msra.mxu0 0.0
        %1334 = vmatprep.subr.mxu0 0.0
        %1335 = vmatpush1.msra.mxu0 0.0
        %1336 = vmatprep.subr.mxu0 0.0
        %1337 = vmatpush1.msra.mxu0 0.0
        %1338 = vmatprep.subr.mxu0 0.0
        %1339 = vmatpush1.msra.mxu0 0.0
        %1340 = vmatprep.subr.mxu0 0.0
        %1341 = vmatpush1.msra.mxu0 0.0
        %1342 = vmatprep.subr.mxu0 0.0
        %1343 = vmatpush1.msra.mxu0 0.0
        %1344 = vmatprep.subr.mxu0 0.0
        %1345 = vmatpush1.msra.mxu0 0.0
        %1346 = vmatprep.subr.mxu0 0.0
        %1347 = vmatpush1.msra.mxu0 0.0
        %1348 = vmatprep.subr.mxu0 0.0
        %1349 = vmatpush1.msra.mxu0 0.0
        %1350 = vmatprep.subr.mxu0 0.0
        %1351 = vmatpush1.msra.mxu0 0.0
        %1352 = vmatprep.subr.mxu0 0.0
        %1353 = vmatpush1.msra.mxu0 0.0
        %1354 = vmatprep.subr.mxu0 0.0
        %1355 = vmatpush1.msra.mxu0 0.0
        %1356 = vmatprep.subr.mxu0 0.0
        %1357 = vmatpush1.msra.mxu0 0.0
        %1358 = vmatprep.subr.mxu0 0.0
        %1359 = vmatpush1.msra.mxu0 0.0
        %1360 = vmatprep.subr.mxu0 0.0
        %1361 = vmatpush1.msra.mxu0 0.0
        %1362 = vmatprep.subr.mxu0 0.0
        %1363 = vmatpush1.msra.mxu0 0.0
        %1364 = vmatprep.mubr.f32.mxu0 0.0
        %1365 = vmatmul.mubr.f32.gmra.mrb[0].mxu0 %v267
        %v1366 = vpop.f32.mrb[0].mxu0
        %v1367 = vadd.f32 0.0, %v1366
        %v1368 = vpop.f32.mrb[0].mxu0
        %v1369 = vadd.f32 0.0, %v1368
        %1370 = vmatprep.mubr.f32.mxu0 0.0
        %1371 = vmatmul.mubr.f32.gmra.mrb[0].mxu0 %v270
        %v1372 = vpop.f32.mrb[0].mxu0
        %v1373 = vadd.f32 0.0, %v1372
        %v1374 = vpop.f32.mrb[0].mxu0
        %v1375 = vadd.f32 0.0, %v1374
        %1376 = vmatprep.mubr.f32.mxu0 0.0
        %1377 = vmatmul.mubr.f32.gmra.mrb[0].mxu0 %v273
        %v1378 = vpop.f32.mrb[0].mxu0
        %v1379 = vadd.f32 0.0, %v1378
        %v1380 = vpop.f32.mrb[0].mxu0
        %v1381 = vadd.f32 0.0, %v1380
        %1382 = vmatprep.mubr.f32.mxu0 0.0
        %1383 = vmatmul.mubr.f32.gmra.mrb[0].mxu0 %v276
        %v1384 = vpop.f32.mrb[0].mxu0
        %v1385 = vadd.f32 0.0, %v1384
        %v1386 = vpop.f32.mrb[0].mxu0
        %v1387 = vadd.f32 0.0, %v1386
        %1388 = vdwg.mxu0
        %1389 = vmatprep.subr.mxu0 %v259
        %1390 = vmatpush1.msra.mxu0 %v258
        %1391 = vmatprep.subr.mxu0 0.0
        %1392 = vmatpush1.msra.mxu0 0.0
        %1393 = vmatprep.subr.mxu0 0.0
        %1394 = vmatpush1.msra.mxu0 0.0
        %1395 = vmatprep.subr.mxu0 0.0
        %1396 = vmatpush1.msra.mxu0 0.0
        %1397 = vmatprep.subr.mxu0 0.0
        %1398 = vmatpush1.msra.mxu0 0.0
        %1399 = vmatprep.subr.mxu0 0.0
        %1400 = vmatpush1.msra.mxu0 0.0
        %1401 = vmatprep.subr.mxu0 0.0
        %1402 = vmatpush1.msra.mxu0 0.0
        %1403 = vmatprep.subr.mxu0 0.0
        %1404 = vmatpush1.msra.mxu0 0.0
        %1405 = vmatprep.subr.mxu0 0.0
        %1406 = vmatpush1.msra.mxu0 0.0
        %1407 = vmatprep.subr.mxu0 0.0
        %1408 = vmatpush1.msra.mxu0 0.0
        %1409 = vmatprep.subr.mxu0 0.0
        %1410 = vmatpush1.msra.mxu0 0.0
        %1411 = vmatprep.subr.mxu0 0.0
        %1412 = vmatpush1.msra.mxu0 0.0
        %1413 = vmatprep.subr.mxu0 0.0
        %1414 = vmatpush1.msra.mxu0 0.0
        %1415 = vmatprep.subr.mxu0 0.0
        %1416 = vmatpush1.msra.mxu0 0.0
        %1417 = vmatprep.subr.mxu0 0.0
        %1418 = vmatpush1.msra.mxu0 0.0
        %1419 = vmatprep.subr.mxu0 0.0
        %1420 = vmatpush1.msra.mxu0 0.0
        %1421 = vmatprep.subr.mxu0 0.0
        %1422 = vmatpush1.msra.mxu0 0.0
        %1423 = vmatprep.subr.mxu0 0.0
        %1424 = vmatpush1.msra.mxu0 0.0
        %1425 = vmatprep.subr.mxu0 0.0
        %1426 = vmatpush1.msra.mxu0 0.0
        %1427 = vmatprep.subr.mxu0 0.0
        %1428 = vmatpush1.msra.mxu0 0.0
        %1429 = vmatprep.subr.mxu0 0.0
        %1430 = vmatpush1.msra.mxu0 0.0
        %1431 = vmatprep.subr.mxu0 0.0
        %1432 = vmatpush1.msra.mxu0 0.0
        %1433 = vmatprep.subr.mxu0 0.0
        %1434 = vmatpush1.msra.mxu0 0.0
        %1435 = vmatprep.subr.mxu0 0.0
        %1436 = vmatpush1.msra.mxu0 0.0
        %1437 = vmatprep.subr.mxu0 0.0
        %1438 = vmatpush1.msra.mxu0 0.0
        %1439 = vmatprep.subr.mxu0 0.0
        %1440 = vmatpush1.msra.mxu0 0.0
        %1441 = vmatprep.subr.mxu0 0.0
        %1442 = vmatpush1.msra.mxu0 0.0
        %1443 = vmatprep.subr.mxu0 0.0
        %1444 = vmatpush1.msra.mxu0 0.0
        %1445 = vmatprep.subr.mxu0 0.0
        %1446 = vmatpush1.msra.mxu0 0.0
        %1447 = vmatprep.subr.mxu0 0.0
        %1448 = vmatpush1.msra.mxu0 0.0
        %1449 = vmatprep.subr.mxu0 0.0
        %1450 = vmatpush1.msra.mxu0 0.0
        %1451 = vmatprep.subr.mxu0 0.0
        %1452 = vmatpush1.msra.mxu0 0.0
        %1453 = vmatprep.mubr.f32.mxu0 0.0
        %1454 = vmatmul.mubr.f32.gmra.mrb[0].mxu0 %v368
        %v1455 = vpop.f32.mrb[0].mxu0
        %v1456 = vadd.f32 %v1367, %v1455
        %v1457 = vpop.f32.mrb[0].mxu0
        %v1458 = vadd.f32 %v1369, %v1457
        %1459 = vmatprep.mubr.f32.mxu0 0.0
        %1460 = vmatmul.mubr.f32.gmra.mrb[0].mxu0 %v371
        %v1461 = vpop.f32.mrb[0].mxu0
        %v1462 = vadd.f32 %v1373, %v1461
        %v1463 = vpop.f32.mrb[0].mxu0
        %v1464 = vadd.f32 %v1375, %v1463
        %1465 = vmatprep.mubr.f32.mxu0 0.0
        %1466 = vmatmul.mubr.f32.gmra.mrb[0].mxu0 %v374
        %v1467 = vpop.f32.mrb[0].mxu0
        %v1468 = vadd.f32 %v1379, %v1467
        %v1469 = vpop.f32.mrb[0].mxu0
        %v1470 = vadd.f32 %v1381, %v1469
        %1471 = vmatprep.mubr.f32.mxu0 0.0
        %1472 = vmatmul.mubr.f32.gmra.mrb[0].mxu0 %v377
        %v1473 = vpop.f32.mrb[0].mxu0
        %v1474 = vadd.f32 %v1385, %v1473
        %v1475 = vpop.f32.mrb[0].mxu0
        %v1476 = vadd.f32 %v1387, %v1475
        %1477 = vdwg.mxu0
        %1478 = vrot.lane.b32.xlu0 %v245, 15
        %v1479 = vpop.permute.xlu0 %1478
        %1480 = vrot.lane.b32.xlu0 %v246, 15
        %v1481 = vpop.permute.xlu0 %1480
        %vm1482 = vcmp.lt.s32.totalorder %v203, 15
        %v1483 = vsel %vm1482, %v1479, %v1481
        %v1484 = vsel %vm1482, %v1481, %v1479
        %vm1485 = vmand %vm214, %vm220
        %vm1486 = vmand %vm215, %vm221
        %v1487 = vsel %vm1485, 1, 0
        %v1488 = vsel %vm1486, 1, 0
        %vm1489 = vcmp.eq.s32.totalorder %v1487, 1
        %vm1490 = vcmp.eq.s32.totalorder %v1488, 1
        %v1491 = vsel %vm1489, %v1484, 0.0
        %v1492 = vsel %vm1490, %v1483, 0.0
        %1493 = vmatprep.subr.mxu0 %v1492
        %1494 = vmatpush1.msra.mxu0 %v1491
        %1495 = vmatprep.subr.mxu0 0.0
        %1496 = vmatpush1.msra.mxu0 0.0
        %1497 = vmatprep.subr.mxu0 0.0
        %1498 = vmatpush1.msra.mxu0 0.0
        %1499 = vmatprep.subr.mxu0 0.0
        %1500 = vmatpush1.msra.mxu0 0.0
        %1501 = vmatprep.subr.mxu0 0.0
        %1502 = vmatpush1.msra.mxu0 0.0
        %1503 = vmatprep.subr.mxu0 0.0
        %1504 = vmatpush1.msra.mxu0 0.0
        %1505 = vmatprep.subr.mxu0 0.0
        %1506 = vmatpush1.msra.mxu0 0.0
        %1507 = vmatprep.subr.mxu0 0.0
        %1508 = vmatpush1.msra.mxu0 0.0
        %1509 = vmatprep.subr.mxu0 0.0
        %1510 = vmatpush1.msra.mxu0 0.0
        %1511 = vmatprep.subr.mxu0 0.0
        %1512 = vmatpush1.msra.mxu0 0.0
        %1513 = vmatprep.subr.mxu0 0.0
        %1514 = vmatpush1.msra.mxu0 0.0
        %1515 = vmatprep.subr.mxu0 0.0
        %1516 = vmatpush1.msra.mxu0 0.0
        %1517 = vmatprep.subr.mxu0 0.0
        %1518 = vmatpush1.msra.mxu0 0.0
        %1519 = vmatprep.subr.mxu0 0.0
        %1520 = vmatpush1.msra.mxu0 0.0
        %1521 = vmatprep.subr.mxu0 0.0
        %1522 = vmatpush1.msra.mxu0 0.0
        %1523 = vmatprep.subr.mxu0 0.0
        %1524 = vmatpush1.msra.mxu0 0.0
        %1525 = vmatprep.subr.mxu0 0.0
        %1526 = vmatpush1.msra.mxu0 0.0
        %1527 = vmatprep.subr.mxu0 0.0
        %1528 = vmatpush1.msra.mxu0 0.0
        %1529 = vmatprep.subr.mxu0 0.0
        %1530 = vmatpush1.msra.mxu0 0.0
        %1531 = vmatprep.subr.mxu0 0.0
        %1532 = vmatpush1.msra.mxu0 0.0
        %1533 = vmatprep.subr.mxu0 0.0
        %1534 = vmatpush1.msra.mxu0 0.0
        %1535 = vmatprep.subr.mxu0 0.0
        %1536 = vmatpush1.msra.mxu0 0.0
        %1537 = vmatprep.subr.mxu0 0.0
        %1538 = vmatpush1.msra.mxu0 0.0
        %1539 = vmatprep.subr.mxu0 0.0
        %1540 = vmatpush1.msra.mxu0 0.0
        %1541 = vmatprep.subr.mxu0 0.0
        %1542 = vmatpush1.msra.mxu0 0.0
        %1543 = vmatprep.subr.mxu0 0.0
        %1544 = vmatpush1.msra.mxu0 0.0
        %1545 = vmatprep.subr.mxu0 0.0
        %1546 = vmatpush1.msra.mxu0 0.0
        %1547 = vmatprep.subr.mxu0 0.0
        %1548 = vmatpush1.msra.mxu0 0.0
        %1549 = vmatprep.subr.mxu0 0.0
        %1550 = vmatpush1.msra.mxu0 0.0
        %1551 = vmatprep.subr.mxu0 0.0
        %1552 = vmatpush1.msra.mxu0 0.0
        %1553 = vmatprep.subr.mxu0 0.0
        %1554 = vmatpush1.msra.mxu0 0.0
        %1555 = vmatprep.subr.mxu0 0.0
        %1556 = vmatpush1.msra.mxu0 0.0
        %1557 = vmatprep.mubr.f32.mxu0 0.0
        %1558 = vmatmul.mubr.f32.gmra.mrb[0].mxu0 %v482
        %v1559 = vpop.f32.mrb[0].mxu0
        %v1560 = vadd.f32 0.0, %v1559
        %v1561 = vpop.f32.mrb[0].mxu0
        %v1562 = vadd.f32 0.0, %v1561
        %1563 = vmatprep.mubr.f32.mxu0 0.0
        %1564 = vmatmul.mubr.f32.gmra.mrb[0].mxu0 %v485
        %v1565 = vpop.f32.mrb[0].mxu0
        %v1566 = vadd.f32 0.0, %v1565
        %v1567 = vpop.f32.mrb[0].mxu0
        %v1568 = vadd.f32 0.0, %v1567
        %1569 = vmatprep.mubr.f32.mxu0 0.0
        %1570 = vmatmul.mubr.f32.gmra.mrb[0].mxu0 %v488
        %v1571 = vpop.f32.mrb[0].mxu0
        %v1572 = vadd.f32 0.0, %v1571
        %v1573 = vpop.f32.mrb[0].mxu0
        %v1574 = vadd.f32 0.0, %v1573
        %1575 = vmatprep.mubr.f32.mxu0 0.0
        %1576 = vmatmul.mubr.f32.gmra.mrb[0].mxu0 %v491
        %v1577 = vpop.f32.mrb[0].mxu0
        %v1578 = vadd.f32 0.0, %v1577
        %v1579 = vpop.f32.mrb[0].mxu0
        %v1580 = vadd.f32 0.0, %v1579
        %1581 = vdwg.mxu0
        %v1582 = vadd.f32 %v1456, %v1560
        %v1583 = vadd.f32 %v1458, %v1562
        %v1584 = vadd.f32 %v1462, %v1566
        %v1585 = vadd.f32 %v1464, %v1568
        %v1586 = vadd.f32 %v1468, %v1572
        %v1587 = vadd.f32 %v1470, %v1574
        %v1588 = vadd.f32 %v1474, %v1578
        %v1589 = vadd.f32 %v1476, %v1580
        %1590 = vmatprep.subr.mxu0 %v721
        %1591 = vmatpush1.msra.mxu0 %v720
        %1592 = vmatprep.subr.mxu0 0.0
        %1593 = vmatpush1.msra.mxu0 0.0
        %1594 = vmatprep.subr.mxu0 0.0
        %1595 = vmatpush1.msra.mxu0 0.0
        %1596 = vmatprep.subr.mxu0 0.0
        %1597 = vmatpush1.msra.mxu0 0.0
        %1598 = vmatprep.subr.mxu0 0.0
        %1599 = vmatpush1.msra.mxu0 0.0
        %1600 = vmatprep.subr.mxu0 0.0
        %1601 = vmatpush1.msra.mxu0 0.0
        %1602 = vmatprep.subr.mxu0 0.0
        %1603 = vmatpush1.msra.mxu0 0.0
        %1604 = vmatprep.subr.mxu0 0.0
        %1605 = vmatpush1.msra.mxu0 0.0
        %1606 = vmatprep.subr.mxu0 0.0
        %1607 = vmatpush1.msra.mxu0 0.0
        %1608 = vmatprep.subr.mxu0 0.0
        %1609 = vmatpush1.msra.mxu0 0.0
        %1610 = vmatprep.subr.mxu0 0.0
        %1611 = vmatpush1.msra.mxu0 0.0
        %1612 = vmatprep.subr.mxu0 0.0
        %1613 = vmatpush1.msra.mxu0 0.0
        %1614 = vmatprep.subr.mxu0 0.0
        %1615 = vmatpush1.msra.mxu0 0.0
        %1616 = vmatprep.subr.mxu0 0.0
        %1617 = vmatpush1.msra.mxu0 0.0
        %1618 = vmatprep.subr.mxu0 0.0
        %1619 = vmatpush1.msra.mxu0 0.0
        %1620 = vmatprep.subr.mxu0 0.0
        %1621 = vmatpush1.msra.mxu0 0.0
        %1622 = vmatprep.subr.mxu0 0.0
        %1623 = vmatpush1.msra.mxu0 0.0
        %1624 = vmatprep.subr.mxu0 0.0
        %1625 = vmatpush1.msra.mxu0 0.0
        %1626 = vmatprep.subr.mxu0 0.0
        %1627 = vmatpush1.msra.mxu0 0.0
        %1628 = vmatprep.subr.mxu0 0.0
        %1629 = vmatpush1.msra.mxu0 0.0
        %1630 = vmatprep.subr.mxu0 0.0
        %1631 = vmatpush1.msra.mxu0 0.0
        %1632 = vmatprep.subr.mxu0 0.0
        %1633 = vmatpush1.msra.mxu0 0.0
        %1634 = vmatprep.subr.mxu0 0.0
        %1635 = vmatpush1.msra.mxu0 0.0
        %1636 = vmatprep.subr.mxu0 0.0
        %1637 = vmatpush1.msra.mxu0 0.0
        %1638 = vmatprep.subr.mxu0 0.0
        %1639 = vmatpush1.msra.mxu0 0.0
        %1640 = vmatprep.subr.mxu0 0.0
        %1641 = vmatpush1.msra.mxu0 0.0
        %1642 = vmatprep.subr.mxu0 0.0
        %1643 = vmatpush1.msra.mxu0 0.0
        %1644 = vmatprep.subr.mxu0 0.0
        %1645 = vmatpush1.msra.mxu0 0.0
        %1646 = vmatprep.subr.mxu0 0.0
        %1647 = vmatpush1.msra.mxu0 0.0
        %1648 = vmatprep.subr.mxu0 0.0
        %1649 = vmatpush1.msra.mxu0 0.0
        %1650 = vmatprep.subr.mxu0 0.0
        %1651 = vmatpush1.msra.mxu0 0.0
        %1652 = vmatprep.subr.mxu0 0.0
        %1653 = vmatpush1.msra.mxu0 0.0
        %1654 = vmatprep.mubr.f32.mxu0 0.0
        %1655 = vmatmul.mubr.f32.gmra.mrb[0].mxu0 %v612
        %v1656 = vpop.f32.mrb[0].mxu0
        %v1657 = vadd.f32 0.0, %v1656
        %v1658 = vpop.f32.mrb[0].mxu0
        %v1659 = vadd.f32 0.0, %v1658
        %1660 = vmatprep.mubr.f32.mxu0 0.0
        %1661 = vmatmul.mubr.f32.gmra.mrb[0].mxu0 %v615
        %v1662 = vpop.f32.mrb[0].mxu0
        %v1663 = vadd.f32 0.0, %v1662
        %v1664 = vpop.f32.mrb[0].mxu0
        %v1665 = vadd.f32 0.0, %v1664
        %1666 = vmatprep.mubr.f32.mxu0 0.0
        %1667 = vmatmul.mubr.f32.gmra.mrb[0].mxu0 %v618
        %v1668 = vpop.f32.mrb[0].mxu0
        %v1669 = vadd.f32 0.0, %v1668
        %v1670 = vpop.f32.mrb[0].mxu0
        %v1671 = vadd.f32 0.0, %v1670
        %1672 = vmatprep.mubr.f32.mxu0 0.0
        %1673 = vmatmul.mubr.f32.gmra.mrb[0].mxu0 %v621
        %v1674 = vpop.f32.mrb[0].mxu0
        %v1675 = vadd.f32 0.0, %v1674
        %v1676 = vpop.f32.mrb[0].mxu0
        %v1677 = vadd.f32 0.0, %v1676
        %1678 = vdwg.mxu0
        %v1679 = vadd.f32 %v1582, %v1657
        %v1680 = vadd.f32 %v1583, %v1659
        %v1681 = vadd.f32 %v1584, %v1663
        %v1682 = vadd.f32 %v1585, %v1665
        %v1683 = vadd.f32 %v1586, %v1669
        %v1684 = vadd.f32 %v1587, %v1671
        %v1685 = vadd.f32 %v1588, %v1675
        %v1686 = vadd.f32 %v1589, %v1677
        %1687 = vmatprep.subr.mxu0 %v592
        %1688 = vmatpush1.msra.mxu0 %v591
        %1689 = vmatprep.subr.mxu0 0.0
        %1690 = vmatpush1.msra.mxu0 0.0
        %1691 = vmatprep.subr.mxu0 0.0
        %1692 = vmatpush1.msra.mxu0 0.0
        %1693 = vmatprep.subr.mxu0 0.0
        %1694 = vmatpush1.msra.mxu0 0.0
        %1695 = vmatprep.subr.mxu0 0.0
        %1696 = vmatpush1.msra.mxu0 0.0
        %1697 = vmatprep.subr.mxu0 0.0
        %1698 = vmatpush1.msra.mxu0 0.0
        %1699 = vmatprep.subr.mxu0 0.0
        %1700 = vmatpush1.msra.mxu0 0.0
        %1701 = vmatprep.subr.mxu0 0.0
        %1702 = vmatpush1.msra.mxu0 0.0
        %1703 = vmatprep.subr.mxu0 0.0
        %1704 = vmatpush1.msra.mxu0 0.0
        %1705 = vmatprep.subr.mxu0 0.0
        %1706 = vmatpush1.msra.mxu0 0.0
        %1707 = vmatprep.subr.mxu0 0.0
        %1708 = vmatpush1.msra.mxu0 0.0
        %1709 = vmatprep.subr.mxu0 0.0
        %1710 = vmatpush1.msra.mxu0 0.0
        %1711 = vmatprep.subr.mxu0 0.0
        %1712 = vmatpush1.msra.mxu0 0.0
        %1713 = vmatprep.subr.mxu0 0.0
        %1714 = vmatpush1.msra.mxu0 0.0
        %1715 = vmatprep.subr.mxu0 0.0
        %1716 = vmatpush1.msra.mxu0 0.0
        %1717 = vmatprep.subr.mxu0 0.0
        %1718 = vmatpush1.msra.mxu0 0.0
        %1719 = vmatprep.subr.mxu0 0.0
        %1720 = vmatpush1.msra.mxu0 0.0
        %1721 = vmatprep.subr.mxu0 0.0
        %1722 = vmatpush1.msra.mxu0 0.0
        %1723 = vmatprep.subr.mxu0 0.0
        %1724 = vmatpush1.msra.mxu0 0.0
        %1725 = vmatprep.subr.mxu0 0.0
        %1726 = vmatpush1.msra.mxu0 0.0
        %1727 = vmatprep.subr.mxu0 0.0
        %1728 = vmatpush1.msra.mxu0 0.0
        %1729 = vmatprep.subr.mxu0 0.0
        %1730 = vmatpush1.msra.mxu0 0.0
        %1731 = vmatprep.subr.mxu0 0.0
        %1732 = vmatpush1.msra.mxu0 0.0
        %1733 = vmatprep.subr.mxu0 0.0
        %1734 = vmatpush1.msra.mxu0 0.0
        %1735 = vmatprep.subr.mxu0 0.0
        %1736 = vmatpush1.msra.mxu0 0.0
        %1737 = vmatprep.subr.mxu0 0.0
        %1738 = vmatpush1.msra.mxu0 0.0
        %1739 = vmatprep.subr.mxu0 0.0
        %1740 = vmatpush1.msra.mxu0 0.0
        %1741 = vmatprep.subr.mxu0 0.0
        %1742 = vmatpush1.msra.mxu0 0.0
        %1743 = vmatprep.subr.mxu0 0.0
        %1744 = vmatpush1.msra.mxu0 0.0
        %1745 = vmatprep.subr.mxu0 0.0
        %1746 = vmatpush1.msra.mxu0 0.0
        %1747 = vmatprep.subr.mxu0 0.0
        %1748 = vmatpush1.msra.mxu0 0.0
        %1749 = vmatprep.subr.mxu0 0.0
        %1750 = vmatpush1.msra.mxu0 0.0
        %1751 = vmatprep.mubr.f32.mxu0 0.0
        %1752 = vmatmul.mubr.f32.gmra.mrb[0].mxu0 %v728
        %v1753 = vpop.f32.mrb[0].mxu0
        %v1754 = vadd.f32 0.0, %v1753
        %v1755 = vpop.f32.mrb[0].mxu0
        %v1756 = vadd.f32 0.0, %v1755
        %1757 = vmatprep.mubr.f32.mxu0 0.0
        %1758 = vmatmul.mubr.f32.gmra.mrb[0].mxu0 %v731
        %v1759 = vpop.f32.mrb[0].mxu0
        %v1760 = vadd.f32 0.0, %v1759
        %v1761 = vpop.f32.mrb[0].mxu0
        %v1762 = vadd.f32 0.0, %v1761
        %1763 = vmatprep.mubr.f32.mxu0 0.0
        %1764 = vmatmul.mubr.f32.gmra.mrb[0].mxu0 %v734
        %v1765 = vpop.f32.mrb[0].mxu0
        %v1766 = vadd.f32 0.0, %v1765
        %v1767 = vpop.f32.mrb[0].mxu0
        %v1768 = vadd.f32 0.0, %v1767
        %1769 = vmatprep.mubr.f32.mxu0 0.0
        %1770 = vmatmul.mubr.f32.gmra.mrb[0].mxu0 %v737
        %v1771 = vpop.f32.mrb[0].mxu0
        %v1772 = vadd.f32 0.0, %v1771
        %v1773 = vpop.f32.mrb[0].mxu0
        %v1774 = vadd.f32 0.0, %v1773
        %1775 = vdwg.mxu0
        %v1776 = vadd.f32 %v1679, %v1754
        %v1777 = vadd.f32 %v1680, %v1756
        %v1778 = vadd.f32 %v1681, %v1760
        %v1779 = vadd.f32 %v1682, %v1762
        %v1780 = vadd.f32 %v1683, %v1766
        %v1781 = vadd.f32 %v1684, %v1768
        %v1782 = vadd.f32 %v1685, %v1772
        %v1783 = vadd.f32 %v1686, %v1774
        %1784 = vrot.lane.b32.xlu0 %v720, 127
        %v1785 = vpop.permute.xlu0 %1784
        %1786 = vrot.lane.b32.xlu0 %v721, 127
        %v1787 = vpop.permute.xlu0 %1786
        %vm1788 = vcmp.lt.s32.totalorder %v203, 127
        %v1789 = vsel %vm1788, %v1785, %v1787
        %v1790 = vsel %vm1788, %v1787, %v1785
        %v1791 = vsel %vm220, 1, 0
        %v1792 = vsel %vm221, 1, 0
        %vm1793 = vcmp.eq.s32.totalorder %v1791, 1
        %vm1794 = vcmp.eq.s32.totalorder %v1792, 1
        %v1795 = vsel %vm1793, %v1789, 0.0
        %v1796 = vsel %vm1794, %v1790, 0.0
        %1797 = vmatprep.subr.mxu0 %v1796
        %1798 = vmatpush1.msra.mxu0 %v1795
        %1799 = vmatprep.subr.mxu0 0.0
        %1800 = vmatpush1.msra.mxu0 0.0
        %1801 = vmatprep.subr.mxu0 0.0
        %1802 = vmatpush1.msra.mxu0 0.0
        %1803 = vmatprep.subr.mxu0 0.0
        %1804 = vmatpush1.msra.mxu0 0.0
        %1805 = vmatprep.subr.mxu0 0.0
        %1806 = vmatpush1.msra.mxu0 0.0
        %1807 = vmatprep.subr.mxu0 0.0
        %1808 = vmatpush1.msra.mxu0 0.0
        %1809 = vmatprep.subr.mxu0 0.0
        %1810 = vmatpush1.msra.mxu0 0.0
        %1811 = vmatprep.subr.mxu0 0.0
        %1812 = vmatpush1.msra.mxu0 0.0
        %1813 = vmatprep.subr.mxu0 0.0
        %1814 = vmatpush1.msra.mxu0 0.0
        %1815 = vmatprep.subr.mxu0 0.0
        %1816 = vmatpush1.msra.mxu0 0.0
        %1817 = vmatprep.subr.mxu0 0.0
        %1818 = vmatpush1.msra.mxu0 0.0
        %1819 = vmatprep.subr.mxu0 0.0
        %1820 = vmatpush1.msra.mxu0 0.0
        %1821 = vmatprep.subr.mxu0 0.0
        %1822 = vmatpush1.msra.mxu0 0.0
        %1823 = vmatprep.subr.mxu0 0.0
        %1824 = vmatpush1.msra.mxu0 0.0
        %1825 = vmatprep.subr.mxu0 0.0
        %1826 = vmatpush1.msra.mxu0 0.0
        %1827 = vmatprep.subr.mxu0 0.0
        %1828 = vmatpush1.msra.mxu0 0.0
        %1829 = vmatprep.subr.mxu0 0.0
        %1830 = vmatpush1.msra.mxu0 0.0
        %1831 = vmatprep.subr.mxu0 0.0
        %1832 = vmatpush1.msra.mxu0 0.0
        %1833 = vmatprep.subr.mxu0 0.0
        %1834 = vmatpush1.msra.mxu0 0.0
        %1835 = vmatprep.subr.mxu0 0.0
        %1836 = vmatpush1.msra.mxu0 0.0
        %1837 = vmatprep.subr.mxu0 0.0
        %1838 = vmatpush1.msra.mxu0 0.0
        %1839 = vmatprep.subr.mxu0 0.0
        %1840 = vmatpush1.msra.mxu0 0.0
        %1841 = vmatprep.subr.mxu0 0.0
        %1842 = vmatpush1.msra.mxu0 0.0
        %1843 = vmatprep.subr.mxu0 0.0
        %1844 = vmatpush1.msra.mxu0 0.0
        %1845 = vmatprep.subr.mxu0 0.0
        %1846 = vmatpush1.msra.mxu0 0.0
        %1847 = vmatprep.subr.mxu0 0.0
        %1848 = vmatpush1.msra.mxu0 0.0
        %1849 = vmatprep.subr.mxu0 0.0
        %1850 = vmatpush1.msra.mxu0 0.0
        %1851 = vmatprep.subr.mxu0 0.0
        %1852 = vmatpush1.msra.mxu0 0.0
        %1853 = vmatprep.subr.mxu0 0.0
        %1854 = vmatpush1.msra.mxu0 0.0
        %1855 = vmatprep.subr.mxu0 0.0
        %1856 = vmatpush1.msra.mxu0 0.0
        %1857 = vmatprep.subr.mxu0 0.0
        %1858 = vmatpush1.msra.mxu0 0.0
        %1859 = vmatprep.subr.mxu0 0.0
        %1860 = vmatpush1.msra.mxu0 0.0
        %1861 = vmatprep.mubr.f32.mxu0 0.0
        %1862 = vmatmul.mubr.f32.gmra.mrb[0].mxu0 %v842
        %v1863 = vpop.f32.mrb[0].mxu0
        %v1864 = vadd.f32 0.0, %v1863
        %v1865 = vpop.f32.mrb[0].mxu0
        %v1866 = vadd.f32 0.0, %v1865
        %1867 = vmatprep.mubr.f32.mxu0 0.0
        %1868 = vmatmul.mubr.f32.gmra.mrb[0].mxu0 %v845
        %v1869 = vpop.f32.mrb[0].mxu0
        %v1870 = vadd.f32 0.0, %v1869
        %v1871 = vpop.f32.mrb[0].mxu0
        %v1872 = vadd.f32 0.0, %v1871
        %1873 = vmatprep.mubr.f32.mxu0 0.0
        %1874 = vmatmul.mubr.f32.gmra.mrb[0].mxu0 %v848
        %v1875 = vpop.f32.mrb[0].mxu0
        %v1876 = vadd.f32 0.0, %v1875
        %v1877 = vpop.f32.mrb[0].mxu0
        %v1878 = vadd.f32 0.0, %v1877
        %1879 = vmatprep.mubr.f32.mxu0 0.0
        %1880 = vmatmul.mubr.f32.gmra.mrb[0].mxu0 %v851
        %v1881 = vpop.f32.mrb[0].mxu0
        %v1882 = vadd.f32 0.0, %v1881
        %v1883 = vpop.f32.mrb[0].mxu0
        %v1884 = vadd.f32 0.0, %v1883
        %1885 = vdwg.mxu0
        %v1886 = vadd.f32 %v1776, %v1864
        %v1887 = vadd.f32 %v1777, %v1866
        %v1888 = vadd.f32 %v1778, %v1870
        %v1889 = vadd.f32 %v1779, %v1872
        %v1890 = vadd.f32 %v1780, %v1876
        %v1891 = vadd.f32 %v1781, %v1878
        %v1892 = vadd.f32 %v1782, %v1882
        %v1893 = vadd.f32 %v1783, %v1884
        %1894 = vmatprep.subr.mxu0 %v246
        %1895 = vmatpush1.msra.mxu0 %v245
        %1896 = vmatprep.subr.mxu0 0.0
        %1897 = vmatpush1.msra.mxu0 0.0
        %1898 = vmatprep.subr.mxu0 0.0
        %1899 = vmatpush1.msra.mxu0 0.0
        %1900 = vmatprep.subr.mxu0 0.0
        %1901 = vmatpush1.msra.mxu0 0.0
        %1902 = vmatprep.subr.mxu0 0.0
        %1903 = vmatpush1.msra.mxu0 0.0
        %1904 = vmatprep.subr.mxu0 0.0
        %1905 = vmatpush1.msra.mxu0 0.0
        %1906 = vmatprep.subr.mxu0 0.0
        %1907 = vmatpush1.msra.mxu0 0.0
        %1908 = vmatprep.subr.mxu0 0.0
        %1909 = vmatpush1.msra.mxu0 0.0
        %1910 = vmatprep.subr.mxu0 0.0
        %1911 = vmatpush1.msra.mxu0 0.0
        %1912 = vmatprep.subr.mxu0 0.0
        %1913 = vmatpush1.msra.mxu0 0.0
        %1914 = vmatprep.subr.mxu0 0.0
        %1915 = vmatpush1.msra.mxu0 0.0
        %1916 = vmatprep.subr.mxu0 0.0
        %1917 = vmatpush1.msra.mxu0 0.0
        %1918 = vmatprep.subr.mxu0 0.0
        %1919 = vmatpush1.msra.mxu0 0.0
        %1920 = vmatprep.subr.mxu0 0.0
        %1921 = vmatpush1.msra.mxu0 0.0
        %1922 = vmatprep.subr.mxu0 0.0
        %1923 = vmatpush1.msra.mxu0 0.0
        %1924 = vmatprep.subr.mxu0 0.0
        %1925 = vmatpush1.msra.mxu0 0.0
        %1926 = vmatprep.subr.mxu0 0.0
        %1927 = vmatpush1.msra.mxu0 0.0
        %1928 = vmatprep.subr.mxu0 0.0
        %1929 = vmatpush1.msra.mxu0 0.0
        %1930 = vmatprep.subr.mxu0 0.0
        %1931 = vmatpush1.msra.mxu0 0.0
        %1932 = vmatprep.subr.mxu0 0.0
        %1933 = vmatpush1.msra.mxu0 0.0
        %1934 = vmatprep.subr.mxu0 0.0
        %1935 = vmatpush1.msra.mxu0 0.0
        %1936 = vmatprep.subr.mxu0 0.0
        %1937 = vmatpush1.msra.mxu0 0.0
        %1938 = vmatprep.subr.mxu0 0.0
        %1939 = vmatpush1.msra.mxu0 0.0
        %1940 = vmatprep.subr.mxu0 0.0
        %1941 = vmatpush1.msra.mxu0 0.0
        %1942 = vmatprep.subr.mxu0 0.0
        %1943 = vmatpush1.msra.mxu0 0.0
        %1944 = vmatprep.subr.mxu0 0.0
        %1945 = vmatpush1.msra.mxu0 0.0
        %1946 = vmatprep.subr.mxu0 0.0
        %1947 = vmatpush1.msra.mxu0 0.0
        %1948 = vmatprep.subr.mxu0 0.0
        %1949 = vmatpush1.msra.mxu0 0.0
        %1950 = vmatprep.subr.mxu0 0.0
        %1951 = vmatpush1.msra.mxu0 0.0
        %1952 = vmatprep.subr.mxu0 0.0
        %1953 = vmatpush1.msra.mxu0 0.0
        %1954 = vmatprep.subr.mxu0 0.0
        %1955 = vmatpush1.msra.mxu0 0.0
        %1956 = vmatprep.subr.mxu0 0.0
        %1957 = vmatpush1.msra.mxu0 0.0
        %1958 = vmatprep.mubr.f32.mxu0 0.0
        %1959 = vmatmul.mubr.f32.gmra.mrb[0].mxu0 %v964
        %v1960 = vpop.f32.mrb[0].mxu0
        %v1961 = vadd.f32 0.0, %v1960
        %v1962 = vpop.f32.mrb[0].mxu0
        %v1963 = vadd.f32 0.0, %v1962
        %1964 = vmatprep.mubr.f32.mxu0 0.0
        %1965 = vmatmul.mubr.f32.gmra.mrb[0].mxu0 %v967
        %v1966 = vpop.f32.mrb[0].mxu0
        %v1967 = vadd.f32 0.0, %v1966
        %v1968 = vpop.f32.mrb[0].mxu0
        %v1969 = vadd.f32 0.0, %v1968
        %1970 = vmatprep.mubr.f32.mxu0 0.0
        %1971 = vmatmul.mubr.f32.gmra.mrb[0].mxu0 %v970
        %v1972 = vpop.f32.mrb[0].mxu0
        %v1973 = vadd.f32 0.0, %v1972
        %v1974 = vpop.f32.mrb[0].mxu0
        %v1975 = vadd.f32 0.0, %v1974
        %1976 = vmatprep.mubr.f32.mxu0 0.0
        %1977 = vmatmul.mubr.f32.gmra.mrb[0].mxu0 %v973
        %v1978 = vpop.f32.mrb[0].mxu0
        %v1979 = vadd.f32 0.0, %v1978
        %v1980 = vpop.f32.mrb[0].mxu0
        %v1981 = vadd.f32 0.0, %v1980
        %1982 = vdwg.mxu0
        %v1983 = vadd.f32 %v1886, %v1961
        %v1984 = vadd.f32 %v1887, %v1963
        %v1985 = vadd.f32 %v1888, %v1967
        %v1986 = vadd.f32 %v1889, %v1969
        %v1987 = vadd.f32 %v1890, %v1973
        %v1988 = vadd.f32 %v1891, %v1975
        %v1989 = vadd.f32 %v1892, %v1979
        %v1990 = vadd.f32 %v1893, %v1981
        %1991 = vmatprep.subr.mxu0 %v224
        %1992 = vmatpush1.msra.mxu0 %v223
        %1993 = vmatprep.subr.mxu0 0.0
        %1994 = vmatpush1.msra.mxu0 0.0
        %1995 = vmatprep.subr.mxu0 0.0
        %1996 = vmatpush1.msra.mxu0 0.0
        %1997 = vmatprep.subr.mxu0 0.0
        %1998 = vmatpush1.msra.mxu0 0.0
        %1999 = vmatprep.subr.mxu0 0.0
        %2000 = vmatpush1.msra.mxu0 0.0
        %2001 = vmatprep.subr.mxu0 0.0
        %2002 = vmatpush1.msra.mxu0 0.0
        %2003 = vmatprep.subr.mxu0 0.0
        %2004 = vmatpush1.msra.mxu0 0.0
        %2005 = vmatprep.subr.mxu0 0.0
        %2006 = vmatpush1.msra.mxu0 0.0
        %2007 = vmatprep.subr.mxu0 0.0
        %2008 = vmatpush1.msra.mxu0 0.0
        %2009 = vmatprep.subr.mxu0 0.0
        %2010 = vmatpush1.msra.mxu0 0.0
        %2011 = vmatprep.subr.mxu0 0.0
        %2012 = vmatpush1.msra.mxu0 0.0
        %2013 = vmatprep.subr.mxu0 0.0
        %2014 = vmatpush1.msra.mxu0 0.0
        %2015 = vmatprep.subr.mxu0 0.0
        %2016 = vmatpush1.msra.mxu0 0.0
        %2017 = vmatprep.subr.mxu0 0.0
        %2018 = vmatpush1.msra.mxu0 0.0
        %2019 = vmatprep.subr.mxu0 0.0
        %2020 = vmatpush1.msra.mxu0 0.0
        %2021 = vmatprep.subr.mxu0 0.0
        %2022 = vmatpush1.msra.mxu0 0.0
        %2023 = vmatprep.subr.mxu0 0.0
        %2024 = vmatpush1.msra.mxu0 0.0
        %2025 = vmatprep.subr.mxu0 0.0
        %2026 = vmatpush1.msra.mxu0 0.0
        %2027 = vmatprep.subr.mxu0 0.0
        %2028 = vmatpush1.msra.mxu0 0.0
        %2029 = vmatprep.subr.mxu0 0.0
        %2030 = vmatpush1.msra.mxu0 0.0
        %2031 = vmatprep.subr.mxu0 0.0
        %2032 = vmatpush1.msra.mxu0 0.0
        %2033 = vmatprep.subr.mxu0 0.0
        %2034 = vmatpush1.msra.mxu0 0.0
        %2035 = vmatprep.subr.mxu0 0.0
        %2036 = vmatpush1.msra.mxu0 0.0
        %2037 = vmatprep.subr.mxu0 0.0
        %2038 = vmatpush1.msra.mxu0 0.0
        %2039 = vmatprep.subr.mxu0 0.0
        %2040 = vmatpush1.msra.mxu0 0.0
        %2041 = vmatprep.subr.mxu0 0.0
        %2042 = vmatpush1.msra.mxu0 0.0
        %2043 = vmatprep.subr.mxu0 0.0
        %2044 = vmatpush1.msra.mxu0 0.0
        %2045 = vmatprep.subr.mxu0 0.0
        %2046 = vmatpush1.msra.mxu0 0.0
        %2047 = vmatprep.subr.mxu0 0.0
        %2048 = vmatpush1.msra.mxu0 0.0
        %2049 = vmatprep.subr.mxu0 0.0
        %2050 = vmatpush1.msra.mxu0 0.0
        %2051 = vmatprep.subr.mxu0 0.0
        %2052 = vmatpush1.msra.mxu0 0.0
        %2053 = vmatprep.subr.mxu0 0.0
        %2054 = vmatpush1.msra.mxu0 0.0
        %2055 = vmatprep.mubr.f32.mxu0 0.0
        %2056 = vmatmul.mubr.f32.gmra.mrb[0].mxu0 %v1078
        %v2057 = vpop.f32.mrb[0].mxu0
        %v2058 = vadd.f32 0.0, %v2057
        %v2059 = vpop.f32.mrb[0].mxu0
        %v2060 = vadd.f32 0.0, %v2059
        %2061 = vmatprep.mubr.f32.mxu0 0.0
        %2062 = vmatmul.mubr.f32.gmra.mrb[0].mxu0 %v1081
        %v2063 = vpop.f32.mrb[0].mxu0
        %v2064 = vadd.f32 0.0, %v2063
        %v2065 = vpop.f32.mrb[0].mxu0
        %v2066 = vadd.f32 0.0, %v2065
        %2067 = vmatprep.mubr.f32.mxu0 0.0
        %2068 = vmatmul.mubr.f32.gmra.mrb[0].mxu0 %v1084
        %v2069 = vpop.f32.mrb[0].mxu0
        %v2070 = vadd.f32 0.0, %v2069
        %v2071 = vpop.f32.mrb[0].mxu0
        %v2072 = vadd.f32 0.0, %v2071
        %2073 = vmatprep.mubr.f32.mxu0 0.0
        %2074 = vmatmul.mubr.f32.gmra.mrb[0].mxu0 %v1087
        %v2075 = vpop.f32.mrb[0].mxu0
        %v2076 = vadd.f32 0.0, %v2075
        %v2077 = vpop.f32.mrb[0].mxu0
        %v2078 = vadd.f32 0.0, %v2077
        %2079 = vdwg.mxu0
        %v2080 = vadd.f32 %v1983, %v2058
        %v2081 = vadd.f32 %v1984, %v2060
        %v2082 = vadd.f32 %v1985, %v2064
        %v2083 = vadd.f32 %v1986, %v2066
        %v2084 = vadd.f32 %v1987, %v2070
        %v2085 = vadd.f32 %v1988, %v2072
        %v2086 = vadd.f32 %v1989, %v2076
        %v2087 = vadd.f32 %v1990, %v2078
        %2088 = vrot.lane.b32.xlu0 %v245, 127
        %v2089 = vpop.permute.xlu0 %2088
        %2090 = vrot.lane.b32.xlu0 %v246, 127
        %v2091 = vpop.permute.xlu0 %2090
        %v2092 = vsel %vm1788, %v2089, %v2091
        %v2093 = vsel %vm1788, %v2091, %v2089
        %v2094 = vsel %vm1793, %v2092, 0.0
        %v2095 = vsel %vm1794, %v2093, 0.0
        %2096 = vmatprep.subr.mxu0 %v2095
        %2097 = vmatpush1.msra.mxu0 %v2094
        %2098 = vmatprep.subr.mxu0 0.0
        %2099 = vmatpush1.msra.mxu0 0.0
        %2100 = vmatprep.subr.mxu0 0.0
        %2101 = vmatpush1.msra.mxu0 0.0
        %2102 = vmatprep.subr.mxu0 0.0
        %2103 = vmatpush1.msra.mxu0 0.0
        %2104 = vmatprep.subr.mxu0 0.0
        %2105 = vmatpush1.msra.mxu0 0.0
        %2106 = vmatprep.subr.mxu0 0.0
        %2107 = vmatpush1.msra.mxu0 0.0
        %2108 = vmatprep.subr.mxu0 0.0
        %2109 = vmatpush1.msra.mxu0 0.0
        %2110 = vmatprep.subr.mxu0 0.0
        %2111 = vmatpush1.msra.mxu0 0.0
        %2112 = vmatprep.subr.mxu0 0.0
        %2113 = vmatpush1.msra.mxu0 0.0
        %2114 = vmatprep.subr.mxu0 0.0
        %2115 = vmatpush1.msra.mxu0 0.0
        %2116 = vmatprep.subr.mxu0 0.0
        %2117 = vmatpush1.msra.mxu0 0.0
        %2118 = vmatprep.subr.mxu0 0.0
        %2119 = vmatpush1.msra.mxu0 0.0
        %2120 = vmatprep.subr.mxu0 0.0
        %2121 = vmatpush1.msra.mxu0 0.0
        %2122 = vmatprep.subr.mxu0 0.0
        %2123 = vmatpush1.msra.mxu0 0.0
        %2124 = vmatprep.subr.mxu0 0.0
        %2125 = vmatpush1.msra.mxu0 0.0
        %2126 = vmatprep.subr.mxu0 0.0
        %2127 = vmatpush1.msra.mxu0 0.0
        %2128 = vmatprep.subr.mxu0 0.0
        %2129 = vmatpush1.msra.mxu0 0.0
        %2130 = vmatprep.subr.mxu0 0.0
        %2131 = vmatpush1.msra.mxu0 0.0
        %2132 = vmatprep.subr.mxu0 0.0
        %2133 = vmatpush1.msra.mxu0 0.0
        %2134 = vmatprep.subr.mxu0 0.0
        %2135 = vmatpush1.msra.mxu0 0.0
        %2136 = vmatprep.subr.mxu0 0.0
        %2137 = vmatpush1.msra.mxu0 0.0
        %2138 = vmatprep.subr.mxu0 0.0
        %2139 = vmatpush1.msra.mxu0 0.0
        %2140 = vmatprep.subr.mxu0 0.0
        %2141 = vmatpush1.msra.mxu0 0.0
        %2142 = vmatprep.subr.mxu0 0.0
        %2143 = vmatpush1.msra.mxu0 0.0
        %2144 = vmatprep.subr.mxu0 0.0
        %2145 = vmatpush1.msra.mxu0 0.0
        %2146 = vmatprep.subr.mxu0 0.0
        %2147 = vmatpush1.msra.mxu0 0.0
        %2148 = vmatprep.subr.mxu0 0.0
        %2149 = vmatpush1.msra.mxu0 0.0
        %2150 = vmatprep.subr.mxu0 0.0
        %2151 = vmatpush1.msra.mxu0 0.0
        %2152 = vmatprep.subr.mxu0 0.0
        %2153 = vmatpush1.msra.mxu0 0.0
        %2154 = vmatprep.subr.mxu0 0.0
        %2155 = vmatpush1.msra.mxu0 0.0
        %2156 = vmatprep.subr.mxu0 0.0
        %2157 = vmatpush1.msra.mxu0 0.0
        %2158 = vmatprep.subr.mxu0 0.0
        %2159 = vmatpush1.msra.mxu0 0.0
        %2160 = vmatprep.mubr.f32.mxu0 0.0
        %2161 = vmatmul.mubr.f32.gmra.mrb[0].mxu0 %v1192
        %v2162 = vpop.f32.mrb[0].mxu0
        %v2163 = vadd.f32 0.0, %v2162
        %v2164 = vpop.f32.mrb[0].mxu0
        %v2165 = vadd.f32 0.0, %v2164
        %2166 = vmatprep.mubr.f32.mxu0 0.0
        %2167 = vmatmul.mubr.f32.gmra.mrb[0].mxu0 %v1195
        %v2168 = vpop.f32.mrb[0].mxu0
        %v2169 = vadd.f32 0.0, %v2168
        %v2170 = vpop.f32.mrb[0].mxu0
        %v2171 = vadd.f32 0.0, %v2170
        %2172 = vmatprep.mubr.f32.mxu0 0.0
        %2173 = vmatmul.mubr.f32.gmra.mrb[0].mxu0 %v1198
        %v2174 = vpop.f32.mrb[0].mxu0
        %v2175 = vadd.f32 0.0, %v2174
        %v2176 = vpop.f32.mrb[0].mxu0
        %v2177 = vadd.f32 0.0, %v2176
        %2178 = vmatprep.mubr.f32.mxu0 0.0
        %2179 = vmatmul.mubr.f32.gmra.mrb[0].mxu0 %v1201
        %v2180 = vpop.f32.mrb[0].mxu0
        %v2181 = vadd.f32 0.0, %v2180
        %v2182 = vpop.f32.mrb[0].mxu0
        %v2183 = vadd.f32 0.0, %v2182
        %2184 = vdwg.mxu0
        %v2185 = vadd.f32 %v2080, %v2163
        %v2186 = vadd.f32 %v2081, %v2165
        %v2187 = vadd.f32 %v2082, %v2169
        %v2188 = vadd.f32 %v2083, %v2171
        %v2189 = vadd.f32 %v2084, %v2175
        %v2190 = vadd.f32 %v2085, %v2177
        %v2191 = vadd.f32 %v2086, %v2181
        %v2192 = vadd.f32 %v2087, %v2183
        %v2193 = vmax.f32 %v1292, %v2185
        %v2194 = vmax.f32 %v1293, %v2186
        %v2195 = vmax.f32 %v1294, %v2187
        %v2196 = vmax.f32 %v1295, %v2188
        %v2197 = vmax.f32 %v1296, %v2189
        %v2198 = vmax.f32 %v1297, %v2190
        %v2199 = vmax.f32 %v1298, %v2191
        %v2200 = vmax.f32 %v1299, %v2192
        %2201 = vmatprep.subr.mxu0 %v721
        %2202 = vmatpush1.msra.mxu0 %v720
        %2203 = vmatprep.subr.mxu0 0.0
        %2204 = vmatpush1.msra.mxu0 0.0
        %2205 = vmatprep.subr.mxu0 0.0
        %2206 = vmatpush1.msra.mxu0 0.0
        %2207 = vmatprep.subr.mxu0 0.0
        %2208 = vmatpush1.msra.mxu0 0.0
        %2209 = vmatprep.subr.mxu0 0.0
        %2210 = vmatpush1.msra.mxu0 0.0
        %2211 = vmatprep.subr.mxu0 0.0
        %2212 = vmatpush1.msra.mxu0 0.0
        %2213 = vmatprep.subr.mxu0 0.0
        %2214 = vmatpush1.msra.mxu0 0.0
        %2215 = vmatprep.subr.mxu0 0.0
        %2216 = vmatpush1.msra.mxu0 0.0
        %2217 = vmatprep.subr.mxu0 0.0
        %2218 = vmatpush1.msra.mxu0 0.0
        %2219 = vmatprep.subr.mxu0 0.0
        %2220 = vmatpush1.msra.mxu0 0.0
        %2221 = vmatprep.subr.mxu0 0.0
        %2222 = vmatpush1.msra.mxu0 0.0
        %2223 = vmatprep.subr.mxu0 0.0
        %2224 = vmatpush1.msra.mxu0 0.0
        %2225 = vmatprep.subr.mxu0 0.0
        %2226 = vmatpush1.msra.mxu0 0.0
        %2227 = vmatprep.subr.mxu0 0.0
        %2228 = vmatpush1.msra.mxu0 0.0
        %2229 = vmatprep.subr.mxu0 0.0
        %2230 = vmatpush1.msra.mxu0 0.0
        %2231 = vmatprep.subr.mxu0 0.0
        %2232 = vmatpush1.msra.mxu0 0.0
        %2233 = vmatprep.subr.mxu0 0.0
        %2234 = vmatpush1.msra.mxu0 0.0
        %2235 = vmatprep.subr.mxu0 0.0
        %2236 = vmatpush1.msra.mxu0 0.0
        %2237 = vmatprep.subr.mxu0 0.0
        %2238 = vmatpush1.msra.mxu0 0.0
        %2239 = vmatprep.subr.mxu0 0.0
        %2240 = vmatpush1.msra.mxu0 0.0
        %2241 = vmatprep.subr.mxu0 0.0
        %2242 = vmatpush1.msra.mxu0 0.0
        %2243 = vmatprep.subr.mxu0 0.0
        %2244 = vmatpush1.msra.mxu0 0.0
        %2245 = vmatprep.subr.mxu0 0.0
        %2246 = vmatpush1.msra.mxu0 0.0
        %2247 = vmatprep.subr.mxu0 0.0
        %2248 = vmatpush1.msra.mxu0 0.0
        %2249 = vmatprep.subr.mxu0 0.0
        %2250 = vmatpush1.msra.mxu0 0.0
        %2251 = vmatprep.subr.mxu0 0.0
        %2252 = vmatpush1.msra.mxu0 0.0
        %2253 = vmatprep.subr.mxu0 0.0
        %2254 = vmatpush1.msra.mxu0 0.0
        %2255 = vmatprep.subr.mxu0 0.0
        %2256 = vmatpush1.msra.mxu0 0.0
        %2257 = vmatprep.subr.mxu0 0.0
        %2258 = vmatpush1.msra.mxu0 0.0
        %2259 = vmatprep.subr.mxu0 0.0
        %2260 = vmatpush1.msra.mxu0 0.0
        %2261 = vmatprep.subr.mxu0 0.0
        %2262 = vmatpush1.msra.mxu0 0.0
        %2263 = vmatprep.subr.mxu0 0.0
        %2264 = vmatpush1.msra.mxu0 0.0
        %2265 = vmatprep.mubr.f32.mxu0 0.0
        %2266 = vmatmul.mubr.f32.gmra.mrb[0].mxu0 %v267
        %v2267 = vpop.f32.mrb[0].mxu0
        %v2268 = vadd.f32 0.0, %v2267
        %v2269 = vpop.f32.mrb[0].mxu0
        %v2270 = vadd.f32 0.0, %v2269
        %2271 = vmatprep.mubr.f32.mxu0 0.0
        %2272 = vmatmul.mubr.f32.gmra.mrb[0].mxu0 %v270
        %v2273 = vpop.f32.mrb[0].mxu0
        %v2274 = vadd.f32 0.0, %v2273
        %v2275 = vpop.f32.mrb[0].mxu0
        %v2276 = vadd.f32 0.0, %v2275
        %2277 = vmatprep.mubr.f32.mxu0 0.0
        %2278 = vmatmul.mubr.f32.gmra.mrb[0].mxu0 %v273
        %v2279 = vpop.f32.mrb[0].mxu0
        %v2280 = vadd.f32 0.0, %v2279
        %v2281 = vpop.f32.mrb[0].mxu0
        %v2282 = vadd.f32 0.0, %v2281
        %2283 = vmatprep.mubr.f32.mxu0 0.0
        %2284 = vmatmul.mubr.f32.gmra.mrb[0].mxu0 %v276
        %v2285 = vpop.f32.mrb[0].mxu0
        %v2286 = vadd.f32 0.0, %v2285
        %v2287 = vpop.f32.mrb[0].mxu0
        %v2288 = vadd.f32 0.0, %v2287
        %2289 = vdwg.mxu0
        %2290 = vmatprep.subr.mxu0 %v605
        %2291 = vmatpush1.msra.mxu0 %v604
        %2292 = vmatprep.subr.mxu0 0.0
        %2293 = vmatpush1.msra.mxu0 0.0
        %2294 = vmatprep.subr.mxu0 0.0
        %2295 = vmatpush1.msra.mxu0 0.0
        %2296 = vmatprep.subr.mxu0 0.0
        %2297 = vmatpush1.msra.mxu0 0.0
        %2298 = vmatprep.subr.mxu0 0.0
        %2299 = vmatpush1.msra.mxu0 0.0
        %2300 = vmatprep.subr.mxu0 0.0
        %2301 = vmatpush1.msra.mxu0 0.0
        %2302 = vmatprep.subr.mxu0 0.0
        %2303 = vmatpush1.msra.mxu0 0.0
        %2304 = vmatprep.subr.mxu0 0.0
        %2305 = vmatpush1.msra.mxu0 0.0
        %2306 = vmatprep.subr.mxu0 0.0
        %2307 = vmatpush1.msra.mxu0 0.0
        %2308 = vmatprep.subr.mxu0 0.0
        %2309 = vmatpush1.msra.mxu0 0.0
        %2310 = vmatprep.subr.mxu0 0.0
        %2311 = vmatpush1.msra.mxu0 0.0
        %2312 = vmatprep.subr.mxu0 0.0
        %2313 = vmatpush1.msra.mxu0 0.0
        %2314 = vmatprep.subr.mxu0 0.0
        %2315 = vmatpush1.msra.mxu0 0.0
        %2316 = vmatprep.subr.mxu0 0.0
        %2317 = vmatpush1.msra.mxu0 0.0
        %2318 = vmatprep.subr.mxu0 0.0
        %2319 = vmatpush1.msra.mxu0 0.0
        %2320 = vmatprep.subr.mxu0 0.0
        %2321 = vmatpush1.msra.mxu0 0.0
        %2322 = vmatprep.subr.mxu0 0.0
        %2323 = vmatpush1.msra.mxu0 0.0
        %2324 = vmatprep.subr.mxu0 0.0
        %2325 = vmatpush1.msra.mxu0 0.0
        %2326 = vmatprep.subr.mxu0 0.0
        %2327 = vmatpush1.msra.mxu0 0.0
        %2328 = vmatprep.subr.mxu0 0.0
        %2329 = vmatpush1.msra.mxu0 0.0
        %2330 = vmatprep.subr.mxu0 0.0
        %2331 = vmatpush1.msra.mxu0 0.0
        %2332 = vmatprep.subr.mxu0 0.0
        %2333 = vmatpush1.msra.mxu0 0.0
        %2334 = vmatprep.subr.mxu0 0.0
        %2335 = vmatpush1.msra.mxu0 0.0
        %2336 = vmatprep.subr.mxu0 0.0
        %2337 = vmatpush1.msra.mxu0 0.0
        %2338 = vmatprep.subr.mxu0 0.0
        %2339 = vmatpush1.msra.mxu0 0.0
        %2340 = vmatprep.subr.mxu0 0.0
        %2341 = vmatpush1.msra.mxu0 0.0
        %2342 = vmatprep.subr.mxu0 0.0
        %2343 = vmatpush1.msra.mxu0 0.0
        %2344 = vmatprep.subr.mxu0 0.0
        %2345 = vmatpush1.msra.mxu0 0.0
        %2346 = vmatprep.subr.mxu0 0.0
        %2347 = vmatpush1.msra.mxu0 0.0
        %2348 = vmatprep.subr.mxu0 0.0
        %2349 = vmatpush1.msra.mxu0 0.0
        %2350 = vmatprep.subr.mxu0 0.0
        %2351 = vmatpush1.msra.mxu0 0.0
        %2352 = vmatprep.subr.mxu0 0.0
        %2353 = vmatpush1.msra.mxu0 0.0
        %2354 = vmatprep.mubr.f32.mxu0 0.0
        %2355 = vmatmul.mubr.f32.gmra.mrb[0].mxu0 %v368
        %v2356 = vpop.f32.mrb[0].mxu0
        %v2357 = vadd.f32 %v2268, %v2356
        %v2358 = vpop.f32.mrb[0].mxu0
        %v2359 = vadd.f32 %v2270, %v2358
        %2360 = vmatprep.mubr.f32.mxu0 0.0
        %2361 = vmatmul.mubr.f32.gmra.mrb[0].mxu0 %v371
        %v2362 = vpop.f32.mrb[0].mxu0
        %v2363 = vadd.f32 %v2274, %v2362
        %v2364 = vpop.f32.mrb[0].mxu0
        %v2365 = vadd.f32 %v2276, %v2364
        %2366 = vmatprep.mubr.f32.mxu0 0.0
        %2367 = vmatmul.mubr.f32.gmra.mrb[0].mxu0 %v374
        %v2368 = vpop.f32.mrb[0].mxu0
        %v2369 = vadd.f32 %v2280, %v2368
        %v2370 = vpop.f32.mrb[0].mxu0
        %v2371 = vadd.f32 %v2282, %v2370
        %2372 = vmatprep.mubr.f32.mxu0 0.0
        %2373 = vmatmul.mubr.f32.gmra.mrb[0].mxu0 %v377
        %v2374 = vpop.f32.mrb[0].mxu0
        %v2375 = vadd.f32 %v2286, %v2374
        %v2376 = vpop.f32.mrb[0].mxu0
        %v2377 = vadd.f32 %v2288, %v2376
        %2378 = vdwg.mxu0
        %2379 = vmatprep.subr.mxu0 %v592
        %2380 = vmatpush1.msra.mxu0 %v591
        %2381 = vmatprep.subr.mxu0 0.0
        %2382 = vmatpush1.msra.mxu0 0.0
        %2383 = vmatprep.subr.mxu0 0.0
        %2384 = vmatpush1.msra.mxu0 0.0
        %2385 = vmatprep.subr.mxu0 0.0
        %2386 = vmatpush1.msra.mxu0 0.0
        %2387 = vmatprep.subr.mxu0 0.0
        %2388 = vmatpush1.msra.mxu0 0.0
        %2389 = vmatprep.subr.mxu0 0.0
        %2390 = vmatpush1.msra.mxu0 0.0
        %2391 = vmatprep.subr.mxu0 0.0
        %2392 = vmatpush1.msra.mxu0 0.0
        %2393 = vmatprep.subr.mxu0 0.0
        %2394 = vmatpush1.msra.mxu0 0.0
        %2395 = vmatprep.subr.mxu0 0.0
        %2396 = vmatpush1.msra.mxu0 0.0
        %2397 = vmatprep.subr.mxu0 0.0
        %2398 = vmatpush1.msra.mxu0 0.0
        %2399 = vmatprep.subr.mxu0 0.0
        %2400 = vmatpush1.msra.mxu0 0.0
        %2401 = vmatprep.subr.mxu0 0.0
        %2402 = vmatpush1.msra.mxu0 0.0
        %2403 = vmatprep.subr.mxu0 0.0
        %2404 = vmatpush1.msra.mxu0 0.0
        %2405 = vmatprep.subr.mxu0 0.0
        %2406 = vmatpush1.msra.mxu0 0.0
        %2407 = vmatprep.subr.mxu0 0.0
        %2408 = vmatpush1.msra.mxu0 0.0
        %2409 = vmatprep.subr.mxu0 0.0
        %2410 = vmatpush1.msra.mxu0 0.0
        %2411 = vmatprep.subr.mxu0 0.0
        %2412 = vmatpush1.msra.mxu0 0.0
        %2413 = vmatprep.subr.mxu0 0.0
        %2414 = vmatpush1.msra.mxu0 0.0
        %2415 = vmatprep.subr.mxu0 0.0
        %2416 = vmatpush1.msra.mxu0 0.0
        %2417 = vmatprep.subr.mxu0 0.0
        %2418 = vmatpush1.msra.mxu0 0.0
        %2419 = vmatprep.subr.mxu0 0.0
        %2420 = vmatpush1.msra.mxu0 0.0
        %2421 = vmatprep.subr.mxu0 0.0
        %2422 = vmatpush1.msra.mxu0 0.0
        %2423 = vmatprep.subr.mxu0 0.0
        %2424 = vmatpush1.msra.mxu0 0.0
        %2425 = vmatprep.subr.mxu0 0.0
        %2426 = vmatpush1.msra.mxu0 0.0
        %2427 = vmatprep.subr.mxu0 0.0
        %2428 = vmatpush1.msra.mxu0 0.0
        %2429 = vmatprep.subr.mxu0 0.0
        %2430 = vmatpush1.msra.mxu0 0.0
        %2431 = vmatprep.subr.mxu0 0.0
        %2432 = vmatpush1.msra.mxu0 0.0
        %2433 = vmatprep.subr.mxu0 0.0
        %2434 = vmatpush1.msra.mxu0 0.0
        %2435 = vmatprep.subr.mxu0 0.0
        %2436 = vmatpush1.msra.mxu0 0.0
        %2437 = vmatprep.subr.mxu0 0.0
        %2438 = vmatpush1.msra.mxu0 0.0
        %2439 = vmatprep.subr.mxu0 0.0
        %2440 = vmatpush1.msra.mxu0 0.0
        %2441 = vmatprep.subr.mxu0 0.0
        %2442 = vmatpush1.msra.mxu0 0.0
        %2443 = vmatprep.mubr.f32.mxu0 0.0
        %2444 = vmatmul.mubr.f32.gmra.mrb[0].mxu0 %v482
        %v2445 = vpop.f32.mrb[0].mxu0
        %v2446 = vadd.f32 0.0, %v2445
        %v2447 = vpop.f32.mrb[0].mxu0
        %v2448 = vadd.f32 0.0, %v2447
        %2449 = vmatprep.mubr.f32.mxu0 0.0
        %2450 = vmatmul.mubr.f32.gmra.mrb[0].mxu0 %v485
        %v2451 = vpop.f32.mrb[0].mxu0
        %v2452 = vadd.f32 0.0, %v2451
        %v2453 = vpop.f32.mrb[0].mxu0
        %v2454 = vadd.f32 0.0, %v2453
        %2455 = vmatprep.mubr.f32.mxu0 0.0
        %2456 = vmatmul.mubr.f32.gmra.mrb[0].mxu0 %v488
        %v2457 = vpop.f32.mrb[0].mxu0
        %v2458 = vadd.f32 0.0, %v2457
        %v2459 = vpop.f32.mrb[0].mxu0
        %v2460 = vadd.f32 0.0, %v2459
        %2461 = vmatprep.mubr.f32.mxu0 0.0
        %2462 = vmatmul.mubr.f32.gmra.mrb[0].mxu0 %v491
        %v2463 = vpop.f32.mrb[0].mxu0
        %v2464 = vadd.f32 0.0, %v2463
        %v2465 = vpop.f32.mrb[0].mxu0
        %v2466 = vadd.f32 0.0, %v2465
        %2467 = vdwg.mxu0
        %v2468 = vadd.f32 %v2357, %v2446
        %v2469 = vadd.f32 %v2359, %v2448
        %v2470 = vadd.f32 %v2363, %v2452
        %v2471 = vadd.f32 %v2365, %v2454
        %v2472 = vadd.f32 %v2369, %v2458
        %v2473 = vadd.f32 %v2371, %v2460
        %v2474 = vadd.f32 %v2375, %v2464
        %v2475 = vadd.f32 %v2377, %v2466
        %2476 = vmatprep.subr.mxu0 %v957
        %2477 = vmatpush1.msra.mxu0 %v956
        %2478 = vmatprep.subr.mxu0 0.0
        %2479 = vmatpush1.msra.mxu0 0.0
        %2480 = vmatprep.subr.mxu0 0.0
        %2481 = vmatpush1.msra.mxu0 0.0
        %2482 = vmatprep.subr.mxu0 0.0
        %2483 = vmatpush1.msra.mxu0 0.0
        %2484 = vmatprep.subr.mxu0 0.0
        %2485 = vmatpush1.msra.mxu0 0.0
        %2486 = vmatprep.subr.mxu0 0.0
        %2487 = vmatpush1.msra.mxu0 0.0
        %2488 = vmatprep.subr.mxu0 0.0
        %2489 = vmatpush1.msra.mxu0 0.0
        %2490 = vmatprep.subr.mxu0 0.0
        %2491 = vmatpush1.msra.mxu0 0.0
        %2492 = vmatprep.subr.mxu0 0.0
        %2493 = vmatpush1.msra.mxu0 0.0
        %2494 = vmatprep.subr.mxu0 0.0
        %2495 = vmatpush1.msra.mxu0 0.0
        %2496 = vmatprep.subr.mxu0 0.0
        %2497 = vmatpush1.msra.mxu0 0.0
        %2498 = vmatprep.subr.mxu0 0.0
        %2499 = vmatpush1.msra.mxu0 0.0
        %2500 = vmatprep.subr.mxu0 0.0
        %2501 = vmatpush1.msra.mxu0 0.0
        %2502 = vmatprep.subr.mxu0 0.0
        %2503 = vmatpush1.msra.mxu0 0.0
        %2504 = vmatprep.subr.mxu0 0.0
        %2505 = vmatpush1.msra.mxu0 0.0
        %2506 = vmatprep.subr.mxu0 0.0
        %2507 = vmatpush1.msra.mxu0 0.0
        %2508 = vmatprep.subr.mxu0 0.0
        %2509 = vmatpush1.msra.mxu0 0.0
        %2510 = vmatprep.subr.mxu0 0.0
        %2511 = vmatpush1.msra.mxu0 0.0
        %2512 = vmatprep.subr.mxu0 0.0
        %2513 = vmatpush1.msra.mxu0 0.0
        %2514 = vmatprep.subr.mxu0 0.0
        %2515 = vmatpush1.msra.mxu0 0.0
        %2516 = vmatprep.subr.mxu0 0.0
        %2517 = vmatpush1.msra.mxu0 0.0
        %2518 = vmatprep.subr.mxu0 0.0
        %2519 = vmatpush1.msra.mxu0 0.0
        %2520 = vmatprep.subr.mxu0 0.0
        %2521 = vmatpush1.msra.mxu0 0.0
        %2522 = vmatprep.subr.mxu0 0.0
        %2523 = vmatpush1.msra.mxu0 0.0
        %2524 = vmatprep.subr.mxu0 0.0
        %2525 = vmatpush1.msra.mxu0 0.0
        %2526 = vmatprep.subr.mxu0 0.0
        %2527 = vmatpush1.msra.mxu0 0.0
        %2528 = vmatprep.subr.mxu0 0.0
        %2529 = vmatpush1.msra.mxu0 0.0
        %2530 = vmatprep.subr.mxu0 0.0
        %2531 = vmatpush1.msra.mxu0 0.0
        %2532 = vmatprep.subr.mxu0 0.0
        %2533 = vmatpush1.msra.mxu0 0.0
        %2534 = vmatprep.subr.mxu0 0.0
        %2535 = vmatpush1.msra.mxu0 0.0
        %2536 = vmatprep.subr.mxu0 0.0
        %2537 = vmatpush1.msra.mxu0 0.0
        %2538 = vmatprep.subr.mxu0 0.0
        %2539 = vmatpush1.msra.mxu0 0.0
        %2540 = vmatprep.mubr.f32.mxu0 0.0
        %2541 = vmatmul.mubr.f32.gmra.mrb[0].mxu0 %v612
        %v2542 = vpop.f32.mrb[0].mxu0
        %v2543 = vadd.f32 0.0, %v2542
        %v2544 = vpop.f32.mrb[0].mxu0
        %v2545 = vadd.f32 0.0, %v2544
        %2546 = vmatprep.mubr.f32.mxu0 0.0
        %2547 = vmatmul.mubr.f32.gmra.mrb[0].mxu0 %v615
        %v2548 = vpop.f32.mrb[0].mxu0
        %v2549 = vadd.f32 0.0, %v2548
        %v2550 = vpop.f32.mrb[0].mxu0
        %v2551 = vadd.f32 0.0, %v2550
        %2552 = vmatprep.mubr.f32.mxu0 0.0
        %2553 = vmatmul.mubr.f32.gmra.mrb[0].mxu0 %v618
        %v2554 = vpop.f32.mrb[0].mxu0
        %v2555 = vadd.f32 0.0, %v2554
        %v2556 = vpop.f32.mrb[0].mxu0
        %v2557 = vadd.f32 0.0, %v2556
        %2558 = vmatprep.mubr.f32.mxu0 0.0
        %2559 = vmatmul.mubr.f32.gmra.mrb[0].mxu0 %v621
        %v2560 = vpop.f32.mrb[0].mxu0
        %v2561 = vadd.f32 0.0, %v2560
        %v2562 = vpop.f32.mrb[0].mxu0
        %v2563 = vadd.f32 0.0, %v2562
        %2564 = vdwg.mxu0
        %v2565 = vadd.f32 %v2468, %v2543
        %v2566 = vadd.f32 %v2469, %v2545
        %v2567 = vadd.f32 %v2470, %v2549
        %v2568 = vadd.f32 %v2471, %v2551
        %v2569 = vadd.f32 %v2472, %v2555
        %v2570 = vadd.f32 %v2473, %v2557
        %v2571 = vadd.f32 %v2474, %v2561
        %v2572 = vadd.f32 %v2475, %v2563
        %2573 = vmatprep.subr.mxu0 %v246
        %2574 = vmatpush1.msra.mxu0 %v245
        %2575 = vmatprep.subr.mxu0 0.0
        %2576 = vmatpush1.msra.mxu0 0.0
        %2577 = vmatprep.subr.mxu0 0.0
        %2578 = vmatpush1.msra.mxu0 0.0
        %2579 = vmatprep.subr.mxu0 0.0
        %2580 = vmatpush1.msra.mxu0 0.0
        %2581 = vmatprep.subr.mxu0 0.0
        %2582 = vmatpush1.msra.mxu0 0.0
        %2583 = vmatprep.subr.mxu0 0.0
        %2584 = vmatpush1.msra.mxu0 0.0
        %2585 = vmatprep.subr.mxu0 0.0
        %2586 = vmatpush1.msra.mxu0 0.0
        %2587 = vmatprep.subr.mxu0 0.0
        %2588 = vmatpush1.msra.mxu0 0.0
        %2589 = vmatprep.subr.mxu0 0.0
        %2590 = vmatpush1.msra.mxu0 0.0
        %2591 = vmatprep.subr.mxu0 0.0
        %2592 = vmatpush1.msra.mxu0 0.0
        %2593 = vmatprep.subr.mxu0 0.0
        %2594 = vmatpush1.msra.mxu0 0.0
        %2595 = vmatprep.subr.mxu0 0.0
        %2596 = vmatpush1.msra.mxu0 0.0
        %2597 = vmatprep.subr.mxu0 0.0
        %2598 = vmatpush1.msra.mxu0 0.0
        %2599 = vmatprep.subr.mxu0 0.0
        %2600 = vmatpush1.msra.mxu0 0.0
        %2601 = vmatprep.subr.mxu0 0.0
        %2602 = vmatpush1.msra.mxu0 0.0
        %2603 = vmatprep.subr.mxu0 0.0
        %2604 = vmatpush1.msra.mxu0 0.0
        %2605 = vmatprep.subr.mxu0 0.0
        %2606 = vmatpush1.msra.mxu0 0.0
        %2607 = vmatprep.subr.mxu0 0.0
        %2608 = vmatpush1.msra.mxu0 0.0
        %2609 = vmatprep.subr.mxu0 0.0
        %2610 = vmatpush1.msra.mxu0 0.0
        %2611 = vmatprep.subr.mxu0 0.0
        %2612 = vmatpush1.msra.mxu0 0.0
        %2613 = vmatprep.subr.mxu0 0.0
        %2614 = vmatpush1.msra.mxu0 0.0
        %2615 = vmatprep.subr.mxu0 0.0
        %2616 = vmatpush1.msra.mxu0 0.0
        %2617 = vmatprep.subr.mxu0 0.0
        %2618 = vmatpush1.msra.mxu0 0.0
        %2619 = vmatprep.subr.mxu0 0.0
        %2620 = vmatpush1.msra.mxu0 0.0
        %2621 = vmatprep.subr.mxu0 0.0
        %2622 = vmatpush1.msra.mxu0 0.0
        %2623 = vmatprep.subr.mxu0 0.0
        %2624 = vmatpush1.msra.mxu0 0.0
        %2625 = vmatprep.subr.mxu0 0.0
        %2626 = vmatpush1.msra.mxu0 0.0
        %2627 = vmatprep.subr.mxu0 0.0
        %2628 = vmatpush1.msra.mxu0 0.0
        %2629 = vmatprep.subr.mxu0 0.0
        %2630 = vmatpush1.msra.mxu0 0.0
        %2631 = vmatprep.subr.mxu0 0.0
        %2632 = vmatpush1.msra.mxu0 0.0
        %2633 = vmatprep.subr.mxu0 0.0
        %2634 = vmatpush1.msra.mxu0 0.0
        %2635 = vmatprep.subr.mxu0 0.0
        %2636 = vmatpush1.msra.mxu0 0.0
        %2637 = vmatprep.mubr.f32.mxu0 0.0
        %2638 = vmatmul.mubr.f32.gmra.mrb[0].mxu0 %v728
        %v2639 = vpop.f32.mrb[0].mxu0
        %v2640 = vadd.f32 0.0, %v2639
        %v2641 = vpop.f32.mrb[0].mxu0
        %v2642 = vadd.f32 0.0, %v2641
        %2643 = vmatprep.mubr.f32.mxu0 0.0
        %2644 = vmatmul.mubr.f32.gmra.mrb[0].mxu0 %v731
        %v2645 = vpop.f32.mrb[0].mxu0
        %v2646 = vadd.f32 0.0, %v2645
        %v2647 = vpop.f32.mrb[0].mxu0
        %v2648 = vadd.f32 0.0, %v2647
        %2649 = vmatprep.mubr.f32.mxu0 0.0
        %2650 = vmatmul.mubr.f32.gmra.mrb[0].mxu0 %v734
        %v2651 = vpop.f32.mrb[0].mxu0
        %v2652 = vadd.f32 0.0, %v2651
        %v2653 = vpop.f32.mrb[0].mxu0
        %v2654 = vadd.f32 0.0, %v2653
        %2655 = vmatprep.mubr.f32.mxu0 0.0
        %2656 = vmatmul.mubr.f32.gmra.mrb[0].mxu0 %v737
        %v2657 = vpop.f32.mrb[0].mxu0
        %v2658 = vadd.f32 0.0, %v2657
        %v2659 = vpop.f32.mrb[0].mxu0
        %v2660 = vadd.f32 0.0, %v2659
        %2661 = vdwg.mxu0
        %v2662 = vadd.f32 %v2565, %v2640
        %v2663 = vadd.f32 %v2566, %v2642
        %v2664 = vadd.f32 %v2567, %v2646
        %v2665 = vadd.f32 %v2568, %v2648
        %v2666 = vadd.f32 %v2569, %v2652
        %v2667 = vadd.f32 %v2570, %v2654
        %v2668 = vadd.f32 %v2571, %v2658
        %v2669 = vadd.f32 %v2572, %v2660
        %2670 = vmatprep.subr.mxu0 %v224
        %2671 = vmatpush1.msra.mxu0 %v223
        %2672 = vmatprep.subr.mxu0 0.0
        %2673 = vmatpush1.msra.mxu0 0.0
        %2674 = vmatprep.subr.mxu0 0.0
        %2675 = vmatpush1.msra.mxu0 0.0
        %2676 = vmatprep.subr.mxu0 0.0
        %2677 = vmatpush1.msra.mxu0 0.0
        %2678 = vmatprep.subr.mxu0 0.0
        %2679 = vmatpush1.msra.mxu0 0.0
        %2680 = vmatprep.subr.mxu0 0.0
        %2681 = vmatpush1.msra.mxu0 0.0
        %2682 = vmatprep.subr.mxu0 0.0
        %2683 = vmatpush1.msra.mxu0 0.0
        %2684 = vmatprep.subr.mxu0 0.0
        %2685 = vmatpush1.msra.mxu0 0.0
        %2686 = vmatprep.subr.mxu0 0.0
        %2687 = vmatpush1.msra.mxu0 0.0
        %2688 = vmatprep.subr.mxu0 0.0
        %2689 = vmatpush1.msra.mxu0 0.0
        %2690 = vmatprep.subr.mxu0 0.0
        %2691 = vmatpush1.msra.mxu0 0.0
        %2692 = vmatprep.subr.mxu0 0.0
        %2693 = vmatpush1.msra.mxu0 0.0
        %2694 = vmatprep.subr.mxu0 0.0
        %2695 = vmatpush1.msra.mxu0 0.0
        %2696 = vmatprep.subr.mxu0 0.0
        %2697 = vmatpush1.msra.mxu0 0.0
        %2698 = vmatprep.subr.mxu0 0.0
        %2699 = vmatpush1.msra.mxu0 0.0
        %2700 = vmatprep.subr.mxu0 0.0
        %2701 = vmatpush1.msra.mxu0 0.0
        %2702 = vmatprep.subr.mxu0 0.0
        %2703 = vmatpush1.msra.mxu0 0.0
        %2704 = vmatprep.subr.mxu0 0.0
        %2705 = vmatpush1.msra.mxu0 0.0
        %2706 = vmatprep.subr.mxu0 0.0
        %2707 = vmatpush1.msra.mxu0 0.0
        %2708 = vmatprep.subr.mxu0 0.0
        %2709 = vmatpush1.msra.mxu0 0.0
        %2710 = vmatprep.subr.mxu0 0.0
        %2711 = vmatpush1.msra.mxu0 0.0
        %2712 = vmatprep.subr.mxu0 0.0
        %2713 = vmatpush1.msra.mxu0 0.0
        %2714 = vmatprep.subr.mxu0 0.0
        %2715 = vmatpush1.msra.mxu0 0.0
        %2716 = vmatprep.subr.mxu0 0.0
        %2717 = vmatpush1.msra.mxu0 0.0
        %2718 = vmatprep.subr.mxu0 0.0
        %2719 = vmatpush1.msra.mxu0 0.0
        %2720 = vmatprep.subr.mxu0 0.0
        %2721 = vmatpush1.msra.mxu0 0.0
        %2722 = vmatprep.subr.mxu0 0.0
        %2723 = vmatpush1.msra.mxu0 0.0
        %2724 = vmatprep.subr.mxu0 0.0
        %2725 = vmatpush1.msra.mxu0 0.0
        %2726 = vmatprep.subr.mxu0 0.0
        %2727 = vmatpush1.msra.mxu0 0.0
        %2728 = vmatprep.subr.mxu0 0.0
        %2729 = vmatpush1.msra.mxu0 0.0
        %2730 = vmatprep.subr.mxu0 0.0
        %2731 = vmatpush1.msra.mxu0 0.0
        %2732 = vmatprep.subr.mxu0 0.0
        %2733 = vmatpush1.msra.mxu0 0.0
        %2734 = vmatprep.mubr.f32.mxu0 0.0
        %2735 = vmatmul.mubr.f32.gmra.mrb[0].mxu0 %v842
        %v2736 = vpop.f32.mrb[0].mxu0
        %v2737 = vadd.f32 0.0, %v2736
        %v2738 = vpop.f32.mrb[0].mxu0
        %v2739 = vadd.f32 0.0, %v2738
        %2740 = vmatprep.mubr.f32.mxu0 0.0
        %2741 = vmatmul.mubr.f32.gmra.mrb[0].mxu0 %v845
        %v2742 = vpop.f32.mrb[0].mxu0
        %v2743 = vadd.f32 0.0, %v2742
        %v2744 = vpop.f32.mrb[0].mxu0
        %v2745 = vadd.f32 0.0, %v2744
        %2746 = vmatprep.mubr.f32.mxu0 0.0
        %2747 = vmatmul.mubr.f32.gmra.mrb[0].mxu0 %v848
        %v2748 = vpop.f32.mrb[0].mxu0
        %v2749 = vadd.f32 0.0, %v2748
        %v2750 = vpop.f32.mrb[0].mxu0
        %v2751 = vadd.f32 0.0, %v2750
        %2752 = vmatprep.mubr.f32.mxu0 0.0
        %2753 = vmatmul.mubr.f32.gmra.mrb[0].mxu0 %v851
        %v2754 = vpop.f32.mrb[0].mxu0
        %v2755 = vadd.f32 0.0, %v2754
        %v2756 = vpop.f32.mrb[0].mxu0
        %v2757 = vadd.f32 0.0, %v2756
        %2758 = vdwg.mxu0
        %v2759 = vadd.f32 %v2662, %v2737
        %v2760 = vadd.f32 %v2663, %v2739
        %v2761 = vadd.f32 %v2664, %v2743
        %v2762 = vadd.f32 %v2665, %v2745
        %v2763 = vadd.f32 %v2666, %v2749
        %v2764 = vadd.f32 %v2667, %v2751
        %v2765 = vadd.f32 %v2668, %v2755
        %v2766 = vadd.f32 %v2669, %v2757
        %2767 = vrot.lane.b32.xlu0 %v591, 113
        %v2768 = vpop.permute.xlu0 %2767
        %2769 = vrot.lane.b32.xlu0 %v592, 113
        %v2770 = vpop.permute.xlu0 %2769
        %vm2771 = vcmp.lt.s32.totalorder %v203, 113
        %v2772 = vsel %vm2771, %v2768, %v2770
        %v2773 = vsel %vm2771, %v2770, %v2768
        %vm2774 = vmand %vm216, %vm218
        %vm2775 = vmand %vm217, %vm219
        %v2776 = vsel %vm2774, 1, 0
        %v2777 = vsel %vm2775, 1, 0
        %vm2778 = vcmp.eq.s32.totalorder %v2776, 1
        %vm2779 = vcmp.eq.s32.totalorder %v2777, 1
        %v2780 = vsel %vm2778, %v2772, 0.0
        %v2781 = vsel %vm2779, %v2773, 0.0
        %2782 = vmatprep.subr.mxu0 %v2781
        %2783 = vmatpush1.msra.mxu0 %v2780
        %2784 = vmatprep.subr.mxu0 0.0
        %2785 = vmatpush1.msra.mxu0 0.0
        %2786 = vmatprep.subr.mxu0 0.0
        %2787 = vmatpush1.msra.mxu0 0.0
        %2788 = vmatprep.subr.mxu0 0.0
        %2789 = vmatpush1.msra.mxu0 0.0
        %2790 = vmatprep.subr.mxu0 0.0
        %2791 = vmatpush1.msra.mxu0 0.0
        %2792 = vmatprep.subr.mxu0 0.0
        %2793 = vmatpush1.msra.mxu0 0.0
        %2794 = vmatprep.subr.mxu0 0.0
        %2795 = vmatpush1.msra.mxu0 0.0
        %2796 = vmatprep.subr.mxu0 0.0
        %2797 = vmatpush1.msra.mxu0 0.0
        %2798 = vmatprep.subr.mxu0 0.0
        %2799 = vmatpush1.msra.mxu0 0.0
        %2800 = vmatprep.subr.mxu0 0.0
        %2801 = vmatpush1.msra.mxu0 0.0
        %2802 = vmatprep.subr.mxu0 0.0
        %2803 = vmatpush1.msra.mxu0 0.0
        %2804 = vmatprep.subr.mxu0 0.0
        %2805 = vmatpush1.msra.mxu0 0.0
        %2806 = vmatprep.subr.mxu0 0.0
        %2807 = vmatpush1.msra.mxu0 0.0
        %2808 = vmatprep.subr.mxu0 0.0
        %2809 = vmatpush1.msra.mxu0 0.0
        %2810 = vmatprep.subr.mxu0 0.0
        %2811 = vmatpush1.msra.mxu0 0.0
        %2812 = vmatprep.subr.mxu0 0.0
        %2813 = vmatpush1.msra.mxu0 0.0
        %2814 = vmatprep.subr.mxu0 0.0
        %2815 = vmatpush1.msra.mxu0 0.0
        %2816 = vmatprep.subr.mxu0 0.0
        %2817 = vmatpush1.msra.mxu0 0.0
        %2818 = vmatprep.subr.mxu0 0.0
        %2819 = vmatpush1.msra.mxu0 0.0
        %2820 = vmatprep.subr.mxu0 0.0
        %2821 = vmatpush1.msra.mxu0 0.0
        %2822 = vmatprep.subr.mxu0 0.0
        %2823 = vmatpush1.msra.mxu0 0.0
        %2824 = vmatprep.subr.mxu0 0.0
        %2825 = vmatpush1.msra.mxu0 0.0
        %2826 = vmatprep.subr.mxu0 0.0
        %2827 = vmatpush1.msra.mxu0 0.0
        %2828 = vmatprep.subr.mxu0 0.0
        %2829 = vmatpush1.msra.mxu0 0.0
        %2830 = vmatprep.subr.mxu0 0.0
        %2831 = vmatpush1.msra.mxu0 0.0
        %2832 = vmatprep.subr.mxu0 0.0
        %2833 = vmatpush1.msra.mxu0 0.0
        %2834 = vmatprep.subr.mxu0 0.0
        %2835 = vmatpush1.msra.mxu0 0.0
        %2836 = vmatprep.subr.mxu0 0.0
        %2837 = vmatpush1.msra.mxu0 0.0
        %2838 = vmatprep.subr.mxu0 0.0
        %2839 = vmatpush1.msra.mxu0 0.0
        %2840 = vmatprep.subr.mxu0 0.0
        %2841 = vmatpush1.msra.mxu0 0.0
        %2842 = vmatprep.subr.mxu0 0.0
        %2843 = vmatpush1.msra.mxu0 0.0
        %2844 = vmatprep.subr.mxu0 0.0
        %2845 = vmatpush1.msra.mxu0 0.0
        %2846 = vmatprep.mubr.f32.mxu0 0.0
        %2847 = vmatmul.mubr.f32.gmra.mrb[0].mxu0 %v964
        %v2848 = vpop.f32.mrb[0].mxu0
        %v2849 = vadd.f32 0.0, %v2848
        %v2850 = vpop.f32.mrb[0].mxu0
        %v2851 = vadd.f32 0.0, %v2850
        %2852 = vmatprep.mubr.f32.mxu0 0.0
        %2853 = vmatmul.mubr.f32.gmra.mrb[0].mxu0 %v967
        %v2854 = vpop.f32.mrb[0].mxu0
        %v2855 = vadd.f32 0.0, %v2854
        %v2856 = vpop.f32.mrb[0].mxu0
        %v2857 = vadd.f32 0.0, %v2856
        %2858 = vmatprep.mubr.f32.mxu0 0.0
        %2859 = vmatmul.mubr.f32.gmra.mrb[0].mxu0 %v970
        %v2860 = vpop.f32.mrb[0].mxu0
        %v2861 = vadd.f32 0.0, %v2860
        %v2862 = vpop.f32.mrb[0].mxu0
        %v2863 = vadd.f32 0.0, %v2862
        %2864 = vmatprep.mubr.f32.mxu0 0.0
        %2865 = vmatmul.mubr.f32.gmra.mrb[0].mxu0 %v973
        %v2866 = vpop.f32.mrb[0].mxu0
        %v2867 = vadd.f32 0.0, %v2866
        %v2868 = vpop.f32.mrb[0].mxu0
        %v2869 = vadd.f32 0.0, %v2868
        %2870 = vdwg.mxu0
        %v2871 = vadd.f32 %v2759, %v2849
        %v2872 = vadd.f32 %v2760, %v2851
        %v2873 = vadd.f32 %v2761, %v2855
        %v2874 = vadd.f32 %v2762, %v2857
        %v2875 = vadd.f32 %v2763, %v2861
        %v2876 = vadd.f32 %v2764, %v2863
        %v2877 = vadd.f32 %v2765, %v2867
        %v2878 = vadd.f32 %v2766, %v2869
        %2879 = vrot.lane.b32.xlu0 %v720, 112
        %v2880 = vpop.permute.xlu0 %2879
        %2881 = vrot.lane.b32.xlu0 %v721, 112
        %v2882 = vpop.permute.xlu0 %2881
        %vm2883 = vcmp.lt.s32.totalorder %v203, 112
        %v2884 = vsel %vm2883, %v2880, %v2882
        %v2885 = vsel %vm2883, %v2882, %v2880
        %v2886 = vsel %vm216, 1, 0
        %v2887 = vsel %vm217, 1, 0
        %vm2888 = vcmp.eq.s32.totalorder %v2886, 1
        %vm2889 = vcmp.eq.s32.totalorder %v2887, 1
        %v2890 = vsel %vm2888, %v2884, 0.0
        %v2891 = vsel %vm2889, %v2885, 0.0
        %2892 = vmatprep.subr.mxu0 %v2891
        %2893 = vmatpush1.msra.mxu0 %v2890
        %2894 = vmatprep.subr.mxu0 0.0
        %2895 = vmatpush1.msra.mxu0 0.0
        %2896 = vmatprep.subr.mxu0 0.0
        %2897 = vmatpush1.msra.mxu0 0.0
        %2898 = vmatprep.subr.mxu0 0.0
        %2899 = vmatpush1.msra.mxu0 0.0
        %2900 = vmatprep.subr.mxu0 0.0
        %2901 = vmatpush1.msra.mxu0 0.0
        %2902 = vmatprep.subr.mxu0 0.0
        %2903 = vmatpush1.msra.mxu0 0.0
        %2904 = vmatprep.subr.mxu0 0.0
        %2905 = vmatpush1.msra.mxu0 0.0
        %2906 = vmatprep.subr.mxu0 0.0
        %2907 = vmatpush1.msra.mxu0 0.0
        %2908 = vmatprep.subr.mxu0 0.0
        %2909 = vmatpush1.msra.mxu0 0.0
        %2910 = vmatprep.subr.mxu0 0.0
        %2911 = vmatpush1.msra.mxu0 0.0
        %2912 = vmatprep.subr.mxu0 0.0
        %2913 = vmatpush1.msra.mxu0 0.0
        %2914 = vmatprep.subr.mxu0 0.0
        %2915 = vmatpush1.msra.mxu0 0.0
        %2916 = vmatprep.subr.mxu0 0.0
        %2917 = vmatpush1.msra.mxu0 0.0
        %2918 = vmatprep.subr.mxu0 0.0
        %2919 = vmatpush1.msra.mxu0 0.0
        %2920 = vmatprep.subr.mxu0 0.0
        %2921 = vmatpush1.msra.mxu0 0.0
        %2922 = vmatprep.subr.mxu0 0.0
        %2923 = vmatpush1.msra.mxu0 0.0
        %2924 = vmatprep.subr.mxu0 0.0
        %2925 = vmatpush1.msra.mxu0 0.0
        %2926 = vmatprep.subr.mxu0 0.0
        %2927 = vmatpush1.msra.mxu0 0.0
        %2928 = vmatprep.subr.mxu0 0.0
        %2929 = vmatpush1.msra.mxu0 0.0
        %2930 = vmatprep.subr.mxu0 0.0
        %2931 = vmatpush1.msra.mxu0 0.0
        %2932 = vmatprep.subr.mxu0 0.0
        %2933 = vmatpush1.msra.mxu0 0.0
        %2934 = vmatprep.subr.mxu0 0.0
        %2935 = vmatpush1.msra.mxu0 0.0
        %2936 = vmatprep.subr.mxu0 0.0
        %2937 = vmatpush1.msra.mxu0 0.0
        %2938 = vmatprep.subr.mxu0 0.0
        %2939 = vmatpush1.msra.mxu0 0.0
        %2940 = vmatprep.subr.mxu0 0.0
        %2941 = vmatpush1.msra.mxu0 0.0
        %2942 = vmatprep.subr.mxu0 0.0
        %2943 = vmatpush1.msra.mxu0 0.0
        %2944 = vmatprep.subr.mxu0 0.0
        %2945 = vmatpush1.msra.mxu0 0.0
        %2946 = vmatprep.subr.mxu0 0.0
        %2947 = vmatpush1.msra.mxu0 0.0
        %2948 = vmatprep.subr.mxu0 0.0
        %2949 = vmatpush1.msra.mxu0 0.0
        %2950 = vmatprep.subr.mxu0 0.0
        %2951 = vmatpush1.msra.mxu0 0.0
        %2952 = vmatprep.subr.mxu0 0.0
        %2953 = vmatpush1.msra.mxu0 0.0
        %2954 = vmatprep.subr.mxu0 0.0
        %2955 = vmatpush1.msra.mxu0 0.0
        %2956 = vmatprep.mubr.f32.mxu0 0.0
        %2957 = vmatmul.mubr.f32.gmra.mrb[0].mxu0 %v1078
        %v2958 = vpop.f32.mrb[0].mxu0
        %v2959 = vadd.f32 0.0, %v2958
        %v2960 = vpop.f32.mrb[0].mxu0
        %v2961 = vadd.f32 0.0, %v2960
        %2962 = vmatprep.mubr.f32.mxu0 0.0
        %2963 = vmatmul.mubr.f32.gmra.mrb[0].mxu0 %v1081
        %v2964 = vpop.f32.mrb[0].mxu0
        %v2965 = vadd.f32 0.0, %v2964
        %v2966 = vpop.f32.mrb[0].mxu0
        %v2967 = vadd.f32 0.0, %v2966
        %2968 = vmatprep.mubr.f32.mxu0 0.0
        %2969 = vmatmul.mubr.f32.gmra.mrb[0].mxu0 %v1084
        %v2970 = vpop.f32.mrb[0].mxu0
        %v2971 = vadd.f32 0.0, %v2970
        %v2972 = vpop.f32.mrb[0].mxu0
        %v2973 = vadd.f32 0.0, %v2972
        %2974 = vmatprep.mubr.f32.mxu0 0.0
        %2975 = vmatmul.mubr.f32.gmra.mrb[0].mxu0 %v1087
        %v2976 = vpop.f32.mrb[0].mxu0
        %v2977 = vadd.f32 0.0, %v2976
        %v2978 = vpop.f32.mrb[0].mxu0
        %v2979 = vadd.f32 0.0, %v2978
        %2980 = vdwg.mxu0
        %v2981 = vadd.f32 %v2871, %v2959
        %v2982 = vadd.f32 %v2872, %v2961
        %v2983 = vadd.f32 %v2873, %v2965
        %v2984 = vadd.f32 %v2874, %v2967
        %v2985 = vadd.f32 %v2875, %v2971
        %v2986 = vadd.f32 %v2876, %v2973
        %v2987 = vadd.f32 %v2877, %v2977
        %v2988 = vadd.f32 %v2878, %v2979
        %2989 = vrot.lane.b32.xlu0 %v591, 112
        %v2990 = vpop.permute.xlu0 %2989
        %2991 = vrot.lane.b32.xlu0 %v592, 112
        %v2992 = vpop.permute.xlu0 %2991
        %v2993 = vsel %vm2883, %v2990, %v2992
        %v2994 = vsel %vm2883, %v2992, %v2990
        %v2995 = vsel %vm2888, %v2993, 0.0
        %v2996 = vsel %vm2889, %v2994, 0.0
        %2997 = vmatprep.subr.mxu0 %v2996
        %2998 = vmatpush1.msra.mxu0 %v2995
        %2999 = vmatprep.subr.mxu0 0.0
        %3000 = vmatpush1.msra.mxu0 0.0
        %3001 = vmatprep.subr.mxu0 0.0
        %3002 = vmatpush1.msra.mxu0 0.0
        %3003 = vmatprep.subr.mxu0 0.0
        %3004 = vmatpush1.msra.mxu0 0.0
        %3005 = vmatprep.subr.mxu0 0.0
        %3006 = vmatpush1.msra.mxu0 0.0
        %3007 = vmatprep.subr.mxu0 0.0
        %3008 = vmatpush1.msra.mxu0 0.0
        %3009 = vmatprep.subr.mxu0 0.0
        %3010 = vmatpush1.msra.mxu0 0.0
        %3011 = vmatprep.subr.mxu0 0.0
        %3012 = vmatpush1.msra.mxu0 0.0
        %3013 = vmatprep.subr.mxu0 0.0
        %3014 = vmatpush1.msra.mxu0 0.0
        %3015 = vmatprep.subr.mxu0 0.0
        %3016 = vmatpush1.msra.mxu0 0.0
        %3017 = vmatprep.subr.mxu0 0.0
        %3018 = vmatpush1.msra.mxu0 0.0
        %3019 = vmatprep.subr.mxu0 0.0
        %3020 = vmatpush1.msra.mxu0 0.0
        %3021 = vmatprep.subr.mxu0 0.0
        %3022 = vmatpush1.msra.mxu0 0.0
        %3023 = vmatprep.subr.mxu0 0.0
        %3024 = vmatpush1.msra.mxu0 0.0
        %3025 = vmatprep.subr.mxu0 0.0
        %3026 = vmatpush1.msra.mxu0 0.0
        %3027 = vmatprep.subr.mxu0 0.0
        %3028 = vmatpush1.msra.mxu0 0.0
        %3029 = vmatprep.subr.mxu0 0.0
        %3030 = vmatpush1.msra.mxu0 0.0
        %3031 = vmatprep.subr.mxu0 0.0
        %3032 = vmatpush1.msra.mxu0 0.0
        %3033 = vmatprep.subr.mxu0 0.0
        %3034 = vmatpush1.msra.mxu0 0.0
        %3035 = vmatprep.subr.mxu0 0.0
        %3036 = vmatpush1.msra.mxu0 0.0
        %3037 = vmatprep.subr.mxu0 0.0
        %3038 = vmatpush1.msra.mxu0 0.0
        %3039 = vmatprep.subr.mxu0 0.0
        %3040 = vmatpush1.msra.mxu0 0.0
        %3041 = vmatprep.subr.mxu0 0.0
        %3042 = vmatpush1.msra.mxu0 0.0
        %3043 = vmatprep.subr.mxu0 0.0
        %3044 = vmatpush1.msra.mxu0 0.0
        %3045 = vmatprep.subr.mxu0 0.0
        %3046 = vmatpush1.msra.mxu0 0.0
        %3047 = vmatprep.subr.mxu0 0.0
        %3048 = vmatpush1.msra.mxu0 0.0
        %3049 = vmatprep.subr.mxu0 0.0
        %3050 = vmatpush1.msra.mxu0 0.0
        %3051 = vmatprep.subr.mxu0 0.0
        %3052 = vmatpush1.msra.mxu0 0.0
        %3053 = vmatprep.subr.mxu0 0.0
        %3054 = vmatpush1.msra.mxu0 0.0
        %3055 = vmatprep.subr.mxu0 0.0
        %3056 = vmatpush1.msra.mxu0 0.0
        %3057 = vmatprep.subr.mxu0 0.0
        %3058 = vmatpush1.msra.mxu0 0.0
        %3059 = vmatprep.subr.mxu0 0.0
        %3060 = vmatpush1.msra.mxu0 0.0
        %3061 = vmatprep.mubr.f32.mxu0 0.0
        %3062 = vmatmul.mubr.f32.gmra.mrb[0].mxu0 %v1192
        %v3063 = vpop.f32.mrb[0].mxu0
        %v3064 = vadd.f32 0.0, %v3063
        %v3065 = vpop.f32.mrb[0].mxu0
        %v3066 = vadd.f32 0.0, %v3065
        %3067 = vmatprep.mubr.f32.mxu0 0.0
        %3068 = vmatmul.mubr.f32.gmra.mrb[0].mxu0 %v1195
        %v3069 = vpop.f32.mrb[0].mxu0
        %v3070 = vadd.f32 0.0, %v3069
        %v3071 = vpop.f32.mrb[0].mxu0
        %v3072 = vadd.f32 0.0, %v3071
        %3073 = vmatprep.mubr.f32.mxu0 0.0
        %3074 = vmatmul.mubr.f32.gmra.mrb[0].mxu0 %v1198
        %v3075 = vpop.f32.mrb[0].mxu0
        %v3076 = vadd.f32 0.0, %v3075
        %v3077 = vpop.f32.mrb[0].mxu0
        %v3078 = vadd.f32 0.0, %v3077
        %3079 = vmatprep.mubr.f32.mxu0 0.0
        %3080 = vmatmul.mubr.f32.gmra.mrb[0].mxu0 %v1201
        %v3081 = vpop.f32.mrb[0].mxu0
        %v3082 = vadd.f32 0.0, %v3081
        %v3083 = vpop.f32.mrb[0].mxu0
        %v3084 = vadd.f32 0.0, %v3083
        %3085 = vdwg.mxu0
        %v3086 = vadd.f32 %v2981, %v3064
        %v3087 = vadd.f32 %v2982, %v3066
        %v3088 = vadd.f32 %v2983, %v3070
        %v3089 = vadd.f32 %v2984, %v3072
        %v3090 = vadd.f32 %v2985, %v3076
        %v3091 = vadd.f32 %v2986, %v3078
        %v3092 = vadd.f32 %v2987, %v3082
        %v3093 = vadd.f32 %v2988, %v3084
        %v3094 = vmax.f32 %v2193, %v3086
        %v3095 = vmax.f32 %v2194, %v3087
        %v3096 = vmax.f32 %v2195, %v3088
        %v3097 = vmax.f32 %v2196, %v3089
        %v3098 = vmax.f32 %v2197, %v3090
        %v3099 = vmax.f32 %v2198, %v3091
        %v3100 = vmax.f32 %v2199, %v3092
        %v3101 = vmax.f32 %v2200, %v3093
        %3102 = vmatprep.subr.mxu0 %v592
        %3103 = vmatpush1.msra.mxu0 %v591
        %3104 = vmatprep.subr.mxu0 0.0
        %3105 = vmatpush1.msra.mxu0 0.0
        %3106 = vmatprep.subr.mxu0 0.0
        %3107 = vmatpush1.msra.mxu0 0.0
        %3108 = vmatprep.subr.mxu0 0.0
        %3109 = vmatpush1.msra.mxu0 0.0
        %3110 = vmatprep.subr.mxu0 0.0
        %3111 = vmatpush1.msra.mxu0 0.0
        %3112 = vmatprep.subr.mxu0 0.0
        %3113 = vmatpush1.msra.mxu0 0.0
        %3114 = vmatprep.subr.mxu0 0.0
        %3115 = vmatpush1.msra.mxu0 0.0
        %3116 = vmatprep.subr.mxu0 0.0
        %3117 = vmatpush1.msra.mxu0 0.0
        %3118 = vmatprep.subr.mxu0 0.0
        %3119 = vmatpush1.msra.mxu0 0.0
        %3120 = vmatprep.subr.mxu0 0.0
        %3121 = vmatpush1.msra.mxu0 0.0
        %3122 = vmatprep.subr.mxu0 0.0
        %3123 = vmatpush1.msra.mxu0 0.0
        %3124 = vmatprep.subr.mxu0 0.0
        %3125 = vmatpush1.msra.mxu0 0.0
        %3126 = vmatprep.subr.mxu0 0.0
        %3127 = vmatpush1.msra.mxu0 0.0
        %3128 = vmatprep.subr.mxu0 0.0
        %3129 = vmatpush1.msra.mxu0 0.0
        %3130 = vmatprep.subr.mxu0 0.0
        %3131 = vmatpush1.msra.mxu0 0.0
        %3132 = vmatprep.subr.mxu0 0.0
        %3133 = vmatpush1.msra.mxu0 0.0
        %3134 = vmatprep.subr.mxu0 0.0
        %3135 = vmatpush1.msra.mxu0 0.0
        %3136 = vmatprep.subr.mxu0 0.0
        %3137 = vmatpush1.msra.mxu0 0.0
        %3138 = vmatprep.subr.mxu0 0.0
        %3139 = vmatpush1.msra.mxu0 0.0
        %3140 = vmatprep.subr.mxu0 0.0
        %3141 = vmatpush1.msra.mxu0 0.0
        %3142 = vmatprep.subr.mxu0 0.0
        %3143 = vmatpush1.msra.mxu0 0.0
        %3144 = vmatprep.subr.mxu0 0.0
        %3145 = vmatpush1.msra.mxu0 0.0
        %3146 = vmatprep.subr.mxu0 0.0
        %3147 = vmatpush1.msra.mxu0 0.0
        %3148 = vmatprep.subr.mxu0 0.0
        %3149 = vmatpush1.msra.mxu0 0.0
        %3150 = vmatprep.subr.mxu0 0.0
        %3151 = vmatpush1.msra.mxu0 0.0
        %3152 = vmatprep.subr.mxu0 0.0
        %3153 = vmatpush1.msra.mxu0 0.0
        %3154 = vmatprep.subr.mxu0 0.0
        %3155 = vmatpush1.msra.mxu0 0.0
        %3156 = vmatprep.subr.mxu0 0.0
        %3157 = vmatpush1.msra.mxu0 0.0
        %3158 = vmatprep.subr.mxu0 0.0
        %3159 = vmatpush1.msra.mxu0 0.0
        %3160 = vmatprep.subr.mxu0 0.0
        %3161 = vmatpush1.msra.mxu0 0.0
        %3162 = vmatprep.subr.mxu0 0.0
        %3163 = vmatpush1.msra.mxu0 0.0
        %3164 = vmatprep.subr.mxu0 0.0
        %3165 = vmatpush1.msra.mxu0 0.0
        %3166 = vmatprep.mubr.f32.mxu0 0.0
        %3167 = vmatmul.mubr.f32.gmra.mrb[0].mxu0 %v267
        %v3168 = vpop.f32.mrb[0].mxu0
        %v3169 = vadd.f32 0.0, %v3168
        %v3170 = vpop.f32.mrb[0].mxu0
        %v3171 = vadd.f32 0.0, %v3170
        %3172 = vmatprep.mubr.f32.mxu0 0.0
        %3173 = vmatmul.mubr.f32.gmra.mrb[0].mxu0 %v270
        %v3174 = vpop.f32.mrb[0].mxu0
        %v3175 = vadd.f32 0.0, %v3174
        %v3176 = vpop.f32.mrb[0].mxu0
        %v3177 = vadd.f32 0.0, %v3176
        %3178 = vmatprep.mubr.f32.mxu0 0.0
        %3179 = vmatmul.mubr.f32.gmra.mrb[0].mxu0 %v273
        %v3180 = vpop.f32.mrb[0].mxu0
        %v3181 = vadd.f32 0.0, %v3180
        %v3182 = vpop.f32.mrb[0].mxu0
        %v3183 = vadd.f32 0.0, %v3182
        %3184 = vmatprep.mubr.f32.mxu0 0.0
        %3185 = vmatmul.mubr.f32.gmra.mrb[0].mxu0 %v276
        %v3186 = vpop.f32.mrb[0].mxu0
        %v3187 = vadd.f32 0.0, %v3186
        %v3188 = vpop.f32.mrb[0].mxu0
        %v3189 = vadd.f32 0.0, %v3188
        %3190 = vdwg.mxu0
        %3191 = vmatprep.subr.mxu0 %v721
        %3192 = vmatpush1.msra.mxu0 %v720
        %3193 = vmatprep.subr.mxu0 0.0
        %3194 = vmatpush1.msra.mxu0 0.0
        %3195 = vmatprep.subr.mxu0 0.0
        %3196 = vmatpush1.msra.mxu0 0.0
        %3197 = vmatprep.subr.mxu0 0.0
        %3198 = vmatpush1.msra.mxu0 0.0
        %3199 = vmatprep.subr.mxu0 0.0
        %3200 = vmatpush1.msra.mxu0 0.0
        %3201 = vmatprep.subr.mxu0 0.0
        %3202 = vmatpush1.msra.mxu0 0.0
        %3203 = vmatprep.subr.mxu0 0.0
        %3204 = vmatpush1.msra.mxu0 0.0
        %3205 = vmatprep.subr.mxu0 0.0
        %3206 = vmatpush1.msra.mxu0 0.0
        %3207 = vmatprep.subr.mxu0 0.0
        %3208 = vmatpush1.msra.mxu0 0.0
        %3209 = vmatprep.subr.mxu0 0.0
        %3210 = vmatpush1.msra.mxu0 0.0
        %3211 = vmatprep.subr.mxu0 0.0
        %3212 = vmatpush1.msra.mxu0 0.0
        %3213 = vmatprep.subr.mxu0 0.0
        %3214 = vmatpush1.msra.mxu0 0.0
        %3215 = vmatprep.subr.mxu0 0.0
        %3216 = vmatpush1.msra.mxu0 0.0
        %3217 = vmatprep.subr.mxu0 0.0
        %3218 = vmatpush1.msra.mxu0 0.0
        %3219 = vmatprep.subr.mxu0 0.0
        %3220 = vmatpush1.msra.mxu0 0.0
        %3221 = vmatprep.subr.mxu0 0.0
        %3222 = vmatpush1.msra.mxu0 0.0
        %3223 = vmatprep.subr.mxu0 0.0
        %3224 = vmatpush1.msra.mxu0 0.0
        %3225 = vmatprep.subr.mxu0 0.0
        %3226 = vmatpush1.msra.mxu0 0.0
        %3227 = vmatprep.subr.mxu0 0.0
        %3228 = vmatpush1.msra.mxu0 0.0
        %3229 = vmatprep.subr.mxu0 0.0
        %3230 = vmatpush1.msra.mxu0 0.0
        %3231 = vmatprep.subr.mxu0 0.0
        %3232 = vmatpush1.msra.mxu0 0.0
        %3233 = vmatprep.subr.mxu0 0.0
        %3234 = vmatpush1.msra.mxu0 0.0
        %3235 = vmatprep.subr.mxu0 0.0
        %3236 = vmatpush1.msra.mxu0 0.0
        %3237 = vmatprep.subr.mxu0 0.0
        %3238 = vmatpush1.msra.mxu0 0.0
        %3239 = vmatprep.subr.mxu0 0.0
        %3240 = vmatpush1.msra.mxu0 0.0
        %3241 = vmatprep.subr.mxu0 0.0
        %3242 = vmatpush1.msra.mxu0 0.0
        %3243 = vmatprep.subr.mxu0 0.0
        %3244 = vmatpush1.msra.mxu0 0.0
        %3245 = vmatprep.subr.mxu0 0.0
        %3246 = vmatpush1.msra.mxu0 0.0
        %3247 = vmatprep.subr.mxu0 0.0
        %3248 = vmatpush1.msra.mxu0 0.0
        %3249 = vmatprep.subr.mxu0 0.0
        %3250 = vmatpush1.msra.mxu0 0.0
        %3251 = vmatprep.subr.mxu0 0.0
        %3252 = vmatpush1.msra.mxu0 0.0
        %3253 = vmatprep.subr.mxu0 0.0
        %3254 = vmatpush1.msra.mxu0 0.0
        %3255 = vmatprep.mubr.f32.mxu0 0.0
        %3256 = vmatmul.mubr.f32.gmra.mrb[0].mxu0 %v368
        %v3257 = vpop.f32.mrb[0].mxu0
        %v3258 = vadd.f32 %v3169, %v3257
        %v3259 = vpop.f32.mrb[0].mxu0
        %v3260 = vadd.f32 %v3171, %v3259
        %3261 = vmatprep.mubr.f32.mxu0 0.0
        %3262 = vmatmul.mubr.f32.gmra.mrb[0].mxu0 %v371
        %v3263 = vpop.f32.mrb[0].mxu0
        %v3264 = vadd.f32 %v3175, %v3263
        %v3265 = vpop.f32.mrb[0].mxu0
        %v3266 = vadd.f32 %v3177, %v3265
        %3267 = vmatprep.mubr.f32.mxu0 0.0
        %3268 = vmatmul.mubr.f32.gmra.mrb[0].mxu0 %v374
        %v3269 = vpop.f32.mrb[0].mxu0
        %v3270 = vadd.f32 %v3181, %v3269
        %v3271 = vpop.f32.mrb[0].mxu0
        %v3272 = vadd.f32 %v3183, %v3271
        %3273 = vmatprep.mubr.f32.mxu0 0.0
        %3274 = vmatmul.mubr.f32.gmra.mrb[0].mxu0 %v377
        %v3275 = vpop.f32.mrb[0].mxu0
        %v3276 = vadd.f32 %v3187, %v3275
        %v3277 = vpop.f32.mrb[0].mxu0
        %v3278 = vadd.f32 %v3189, %v3277
        %3279 = vdwg.mxu0
        %3280 = vmatprep.subr.mxu0 %v1796
        %3281 = vmatpush1.msra.mxu0 %v1795
        %3282 = vmatprep.subr.mxu0 0.0
        %3283 = vmatpush1.msra.mxu0 0.0
        %3284 = vmatprep.subr.mxu0 0.0
        %3285 = vmatpush1.msra.mxu0 0.0
        %3286 = vmatprep.subr.mxu0 0.0
        %3287 = vmatpush1.msra.mxu0 0.0
        %3288 = vmatprep.subr.mxu0 0.0
        %3289 = vmatpush1.msra.mxu0 0.0
        %3290 = vmatprep.subr.mxu0 0.0
        %3291 = vmatpush1.msra.mxu0 0.0
        %3292 = vmatprep.subr.mxu0 0.0
        %3293 = vmatpush1.msra.mxu0 0.0
        %3294 = vmatprep.subr.mxu0 0.0
        %3295 = vmatpush1.msra.mxu0 0.0
        %3296 = vmatprep.subr.mxu0 0.0
        %3297 = vmatpush1.msra.mxu0 0.0
        %3298 = vmatprep.subr.mxu0 0.0
        %3299 = vmatpush1.msra.mxu0 0.0
        %3300 = vmatprep.subr.mxu0 0.0
        %3301 = vmatpush1.msra.mxu0 0.0
        %3302 = vmatprep.subr.mxu0 0.0
        %3303 = vmatpush1.msra.mxu0 0.0
        %3304 = vmatprep.subr.mxu0 0.0
        %3305 = vmatpush1.msra.mxu0 0.0
        %3306 = vmatprep.subr.mxu0 0.0
        %3307 = vmatpush1.msra.mxu0 0.0
        %3308 = vmatprep.subr.mxu0 0.0
        %3309 = vmatpush1.msra.mxu0 0.0
        %3310 = vmatprep.subr.mxu0 0.0
        %3311 = vmatpush1.msra.mxu0 0.0
        %3312 = vmatprep.subr.mxu0 0.0
        %3313 = vmatpush1.msra.mxu0 0.0
        %3314 = vmatprep.subr.mxu0 0.0
        %3315 = vmatpush1.msra.mxu0 0.0
        %3316 = vmatprep.subr.mxu0 0.0
        %3317 = vmatpush1.msra.mxu0 0.0
        %3318 = vmatprep.subr.mxu0 0.0
        %3319 = vmatpush1.msra.mxu0 0.0
        %3320 = vmatprep.subr.mxu0 0.0
        %3321 = vmatpush1.msra.mxu0 0.0
        %3322 = vmatprep.subr.mxu0 0.0
        %3323 = vmatpush1.msra.mxu0 0.0
        %3324 = vmatprep.subr.mxu0 0.0
        %3325 = vmatpush1.msra.mxu0 0.0
        %3326 = vmatprep.subr.mxu0 0.0
        %3327 = vmatpush1.msra.mxu0 0.0
        %3328 = vmatprep.subr.mxu0 0.0
        %3329 = vmatpush1.msra.mxu0 0.0
        %3330 = vmatprep.subr.mxu0 0.0
        %3331 = vmatpush1.msra.mxu0 0.0
        %3332 = vmatprep.subr.mxu0 0.0
        %3333 = vmatpush1.msra.mxu0 0.0
        %3334 = vmatprep.subr.mxu0 0.0
        %3335 = vmatpush1.msra.mxu0 0.0
        %3336 = vmatprep.subr.mxu0 0.0
        %3337 = vmatpush1.msra.mxu0 0.0
        %3338 = vmatprep.subr.mxu0 0.0
        %3339 = vmatpush1.msra.mxu0 0.0
        %3340 = vmatprep.subr.mxu0 0.0
        %3341 = vmatpush1.msra.mxu0 0.0
        %3342 = vmatprep.subr.mxu0 0.0
        %3343 = vmatpush1.msra.mxu0 0.0
        %3344 = vmatprep.mubr.f32.mxu0 0.0
        %3345 = vmatmul.mubr.f32.gmra.mrb[0].mxu0 %v482
        %v3346 = vpop.f32.mrb[0].mxu0
        %v3347 = vadd.f32 0.0, %v3346
        %v3348 = vpop.f32.mrb[0].mxu0
        %v3349 = vadd.f32 0.0, %v3348
        %3350 = vmatprep.mubr.f32.mxu0 0.0
        %3351 = vmatmul.mubr.f32.gmra.mrb[0].mxu0 %v485
        %v3352 = vpop.f32.mrb[0].mxu0
        %v3353 = vadd.f32 0.0, %v3352
        %v3354 = vpop.f32.mrb[0].mxu0
        %v3355 = vadd.f32 0.0, %v3354
        %3356 = vmatprep.mubr.f32.mxu0 0.0
        %3357 = vmatmul.mubr.f32.gmra.mrb[0].mxu0 %v488
        %v3358 = vpop.f32.mrb[0].mxu0
        %v3359 = vadd.f32 0.0, %v3358
        %v3360 = vpop.f32.mrb[0].mxu0
        %v3361 = vadd.f32 0.0, %v3360
        %3362 = vmatprep.mubr.f32.mxu0 0.0
        %3363 = vmatmul.mubr.f32.gmra.mrb[0].mxu0 %v491
        %v3364 = vpop.f32.mrb[0].mxu0
        %v3365 = vadd.f32 0.0, %v3364
        %v3366 = vpop.f32.mrb[0].mxu0
        %v3367 = vadd.f32 0.0, %v3366
        %3368 = vdwg.mxu0
        %v3369 = vadd.f32 %v3258, %v3347
        %v3370 = vadd.f32 %v3260, %v3349
        %v3371 = vadd.f32 %v3264, %v3353
        %v3372 = vadd.f32 %v3266, %v3355
        %v3373 = vadd.f32 %v3270, %v3359
        %v3374 = vadd.f32 %v3272, %v3361
        %v3375 = vadd.f32 %v3276, %v3365
        %v3376 = vadd.f32 %v3278, %v3367
        %3377 = vmatprep.subr.mxu0 %v246
        %3378 = vmatpush1.msra.mxu0 %v245
        %3379 = vmatprep.subr.mxu0 0.0
        %3380 = vmatpush1.msra.mxu0 0.0
        %3381 = vmatprep.subr.mxu0 0.0
        %3382 = vmatpush1.msra.mxu0 0.0
        %3383 = vmatprep.subr.mxu0 0.0
        %3384 = vmatpush1.msra.mxu0 0.0
        %3385 = vmatprep.subr.mxu0 0.0
        %3386 = vmatpush1.msra.mxu0 0.0
        %3387 = vmatprep.subr.mxu0 0.0
        %3388 = vmatpush1.msra.mxu0 0.0
        %3389 = vmatprep.subr.mxu0 0.0
        %3390 = vmatpush1.msra.mxu0 0.0
        %3391 = vmatprep.subr.mxu0 0.0
        %3392 = vmatpush1.msra.mxu0 0.0
        %3393 = vmatprep.subr.mxu0 0.0
        %3394 = vmatpush1.msra.mxu0 0.0
        %3395 = vmatprep.subr.mxu0 0.0
        %3396 = vmatpush1.msra.mxu0 0.0
        %3397 = vmatprep.subr.mxu0 0.0
        %3398 = vmatpush1.msra.mxu0 0.0
        %3399 = vmatprep.subr.mxu0 0.0
        %3400 = vmatpush1.msra.mxu0 0.0
        %3401 = vmatprep.subr.mxu0 0.0
        %3402 = vmatpush1.msra.mxu0 0.0
        %3403 = vmatprep.subr.mxu0 0.0
        %3404 = vmatpush1.msra.mxu0 0.0
        %3405 = vmatprep.subr.mxu0 0.0
        %3406 = vmatpush1.msra.mxu0 0.0
        %3407 = vmatprep.subr.mxu0 0.0
        %3408 = vmatpush1.msra.mxu0 0.0
        %3409 = vmatprep.subr.mxu0 0.0
        %3410 = vmatpush1.msra.mxu0 0.0
        %3411 = vmatprep.subr.mxu0 0.0
        %3412 = vmatpush1.msra.mxu0 0.0
        %3413 = vmatprep.subr.mxu0 0.0
        %3414 = vmatpush1.msra.mxu0 0.0
        %3415 = vmatprep.subr.mxu0 0.0
        %3416 = vmatpush1.msra.mxu0 0.0
        %3417 = vmatprep.subr.mxu0 0.0
        %3418 = vmatpush1.msra.mxu0 0.0
        %3419 = vmatprep.subr.mxu0 0.0
        %3420 = vmatpush1.msra.mxu0 0.0
        %3421 = vmatprep.subr.mxu0 0.0
        %3422 = vmatpush1.msra.mxu0 0.0
        %3423 = vmatprep.subr.mxu0 0.0
        %3424 = vmatpush1.msra.mxu0 0.0
        %3425 = vmatprep.subr.mxu0 0.0
        %3426 = vmatpush1.msra.mxu0 0.0
        %3427 = vmatprep.subr.mxu0 0.0
        %3428 = vmatpush1.msra.mxu0 0.0
        %3429 = vmatprep.subr.mxu0 0.0
        %3430 = vmatpush1.msra.mxu0 0.0
        %3431 = vmatprep.subr.mxu0 0.0
        %3432 = vmatpush1.msra.mxu0 0.0
        %3433 = vmatprep.subr.mxu0 0.0
        %3434 = vmatpush1.msra.mxu0 0.0
        %3435 = vmatprep.subr.mxu0 0.0
        %3436 = vmatpush1.msra.mxu0 0.0
        %3437 = vmatprep.subr.mxu0 0.0
        %3438 = vmatpush1.msra.mxu0 0.0
        %3439 = vmatprep.subr.mxu0 0.0
        %3440 = vmatpush1.msra.mxu0 0.0
        %3441 = vmatprep.mubr.f32.mxu0 0.0
        %3442 = vmatmul.mubr.f32.gmra.mrb[0].mxu0 %v612
        %v3443 = vpop.f32.mrb[0].mxu0
        %v3444 = vadd.f32 0.0, %v3443
        %v3445 = vpop.f32.mrb[0].mxu0
        %v3446 = vadd.f32 0.0, %v3445
        %3447 = vmatprep.mubr.f32.mxu0 0.0
        %3448 = vmatmul.mubr.f32.gmra.mrb[0].mxu0 %v615
        %v3449 = vpop.f32.mrb[0].mxu0
        %v3450 = vadd.f32 0.0, %v3449
        %v3451 = vpop.f32.mrb[0].mxu0
        %v3452 = vadd.f32 0.0, %v3451
        %3453 = vmatprep.mubr.f32.mxu0 0.0
        %3454 = vmatmul.mubr.f32.gmra.mrb[0].mxu0 %v618
        %v3455 = vpop.f32.mrb[0].mxu0
        %v3456 = vadd.f32 0.0, %v3455
        %v3457 = vpop.f32.mrb[0].mxu0
        %v3458 = vadd.f32 0.0, %v3457
        %3459 = vmatprep.mubr.f32.mxu0 0.0
        %3460 = vmatmul.mubr.f32.gmra.mrb[0].mxu0 %v621
        %v3461 = vpop.f32.mrb[0].mxu0
        %v3462 = vadd.f32 0.0, %v3461
        %v3463 = vpop.f32.mrb[0].mxu0
        %v3464 = vadd.f32 0.0, %v3463
        %3465 = vdwg.mxu0
        %v3466 = vadd.f32 %v3369, %v3444
        %v3467 = vadd.f32 %v3370, %v3446
        %v3468 = vadd.f32 %v3371, %v3450
        %v3469 = vadd.f32 %v3372, %v3452
        %v3470 = vadd.f32 %v3373, %v3456
        %v3471 = vadd.f32 %v3374, %v3458
        %v3472 = vadd.f32 %v3375, %v3462
        %v3473 = vadd.f32 %v3376, %v3464
        %3474 = vmatprep.subr.mxu0 %v224
        %3475 = vmatpush1.msra.mxu0 %v223
        %3476 = vmatprep.subr.mxu0 0.0
        %3477 = vmatpush1.msra.mxu0 0.0
        %3478 = vmatprep.subr.mxu0 0.0
        %3479 = vmatpush1.msra.mxu0 0.0
        %3480 = vmatprep.subr.mxu0 0.0
        %3481 = vmatpush1.msra.mxu0 0.0
        %3482 = vmatprep.subr.mxu0 0.0
        %3483 = vmatpush1.msra.mxu0 0.0
        %3484 = vmatprep.subr.mxu0 0.0
        %3485 = vmatpush1.msra.mxu0 0.0
        %3486 = vmatprep.subr.mxu0 0.0
        %3487 = vmatpush1.msra.mxu0 0.0
        %3488 = vmatprep.subr.mxu0 0.0
        %3489 = vmatpush1.msra.mxu0 0.0
        %3490 = vmatprep.subr.mxu0 0.0
        %3491 = vmatpush1.msra.mxu0 0.0
        %3492 = vmatprep.subr.mxu0 0.0
        %3493 = vmatpush1.msra.mxu0 0.0
        %3494 = vmatprep.subr.mxu0 0.0
        %3495 = vmatpush1.msra.mxu0 0.0
        %3496 = vmatprep.subr.mxu0 0.0
        %3497 = vmatpush1.msra.mxu0 0.0
        %3498 = vmatprep.subr.mxu0 0.0
        %3499 = vmatpush1.msra.mxu0 0.0
        %3500 = vmatprep.subr.mxu0 0.0
        %3501 = vmatpush1.msra.mxu0 0.0
        %3502 = vmatprep.subr.mxu0 0.0
        %3503 = vmatpush1.msra.mxu0 0.0
        %3504 = vmatprep.subr.mxu0 0.0
        %3505 = vmatpush1.msra.mxu0 0.0
        %3506 = vmatprep.subr.mxu0 0.0
        %3507 = vmatpush1.msra.mxu0 0.0
        %3508 = vmatprep.subr.mxu0 0.0
        %3509 = vmatpush1.msra.mxu0 0.0
        %3510 = vmatprep.subr.mxu0 0.0
        %3511 = vmatpush1.msra.mxu0 0.0
        %3512 = vmatprep.subr.mxu0 0.0
        %3513 = vmatpush1.msra.mxu0 0.0
        %3514 = vmatprep.subr.mxu0 0.0
        %3515 = vmatpush1.msra.mxu0 0.0
        %3516 = vmatprep.subr.mxu0 0.0
        %3517 = vmatpush1.msra.mxu0 0.0
        %3518 = vmatprep.subr.mxu0 0.0
        %3519 = vmatpush1.msra.mxu0 0.0
        %3520 = vmatprep.subr.mxu0 0.0
        %3521 = vmatpush1.msra.mxu0 0.0
        %3522 = vmatprep.subr.mxu0 0.0
        %3523 = vmatpush1.msra.mxu0 0.0
        %3524 = vmatprep.subr.mxu0 0.0
        %3525 = vmatpush1.msra.mxu0 0.0
        %3526 = vmatprep.subr.mxu0 0.0
        %3527 = vmatpush1.msra.mxu0 0.0
        %3528 = vmatprep.subr.mxu0 0.0
        %3529 = vmatpush1.msra.mxu0 0.0
        %3530 = vmatprep.subr.mxu0 0.0
        %3531 = vmatpush1.msra.mxu0 0.0
        %3532 = vmatprep.subr.mxu0 0.0
        %3533 = vmatpush1.msra.mxu0 0.0
        %3534 = vmatprep.subr.mxu0 0.0
        %3535 = vmatpush1.msra.mxu0 0.0
        %3536 = vmatprep.subr.mxu0 0.0
        %3537 = vmatpush1.msra.mxu0 0.0
        %3538 = vmatprep.mubr.f32.mxu0 0.0
        %3539 = vmatmul.mubr.f32.gmra.mrb[0].mxu0 %v728
        %v3540 = vpop.f32.mrb[0].mxu0
        %v3541 = vadd.f32 0.0, %v3540
        %v3542 = vpop.f32.mrb[0].mxu0
        %v3543 = vadd.f32 0.0, %v3542
        %3544 = vmatprep.mubr.f32.mxu0 0.0
        %3545 = vmatmul.mubr.f32.gmra.mrb[0].mxu0 %v731
        %v3546 = vpop.f32.mrb[0].mxu0
        %v3547 = vadd.f32 0.0, %v3546
        %v3548 = vpop.f32.mrb[0].mxu0
        %v3549 = vadd.f32 0.0, %v3548
        %3550 = vmatprep.mubr.f32.mxu0 0.0
        %3551 = vmatmul.mubr.f32.gmra.mrb[0].mxu0 %v734
        %v3552 = vpop.f32.mrb[0].mxu0
        %v3553 = vadd.f32 0.0, %v3552
        %v3554 = vpop.f32.mrb[0].mxu0
        %v3555 = vadd.f32 0.0, %v3554
        %3556 = vmatprep.mubr.f32.mxu0 0.0
        %3557 = vmatmul.mubr.f32.gmra.mrb[0].mxu0 %v737
        %v3558 = vpop.f32.mrb[0].mxu0
        %v3559 = vadd.f32 0.0, %v3558
        %v3560 = vpop.f32.mrb[0].mxu0
        %v3561 = vadd.f32 0.0, %v3560
        %3562 = vdwg.mxu0
        %v3563 = vadd.f32 %v3466, %v3541
        %v3564 = vadd.f32 %v3467, %v3543
        %v3565 = vadd.f32 %v3468, %v3547
        %v3566 = vadd.f32 %v3469, %v3549
        %v3567 = vadd.f32 %v3470, %v3553
        %v3568 = vadd.f32 %v3471, %v3555
        %v3569 = vadd.f32 %v3472, %v3559
        %v3570 = vadd.f32 %v3473, %v3561
        %3571 = vmatprep.subr.mxu0 %v2095
        %3572 = vmatpush1.msra.mxu0 %v2094
        %3573 = vmatprep.subr.mxu0 0.0
        %3574 = vmatpush1.msra.mxu0 0.0
        %3575 = vmatprep.subr.mxu0 0.0
        %3576 = vmatpush1.msra.mxu0 0.0
        %3577 = vmatprep.subr.mxu0 0.0
        %3578 = vmatpush1.msra.mxu0 0.0
        %3579 = vmatprep.subr.mxu0 0.0
        %3580 = vmatpush1.msra.mxu0 0.0
        %3581 = vmatprep.subr.mxu0 0.0
        %3582 = vmatpush1.msra.mxu0 0.0
        %3583 = vmatprep.subr.mxu0 0.0
        %3584 = vmatpush1.msra.mxu0 0.0
        %3585 = vmatprep.subr.mxu0 0.0
        %3586 = vmatpush1.msra.mxu0 0.0
        %3587 = vmatprep.subr.mxu0 0.0
        %3588 = vmatpush1.msra.mxu0 0.0
        %3589 = vmatprep.subr.mxu0 0.0
        %3590 = vmatpush1.msra.mxu0 0.0
        %3591 = vmatprep.subr.mxu0 0.0
        %3592 = vmatpush1.msra.mxu0 0.0
        %3593 = vmatprep.subr.mxu0 0.0
        %3594 = vmatpush1.msra.mxu0 0.0
        %3595 = vmatprep.subr.mxu0 0.0
        %3596 = vmatpush1.msra.mxu0 0.0
        %3597 = vmatprep.subr.mxu0 0.0
        %3598 = vmatpush1.msra.mxu0 0.0
        %3599 = vmatprep.subr.mxu0 0.0
        %3600 = vmatpush1.msra.mxu0 0.0
        %3601 = vmatprep.subr.mxu0 0.0
        %3602 = vmatpush1.msra.mxu0 0.0
        %3603 = vmatprep.subr.mxu0 0.0
        %3604 = vmatpush1.msra.mxu0 0.0
        %3605 = vmatprep.subr.mxu0 0.0
        %3606 = vmatpush1.msra.mxu0 0.0
        %3607 = vmatprep.subr.mxu0 0.0
        %3608 = vmatpush1.msra.mxu0 0.0
        %3609 = vmatprep.subr.mxu0 0.0
        %3610 = vmatpush1.msra.mxu0 0.0
        %3611 = vmatprep.subr.mxu0 0.0
        %3612 = vmatpush1.msra.mxu0 0.0
        %3613 = vmatprep.subr.mxu0 0.0
        %3614 = vmatpush1.msra.mxu0 0.0
        %3615 = vmatprep.subr.mxu0 0.0
        %3616 = vmatpush1.msra.mxu0 0.0
        %3617 = vmatprep.subr.mxu0 0.0
        %3618 = vmatpush1.msra.mxu0 0.0
        %3619 = vmatprep.subr.mxu0 0.0
        %3620 = vmatpush1.msra.mxu0 0.0
        %3621 = vmatprep.subr.mxu0 0.0
        %3622 = vmatpush1.msra.mxu0 0.0
        %3623 = vmatprep.subr.mxu0 0.0
        %3624 = vmatpush1.msra.mxu0 0.0
        %3625 = vmatprep.subr.mxu0 0.0
        %3626 = vmatpush1.msra.mxu0 0.0
        %3627 = vmatprep.subr.mxu0 0.0
        %3628 = vmatpush1.msra.mxu0 0.0
        %3629 = vmatprep.subr.mxu0 0.0
        %3630 = vmatpush1.msra.mxu0 0.0
        %3631 = vmatprep.subr.mxu0 0.0
        %3632 = vmatpush1.msra.mxu0 0.0
        %3633 = vmatprep.subr.mxu0 0.0
        %3634 = vmatpush1.msra.mxu0 0.0
        %3635 = vmatprep.mubr.f32.mxu0 0.0
        %3636 = vmatmul.mubr.f32.gmra.mrb[0].mxu0 %v842
        %v3637 = vpop.f32.mrb[0].mxu0
        %v3638 = vadd.f32 0.0, %v3637
        %v3639 = vpop.f32.mrb[0].mxu0
        %v3640 = vadd.f32 0.0, %v3639
        %3641 = vmatprep.mubr.f32.mxu0 0.0
        %3642 = vmatmul.mubr.f32.gmra.mrb[0].mxu0 %v845
        %v3643 = vpop.f32.mrb[0].mxu0
        %v3644 = vadd.f32 0.0, %v3643
        %v3645 = vpop.f32.mrb[0].mxu0
        %v3646 = vadd.f32 0.0, %v3645
        %3647 = vmatprep.mubr.f32.mxu0 0.0
        %3648 = vmatmul.mubr.f32.gmra.mrb[0].mxu0 %v848
        %v3649 = vpop.f32.mrb[0].mxu0
        %v3650 = vadd.f32 0.0, %v3649
        %v3651 = vpop.f32.mrb[0].mxu0
        %v3652 = vadd.f32 0.0, %v3651
        %3653 = vmatprep.mubr.f32.mxu0 0.0
        %3654 = vmatmul.mubr.f32.gmra.mrb[0].mxu0 %v851
        %v3655 = vpop.f32.mrb[0].mxu0
        %v3656 = vadd.f32 0.0, %v3655
        %v3657 = vpop.f32.mrb[0].mxu0
        %v3658 = vadd.f32 0.0, %v3657
        %3659 = vdwg.mxu0
        %v3660 = vadd.f32 %v3563, %v3638
        %v3661 = vadd.f32 %v3564, %v3640
        %v3662 = vadd.f32 %v3565, %v3644
        %v3663 = vadd.f32 %v3566, %v3646
        %v3664 = vadd.f32 %v3567, %v3650
        %v3665 = vadd.f32 %v3568, %v3652
        %v3666 = vadd.f32 %v3569, %v3656
        %v3667 = vadd.f32 %v3570, %v3658
        %3668 = vmatprep.subr.mxu0 %v2891
        %3669 = vmatpush1.msra.mxu0 %v2890
        %3670 = vmatprep.subr.mxu0 0.0
        %3671 = vmatpush1.msra.mxu0 0.0
        %3672 = vmatprep.subr.mxu0 0.0
        %3673 = vmatpush1.msra.mxu0 0.0
        %3674 = vmatprep.subr.mxu0 0.0
        %3675 = vmatpush1.msra.mxu0 0.0
        %3676 = vmatprep.subr.mxu0 0.0
        %3677 = vmatpush1.msra.mxu0 0.0
        %3678 = vmatprep.subr.mxu0 0.0
        %3679 = vmatpush1.msra.mxu0 0.0
        %3680 = vmatprep.subr.mxu0 0.0
        %3681 = vmatpush1.msra.mxu0 0.0
        %3682 = vmatprep.subr.mxu0 0.0
        %3683 = vmatpush1.msra.mxu0 0.0
        %3684 = vmatprep.subr.mxu0 0.0
        %3685 = vmatpush1.msra.mxu0 0.0
        %3686 = vmatprep.subr.mxu0 0.0
        %3687 = vmatpush1.msra.mxu0 0.0
        %3688 = vmatprep.subr.mxu0 0.0
        %3689 = vmatpush1.msra.mxu0 0.0
        %3690 = vmatprep.subr.mxu0 0.0
        %3691 = vmatpush1.msra.mxu0 0.0
        %3692 = vmatprep.subr.mxu0 0.0
        %3693 = vmatpush1.msra.mxu0 0.0
        %3694 = vmatprep.subr.mxu0 0.0
        %3695 = vmatpush1.msra.mxu0 0.0
        %3696 = vmatprep.subr.mxu0 0.0
        %3697 = vmatpush1.msra.mxu0 0.0
        %3698 = vmatprep.subr.mxu0 0.0
        %3699 = vmatpush1.msra.mxu0 0.0
        %3700 = vmatprep.subr.mxu0 0.0
        %3701 = vmatpush1.msra.mxu0 0.0
        %3702 = vmatprep.subr.mxu0 0.0
        %3703 = vmatpush1.msra.mxu0 0.0
        %3704 = vmatprep.subr.mxu0 0.0
        %3705 = vmatpush1.msra.mxu0 0.0
        %3706 = vmatprep.subr.mxu0 0.0
        %3707 = vmatpush1.msra.mxu0 0.0
        %3708 = vmatprep.subr.mxu0 0.0
        %3709 = vmatpush1.msra.mxu0 0.0
        %3710 = vmatprep.subr.mxu0 0.0
        %3711 = vmatpush1.msra.mxu0 0.0
        %3712 = vmatprep.subr.mxu0 0.0
        %3713 = vmatpush1.msra.mxu0 0.0
        %3714 = vmatprep.subr.mxu0 0.0
        %3715 = vmatpush1.msra.mxu0 0.0
        %3716 = vmatprep.subr.mxu0 0.0
        %3717 = vmatpush1.msra.mxu0 0.0
        %3718 = vmatprep.subr.mxu0 0.0
        %3719 = vmatpush1.msra.mxu0 0.0
        %3720 = vmatprep.subr.mxu0 0.0
        %3721 = vmatpush1.msra.mxu0 0.0
        %3722 = vmatprep.subr.mxu0 0.0
        %3723 = vmatpush1.msra.mxu0 0.0
        %3724 = vmatprep.subr.mxu0 0.0
        %3725 = vmatpush1.msra.mxu0 0.0
        %3726 = vmatprep.subr.mxu0 0.0
        %3727 = vmatpush1.msra.mxu0 0.0
        %3728 = vmatprep.subr.mxu0 0.0
        %3729 = vmatpush1.msra.mxu0 0.0
        %3730 = vmatprep.subr.mxu0 0.0
        %3731 = vmatpush1.msra.mxu0 0.0
        %3732 = vmatprep.mubr.f32.mxu0 0.0
        %3733 = vmatmul.mubr.f32.gmra.mrb[0].mxu0 %v964
        %v3734 = vpop.f32.mrb[0].mxu0
        %v3735 = vadd.f32 0.0, %v3734
        %v3736 = vpop.f32.mrb[0].mxu0
        %v3737 = vadd.f32 0.0, %v3736
        %3738 = vmatprep.mubr.f32.mxu0 0.0
        %3739 = vmatmul.mubr.f32.gmra.mrb[0].mxu0 %v967
        %v3740 = vpop.f32.mrb[0].mxu0
        %v3741 = vadd.f32 0.0, %v3740
        %v3742 = vpop.f32.mrb[0].mxu0
        %v3743 = vadd.f32 0.0, %v3742
        %3744 = vmatprep.mubr.f32.mxu0 0.0
        %3745 = vmatmul.mubr.f32.gmra.mrb[0].mxu0 %v970
        %v3746 = vpop.f32.mrb[0].mxu0
        %v3747 = vadd.f32 0.0, %v3746
        %v3748 = vpop.f32.mrb[0].mxu0
        %v3749 = vadd.f32 0.0, %v3748
        %3750 = vmatprep.mubr.f32.mxu0 0.0
        %3751 = vmatmul.mubr.f32.gmra.mrb[0].mxu0 %v973
        %v3752 = vpop.f32.mrb[0].mxu0
        %v3753 = vadd.f32 0.0, %v3752
        %v3754 = vpop.f32.mrb[0].mxu0
        %v3755 = vadd.f32 0.0, %v3754
        %3756 = vdwg.mxu0
        %v3757 = vadd.f32 %v3660, %v3735
        %v3758 = vadd.f32 %v3661, %v3737
        %v3759 = vadd.f32 %v3662, %v3741
        %v3760 = vadd.f32 %v3663, %v3743
        %v3761 = vadd.f32 %v3664, %v3747
        %v3762 = vadd.f32 %v3665, %v3749
        %v3763 = vadd.f32 %v3666, %v3753
        %v3764 = vadd.f32 %v3667, %v3755
        %3765 = vmatprep.subr.mxu0 %v2996
        %3766 = vmatpush1.msra.mxu0 %v2995
        %3767 = vmatprep.subr.mxu0 0.0
        %3768 = vmatpush1.msra.mxu0 0.0
        %3769 = vmatprep.subr.mxu0 0.0
        %3770 = vmatpush1.msra.mxu0 0.0
        %3771 = vmatprep.subr.mxu0 0.0
        %3772 = vmatpush1.msra.mxu0 0.0
        %3773 = vmatprep.subr.mxu0 0.0
        %3774 = vmatpush1.msra.mxu0 0.0
        %3775 = vmatprep.subr.mxu0 0.0
        %3776 = vmatpush1.msra.mxu0 0.0
        %3777 = vmatprep.subr.mxu0 0.0
        %3778 = vmatpush1.msra.mxu0 0.0
        %3779 = vmatprep.subr.mxu0 0.0
        %3780 = vmatpush1.msra.mxu0 0.0
        %3781 = vmatprep.subr.mxu0 0.0
        %3782 = vmatpush1.msra.mxu0 0.0
        %3783 = vmatprep.subr.mxu0 0.0
        %3784 = vmatpush1.msra.mxu0 0.0
        %3785 = vmatprep.subr.mxu0 0.0
        %3786 = vmatpush1.msra.mxu0 0.0
        %3787 = vmatprep.subr.mxu0 0.0
        %3788 = vmatpush1.msra.mxu0 0.0
        %3789 = vmatprep.subr.mxu0 0.0
        %3790 = vmatpush1.msra.mxu0 0.0
        %3791 = vmatprep.subr.mxu0 0.0
        %3792 = vmatpush1.msra.mxu0 0.0
        %3793 = vmatprep.subr.mxu0 0.0
        %3794 = vmatpush1.msra.mxu0 0.0
        %3795 = vmatprep.subr.mxu0 0.0
        %3796 = vmatpush1.msra.mxu0 0.0
        %3797 = vmatprep.subr.mxu0 0.0
        %3798 = vmatpush1.msra.mxu0 0.0
        %3799 = vmatprep.subr.mxu0 0.0
        %3800 = vmatpush1.msra.mxu0 0.0
        %3801 = vmatprep.subr.mxu0 0.0
        %3802 = vmatpush1.msra.mxu0 0.0
        %3803 = vmatprep.subr.mxu0 0.0
        %3804 = vmatpush1.msra.mxu0 0.0
        %3805 = vmatprep.subr.mxu0 0.0
        %3806 = vmatpush1.msra.mxu0 0.0
        %3807 = vmatprep.subr.mxu0 0.0
        %3808 = vmatpush1.msra.mxu0 0.0
        %3809 = vmatprep.subr.mxu0 0.0
        %3810 = vmatpush1.msra.mxu0 0.0
        %3811 = vmatprep.subr.mxu0 0.0
        %3812 = vmatpush1.msra.mxu0 0.0
        %3813 = vmatprep.subr.mxu0 0.0
        %3814 = vmatpush1.msra.mxu0 0.0
        %3815 = vmatprep.subr.mxu0 0.0
        %3816 = vmatpush1.msra.mxu0 0.0
        %3817 = vmatprep.subr.mxu0 0.0
        %3818 = vmatpush1.msra.mxu0 0.0
        %3819 = vmatprep.subr.mxu0 0.0
        %3820 = vmatpush1.msra.mxu0 0.0
        %3821 = vmatprep.subr.mxu0 0.0
        %3822 = vmatpush1.msra.mxu0 0.0
        %3823 = vmatprep.subr.mxu0 0.0
        %3824 = vmatpush1.msra.mxu0 0.0
        %3825 = vmatprep.subr.mxu0 0.0
        %3826 = vmatpush1.msra.mxu0 0.0
        %3827 = vmatprep.subr.mxu0 0.0
        %3828 = vmatpush1.msra.mxu0 0.0
        %3829 = vmatprep.mubr.f32.mxu0 0.0
        %3830 = vmatmul.mubr.f32.gmra.mrb[0].mxu0 %v1078
        %v3831 = vpop.f32.mrb[0].mxu0
        %v3832 = vadd.f32 0.0, %v3831
        %v3833 = vpop.f32.mrb[0].mxu0
        %v3834 = vadd.f32 0.0, %v3833
        %3835 = vmatprep.mubr.f32.mxu0 0.0
        %3836 = vmatmul.mubr.f32.gmra.mrb[0].mxu0 %v1081
        %v3837 = vpop.f32.mrb[0].mxu0
        %v3838 = vadd.f32 0.0, %v3837
        %v3839 = vpop.f32.mrb[0].mxu0
        %v3840 = vadd.f32 0.0, %v3839
        %3841 = vmatprep.mubr.f32.mxu0 0.0
        %3842 = vmatmul.mubr.f32.gmra.mrb[0].mxu0 %v1084
        %v3843 = vpop.f32.mrb[0].mxu0
        %v3844 = vadd.f32 0.0, %v3843
        %v3845 = vpop.f32.mrb[0].mxu0
        %v3846 = vadd.f32 0.0, %v3845
        %3847 = vmatprep.mubr.f32.mxu0 0.0
        %3848 = vmatmul.mubr.f32.gmra.mrb[0].mxu0 %v1087
        %v3849 = vpop.f32.mrb[0].mxu0
        %v3850 = vadd.f32 0.0, %v3849
        %v3851 = vpop.f32.mrb[0].mxu0
        %v3852 = vadd.f32 0.0, %v3851
        %3853 = vdwg.mxu0
        %v3854 = vadd.f32 %v3757, %v3832
        %v3855 = vadd.f32 %v3758, %v3834
        %v3856 = vadd.f32 %v3759, %v3838
        %v3857 = vadd.f32 %v3760, %v3840
        %v3858 = vadd.f32 %v3761, %v3844
        %v3859 = vadd.f32 %v3762, %v3846
        %v3860 = vadd.f32 %v3763, %v3850
        %v3861 = vadd.f32 %v3764, %v3852
        %3862 = vrot.lane.b32.xlu0 %v720, 111
        %v3863 = vpop.permute.xlu0 %3862
        %3864 = vrot.lane.b32.xlu0 %v721, 111
        %v3865 = vpop.permute.xlu0 %3864
        %vm3866 = vcmp.lt.s32.totalorder %v203, 111
        %v3867 = vsel %vm3866, %v3863, %v3865
        %v3868 = vsel %vm3866, %v3865, %v3863
        %vm3869 = vmand %vm216, %vm220
        %vm3870 = vmand %vm217, %vm221
        %v3871 = vsel %vm3869, 1, 0
        %v3872 = vsel %vm3870, 1, 0
        %vm3873 = vcmp.eq.s32.totalorder %v3871, 1
        %vm3874 = vcmp.eq.s32.totalorder %v3872, 1
        %v3875 = vsel %vm3873, %v3867, 0.0
        %v3876 = vsel %vm3874, %v3868, 0.0
        %3877 = vmatprep.subr.mxu0 %v3876
        %3878 = vmatpush1.msra.mxu0 %v3875
        %3879 = vmatprep.subr.mxu0 0.0
        %3880 = vmatpush1.msra.mxu0 0.0
        %3881 = vmatprep.subr.mxu0 0.0
        %3882 = vmatpush1.msra.mxu0 0.0
        %3883 = vmatprep.subr.mxu0 0.0
        %3884 = vmatpush1.msra.mxu0 0.0
        %3885 = vmatprep.subr.mxu0 0.0
        %3886 = vmatpush1.msra.mxu0 0.0
        %3887 = vmatprep.subr.mxu0 0.0
        %3888 = vmatpush1.msra.mxu0 0.0
        %3889 = vmatprep.subr.mxu0 0.0
        %3890 = vmatpush1.msra.mxu0 0.0
        %3891 = vmatprep.subr.mxu0 0.0
        %3892 = vmatpush1.msra.mxu0 0.0
        %3893 = vmatprep.subr.mxu0 0.0
        %3894 = vmatpush1.msra.mxu0 0.0
        %3895 = vmatprep.subr.mxu0 0.0
        %3896 = vmatpush1.msra.mxu0 0.0
        %3897 = vmatprep.subr.mxu0 0.0
        %3898 = vmatpush1.msra.mxu0 0.0
        %3899 = vmatprep.subr.mxu0 0.0
        %3900 = vmatpush1.msra.mxu0 0.0
        %3901 = vmatprep.subr.mxu0 0.0
        %3902 = vmatpush1.msra.mxu0 0.0
        %3903 = vmatprep.subr.mxu0 0.0
        %3904 = vmatpush1.msra.mxu0 0.0
        %3905 = vmatprep.subr.mxu0 0.0
        %3906 = vmatpush1.msra.mxu0 0.0
        %3907 = vmatprep.subr.mxu0 0.0
        %3908 = vmatpush1.msra.mxu0 0.0
        %3909 = vmatprep.subr.mxu0 0.0
        %3910 = vmatpush1.msra.mxu0 0.0
        %3911 = vmatprep.subr.mxu0 0.0
        %3912 = vmatpush1.msra.mxu0 0.0
        %3913 = vmatprep.subr.mxu0 0.0
        %3914 = vmatpush1.msra.mxu0 0.0
        %3915 = vmatprep.subr.mxu0 0.0
        %3916 = vmatpush1.msra.mxu0 0.0
        %3917 = vmatprep.subr.mxu0 0.0
        %3918 = vmatpush1.msra.mxu0 0.0
        %3919 = vmatprep.subr.mxu0 0.0
        %3920 = vmatpush1.msra.mxu0 0.0
        %3921 = vmatprep.subr.mxu0 0.0
        %3922 = vmatpush1.msra.mxu0 0.0
        %3923 = vmatprep.subr.mxu0 0.0
        %3924 = vmatpush1.msra.mxu0 0.0
        %3925 = vmatprep.subr.mxu0 0.0
        %3926 = vmatpush1.msra.mxu0 0.0
        %3927 = vmatprep.subr.mxu0 0.0
        %3928 = vmatpush1.msra.mxu0 0.0
        %3929 = vmatprep.subr.mxu0 0.0
        %3930 = vmatpush1.msra.mxu0 0.0
        %3931 = vmatprep.subr.mxu0 0.0
        %3932 = vmatpush1.msra.mxu0 0.0
        %3933 = vmatprep.subr.mxu0 0.0
        %3934 = vmatpush1.msra.mxu0 0.0
        %3935 = vmatprep.subr.mxu0 0.0
        %3936 = vmatpush1.msra.mxu0 0.0
        %3937 = vmatprep.subr.mxu0 0.0
        %3938 = vmatpush1.msra.mxu0 0.0
        %3939 = vmatprep.subr.mxu0 0.0
        %3940 = vmatpush1.msra.mxu0 0.0
        %3941 = vmatprep.mubr.f32.mxu0 0.0
        %3942 = vmatmul.mubr.f32.gmra.mrb[0].mxu0 %v1192
        %v3943 = vpop.f32.mrb[0].mxu0
        %v3944 = vadd.f32 0.0, %v3943
        %v3945 = vpop.f32.mrb[0].mxu0
        %v3946 = vadd.f32 0.0, %v3945
        %3947 = vmatprep.mubr.f32.mxu0 0.0
        %3948 = vmatmul.mubr.f32.gmra.mrb[0].mxu0 %v1195
        %v3949 = vpop.f32.mrb[0].mxu0
        %v3950 = vadd.f32 0.0, %v3949
        %v3951 = vpop.f32.mrb[0].mxu0
        %v3952 = vadd.f32 0.0, %v3951
        %3953 = vmatprep.mubr.f32.mxu0 0.0
        %3954 = vmatmul.mubr.f32.gmra.mrb[0].mxu0 %v1198
        %v3955 = vpop.f32.mrb[0].mxu0
        %v3956 = vadd.f32 0.0, %v3955
        %v3957 = vpop.f32.mrb[0].mxu0
        %v3958 = vadd.f32 0.0, %v3957
        %3959 = vmatprep.mubr.f32.mxu0 0.0
        %3960 = vmatmul.mubr.f32.gmra.mrb[0].mxu0 %v1201
        %v3961 = vpop.f32.mrb[0].mxu0
        %v3962 = vadd.f32 0.0, %v3961
        %v3963 = vpop.f32.mrb[0].mxu0
        %v3964 = vadd.f32 0.0, %v3963
        %3965 = vdwg.mxu0
        %v3966 = vadd.f32 %v3854, %v3944
        %v3967 = vadd.f32 %v3855, %v3946
        %v3968 = vadd.f32 %v3856, %v3950
        %v3969 = vadd.f32 %v3857, %v3952
        %v3970 = vadd.f32 %v3858, %v3956
        %v3971 = vadd.f32 %v3859, %v3958
        %v3972 = vadd.f32 %v3860, %v3962
        %v3973 = vadd.f32 %v3861, %v3964
        %v3974 = vmax.f32 %v3094, %v3966
        %v3975 = vmax.f32 %v3095, %v3967
        %v3976 = vmax.f32 %v3096, %v3968
        %v3977 = vmax.f32 %v3097, %v3969
        %v3978 = vmax.f32 %v3098, %v3970
        %v3979 = vmax.f32 %v3099, %v3971
        %v3980 = vmax.f32 %v3100, %v3972
        %v3981 = vmax.f32 %v3101, %v3973
        %v3982 = vld [vmem:[%s2] sm:$0xff]
        %v3983 = vld [vmem:[%s2 + $0x8] sm:$0xff]
        %v3984 = vld [vmem:[%s2 + $0x10] sm:$0xff]
        %v3985 = vld [vmem:[%s2 + $0x18] sm:$0xff]
        %3987 = vset.pattern.permute.xlu0 0
        %3988 = vperm.xlu0 %3987, %v3982
        %v3989 = vpop.permute.xlu0 %3988
        %3992 = vset.pattern.permute.xlu0 0
        %3993 = vperm.xlu0 %3992, %v3983
        %v3994 = vpop.permute.xlu0 %3993
        %3997 = vset.pattern.permute.xlu0 0
        %3998 = vperm.xlu0 %3997, %v3984
        %v3999 = vpop.permute.xlu0 %3998
        %4002 = vset.pattern.permute.xlu0 0
        %4003 = vperm.xlu0 %4002, %v3985
        %v4004 = vpop.permute.xlu0 %4003
        %v4006 = vadd.f32 %v3974, %v3989
        %v4007 = vadd.f32 %v3975, %v3989
        %v4008 = vadd.f32 %v3976, %v3994
        %v4009 = vadd.f32 %v3977, %v3994
        %v4010 = vadd.f32 %v3978, %v3999
        %v4011 = vadd.f32 %v3979, %v3999
        %v4012 = vadd.f32 %v3980, %v4004
        %v4013 = vadd.f32 %v3981, %v4004
        %v4014 = vtanh.pop %v4006
        %v4015 = vtanh.pop %v4007
        %v4016 = vtanh.pop %v4008
        %v4017 = vtanh.pop %v4009
        %v4018 = vtanh.pop %v4010
        %v4019 = vtanh.pop %v4011
        %v4020 = vtanh.pop %v4012
        %v4021 = vtanh.pop %v4013
        %4022 = vst [vmem:[%s198] sm:$0xff] %v4014
        %4023 = vst [vmem:[%s198 + $0x8] sm:$0xff] %v4015
        %4024 = vst [vmem:[%s198 + $0x10] sm:$0xff] %v4016
        %4025 = vst [vmem:[%s198 + $0x18] sm:$0xff] %v4017
        %4026 = vst [vmem:[%s198 + $0x20] sm:$0xff] %v4018
        %4027 = vst [vmem:[%s198 + $0x28] sm:$0xff] %v4019
        %4028 = vst [vmem:[%s198 + $0x30] sm:$0xff] %v4020
        %4029 = vst [vmem:[%s198 + $0x38] sm:$0xff] %v4021
        %s4030 = sand.u32 %s90, 1
        %s4031 = sand.u32 %s90, 1
        %s4032 = smul.addr %s4031, 64
        %s4033 = scalar_lea.vmem [#allocation3], %s4032
        // Predicated region
        $region56: #{net_width_forward.3} parent=50 // pred_check
          %p4034 = pneg %p100
        $region57: #{net_width_forward.3} parent=50 // pred_check_branch
          %4036 = sbr.rel (%p4034) target = $region59
        $region58: #{net_width_forward.3} parent=50 // pred_region
          %s4037 = smul.u32 2, %s14
          %s4038 = smul.addr %s4037, 8
          %s4039 = scalar_lea.vmem %s3, %s4038
          // Predicated region
          $region60: #{net_width_forward.3} parent=58 // pred_check
            _
          $region61: #{net_width_forward.3} parent=58 // pred_check_branch
            %4041 = sbr.rel (0) target = $region63
          $region62: #{net_width_forward.3} parent=58 // pred_region
            // Predicated region
            $region64: #{net_width_forward.3} parent=62 // pred_check
              _
            $region65: #{net_width_forward.3} parent=62 // pred_check_branch
              %4043 = sbr.rel (0) target = $region67
            $region66: #{net_width_forward.3} parent=62 // pred_region
              loop: start=0, step=1, limit=1
              $region68: #{net_width_forward.3} parent=66 // loop_pre_header
                _
              $region69: #{net_width_forward.3} parent=66 // loop_header
                %s4045 = sphi 0, %s4049
                %p4046 = scmp.ge.s32.totalorder %s4045, 1
                %s4050 = sphi %s4033, %s4033
                %s4051 = sphi %s4039, %s4039
              $region70: #{net_width_forward.3} parent=66 // loop_header_branch
                %4048 = sbr.rel (%p4046) target = $region74
              $region71: #{net_width_forward.3} parent=66 // loop_body
                %v4052 = vld [vmem:[%s4050] sm:$0xff]
                %4053 = vst [vmem:[%s4051] sm:$0xff] %v4052
                %v4054 = vld [vmem:[%s4050 + $0x8] sm:$0xff]
                %4055 = vst [vmem:[%s4051 + $0x8] sm:$0xff] %v4054
                %v4056 = vld [vmem:[%s4050 + $0x10] sm:$0xff]
                %4057 = vst [vmem:[%s4051 + $0x20] sm:$0xff] %v4056
                %v4058 = vld [vmem:[%s4050 + $0x18] sm:$0xff]
                %4059 = vst [vmem:[%s4051 + $0x28] sm:$0xff] %v4058
                %v4060 = vld [vmem:[%s4050 + $0x20] sm:$0xff]
                %4061 = vst [vmem:[%s4051 + $0x40] sm:$0xff] %v4060
                %v4062 = vld [vmem:[%s4050 + $0x28] sm:$0xff]
                %4063 = vst [vmem:[%s4051 + $0x48] sm:$0xff] %v4062
                %v4064 = vld [vmem:[%s4050 + $0x30] sm:$0xff]
                %4065 = vst [vmem:[%s4051 + $0x60] sm:$0xff] %v4064
                %v4066 = vld [vmem:[%s4050 + $0x38] sm:$0xff]
                %4067 = vst [vmem:[%s4051 + $0x68] sm:$0xff] %v4066
              $region72: #{net_width_forward.3} parent=66 // loop_footer
                %s4049 = sadd.s32 1, %s4045
              $region73: #{net_width_forward.3} parent=66 // loop_footer_branch
                %4044 = sbr.rel target = $region69
              $region74: #{net_width_forward.3} parent=66 // loop_exit
                _
            $region67: #{net_width_forward.3} parent=62 // pred_fallthru
              _
            // Predicated region
            $region75: #{net_width_forward.3} parent=62 // pred_check
              _
            $region76: #{net_width_forward.3} parent=62 // pred_check_branch
              %4069 = sbr.rel target = $region78
            $region77: #{net_width_forward.3} parent=62 // pred_region
              _
            $region78: #{net_width_forward.3} parent=62 // pred_fallthru
              _
          $region63: #{net_width_forward.3} parent=58 // pred_fallthru
            _
          %4070 = vnop
        $region59: #{net_width_forward.3} parent=50 // pred_fallthru
          _
      $region51: #{net_width_forward.3} parent=5 // pred_fallthru
        _
      %p4071 = scmp.le.s32.totalorder 2, %s9
      // Predicated region
      $region79: #{net_width_forward.3} parent=5 // pred_check
        %p4072 = pneg %p4071
      $region80: #{net_width_forward.3} parent=5 // pred_check_branch
        %4074 = sbr.rel (%p4072) target = $region82
      $region81: #{net_width_forward.3} parent=5 // pred_region
        %s4075 = ssub.s32 %s9, 2
        // Predicated region
        $region83: #{net_width_forward.3} parent=81 // pred_check
          %p4076 = pneg %p106
        $region84: #{net_width_forward.3} parent=81 // pred_check_branch
          %4078 = sbr.rel (%p4076) target = $region86
        $region85: #{net_width_forward.3} parent=81 // pred_region
          %s4079 = sand.u32 %s91, 1
          %s4080 = sand.u32 %s91, 1
          %s4081 = smul.addr %s4080, 64
          %s4082 = scalar_lea.vmem [#allocation3], %s4081
        $region86: #{net_width_forward.3} parent=81 // pred_fallthru
          _
      $region82: #{net_width_forward.3} parent=5 // pred_fallthru
        _
    $region6: #{net_width_forward.3} parent=1 // loop_footer
      %s13 = sadd.s32 1, %s9
    $region7: #{net_width_forward.3} parent=1 // loop_footer_branch
      %8 = sbr.rel target = $region3
    $region8: #{net_width_forward.3} parent=1 // loop_exit
      _

</llo_original>
